<compile_context>
chip_gen: v5e
topology: v5e:2x2
jax: 0.10.0
libtpu: 0.0.40
codegen_flags: <defaults>
</compile_context>

<pallas_src>
import jax
import jax.numpy as jnp
from jax import lax
from jax.experimental import pallas as pl
from jax.experimental.pallas import tpu as pltpu

# ---- model hyper-parameters (fixed by the module definition) ----
W = 16        # window_size (small for the demo)
B = 2         # batch
BP = 8        # batch padded to sublane multiple
K = 4         # conv kernel size
C_OUT = 16    # conv out channels
H1 = 64       # lstm_1 hidden size
H2 = 128      # lstm_2 hidden size

F32 = jnp.float32
BF16 = jnp.bfloat16


# --------------------------------------------------------------------------
# Pallas kernel
# --------------------------------------------------------------------------
def _fused_bilstm(xp_ref, whh_ref, hid, store_fn):
  """Fused forward+backward LSTM recurrence over W steps.

  xp_ref : (W*BP, 8*hid) f32 input pre-activations in fused gate-column layout
           [i_f i_b | f_f f_b | o_f o_b | g_f g_b]; i/f/o columns pre-scaled
           by 0.5 (wrapper) so a single tanh implements sigmoid. Row block t
           holds fwd-proj(time t) + bwd-proj(time W-1-t), biases included.
  whh_ref: (2*hid, 8*hid) bf16 block-diagonal recurrent weights, same column
           layout and prescale (rows 0:hid drive fwd cols, hid:2*hid bwd).
  store_fn(i, h): consume h = [h_f(time i) | h_b(time W-1-i)], (BP, 2*hid) f32.
  """
  whh = whh_ref[...]                        # hoisted: one load for all 16 steps
  h = jnp.zeros((BP, 2 * hid), F32)
  c = jnp.zeros((BP, 2 * hid), F32)
  for i in range(W):                        # static unroll: W is fixed
    row = i * BP
    z = xp_ref[row:row + BP, :]
    if i > 0:                               # h == 0 at step 0: skip the matmul
      z = z + jnp.dot(h.astype(BF16), whh, preferred_element_type=F32)
    t = jnp.tanh(z)                         # single EUP slab for all 8 gates
    gates = 0.5 * t[:, :6 * hid] + 0.5      # == sigmoid of original i/f/o preacts
    g = t[:, 6 * hid:]
    ig = gates[:, 0:2 * hid]
    fg = gates[:, 2 * hid:4 * hid]
    og = gates[:, 4 * hid:6 * hid]
    c = fg * c + ig * g
    h = og * jnp.tanh(c)
    store_fn(i, h)


def bilstm_kernel(
    cols_ref, wfold_ref, bfold_ref, w1hh_ref,
    w2in_hbm, w2hh_hbm, b2_ref,
    fc1w_hbm, fc1b_ref, fc2w_ref, fc2b_ref,
    out_ref,
    w2in_v, w2hh_v, fc1w_v, sems,
    xp1, xin2, xp2, flat):
  # ---- start the big weight DMAs; they overlap conv fold + layer 1 ----------
  cp_w2in = pltpu.make_async_copy(w2in_hbm, w2in_v, sems.at[0])
  cp_w2in.start()
  cp_w2hh = pltpu.make_async_copy(w2hh_hbm, w2hh_v, sems.at[1])
  cp_w2hh.start()
  cp_fc1w = pltpu.make_async_copy(fc1w_hbm, fc1w_v, sems.at[2])
  cp_fc1w.start()

  # ---- Conv1d('same', k=4) folded with the layer-1 input projections --------
  xp1[...] = jnp.dot(cols_ref[...], wfold_ref[...],
                     preferred_element_type=F32) + bfold_ref[...]

  # ---- Layer 1: fused (fwd+bwd) recurrence -----------------------------------
  # xin2 row t columns: [h_f(t) | h_b(W-1-t) | h_f(W-1-t) | h_b(t)]
  # (w2in rows reordered in the wrapper to match -> no per-step roll needed).
  def store_l1(i, h):
    j = W - 1 - i
    hb = h.astype(BF16)
    xin2[i * BP:(i + 1) * BP, 0:2 * H1] = hb
    xin2[j * BP:(j + 1) * BP, 2 * H1:4 * H1] = hb

  _fused_bilstm(xp1, w1hh_ref, H1, store_l1)

  # ---- Layer 2: merged input projection, one (W*BP,256)@(256,1024) matmul ----
  cp_w2in.wait()
  xp2[...] = jnp.dot(xin2[...], w2in_v[...],
                     preferred_element_type=F32) + b2_ref[...]

  cp_w2hh.wait()

  # Layer-2 hidden states stream straight into the flattened fc_1 input slab
  # (BP, W*256) at 128-lane-aligned column offsets.
  def store_l2(i, h):
    j = W - 1 - i
    hb = h.astype(BF16)
    flat[:, i * (2 * H2): i * (2 * H2) + H2] = hb[:, :H2]
    flat[:, j * (2 * H2) + H2: (j + 1) * (2 * H2)] = hb[:, H2:]

  _fused_bilstm(xp2, w2hh_v, H2, store_l2)

  # ---- fc_1 (single matmul over the flattened slab) + tanh + fc_2 ------------
  cp_fc1w.wait()
  hfc = jnp.tanh(jnp.dot(flat[...], fc1w_v[...],
                         preferred_element_type=F32) + fc1b_ref[...])
  out_ref[...] = jnp.dot(hfc.astype(BF16), fc2w_ref[...],
                         preferred_element_type=F32) + fc2b_ref[...]


# --------------------------------------------------------------------------
# One-time parameter packing (hoisted out of the per-call path)
# --------------------------------------------------------------------------
def _fuse_gate_cols(wT, hid, is_bwd):
  """wT: (n, 4*hid), PyTorch gate column order [i|f|g|o].

  Returns (n, 8*hid) in the fused column layout
  [i_f i_b | f_f f_b | o_f o_b | g_f g_b]; the other direction's blocks are 0.
  """
  i_g = wT[:, 0 * hid:1 * hid]
  f_g = wT[:, 1 * hid:2 * hid]
  g_g = wT[:, 2 * hid:3 * hid]
  o_g = wT[:, 3 * hid:4 * hid]
  z = jnp.zeros_like(i_g)
  blocks = []
  for blk in (i_g, f_g, o_g, g_g):
    blocks.extend([z, blk] if is_bwd else [blk, z])
  return jnp.concatenate(blocks, axis=1)


def _prescale(w, hid):
  # i/f/o columns * 0.5 so sigmoid(x) = 0.5*tanh(0.5*x)+0.5 becomes a single
  # tanh over the whole gate slab inside the kernel.
  return jnp.concatenate([0.5 * w[:, :6 * hid], w[:, 6 * hid:]], axis=1)


def pack_params(P):
  """Pack/fold/prescale all weights once, at load time."""
  # ---- layer-1 fused gate-column weights ----
  w1f_in = _fuse_gate_cols(P['l1f_wih'].T, H1, False)       # (16, 512)
  w1b_in = _fuse_gate_cols(P['l1b_wih'].T, H1, True)        # (16, 512)
  b1 = (_fuse_gate_cols((P['l1f_bih'] + P['l1f_bhh'])[None, :], H1, False)
        + _fuse_gate_cols((P['l1b_bih'] + P['l1b_bhh'])[None, :], H1, True))
  cw = P['conv_w'][:, 0, :].T                               # (K, 16)
  cb = P['conv_b'][None, :]                                 # (1, 16)
  # fold conv into the layer-1 input projection: (2K, 512) weight, (1, 512) bias
  wfold = jnp.concatenate([cw @ w1f_in, cw @ w1b_in], axis=0)
  bfold = cb @ w1f_in + cb @ w1b_in + b1
  w1hh = jnp.concatenate(
      [_fuse_gate_cols(P['l1f_whh'].T, H1, False),
       _fuse_gate_cols(P['l1b_whh'].T, H1, True)], axis=0)  # (128, 512)

  # ---- layer-2 fused weights ----
  w2f_fc = _fuse_gate_cols(P['l2f_wih'].T, H2, False)       # (128, 1024)
  w2b_fc = _fuse_gate_cols(P['l2b_wih'].T, H2, True)        # (128, 1024)
  # xin2 row t columns: [h_f(t) | h_b(W-1-t) | h_f(W-1-t) | h_b(t)]
  # -> w2in rows: [w2f[:H1] | w2b[H1:] | w2b[:H1] | w2f[H1:]] (no in-kernel roll)
  w2in = jnp.concatenate(
      [w2f_fc[:H1], w2b_fc[H1:], w2b_fc[:H1], w2f_fc[H1:]], axis=0)  # (256,1024)
  w2hh = jnp.concatenate(
      [_fuse_gate_cols(P['l2f_whh'].T, H2, False),
       _fuse_gate_cols(P['l2b_whh'].T, H2, True)], axis=0)  # (256, 1024)
  b2 = (_fuse_gate_cols((P['l2f_bih'] + P['l2f_bhh'])[None, :], H2, False)
        + _fuse_gate_cols((P['l2b_bih'] + P['l2b_bhh'])[None, :], H2, True))

  wfold = _prescale(wfold, H1)
  bfold = _prescale(bfold, H1)
  w1hh = _prescale(w1hh, H1)
  w2in = _prescale(w2in, H2)
  b2 = _prescale(b2, H2)
  w2hh = _prescale(w2hh, H2)

  # ---- fully connected (fc_2 lane-padded to 128) ----
  fc1w = P['fc1_w'].T                                       # (4096, 128)
  fc1b = P['fc1_b'][None, :]                                # (1, 128)
  fc2w = jnp.pad(P['fc2_w'].T, ((0, 0), (0, 128 - W)))      # (128, 128)
  fc2b = jnp.pad(P['fc2_b'], (0, 128 - W))[None, :]         # (1, 128)

  return dict(
      wfold=wfold.astype(F32), bfold=bfold.astype(F32),
      w1hh=w1hh.astype(BF16),
      w2in=w2in.astype(BF16), w2hh=w2hh.astype(BF16), b2=b2.astype(F32),
      fc1w=fc1w.astype(BF16), fc1b=fc1b.astype(F32),
      fc2w=fc2w.astype(BF16), fc2b=fc2b.astype(F32))


# --------------------------------------------------------------------------
# Jitted forward: im2col of x + pallas_call only
# --------------------------------------------------------------------------
@jax.jit
def bilstm_nilm_forward(x, packed):
  """x: (B, 1, W) float32  ->  (B, 1, W) float32 (seq2seq)."""
  b_in = x.shape[0]
  xs = jnp.pad(x[:, 0, :], ((0, BP - b_in), (0, 0)))          # (BP, W)
  # PyTorch Conv1d(padding='same', k=4): pad left=1, right=2.
  xpad = jnp.pad(xs, ((0, 0), (1, 2)))                        # (BP, W+3)
  cols = jnp.stack([xpad[:, k:k + W] for k in range(K)], axis=-1)   # (BP, W, K)
  cols_tm = jnp.transpose(cols, (1, 0, 2)).reshape(W * BP, K)       # time-major
  cols_rev = jnp.transpose(cols[:, ::-1, :], (1, 0, 2)).reshape(W * BP, K)
  cols2 = jnp.concatenate([cols_tm, cols_rev], axis=1)              # (W*BP, 2K)

  vmem = pl.BlockSpec(memory_space=pltpu.MemorySpace.VMEM)
  hbm = pl.BlockSpec(memory_space=pl.ANY)

  out = pl.pallas_call(
      bilstm_kernel,
      out_shape=jax.ShapeDtypeStruct((BP, 128), F32),
      in_specs=[vmem, vmem, vmem, vmem,      # cols2, wfold, bfold, w1hh
                hbm, hbm, vmem,              # w2in (DMA), w2hh (DMA), b2
                hbm, vmem, vmem, vmem],      # fc1w (DMA), fc1b, fc2w, fc2b
      out_specs=vmem,
      scratch_shapes=[
          pltpu.VMEM((4 * H1, 8 * H2), BF16),     # w2in VMEM landing buffer
          pltpu.VMEM((2 * H2, 8 * H2), BF16),     # w2hh VMEM landing buffer
          pltpu.VMEM((W * 2 * H2, 128), BF16),    # fc1w VMEM landing buffer
          pltpu.SemaphoreType.DMA((3,)),          # DMA completion semaphores
          pltpu.VMEM((W * BP, 8 * H1), F32),      # xp1
          pltpu.VMEM((W * BP, 4 * H1), BF16),     # xin2
          pltpu.VMEM((W * BP, 8 * H2), F32),      # xp2
          pltpu.VMEM((BP, W * 2 * H2), BF16),     # flat fc_1 input slab
      ],
  )(cols2, packed['wfold'], packed['bfold'], packed['w1hh'],
    packed['w2in'], packed['w2hh'], packed['b2'],
    packed['fc1w'], packed['fc1b'], packed['fc2w'], packed['fc2b'])

  return out[:b_in, :W][:, None, :]            # (B, 1, W) == unsqueeze(1)


# --------------------------------------------------------------------------
# Pure-JAX reference (for verification only)
# --------------------------------------------------------------------------
def _lstm_bidir_ref(x_seq, pf, pb, hid):
  def run(x_seq, w_ih, w_hh, b_ih, b_hh, reverse):
    bn = x_seq.shape[0]
    xs = jnp.swapaxes(x_seq, 0, 1)
    if reverse:
      xs = xs[::-1]

    def step(carry, xt):
      h, c = carry
      z = xt @ w_ih.T + h @ w_hh.T + b_ih + b_hh
      i = jax.nn.sigmoid(z[:, :hid])
      f = jax.nn.sigmoid(z[:, hid:2 * hid])
      g = jnp.tanh(z[:, 2 * hid:3 * hid])
      o = jax.nn.sigmoid(z[:, 3 * hid:])
      c = f * c + i * g
      h = o * jnp.tanh(c)
      return (h, c), h

    init = (jnp.zeros((bn, hid), F32), jnp.zeros((bn, hid), F32))
    _, hs = lax.scan(step, init, xs)
    if reverse:
      hs = hs[::-1]
    return jnp.swapaxes(hs, 0, 1)

  hf = run(x_seq, *pf, reverse=False)
  hb = run(x_seq, *pb, reverse=True)
  return jnp.concatenate([hf, hb], axis=-1)


def reference_forward(x, P):
  xs = x[:, 0, :]
  xpad = jnp.pad(xs, ((0, 0), (1, 2)))
  cols = jnp.stack([xpad[:, k:k + W] for k in range(K)], axis=-1)
  conv = jnp.einsum('btk,ok->bto', cols, P['conv_w'][:, 0, :]) + P['conv_b']
  h1 = _lstm_bidir_ref(
      conv,
      (P['l1f_wih'], P['l1f_whh'], P['l1f_bih'], P['l1f_bhh']),
      (P['l1b_wih'], P['l1b_whh'], P['l1b_bih'], P['l1b_bhh']), H1)
  h2 = _lstm_bidir_ref(
      h1,
      (P['l2f_wih'], P['l2f_whh'], P['l2f_bih'], P['l2f_bhh']),
      (P['l2b_wih'], P['l2b_whh'], P['l2b_bih'], P['l2b_bhh']), H2)
  flat = h2.reshape(x.shape[0], W * 2 * H2)
  fc1 = jnp.tanh(flat @ P['fc1_w'].T + P['fc1_b'])
  out = fc1 @ P['fc2_w'].T + P['fc2_b']
  return out[:, None, :]


# --------------------------------------------------------------------------
# Deterministic parameter construction + run
# --------------------------------------------------------------------------
def make_params(key):
  shapes = {
      'conv_w': (C_OUT, 1, K), 'conv_b': (C_OUT,),
      'l1f_wih': (4 * H1, C_OUT), 'l1f_whh': (4 * H1, H1),
      'l1f_bih': (4 * H1,), 'l1f_bhh': (4 * H1,),
      'l1b_wih': (4 * H1, C_OUT), 'l1b_whh': (4 * H1, H1),
      'l1b_bih': (4 * H1,), 'l1b_bhh': (4 * H1,),
      'l2f_wih': (4 * H2, 2 * H1), 'l2f_whh': (4 * H2, H2),
      'l2f_bih': (4 * H2,), 'l2f_bhh': (4 * H2,),
      'l2b_wih': (4 * H2, 2 * H1), 'l2b_whh': (4 * H2, H2),
      'l2b_bih': (4 * H2,), 'l2b_bhh': (4 * H2,),
      'fc1_w': (128, W * 2 * H2), 'fc1_b': (128,),
      'fc2_w': (W, 128), 'fc2_b': (W,),
  }
  keys = jax.random.split(key, len(shapes))
  return {
      name: jax.random.normal(k, shp, jnp.float32) * 0.1
      for (name, shp), k in zip(shapes.items(), keys)
  }


if __name__ == "__main__":
  root = jax.random.PRNGKey(0)
  k_params, k_x = jax.random.split(root)
  params = make_params(k_params)
  packed = pack_params(params)        # one-time packing (off the hot path)
  x = jax.random.normal(k_x, (B, 1, W), jnp.float32)

  out = jax.block_until_ready(bilstm_nilm_forward(x, packed))
  ref = jax.block_until_ready(reference_forward(x, params))

  assert out.shape == (B, 1, W), out.shape
  assert bool(jnp.all(jnp.isfinite(out)))
  # bf16 MXU operands through 2x16 serial LSTM steps + the fc stack accumulate
  # more error than the pure-f32 variant; tolerance widened accordingly
  # (reference is f32).
  err = float(jnp.max(jnp.abs(out - ref)))
  assert jnp.allclose(out, ref, rtol=5e-2, atol=5e-2), err
  print("KERNEL_OK")
</pallas_src>

<mosaic_0001>
module attributes {stable_mosaic.version = 11 : i64} {
  func.func @bilstm_kernel(%arg0: memref<128x8xf32, #tpu.memory_space<vmem>>, %arg1: memref<8x512xf32, #tpu.memory_space<vmem>>, %arg2: memref<1x512xf32, #tpu.memory_space<vmem>>, %arg3: memref<128x512xbf16, #tpu.memory_space<vmem>>, %arg4: memref<256x1024xbf16, #tpu.memory_space<any>>, %arg5: memref<256x1024xbf16, #tpu.memory_space<any>>, %arg6: memref<1x1024xf32, #tpu.memory_space<vmem>>, %arg7: memref<4096x128xbf16, #tpu.memory_space<any>>, %arg8: memref<1x128xf32, #tpu.memory_space<vmem>>, %arg9: memref<128x128xbf16, #tpu.memory_space<vmem>>, %arg10: memref<1x128xf32, #tpu.memory_space<vmem>>, %arg11: memref<8x128xf32, #tpu.memory_space<vmem>>, %arg12: memref<256x1024xbf16, #tpu.memory_space<vmem>>, %arg13: memref<256x1024xbf16, #tpu.memory_space<vmem>>, %arg14: memref<4096x128xbf16, #tpu.memory_space<vmem>>, %arg15: memref<3x!tpu.dma_semaphore, #tpu.memory_space<semaphore_mem>>, %arg16: memref<128x512xf32, #tpu.memory_space<vmem>>, %arg17: memref<128x256xbf16, #tpu.memory_space<vmem>>, %arg18: memref<128x1024xf32, #tpu.memory_space<vmem>>, %arg19: memref<8x4096xbf16, #tpu.memory_space<vmem>>) attributes {dimension_semantics = [], scalar_prefetch = 0 : i64, scratch_operands = 8 : i64, tpu.core_type = #tpu.core_type<tc>} {
    %c0_i32 = arith.constant 0 : i32
    %0 = tpu.memref_slice %arg15[%c0_i32] : memref<3x!tpu.dma_semaphore, #tpu.memory_space<semaphore_mem>> -> memref<1x!tpu.dma_semaphore, #tpu.memory_space<semaphore_mem>>
    %1 = tpu.memref_squeeze %0 : memref<1x!tpu.dma_semaphore, #tpu.memory_space<semaphore_mem>> -> memref<!tpu.dma_semaphore, #tpu.memory_space<semaphore_mem>>
    tpu.enqueue_dma source(%arg4 : memref<256x1024xbf16, #tpu.memory_space<any>>) target(%arg12 : memref<256x1024xbf16, #tpu.memory_space<vmem>>) target_semaphore(%1 : memref<!tpu.dma_semaphore, #tpu.memory_space<semaphore_mem>>)
    %c1_i32 = arith.constant 1 : i32
    %2 = tpu.memref_slice %arg15[%c1_i32] : memref<3x!tpu.dma_semaphore, #tpu.memory_space<semaphore_mem>> -> memref<1x!tpu.dma_semaphore, #tpu.memory_space<semaphore_mem>>
    %3 = tpu.memref_squeeze %2 : memref<1x!tpu.dma_semaphore, #tpu.memory_space<semaphore_mem>> -> memref<!tpu.dma_semaphore, #tpu.memory_space<semaphore_mem>>
    tpu.enqueue_dma source(%arg5 : memref<256x1024xbf16, #tpu.memory_space<any>>) target(%arg13 : memref<256x1024xbf16, #tpu.memory_space<vmem>>) target_semaphore(%3 : memref<!tpu.dma_semaphore, #tpu.memory_space<semaphore_mem>>)
    %c2_i32 = arith.constant 2 : i32
    %4 = tpu.memref_slice %arg15[%c2_i32] : memref<3x!tpu.dma_semaphore, #tpu.memory_space<semaphore_mem>> -> memref<1x!tpu.dma_semaphore, #tpu.memory_space<semaphore_mem>>
    %5 = tpu.memref_squeeze %4 : memref<1x!tpu.dma_semaphore, #tpu.memory_space<semaphore_mem>> -> memref<!tpu.dma_semaphore, #tpu.memory_space<semaphore_mem>>
    tpu.enqueue_dma source(%arg7 : memref<4096x128xbf16, #tpu.memory_space<any>>) target(%arg14 : memref<4096x128xbf16, #tpu.memory_space<vmem>>) target_semaphore(%5 : memref<!tpu.dma_semaphore, #tpu.memory_space<semaphore_mem>>)
    %c0 = arith.constant 0 : index
    %c0_0 = arith.constant 0 : index
    %6 = vector.load %arg0[%c0, %c0_0] : memref<128x8xf32, #tpu.memory_space<vmem>>, vector<128x8xf32>
    %c0_1 = arith.constant 0 : index
    %c0_2 = arith.constant 0 : index
    %7 = vector.load %arg1[%c0_1, %c0_2] : memref<8x512xf32, #tpu.memory_space<vmem>>, vector<8x512xf32>
    %cst = arith.constant dense<0.000000e+00> : vector<128x512xf32>
    %8 = tpu.matmul %6, %7, %cst {dimension_numbers = #tpu.dot_dimension_numbers<[1], [0], [0], [1], [0, 0, 1, 1], [], []>} : vector<128x8xf32>, vector<8x512xf32>, vector<128x512xf32> -> vector<128x512xf32>
    %c0_3 = arith.constant 0 : index
    %c0_4 = arith.constant 0 : index
    %9 = vector.load %arg2[%c0_3, %c0_4] : memref<1x512xf32, #tpu.memory_space<vmem>>, vector<1x512xf32>
    %10 = vector.broadcast %9 : vector<1x512xf32> to vector<128x512xf32>
    %11 = arith.addf %8, %10 : vector<128x512xf32>
    %c0_5 = arith.constant 0 : index
    %c0_6 = arith.constant 0 : index
    %12 = vector.load %arg16[%c0_5, %c0_6] : memref<128x512xf32, #tpu.memory_space<vmem>>, vector<128x512xf32>
    tpu.vector_store %arg16[%c0_5, %c0_6], %11 {strides = array<i32>} : memref<128x512xf32, #tpu.memory_space<vmem>>, vector<128x512xf32>,
    %c0_7 = arith.constant 0 : index
    %c0_8 = arith.constant 0 : index
    %13 = vector.load %arg3[%c0_7, %c0_8] : memref<128x512xbf16, #tpu.memory_space<vmem>>, vector<128x512xbf16>
    %cst_9 = arith.constant 0.000000e+00 : f32
    %14 = vector.broadcast %cst_9 : f32 to vector<8x128xf32>
    %c0_10 = arith.constant 0 : index
    %c0_11 = arith.constant 0 : index
    %15 = vector.load %arg16[%c0_10, %c0_11] : memref<128x512xf32, #tpu.memory_space<vmem>>, vector<8x512xf32>
    %16 = math.tanh %15 : vector<8x512xf32>
    %17 = vector.extract_strided_slice %16 {offsets = [0, 0], sizes = [8, 384], strides = [1, 1]} : vector<8x512xf32> to vector<8x384xf32>
    %cst_12 = arith.constant 5.000000e-01 : f32
    %18 = vector.broadcast %cst_12 : f32 to vector<8x384xf32>
    %19 = arith.mulf %18, %17 : vector<8x384xf32>
    %cst_13 = arith.constant 5.000000e-01 : f32
    %20 = vector.broadcast %cst_13 : f32 to vector<8x384xf32>
    %21 = arith.addf %19, %20 : vector<8x384xf32>
    %22 = vector.extract_strided_slice %16 {offsets = [0, 384], sizes = [8, 128], strides = [1, 1]} : vector<8x512xf32> to vector<8x128xf32>
    %23 = vector.extract_strided_slice %21 {offsets = [0, 0], sizes = [8, 128], strides = [1, 1]} : vector<8x384xf32> to vector<8x128xf32>
    %24 = vector.extract_strided_slice %21 {offsets = [0, 128], sizes = [8, 128], strides = [1, 1]} : vector<8x384xf32> to vector<8x128xf32>
    %25 = vector.extract_strided_slice %21 {offsets = [0, 256], sizes = [8, 128], strides = [1, 1]} : vector<8x384xf32> to vector<8x128xf32>
    %26 = arith.mulf %24, %14 : vector<8x128xf32>
    %27 = arith.mulf %23, %22 : vector<8x128xf32>
    %28 = arith.addf %26, %27 : vector<8x128xf32>
    %29 = math.tanh %28 : vector<8x128xf32>
    %30 = arith.mulf %25, %29 : vector<8x128xf32>
    %31 = arith.truncf %30 : vector<8x128xf32> to vector<8x128xbf16>
    %c0_14 = arith.constant 0 : index
    %c0_15 = arith.constant 0 : index
    %32 = vector.load %arg17[%c0_14, %c0_15] : memref<128x256xbf16, #tpu.memory_space<vmem>>, vector<8x128xbf16>
    tpu.vector_store %arg17[%c0_14, %c0_15], %31 {strides = array<i32>} : memref<128x256xbf16, #tpu.memory_space<vmem>>, vector<8x128xbf16>,
    %c120 = arith.constant 120 : index
    %c128 = arith.constant 128 : index
    %33 = vector.load %arg17[%c120, %c128] : memref<128x256xbf16, #tpu.memory_space<vmem>>, vector<8x128xbf16>
    tpu.vector_store %arg17[%c120, %c128], %31 {strides = array<i32>} : memref<128x256xbf16, #tpu.memory_space<vmem>>, vector<8x128xbf16>,
    %c8 = arith.constant 8 : index
    %c0_16 = arith.constant 0 : index
    %34 = vector.load %arg16[%c8, %c0_16] : memref<128x512xf32, #tpu.memory_space<vmem>>, vector<8x512xf32>
    %35 = arith.truncf %30 : vector<8x128xf32> to vector<8x128xbf16>
    %cst_17 = arith.constant dense<0.000000e+00> : vector<8x512xf32>
    %36 = tpu.matmul %35, %13, %cst_17 {dimension_numbers = #tpu.dot_dimension_numbers<[1], [0], [0], [1], [0, 0, 1, 1], [], []>} : vector<8x128xbf16>, vector<128x512xbf16>, vector<8x512xf32> -> vector<8x512xf32>
    %37 = arith.addf %34, %36 : vector<8x512xf32>
    %38 = math.tanh %37 : vector<8x512xf32>
    %39 = vector.extract_strided_slice %38 {offsets = [0, 0], sizes = [8, 384], strides = [1, 1]} : vector<8x512xf32> to vector<8x384xf32>
    %cst_18 = arith.constant 5.000000e-01 : f32
    %40 = vector.broadcast %cst_18 : f32 to vector<8x384xf32>
    %41 = arith.mulf %40, %39 : vector<8x384xf32>
    %cst_19 = arith.constant 5.000000e-01 : f32
    %42 = vector.broadcast %cst_19 : f32 to vector<8x384xf32>
    %43 = arith.addf %41, %42 : vector<8x384xf32>
    %44 = vector.extract_strided_slice %38 {offsets = [0, 384], sizes = [8, 128], strides = [1, 1]} : vector<8x512xf32> to vector<8x128xf32>
    %45 = vector.extract_strided_slice %43 {offsets = [0, 0], sizes = [8, 128], strides = [1, 1]} : vector<8x384xf32> to vector<8x128xf32>
    %46 = vector.extract_strided_slice %43 {offsets = [0, 128], sizes = [8, 128], strides = [1, 1]} : vector<8x384xf32> to vector<8x128xf32>
    %47 = vector.extract_strided_slice %43 {offsets = [0, 256], sizes = [8, 128], strides = [1, 1]} : vector<8x384xf32> to vector<8x128xf32>
    %48 = arith.mulf %46, %28 : vector<8x128xf32>
    %49 = arith.mulf %45, %44 : vector<8x128xf32>
    %50 = arith.addf %48, %49 : vector<8x128xf32>
    %51 = math.tanh %50 : vector<8x128xf32>
    %52 = arith.mulf %47, %51 : vector<8x128xf32>
    %53 = arith.truncf %52 : vector<8x128xf32> to vector<8x128xbf16>
    %c8_20 = arith.constant 8 : index
    %c0_21 = arith.constant 0 : index
    %54 = vector.load %arg17[%c8_20, %c0_21] : memref<128x256xbf16, #tpu.memory_space<vmem>>, vector<8x128xbf16>
    tpu.vector_store %arg17[%c8_20, %c0_21], %53 {strides = array<i32>} : memref<128x256xbf16, #tpu.memory_space<vmem>>, vector<8x128xbf16>,
    %c112 = arith.constant 112 : index
    %c128_22 = arith.constant 128 : index
    %55 = vector.load %arg17[%c112, %c128_22] : memref<128x256xbf16, #tpu.memory_space<vmem>>, vector<8x128xbf16>
    tpu.vector_store %arg17[%c112, %c128_22], %53 {strides = array<i32>} : memref<128x256xbf16, #tpu.memory_space<vmem>>, vector<8x128xbf16>,
    %c16 = arith.constant 16 : index
    %c0_23 = arith.constant 0 : index
    %56 = vector.load %arg16[%c16, %c0_23] : memref<128x512xf32, #tpu.memory_space<vmem>>, vector<8x512xf32>
    %57 = arith.truncf %52 : vector<8x128xf32> to vector<8x128xbf16>
    %cst_24 = arith.constant dense<0.000000e+00> : vector<8x512xf32>
    %58 = tpu.matmul %57, %13, %cst_24 {dimension_numbers = #tpu.dot_dimension_numbers<[1], [0], [0], [1], [0, 0, 1, 1], [], []>} : vector<8x128xbf16>, vector<128x512xbf16>, vector<8x512xf32> -> vector<8x512xf32>
    %59 = arith.addf %56, %58 : vector<8x512xf32>
    %60 = math.tanh %59 : vector<8x512xf32>
    %61 = vector.extract_strided_slice %60 {offsets = [0, 0], sizes = [8, 384], strides = [1, 1]} : vector<8x512xf32> to vector<8x384xf32>
    %cst_25 = arith.constant 5.000000e-01 : f32
    %62 = vector.broadcast %cst_25 : f32 to vector<8x384xf32>
    %63 = arith.mulf %62, %61 : vector<8x384xf32>
    %cst_26 = arith.constant 5.000000e-01 : f32
    %64 = vector.broadcast %cst_26 : f32 to vector<8x384xf32>
    %65 = arith.addf %63, %64 : vector<8x384xf32>
    %66 = vector.extract_strided_slice %60 {offsets = [0, 384], sizes = [8, 128], strides = [1, 1]} : vector<8x512xf32> to vector<8x128xf32>
    %67 = vector.extract_strided_slice %65 {offsets = [0, 0], sizes = [8, 128], strides = [1, 1]} : vector<8x384xf32> to vector<8x128xf32>
    %68 = vector.extract_strided_slice %65 {offsets = [0, 128], sizes = [8, 128], strides = [1, 1]} : vector<8x384xf32> to vector<8x128xf32>
    %69 = vector.extract_strided_slice %65 {offsets = [0, 256], sizes = [8, 128], strides = [1, 1]} : vector<8x384xf32> to vector<8x128xf32>
    %70 = arith.mulf %68, %50 : vector<8x128xf32>
    %71 = arith.mulf %67, %66 : vector<8x128xf32>
    %72 = arith.addf %70, %71 : vector<8x128xf32>
    %73 = math.tanh %72 : vector<8x128xf32>
    %74 = arith.mulf %69, %73 : vector<8x128xf32>
    %75 = arith.truncf %74 : vector<8x128xf32> to vector<8x128xbf16>
    %c16_27 = arith.constant 16 : index
    %c0_28 = arith.constant 0 : index
    %76 = vector.load %arg17[%c16_27, %c0_28] : memref<128x256xbf16, #tpu.memory_space<vmem>>, vector<8x128xbf16>
    tpu.vector_store %arg17[%c16_27, %c0_28], %75 {strides = array<i32>} : memref<128x256xbf16, #tpu.memory_space<vmem>>, vector<8x128xbf16>,
    %c104 = arith.constant 104 : index
    %c128_29 = arith.constant 128 : index
    %77 = vector.load %arg17[%c104, %c128_29] : memref<128x256xbf16, #tpu.memory_space<vmem>>, vector<8x128xbf16>
    tpu.vector_store %arg17[%c104, %c128_29], %75 {strides = array<i32>} : memref<128x256xbf16, #tpu.memory_space<vmem>>, vector<8x128xbf16>,
    %c24 = arith.constant 24 : index
    %c0_30 = arith.constant 0 : index
    %78 = vector.load %arg16[%c24, %c0_30] : memref<128x512xf32, #tpu.memory_space<vmem>>, vector<8x512xf32>
    %79 = arith.truncf %74 : vector<8x128xf32> to vector<8x128xbf16>
    %cst_31 = arith.constant dense<0.000000e+00> : vector<8x512xf32>
    %80 = tpu.matmul %79, %13, %cst_31 {dimension_numbers = #tpu.dot_dimension_numbers<[1], [0], [0], [1], [0, 0, 1, 1], [], []>} : vector<8x128xbf16>, vector<128x512xbf16>, vector<8x512xf32> -> vector<8x512xf32>
    %81 = arith.addf %78, %80 : vector<8x512xf32>
    %82 = math.tanh %81 : vector<8x512xf32>
    %83 = vector.extract_strided_slice %82 {offsets = [0, 0], sizes = [8, 384], strides = [1, 1]} : vector<8x512xf32> to vector<8x384xf32>
    %cst_32 = arith.constant 5.000000e-01 : f32
    %84 = vector.broadcast %cst_32 : f32 to vector<8x384xf32>
    %85 = arith.mulf %84, %83 : vector<8x384xf32>
    %cst_33 = arith.constant 5.000000e-01 : f32
    %86 = vector.broadcast %cst_33 : f32 to vector<8x384xf32>
    %87 = arith.addf %85, %86 : vector<8x384xf32>
    %88 = vector.extract_strided_slice %82 {offsets = [0, 384], sizes = [8, 128], strides = [1, 1]} : vector<8x512xf32> to vector<8x128xf32>
    %89 = vector.extract_strided_slice %87 {offsets = [0, 0], sizes = [8, 128], strides = [1, 1]} : vector<8x384xf32> to vector<8x128xf32>
    %90 = vector.extract_strided_slice %87 {offsets = [0, 128], sizes = [8, 128], strides = [1, 1]} : vector<8x384xf32> to vector<8x128xf32>
    %91 = vector.extract_strided_slice %87 {offsets = [0, 256], sizes = [8, 128], strides = [1, 1]} : vector<8x384xf32> to vector<8x128xf32>
    %92 = arith.mulf %90, %72 : vector<8x128xf32>
    %93 = arith.mulf %89, %88 : vector<8x128xf32>
    %94 = arith.addf %92, %93 : vector<8x128xf32>
    %95 = math.tanh %94 : vector<8x128xf32>
    %96 = arith.mulf %91, %95 : vector<8x128xf32>
    %97 = arith.truncf %96 : vector<8x128xf32> to vector<8x128xbf16>
    %c24_34 = arith.constant 24 : index
    %c0_35 = arith.constant 0 : index
    %98 = vector.load %arg17[%c24_34, %c0_35] : memref<128x256xbf16, #tpu.memory_space<vmem>>, vector<8x128xbf16>
    tpu.vector_store %arg17[%c24_34, %c0_35], %97 {strides = array<i32>} : memref<128x256xbf16, #tpu.memory_space<vmem>>, vector<8x128xbf16>,
    %c96 = arith.constant 96 : index
    %c128_36 = arith.constant 128 : index
    %99 = vector.load %arg17[%c96, %c128_36] : memref<128x256xbf16, #tpu.memory_space<vmem>>, vector<8x128xbf16>
    tpu.vector_store %arg17[%c96, %c128_36], %97 {strides = array<i32>} : memref<128x256xbf16, #tpu.memory_space<vmem>>, vector<8x128xbf16>,
    %c32 = arith.constant 32 : index
    %c0_37 = arith.constant 0 : index
    %100 = vector.load %arg16[%c32, %c0_37] : memref<128x512xf32, #tpu.memory_space<vmem>>, vector<8x512xf32>
    %101 = arith.truncf %96 : vector<8x128xf32> to vector<8x128xbf16>
    %cst_38 = arith.constant dense<0.000000e+00> : vector<8x512xf32>
    %102 = tpu.matmul %101, %13, %cst_38 {dimension_numbers = #tpu.dot_dimension_numbers<[1], [0], [0], [1], [0, 0, 1, 1], [], []>} : vector<8x128xbf16>, vector<128x512xbf16>, vector<8x512xf32> -> vector<8x512xf32>
    %103 = arith.addf %100, %102 : vector<8x512xf32>
    %104 = math.tanh %103 : vector<8x512xf32>
    %105 = vector.extract_strided_slice %104 {offsets = [0, 0], sizes = [8, 384], strides = [1, 1]} : vector<8x512xf32> to vector<8x384xf32>
    %cst_39 = arith.constant 5.000000e-01 : f32
    %106 = vector.broadcast %cst_39 : f32 to vector<8x384xf32>
    %107 = arith.mulf %106, %105 : vector<8x384xf32>
    %cst_40 = arith.constant 5.000000e-01 : f32
    %108 = vector.broadcast %cst_40 : f32 to vector<8x384xf32>
    %109 = arith.addf %107, %108 : vector<8x384xf32>
    %110 = vector.extract_strided_slice %104 {offsets = [0, 384], sizes = [8, 128], strides = [1, 1]} : vector<8x512xf32> to vector<8x128xf32>
    %111 = vector.extract_strided_slice %109 {offsets = [0, 0], sizes = [8, 128], strides = [1, 1]} : vector<8x384xf32> to vector<8x128xf32>
    %112 = vector.extract_strided_slice %109 {offsets = [0, 128], sizes = [8, 128], strides = [1, 1]} : vector<8x384xf32> to vector<8x128xf32>
    %113 = vector.extract_strided_slice %109 {offsets = [0, 256], sizes = [8, 128], strides = [1, 1]} : vector<8x384xf32> to vector<8x128xf32>
    %114 = arith.mulf %112, %94 : vector<8x128xf32>
    %115 = arith.mulf %111, %110 : vector<8x128xf32>
    %116 = arith.addf %114, %115 : vector<8x128xf32>
    %117 = math.tanh %116 : vector<8x128xf32>
    %118 = arith.mulf %113, %117 : vector<8x128xf32>
    %119 = arith.truncf %118 : vector<8x128xf32> to vector<8x128xbf16>
    %c32_41 = arith.constant 32 : index
    %c0_42 = arith.constant 0 : index
    %120 = vector.load %arg17[%c32_41, %c0_42] : memref<128x256xbf16, #tpu.memory_space<vmem>>, vector<8x128xbf16>
    tpu.vector_store %arg17[%c32_41, %c0_42], %119 {strides = array<i32>} : memref<128x256xbf16, #tpu.memory_space<vmem>>, vector<8x128xbf16>,
    %c88 = arith.constant 88 : index
    %c128_43 = arith.constant 128 : index
    %121 = vector.load %arg17[%c88, %c128_43] : memref<128x256xbf16, #tpu.memory_space<vmem>>, vector<8x128xbf16>
    tpu.vector_store %arg17[%c88, %c128_43], %119 {strides = array<i32>} : memref<128x256xbf16, #tpu.memory_space<vmem>>, vector<8x128xbf16>,
    %c40 = arith.constant 40 : index
    %c0_44 = arith.constant 0 : index
    %122 = vector.load %arg16[%c40, %c0_44] : memref<128x512xf32, #tpu.memory_space<vmem>>, vector<8x512xf32>
    %123 = arith.truncf %118 : vector<8x128xf32> to vector<8x128xbf16>
    %cst_45 = arith.constant dense<0.000000e+00> : vector<8x512xf32>
    %124 = tpu.matmul %123, %13, %cst_45 {dimension_numbers = #tpu.dot_dimension_numbers<[1], [0], [0], [1], [0, 0, 1, 1], [], []>} : vector<8x128xbf16>, vector<128x512xbf16>, vector<8x512xf32> -> vector<8x512xf32>
    %125 = arith.addf %122, %124 : vector<8x512xf32>
    %126 = math.tanh %125 : vector<8x512xf32>
    %127 = vector.extract_strided_slice %126 {offsets = [0, 0], sizes = [8, 384], strides = [1, 1]} : vector<8x512xf32> to vector<8x384xf32>
    %cst_46 = arith.constant 5.000000e-01 : f32
    %128 = vector.broadcast %cst_46 : f32 to vector<8x384xf32>
    %129 = arith.mulf %128, %127 : vector<8x384xf32>
    %cst_47 = arith.constant 5.000000e-01 : f32
    %130 = vector.broadcast %cst_47 : f32 to vector<8x384xf32>
    %131 = arith.addf %129, %130 : vector<8x384xf32>
    %132 = vector.extract_strided_slice %126 {offsets = [0, 384], sizes = [8, 128], strides = [1, 1]} : vector<8x512xf32> to vector<8x128xf32>
    %133 = vector.extract_strided_slice %131 {offsets = [0, 0], sizes = [8, 128], strides = [1, 1]} : vector<8x384xf32> to vector<8x128xf32>
    %134 = vector.extract_strided_slice %131 {offsets = [0, 128], sizes = [8, 128], strides = [1, 1]} : vector<8x384xf32> to vector<8x128xf32>
    %135 = vector.extract_strided_slice %131 {offsets = [0, 256], sizes = [8, 128], strides = [1, 1]} : vector<8x384xf32> to vector<8x128xf32>
    %136 = arith.mulf %134, %116 : vector<8x128xf32>
    %137 = arith.mulf %133, %132 : vector<8x128xf32>
    %138 = arith.addf %136, %137 : vector<8x128xf32>
    %139 = math.tanh %138 : vector<8x128xf32>
    %140 = arith.mulf %135, %139 : vector<8x128xf32>
    %141 = arith.truncf %140 : vector<8x128xf32> to vector<8x128xbf16>
    %c40_48 = arith.constant 40 : index
    %c0_49 = arith.constant 0 : index
    %142 = vector.load %arg17[%c40_48, %c0_49] : memref<128x256xbf16, #tpu.memory_space<vmem>>, vector<8x128xbf16>
    tpu.vector_store %arg17[%c40_48, %c0_49], %141 {strides = array<i32>} : memref<128x256xbf16, #tpu.memory_space<vmem>>, vector<8x128xbf16>,
    %c80 = arith.constant 80 : index
    %c128_50 = arith.constant 128 : index
    %143 = vector.load %arg17[%c80, %c128_50] : memref<128x256xbf16, #tpu.memory_space<vmem>>, vector<8x128xbf16>
    tpu.vector_store %arg17[%c80, %c128_50], %141 {strides = array<i32>} : memref<128x256xbf16, #tpu.memory_space<vmem>>, vector<8x128xbf16>,
    %c48 = arith.constant 48 : index
    %c0_51 = arith.constant 0 : index
    %144 = vector.load %arg16[%c48, %c0_51] : memref<128x512xf32, #tpu.memory_space<vmem>>, vector<8x512xf32>
    %145 = arith.truncf %140 : vector<8x128xf32> to vector<8x128xbf16>
    %cst_52 = arith.constant dense<0.000000e+00> : vector<8x512xf32>
    %146 = tpu.matmul %145, %13, %cst_52 {dimension_numbers = #tpu.dot_dimension_numbers<[1], [0], [0], [1], [0, 0, 1, 1], [], []>} : vector<8x128xbf16>, vector<128x512xbf16>, vector<8x512xf32> -> vector<8x512xf32>
    %147 = arith.addf %144, %146 : vector<8x512xf32>
    %148 = math.tanh %147 : vector<8x512xf32>
    %149 = vector.extract_strided_slice %148 {offsets = [0, 0], sizes = [8, 384], strides = [1, 1]} : vector<8x512xf32> to vector<8x384xf32>
    %cst_53 = arith.constant 5.000000e-01 : f32
    %150 = vector.broadcast %cst_53 : f32 to vector<8x384xf32>
    %151 = arith.mulf %150, %149 : vector<8x384xf32>
    %cst_54 = arith.constant 5.000000e-01 : f32
    %152 = vector.broadcast %cst_54 : f32 to vector<8x384xf32>
    %153 = arith.addf %151, %152 : vector<8x384xf32>
    %154 = vector.extract_strided_slice %148 {offsets = [0, 384], sizes = [8, 128], strides = [1, 1]} : vector<8x512xf32> to vector<8x128xf32>
    %155 = vector.extract_strided_slice %153 {offsets = [0, 0], sizes = [8, 128], strides = [1, 1]} : vector<8x384xf32> to vector<8x128xf32>
    %156 = vector.extract_strided_slice %153 {offsets = [0, 128], sizes = [8, 128], strides = [1, 1]} : vector<8x384xf32> to vector<8x128xf32>
    %157 = vector.extract_strided_slice %153 {offsets = [0, 256], sizes = [8, 128], strides = [1, 1]} : vector<8x384xf32> to vector<8x128xf32>
    %158 = arith.mulf %156, %138 : vector<8x128xf32>
    %159 = arith.mulf %155, %154 : vector<8x128xf32>
    %160 = arith.addf %158, %159 : vector<8x128xf32>
    %161 = math.tanh %160 : vector<8x128xf32>
    %162 = arith.mulf %157, %161 : vector<8x128xf32>
    %163 = arith.truncf %162 : vector<8x128xf32> to vector<8x128xbf16>
    %c48_55 = arith.constant 48 : index
    %c0_56 = arith.constant 0 : index
    %164 = vector.load %arg17[%c48_55, %c0_56] : memref<128x256xbf16, #tpu.memory_space<vmem>>, vector<8x128xbf16>
    tpu.vector_store %arg17[%c48_55, %c0_56], %163 {strides = array<i32>} : memref<128x256xbf16, #tpu.memory_space<vmem>>, vector<8x128xbf16>,
    %c72 = arith.constant 72 : index
    %c128_57 = arith.constant 128 : index
    %165 = vector.load %arg17[%c72, %c128_57] : memref<128x256xbf16, #tpu.memory_space<vmem>>, vector<8x128xbf16>
    tpu.vector_store %arg17[%c72, %c128_57], %163 {strides = array<i32>} : memref<128x256xbf16, #tpu.memory_space<vmem>>, vector<8x128xbf16>,
    %c56 = arith.constant 56 : index
    %c0_58 = arith.constant 0 : index
    %166 = vector.load %arg16[%c56, %c0_58] : memref<128x512xf32, #tpu.memory_space<vmem>>, vector<8x512xf32>
    %167 = arith.truncf %162 : vector<8x128xf32> to vector<8x128xbf16>
    %cst_59 = arith.constant dense<0.000000e+00> : vector<8x512xf32>
    %168 = tpu.matmul %167, %13, %cst_59 {dimension_numbers = #tpu.dot_dimension_numbers<[1], [0], [0], [1], [0, 0, 1, 1], [], []>} : vector<8x128xbf16>, vector<128x512xbf16>, vector<8x512xf32> -> vector<8x512xf32>
    %169 = arith.addf %166, %168 : vector<8x512xf32>
    %170 = math.tanh %169 : vector<8x512xf32>
    %171 = vector.extract_strided_slice %170 {offsets = [0, 0], sizes = [8, 384], strides = [1, 1]} : vector<8x512xf32> to vector<8x384xf32>
    %cst_60 = arith.constant 5.000000e-01 : f32
    %172 = vector.broadcast %cst_60 : f32 to vector<8x384xf32>
    %173 = arith.mulf %172, %171 : vector<8x384xf32>
    %cst_61 = arith.constant 5.000000e-01 : f32
    %174 = vector.broadcast %cst_61 : f32 to vector<8x384xf32>
    %175 = arith.addf %173, %174 : vector<8x384xf32>
    %176 = vector.extract_strided_slice %170 {offsets = [0, 384], sizes = [8, 128], strides = [1, 1]} : vector<8x512xf32> to vector<8x128xf32>
    %177 = vector.extract_strided_slice %175 {offsets = [0, 0], sizes = [8, 128], strides = [1, 1]} : vector<8x384xf32> to vector<8x128xf32>
    %178 = vector.extract_strided_slice %175 {offsets = [0, 128], sizes = [8, 128], strides = [1, 1]} : vector<8x384xf32> to vector<8x128xf32>
    %179 = vector.extract_strided_slice %175 {offsets = [0, 256], sizes = [8, 128], strides = [1, 1]} : vector<8x384xf32> to vector<8x128xf32>
    %180 = arith.mulf %178, %160 : vector<8x128xf32>
    %181 = arith.mulf %177, %176 : vector<8x128xf32>
    %182 = arith.addf %180, %181 : vector<8x128xf32>
    %183 = math.tanh %182 : vector<8x128xf32>
    %184 = arith.mulf %179, %183 : vector<8x128xf32>
    %185 = arith.truncf %184 : vector<8x128xf32> to vector<8x128xbf16>
    %c56_62 = arith.constant 56 : index
    %c0_63 = arith.constant 0 : index
    %186 = vector.load %arg17[%c56_62, %c0_63] : memref<128x256xbf16, #tpu.memory_space<vmem>>, vector<8x128xbf16>
    tpu.vector_store %arg17[%c56_62, %c0_63], %185 {strides = array<i32>} : memref<128x256xbf16, #tpu.memory_space<vmem>>, vector<8x128xbf16>,
    %c64 = arith.constant 64 : index
    %c128_64 = arith.constant 128 : index
    %187 = vector.load %arg17[%c64, %c128_64] : memref<128x256xbf16, #tpu.memory_space<vmem>>, vector<8x128xbf16>
    tpu.vector_store %arg17[%c64, %c128_64], %185 {strides = array<i32>} : memref<128x256xbf16, #tpu.memory_space<vmem>>, vector<8x128xbf16>,
    %c64_65 = arith.constant 64 : index
    %c0_66 = arith.constant 0 : index
    %188 = vector.load %arg16[%c64_65, %c0_66] : memref<128x512xf32, #tpu.memory_space<vmem>>, vector<8x512xf32>
    %189 = arith.truncf %184 : vector<8x128xf32> to vector<8x128xbf16>
    %cst_67 = arith.constant dense<0.000000e+00> : vector<8x512xf32>
    %190 = tpu.matmul %189, %13, %cst_67 {dimension_numbers = #tpu.dot_dimension_numbers<[1], [0], [0], [1], [0, 0, 1, 1], [], []>} : vector<8x128xbf16>, vector<128x512xbf16>, vector<8x512xf32> -> vector<8x512xf32>
    %191 = arith.addf %188, %190 : vector<8x512xf32>
    %192 = math.tanh %191 : vector<8x512xf32>
    %193 = vector.extract_strided_slice %192 {offsets = [0, 0], sizes = [8, 384], strides = [1, 1]} : vector<8x512xf32> to vector<8x384xf32>
    %cst_68 = arith.constant 5.000000e-01 : f32
    %194 = vector.broadcast %cst_68 : f32 to vector<8x384xf32>
    %195 = arith.mulf %194, %193 : vector<8x384xf32>
    %cst_69 = arith.constant 5.000000e-01 : f32
    %196 = vector.broadcast %cst_69 : f32 to vector<8x384xf32>
    %197 = arith.addf %195, %196 : vector<8x384xf32>
    %198 = vector.extract_strided_slice %192 {offsets = [0, 384], sizes = [8, 128], strides = [1, 1]} : vector<8x512xf32> to vector<8x128xf32>
    %199 = vector.extract_strided_slice %197 {offsets = [0, 0], sizes = [8, 128], strides = [1, 1]} : vector<8x384xf32> to vector<8x128xf32>
    %200 = vector.extract_strided_slice %197 {offsets = [0, 128], sizes = [8, 128], strides = [1, 1]} : vector<8x384xf32> to vector<8x128xf32>
    %201 = vector.extract_strided_slice %197 {offsets = [0, 256], sizes = [8, 128], strides = [1, 1]} : vector<8x384xf32> to vector<8x128xf32>
    %202 = arith.mulf %200, %182 : vector<8x128xf32>
    %203 = arith.mulf %199, %198 : vector<8x128xf32>
    %204 = arith.addf %202, %203 : vector<8x128xf32>
    %205 = math.tanh %204 : vector<8x128xf32>
    %206 = arith.mulf %201, %205 : vector<8x128xf32>
    %207 = arith.truncf %206 : vector<8x128xf32> to vector<8x128xbf16>
    %c64_70 = arith.constant 64 : index
    %c0_71 = arith.constant 0 : index
    %208 = vector.load %arg17[%c64_70, %c0_71] : memref<128x256xbf16, #tpu.memory_space<vmem>>, vector<8x128xbf16>
    tpu.vector_store %arg17[%c64_70, %c0_71], %207 {strides = array<i32>} : memref<128x256xbf16, #tpu.memory_space<vmem>>, vector<8x128xbf16>,
    %c56_72 = arith.constant 56 : index
    %c128_73 = arith.constant 128 : index
    %209 = vector.load %arg17[%c56_72, %c128_73] : memref<128x256xbf16, #tpu.memory_space<vmem>>, vector<8x128xbf16>
    tpu.vector_store %arg17[%c56_72, %c128_73], %207 {strides = array<i32>} : memref<128x256xbf16, #tpu.memory_space<vmem>>, vector<8x128xbf16>,
    %c72_74 = arith.constant 72 : index
    %c0_75 = arith.constant 0 : index
    %210 = vector.load %arg16[%c72_74, %c0_75] : memref<128x512xf32, #tpu.memory_space<vmem>>, vector<8x512xf32>
    %211 = arith.truncf %206 : vector<8x128xf32> to vector<8x128xbf16>
    %cst_76 = arith.constant dense<0.000000e+00> : vector<8x512xf32>
    %212 = tpu.matmul %211, %13, %cst_76 {dimension_numbers = #tpu.dot_dimension_numbers<[1], [0], [0], [1], [0, 0, 1, 1], [], []>} : vector<8x128xbf16>, vector<128x512xbf16>, vector<8x512xf32> -> vector<8x512xf32>
    %213 = arith.addf %210, %212 : vector<8x512xf32>
    %214 = math.tanh %213 : vector<8x512xf32>
    %215 = vector.extract_strided_slice %214 {offsets = [0, 0], sizes = [8, 384], strides = [1, 1]} : vector<8x512xf32> to vector<8x384xf32>
    %cst_77 = arith.constant 5.000000e-01 : f32
    %216 = vector.broadcast %cst_77 : f32 to vector<8x384xf32>
    %217 = arith.mulf %216, %215 : vector<8x384xf32>
    %cst_78 = arith.constant 5.000000e-01 : f32
    %218 = vector.broadcast %cst_78 : f32 to vector<8x384xf32>
    %219 = arith.addf %217, %218 : vector<8x384xf32>
    %220 = vector.extract_strided_slice %214 {offsets = [0, 384], sizes = [8, 128], strides = [1, 1]} : vector<8x512xf32> to vector<8x128xf32>
    %221 = vector.extract_strided_slice %219 {offsets = [0, 0], sizes = [8, 128], strides = [1, 1]} : vector<8x384xf32> to vector<8x128xf32>
    %222 = vector.extract_strided_slice %219 {offsets = [0, 128], sizes = [8, 128], strides = [1, 1]} : vector<8x384xf32> to vector<8x128xf32>
    %223 = vector.extract_strided_slice %219 {offsets = [0, 256], sizes = [8, 128], strides = [1, 1]} : vector<8x384xf32> to vector<8x128xf32>
    %224 = arith.mulf %222, %204 : vector<8x128xf32>
    %225 = arith.mulf %221, %220 : vector<8x128xf32>
    %226 = arith.addf %224, %225 : vector<8x128xf32>
    %227 = math.tanh %226 : vector<8x128xf32>
    %228 = arith.mulf %223, %227 : vector<8x128xf32>
    %229 = arith.truncf %228 : vector<8x128xf32> to vector<8x128xbf16>
    %c72_79 = arith.constant 72 : index
    %c0_80 = arith.constant 0 : index
    %230 = vector.load %arg17[%c72_79, %c0_80] : memref<128x256xbf16, #tpu.memory_space<vmem>>, vector<8x128xbf16>
    tpu.vector_store %arg17[%c72_79, %c0_80], %229 {strides = array<i32>} : memref<128x256xbf16, #tpu.memory_space<vmem>>, vector<8x128xbf16>,
    %c48_81 = arith.constant 48 : index
    %c128_82 = arith.constant 128 : index
    %231 = vector.load %arg17[%c48_81, %c128_82] : memref<128x256xbf16, #tpu.memory_space<vmem>>, vector<8x128xbf16>
    tpu.vector_store %arg17[%c48_81, %c128_82], %229 {strides = array<i32>} : memref<128x256xbf16, #tpu.memory_space<vmem>>, vector<8x128xbf16>,
    %c80_83 = arith.constant 80 : index
    %c0_84 = arith.constant 0 : index
    %232 = vector.load %arg16[%c80_83, %c0_84] : memref<128x512xf32, #tpu.memory_space<vmem>>, vector<8x512xf32>
    %233 = arith.truncf %228 : vector<8x128xf32> to vector<8x128xbf16>
    %cst_85 = arith.constant dense<0.000000e+00> : vector<8x512xf32>
    %234 = tpu.matmul %233, %13, %cst_85 {dimension_numbers = #tpu.dot_dimension_numbers<[1], [0], [0], [1], [0, 0, 1, 1], [], []>} : vector<8x128xbf16>, vector<128x512xbf16>, vector<8x512xf32> -> vector<8x512xf32>
    %235 = arith.addf %232, %234 : vector<8x512xf32>
    %236 = math.tanh %235 : vector<8x512xf32>
    %237 = vector.extract_strided_slice %236 {offsets = [0, 0], sizes = [8, 384], strides = [1, 1]} : vector<8x512xf32> to vector<8x384xf32>
    %cst_86 = arith.constant 5.000000e-01 : f32
    %238 = vector.broadcast %cst_86 : f32 to vector<8x384xf32>
    %239 = arith.mulf %238, %237 : vector<8x384xf32>
    %cst_87 = arith.constant 5.000000e-01 : f32
    %240 = vector.broadcast %cst_87 : f32 to vector<8x384xf32>
    %241 = arith.addf %239, %240 : vector<8x384xf32>
    %242 = vector.extract_strided_slice %236 {offsets = [0, 384], sizes = [8, 128], strides = [1, 1]} : vector<8x512xf32> to vector<8x128xf32>
    %243 = vector.extract_strided_slice %241 {offsets = [0, 0], sizes = [8, 128], strides = [1, 1]} : vector<8x384xf32> to vector<8x128xf32>
    %244 = vector.extract_strided_slice %241 {offsets = [0, 128], sizes = [8, 128], strides = [1, 1]} : vector<8x384xf32> to vector<8x128xf32>
    %245 = vector.extract_strided_slice %241 {offsets = [0, 256], sizes = [8, 128], strides = [1, 1]} : vector<8x384xf32> to vector<8x128xf32>
    %246 = arith.mulf %244, %226 : vector<8x128xf32>
    %247 = arith.mulf %243, %242 : vector<8x128xf32>
    %248 = arith.addf %246, %247 : vector<8x128xf32>
    %249 = math.tanh %248 : vector<8x128xf32>
    %250 = arith.mulf %245, %249 : vector<8x128xf32>
    %251 = arith.truncf %250 : vector<8x128xf32> to vector<8x128xbf16>
    %c80_88 = arith.constant 80 : index
    %c0_89 = arith.constant 0 : index
    %252 = vector.load %arg17[%c80_88, %c0_89] : memref<128x256xbf16, #tpu.memory_space<vmem>>, vector<8x128xbf16>
    tpu.vector_store %arg17[%c80_88, %c0_89], %251 {strides = array<i32>} : memref<128x256xbf16, #tpu.memory_space<vmem>>, vector<8x128xbf16>,
    %c40_90 = arith.constant 40 : index
    %c128_91 = arith.constant 128 : index
    %253 = vector.load %arg17[%c40_90, %c128_91] : memref<128x256xbf16, #tpu.memory_space<vmem>>, vector<8x128xbf16>
    tpu.vector_store %arg17[%c40_90, %c128_91], %251 {strides = array<i32>} : memref<128x256xbf16, #tpu.memory_space<vmem>>, vector<8x128xbf16>,
    %c88_92 = arith.constant 88 : index
    %c0_93 = arith.constant 0 : index
    %254 = vector.load %arg16[%c88_92, %c0_93] : memref<128x512xf32, #tpu.memory_space<vmem>>, vector<8x512xf32>
    %255 = arith.truncf %250 : vector<8x128xf32> to vector<8x128xbf16>
    %cst_94 = arith.constant dense<0.000000e+00> : vector<8x512xf32>
    %256 = tpu.matmul %255, %13, %cst_94 {dimension_numbers = #tpu.dot_dimension_numbers<[1], [0], [0], [1], [0, 0, 1, 1], [], []>} : vector<8x128xbf16>, vector<128x512xbf16>, vector<8x512xf32> -> vector<8x512xf32>
    %257 = arith.addf %254, %256 : vector<8x512xf32>
    %258 = math.tanh %257 : vector<8x512xf32>
    %259 = vector.extract_strided_slice %258 {offsets = [0, 0], sizes = [8, 384], strides = [1, 1]} : vector<8x512xf32> to vector<8x384xf32>
    %cst_95 = arith.constant 5.000000e-01 : f32
    %260 = vector.broadcast %cst_95 : f32 to vector<8x384xf32>
    %261 = arith.mulf %260, %259 : vector<8x384xf32>
    %cst_96 = arith.constant 5.000000e-01 : f32
    %262 = vector.broadcast %cst_96 : f32 to vector<8x384xf32>
    %263 = arith.addf %261, %262 : vector<8x384xf32>
    %264 = vector.extract_strided_slice %258 {offsets = [0, 384], sizes = [8, 128], strides = [1, 1]} : vector<8x512xf32> to vector<8x128xf32>
    %265 = vector.extract_strided_slice %263 {offsets = [0, 0], sizes = [8, 128], strides = [1, 1]} : vector<8x384xf32> to vector<8x128xf32>
    %266 = vector.extract_strided_slice %263 {offsets = [0, 128], sizes = [8, 128], strides = [1, 1]} : vector<8x384xf32> to vector<8x128xf32>
    %267 = vector.extract_strided_slice %263 {offsets = [0, 256], sizes = [8, 128], strides = [1, 1]} : vector<8x384xf32> to vector<8x128xf32>
    %268 = arith.mulf %266, %248 : vector<8x128xf32>
    %269 = arith.mulf %265, %264 : vector<8x128xf32>
    %270 = arith.addf %268, %269 : vector<8x128xf32>
    %271 = math.tanh %270 : vector<8x128xf32>
    %272 = arith.mulf %267, %271 : vector<8x128xf32>
    %273 = arith.truncf %272 : vector<8x128xf32> to vector<8x128xbf16>
    %c88_97 = arith.constant 88 : index
    %c0_98 = arith.constant 0 : index
    %274 = vector.load %arg17[%c88_97, %c0_98] : memref<128x256xbf16, #tpu.memory_space<vmem>>, vector<8x128xbf16>
    tpu.vector_store %arg17[%c88_97, %c0_98], %273 {strides = array<i32>} : memref<128x256xbf16, #tpu.memory_space<vmem>>, vector<8x128xbf16>,
    %c32_99 = arith.constant 32 : index
    %c128_100 = arith.constant 128 : index
    %275 = vector.load %arg17[%c32_99, %c128_100] : memref<128x256xbf16, #tpu.memory_space<vmem>>, vector<8x128xbf16>
    tpu.vector_store %arg17[%c32_99, %c128_100], %273 {strides = array<i32>} : memref<128x256xbf16, #tpu.memory_space<vmem>>, vector<8x128xbf16>,
    %c96_101 = arith.constant 96 : index
    %c0_102 = arith.constant 0 : index
    %276 = vector.load %arg16[%c96_101, %c0_102] : memref<128x512xf32, #tpu.memory_space<vmem>>, vector<8x512xf32>
    %277 = arith.truncf %272 : vector<8x128xf32> to vector<8x128xbf16>
    %cst_103 = arith.constant dense<0.000000e+00> : vector<8x512xf32>
    %278 = tpu.matmul %277, %13, %cst_103 {dimension_numbers = #tpu.dot_dimension_numbers<[1], [0], [0], [1], [0, 0, 1, 1], [], []>} : vector<8x128xbf16>, vector<128x512xbf16>, vector<8x512xf32> -> vector<8x512xf32>
    %279 = arith.addf %276, %278 : vector<8x512xf32>
    %280 = math.tanh %279 : vector<8x512xf32>
    %281 = vector.extract_strided_slice %280 {offsets = [0, 0], sizes = [8, 384], strides = [1, 1]} : vector<8x512xf32> to vector<8x384xf32>
    %cst_104 = arith.constant 5.000000e-01 : f32
    %282 = vector.broadcast %cst_104 : f32 to vector<8x384xf32>
    %283 = arith.mulf %282, %281 : vector<8x384xf32>
    %cst_105 = arith.constant 5.000000e-01 : f32
    %284 = vector.broadcast %cst_105 : f32 to vector<8x384xf32>
    %285 = arith.addf %283, %284 : vector<8x384xf32>
    %286 = vector.extract_strided_slice %280 {offsets = [0, 384], sizes = [8, 128], strides = [1, 1]} : vector<8x512xf32> to vector<8x128xf32>
    %287 = vector.extract_strided_slice %285 {offsets = [0, 0], sizes = [8, 128], strides = [1, 1]} : vector<8x384xf32> to vector<8x128xf32>
    %288 = vector.extract_strided_slice %285 {offsets = [0, 128], sizes = [8, 128], strides = [1, 1]} : vector<8x384xf32> to vector<8x128xf32>
    %289 = vector.extract_strided_slice %285 {offsets = [0, 256], sizes = [8, 128], strides = [1, 1]} : vector<8x384xf32> to vector<8x128xf32>
    %290 = arith.mulf %288, %270 : vector<8x128xf32>
    %291 = arith.mulf %287, %286 : vector<8x128xf32>
    %292 = arith.addf %290, %291 : vector<8x128xf32>
    %293 = math.tanh %292 : vector<8x128xf32>
    %294 = arith.mulf %289, %293 : vector<8x128xf32>
    %295 = arith.truncf %294 : vector<8x128xf32> to vector<8x128xbf16>
    %c96_106 = arith.constant 96 : index
    %c0_107 = arith.constant 0 : index
    %296 = vector.load %arg17[%c96_106, %c0_107] : memref<128x256xbf16, #tpu.memory_space<vmem>>, vector<8x128xbf16>
    tpu.vector_store %arg17[%c96_106, %c0_107], %295 {strides = array<i32>} : memref<128x256xbf16, #tpu.memory_space<vmem>>, vector<8x128xbf16>,
    %c24_108 = arith.constant 24 : index
    %c128_109 = arith.constant 128 : index
    %297 = vector.load %arg17[%c24_108, %c128_109] : memref<128x256xbf16, #tpu.memory_space<vmem>>, vector<8x128xbf16>
    tpu.vector_store %arg17[%c24_108, %c128_109], %295 {strides = array<i32>} : memref<128x256xbf16, #tpu.memory_space<vmem>>, vector<8x128xbf16>,
    %c104_110 = arith.constant 104 : index
    %c0_111 = arith.constant 0 : index
    %298 = vector.load %arg16[%c104_110, %c0_111] : memref<128x512xf32, #tpu.memory_space<vmem>>, vector<8x512xf32>
    %299 = arith.truncf %294 : vector<8x128xf32> to vector<8x128xbf16>
    %cst_112 = arith.constant dense<0.000000e+00> : vector<8x512xf32>
    %300 = tpu.matmul %299, %13, %cst_112 {dimension_numbers = #tpu.dot_dimension_numbers<[1], [0], [0], [1], [0, 0, 1, 1], [], []>} : vector<8x128xbf16>, vector<128x512xbf16>, vector<8x512xf32> -> vector<8x512xf32>
    %301 = arith.addf %298, %300 : vector<8x512xf32>
    %302 = math.tanh %301 : vector<8x512xf32>
    %303 = vector.extract_strided_slice %302 {offsets = [0, 0], sizes = [8, 384], strides = [1, 1]} : vector<8x512xf32> to vector<8x384xf32>
    %cst_113 = arith.constant 5.000000e-01 : f32
    %304 = vector.broadcast %cst_113 : f32 to vector<8x384xf32>
    %305 = arith.mulf %304, %303 : vector<8x384xf32>
    %cst_114 = arith.constant 5.000000e-01 : f32
    %306 = vector.broadcast %cst_114 : f32 to vector<8x384xf32>
    %307 = arith.addf %305, %306 : vector<8x384xf32>
    %308 = vector.extract_strided_slice %302 {offsets = [0, 384], sizes = [8, 128], strides = [1, 1]} : vector<8x512xf32> to vector<8x128xf32>
    %309 = vector.extract_strided_slice %307 {offsets = [0, 0], sizes = [8, 128], strides = [1, 1]} : vector<8x384xf32> to vector<8x128xf32>
    %310 = vector.extract_strided_slice %307 {offsets = [0, 128], sizes = [8, 128], strides = [1, 1]} : vector<8x384xf32> to vector<8x128xf32>
    %311 = vector.extract_strided_slice %307 {offsets = [0, 256], sizes = [8, 128], strides = [1, 1]} : vector<8x384xf32> to vector<8x128xf32>
    %312 = arith.mulf %310, %292 : vector<8x128xf32>
    %313 = arith.mulf %309, %308 : vector<8x128xf32>
    %314 = arith.addf %312, %313 : vector<8x128xf32>
    %315 = math.tanh %314 : vector<8x128xf32>
    %316 = arith.mulf %311, %315 : vector<8x128xf32>
    %317 = arith.truncf %316 : vector<8x128xf32> to vector<8x128xbf16>
    %c104_115 = arith.constant 104 : index
    %c0_116 = arith.constant 0 : index
    %318 = vector.load %arg17[%c104_115, %c0_116] : memref<128x256xbf16, #tpu.memory_space<vmem>>, vector<8x128xbf16>
    tpu.vector_store %arg17[%c104_115, %c0_116], %317 {strides = array<i32>} : memref<128x256xbf16, #tpu.memory_space<vmem>>, vector<8x128xbf16>,
    %c16_117 = arith.constant 16 : index
    %c128_118 = arith.constant 128 : index
    %319 = vector.load %arg17[%c16_117, %c128_118] : memref<128x256xbf16, #tpu.memory_space<vmem>>, vector<8x128xbf16>
    tpu.vector_store %arg17[%c16_117, %c128_118], %317 {strides = array<i32>} : memref<128x256xbf16, #tpu.memory_space<vmem>>, vector<8x128xbf16>,
    %c112_119 = arith.constant 112 : index
    %c0_120 = arith.constant 0 : index
    %320 = vector.load %arg16[%c112_119, %c0_120] : memref<128x512xf32, #tpu.memory_space<vmem>>, vector<8x512xf32>
    %321 = arith.truncf %316 : vector<8x128xf32> to vector<8x128xbf16>
    %cst_121 = arith.constant dense<0.000000e+00> : vector<8x512xf32>
    %322 = tpu.matmul %321, %13, %cst_121 {dimension_numbers = #tpu.dot_dimension_numbers<[1], [0], [0], [1], [0, 0, 1, 1], [], []>} : vector<8x128xbf16>, vector<128x512xbf16>, vector<8x512xf32> -> vector<8x512xf32>
    %323 = arith.addf %320, %322 : vector<8x512xf32>
    %324 = math.tanh %323 : vector<8x512xf32>
    %325 = vector.extract_strided_slice %324 {offsets = [0, 0], sizes = [8, 384], strides = [1, 1]} : vector<8x512xf32> to vector<8x384xf32>
    %cst_122 = arith.constant 5.000000e-01 : f32
    %326 = vector.broadcast %cst_122 : f32 to vector<8x384xf32>
    %327 = arith.mulf %326, %325 : vector<8x384xf32>
    %cst_123 = arith.constant 5.000000e-01 : f32
    %328 = vector.broadcast %cst_123 : f32 to vector<8x384xf32>
    %329 = arith.addf %327, %328 : vector<8x384xf32>
    %330 = vector.extract_strided_slice %324 {offsets = [0, 384], sizes = [8, 128], strides = [1, 1]} : vector<8x512xf32> to vector<8x128xf32>
    %331 = vector.extract_strided_slice %329 {offsets = [0, 0], sizes = [8, 128], strides = [1, 1]} : vector<8x384xf32> to vector<8x128xf32>
    %332 = vector.extract_strided_slice %329 {offsets = [0, 128], sizes = [8, 128], strides = [1, 1]} : vector<8x384xf32> to vector<8x128xf32>
    %333 = vector.extract_strided_slice %329 {offsets = [0, 256], sizes = [8, 128], strides = [1, 1]} : vector<8x384xf32> to vector<8x128xf32>
    %334 = arith.mulf %332, %314 : vector<8x128xf32>
    %335 = arith.mulf %331, %330 : vector<8x128xf32>
    %336 = arith.addf %334, %335 : vector<8x128xf32>
    %337 = math.tanh %336 : vector<8x128xf32>
    %338 = arith.mulf %333, %337 : vector<8x128xf32>
    %339 = arith.truncf %338 : vector<8x128xf32> to vector<8x128xbf16>
    %c112_124 = arith.constant 112 : index
    %c0_125 = arith.constant 0 : index
    %340 = vector.load %arg17[%c112_124, %c0_125] : memref<128x256xbf16, #tpu.memory_space<vmem>>, vector<8x128xbf16>
    tpu.vector_store %arg17[%c112_124, %c0_125], %339 {strides = array<i32>} : memref<128x256xbf16, #tpu.memory_space<vmem>>, vector<8x128xbf16>,
    %c8_126 = arith.constant 8 : index
    %c128_127 = arith.constant 128 : index
    %341 = vector.load %arg17[%c8_126, %c128_127] : memref<128x256xbf16, #tpu.memory_space<vmem>>, vector<8x128xbf16>
    tpu.vector_store %arg17[%c8_126, %c128_127], %339 {strides = array<i32>} : memref<128x256xbf16, #tpu.memory_space<vmem>>, vector<8x128xbf16>,
    %c120_128 = arith.constant 120 : index
    %c0_129 = arith.constant 0 : index
    %342 = vector.load %arg16[%c120_128, %c0_129] : memref<128x512xf32, #tpu.memory_space<vmem>>, vector<8x512xf32>
    %343 = arith.truncf %338 : vector<8x128xf32> to vector<8x128xbf16>
    %cst_130 = arith.constant dense<0.000000e+00> : vector<8x512xf32>
    %344 = tpu.matmul %343, %13, %cst_130 {dimension_numbers = #tpu.dot_dimension_numbers<[1], [0], [0], [1], [0, 0, 1, 1], [], []>} : vector<8x128xbf16>, vector<128x512xbf16>, vector<8x512xf32> -> vector<8x512xf32>
    %345 = arith.addf %342, %344 : vector<8x512xf32>
    %346 = math.tanh %345 : vector<8x512xf32>
    %347 = vector.extract_strided_slice %346 {offsets = [0, 0], sizes = [8, 384], strides = [1, 1]} : vector<8x512xf32> to vector<8x384xf32>
    %cst_131 = arith.constant 5.000000e-01 : f32
    %348 = vector.broadcast %cst_131 : f32 to vector<8x384xf32>
    %349 = arith.mulf %348, %347 : vector<8x384xf32>
    %cst_132 = arith.constant 5.000000e-01 : f32
    %350 = vector.broadcast %cst_132 : f32 to vector<8x384xf32>
    %351 = arith.addf %349, %350 : vector<8x384xf32>
    %352 = vector.extract_strided_slice %346 {offsets = [0, 384], sizes = [8, 128], strides = [1, 1]} : vector<8x512xf32> to vector<8x128xf32>
    %353 = vector.extract_strided_slice %351 {offsets = [0, 0], sizes = [8, 128], strides = [1, 1]} : vector<8x384xf32> to vector<8x128xf32>
    %354 = vector.extract_strided_slice %351 {offsets = [0, 128], sizes = [8, 128], strides = [1, 1]} : vector<8x384xf32> to vector<8x128xf32>
    %355 = vector.extract_strided_slice %351 {offsets = [0, 256], sizes = [8, 128], strides = [1, 1]} : vector<8x384xf32> to vector<8x128xf32>
    %356 = arith.mulf %354, %336 : vector<8x128xf32>
    %357 = arith.mulf %353, %352 : vector<8x128xf32>
    %358 = arith.addf %356, %357 : vector<8x128xf32>
    %359 = math.tanh %358 : vector<8x128xf32>
    %360 = arith.mulf %355, %359 : vector<8x128xf32>
    %361 = arith.truncf %360 : vector<8x128xf32> to vector<8x128xbf16>
    %c120_133 = arith.constant 120 : index
    %c0_134 = arith.constant 0 : index
    %362 = vector.load %arg17[%c120_133, %c0_134] : memref<128x256xbf16, #tpu.memory_space<vmem>>, vector<8x128xbf16>
    tpu.vector_store %arg17[%c120_133, %c0_134], %361 {strides = array<i32>} : memref<128x256xbf16, #tpu.memory_space<vmem>>, vector<8x128xbf16>,
    %c0_135 = arith.constant 0 : index
    %c128_136 = arith.constant 128 : index
    %363 = vector.load %arg17[%c0_135, %c128_136] : memref<128x256xbf16, #tpu.memory_space<vmem>>, vector<8x128xbf16>
    tpu.vector_store %arg17[%c0_135, %c128_136], %361 {strides = array<i32>} : memref<128x256xbf16, #tpu.memory_space<vmem>>, vector<8x128xbf16>,
    %c0_i32_137 = arith.constant 0 : i32
    %364 = tpu.memref_slice %arg15[%c0_i32_137] : memref<3x!tpu.dma_semaphore, #tpu.memory_space<semaphore_mem>> -> memref<1x!tpu.dma_semaphore, #tpu.memory_space<semaphore_mem>>
    %365 = tpu.memref_squeeze %364 : memref<1x!tpu.dma_semaphore, #tpu.memory_space<semaphore_mem>> -> memref<!tpu.dma_semaphore, #tpu.memory_space<semaphore_mem>>
    tpu.wait_dma2 semaphore(%365 : memref<!tpu.dma_semaphore, #tpu.memory_space<semaphore_mem>>) src(%arg4 : memref<256x1024xbf16, #tpu.memory_space<any>>) dst(%arg12 : memref<256x1024xbf16, #tpu.memory_space<vmem>>)
    %c0_138 = arith.constant 0 : index
    %c0_139 = arith.constant 0 : index
    %366 = vector.load %arg17[%c0_138, %c0_139] : memref<128x256xbf16, #tpu.memory_space<vmem>>, vector<128x256xbf16>
    %c0_140 = arith.constant 0 : index
    %c0_141 = arith.constant 0 : index
    %367 = vector.load %arg12[%c0_140, %c0_141] : memref<256x1024xbf16, #tpu.memory_space<vmem>>, vector<256x1024xbf16>
    %cst_142 = arith.constant dense<0.000000e+00> : vector<128x1024xf32>
    %368 = tpu.matmul %366, %367, %cst_142 {dimension_numbers = #tpu.dot_dimension_numbers<[1], [0], [0], [1], [0, 0, 1, 1], [], []>} : vector<128x256xbf16>, vector<256x1024xbf16>, vector<128x1024xf32> -> vector<128x1024xf32>
    %c0_143 = arith.constant 0 : index
    %c0_144 = arith.constant 0 : index
    %369 = vector.load %arg6[%c0_143, %c0_144] : memref<1x1024xf32, #tpu.memory_space<vmem>>, vector<1x1024xf32>
    %370 = vector.broadcast %369 : vector<1x1024xf32> to vector<128x1024xf32>
    %371 = arith.addf %368, %370 : vector<128x1024xf32>
    %c0_145 = arith.constant 0 : index
    %c0_146 = arith.constant 0 : index
    %372 = vector.load %arg18[%c0_145, %c0_146] : memref<128x1024xf32, #tpu.memory_space<vmem>>, vector<128x1024xf32>
    tpu.vector_store %arg18[%c0_145, %c0_146], %371 {strides = array<i32>} : memref<128x1024xf32, #tpu.memory_space<vmem>>, vector<128x1024xf32>,
    %c1_i32_147 = arith.constant 1 : i32
    %373 = tpu.memref_slice %arg15[%c1_i32_147] : memref<3x!tpu.dma_semaphore, #tpu.memory_space<semaphore_mem>> -> memref<1x!tpu.dma_semaphore, #tpu.memory_space<semaphore_mem>>
    %374 = tpu.memref_squeeze %373 : memref<1x!tpu.dma_semaphore, #tpu.memory_space<semaphore_mem>> -> memref<!tpu.dma_semaphore, #tpu.memory_space<semaphore_mem>>
    tpu.wait_dma2 semaphore(%374 : memref<!tpu.dma_semaphore, #tpu.memory_space<semaphore_mem>>) src(%arg5 : memref<256x1024xbf16, #tpu.memory_space<any>>) dst(%arg13 : memref<256x1024xbf16, #tpu.memory_space<vmem>>)
    %c0_148 = arith.constant 0 : index
    %c0_149 = arith.constant 0 : index
    %375 = vector.load %arg13[%c0_148, %c0_149] : memref<256x1024xbf16, #tpu.memory_space<vmem>>, vector<256x1024xbf16>
    %cst_150 = arith.constant 0.000000e+00 : f32
    %376 = vector.broadcast %cst_150 : f32 to vector<8x256xf32>
    %c0_151 = arith.constant 0 : index
    %c0_152 = arith.constant 0 : index
    %377 = vector.load %arg18[%c0_151, %c0_152] : memref<128x1024xf32, #tpu.memory_space<vmem>>, vector<8x1024xf32>
    %378 = math.tanh %377 : vector<8x1024xf32>
    %379 = vector.extract_strided_slice %378 {offsets = [0, 0], sizes = [8, 768], strides = [1, 1]} : vector<8x1024xf32> to vector<8x768xf32>
    %cst_153 = arith.constant 5.000000e-01 : f32
    %380 = vector.broadcast %cst_153 : f32 to vector<8x768xf32>
    %381 = arith.mulf %380, %379 : vector<8x768xf32>
    %cst_154 = arith.constant 5.000000e-01 : f32
    %382 = vector.broadcast %cst_154 : f32 to vector<8x768xf32>
    %383 = arith.addf %381, %382 : vector<8x768xf32>
    %384 = vector.extract_strided_slice %378 {offsets = [0, 768], sizes = [8, 256], strides = [1, 1]} : vector<8x1024xf32> to vector<8x256xf32>
    %385 = vector.extract_strided_slice %383 {offsets = [0, 0], sizes = [8, 256], strides = [1, 1]} : vector<8x768xf32> to vector<8x256xf32>
    %386 = vector.extract_strided_slice %383 {offsets = [0, 256], sizes = [8, 256], strides = [1, 1]} : vector<8x768xf32> to vector<8x256xf32>
    %387 = vector.extract_strided_slice %383 {offsets = [0, 512], sizes = [8, 256], strides = [1, 1]} : vector<8x768xf32> to vector<8x256xf32>
    %388 = arith.mulf %386, %376 : vector<8x256xf32>
    %389 = arith.mulf %385, %384 : vector<8x256xf32>
    %390 = arith.addf %388, %389 : vector<8x256xf32>
    %391 = math.tanh %390 : vector<8x256xf32>
    %392 = arith.mulf %387, %391 : vector<8x256xf32>
    %393 = arith.truncf %392 : vector<8x256xf32> to vector<8x256xbf16>
    %394 = vector.extract_strided_slice %393 {offsets = [0, 0], sizes = [8, 128], strides = [1, 1]} : vector<8x256xbf16> to vector<8x128xbf16>
    %c0_155 = arith.constant 0 : index
    %c0_156 = arith.constant 0 : index
    %395 = vector.load %arg19[%c0_155, %c0_156] : memref<8x4096xbf16, #tpu.memory_space<vmem>>, vector<8x128xbf16>
    tpu.vector_store %arg19[%c0_155, %c0_156], %394 {strides = array<i32>} : memref<8x4096xbf16, #tpu.memory_space<vmem>>, vector<8x128xbf16>,
    %396 = vector.extract_strided_slice %393 {offsets = [0, 128], sizes = [8, 128], strides = [1, 1]} : vector<8x256xbf16> to vector<8x128xbf16>
    %c0_157 = arith.constant 0 : index
    %c3968 = arith.constant 3968 : index
    %397 = vector.load %arg19[%c0_157, %c3968] : memref<8x4096xbf16, #tpu.memory_space<vmem>>, vector<8x128xbf16>
    tpu.vector_store %arg19[%c0_157, %c3968], %396 {strides = array<i32>} : memref<8x4096xbf16, #tpu.memory_space<vmem>>, vector<8x128xbf16>,
    %c8_158 = arith.constant 8 : index
    %c0_159 = arith.constant 0 : index
    %398 = vector.load %arg18[%c8_158, %c0_159] : memref<128x1024xf32, #tpu.memory_space<vmem>>, vector<8x1024xf32>
    %399 = arith.truncf %392 : vector<8x256xf32> to vector<8x256xbf16>
    %cst_160 = arith.constant dense<0.000000e+00> : vector<8x1024xf32>
    %400 = tpu.matmul %399, %375, %cst_160 {dimension_numbers = #tpu.dot_dimension_numbers<[1], [0], [0], [1], [0, 0, 1, 1], [], []>} : vector<8x256xbf16>, vector<256x1024xbf16>, vector<8x1024xf32> -> vector<8x1024xf32>
    %401 = arith.addf %398, %400 : vector<8x1024xf32>
    %402 = math.tanh %401 : vector<8x1024xf32>
    %403 = vector.extract_strided_slice %402 {offsets = [0, 0], sizes = [8, 768], strides = [1, 1]} : vector<8x1024xf32> to vector<8x768xf32>
    %cst_161 = arith.constant 5.000000e-01 : f32
    %404 = vector.broadcast %cst_161 : f32 to vector<8x768xf32>
    %405 = arith.mulf %404, %403 : vector<8x768xf32>
    %cst_162 = arith.constant 5.000000e-01 : f32
    %406 = vector.broadcast %cst_162 : f32 to vector<8x768xf32>
    %407 = arith.addf %405, %406 : vector<8x768xf32>
    %408 = vector.extract_strided_slice %402 {offsets = [0, 768], sizes = [8, 256], strides = [1, 1]} : vector<8x1024xf32> to vector<8x256xf32>
    %409 = vector.extract_strided_slice %407 {offsets = [0, 0], sizes = [8, 256], strides = [1, 1]} : vector<8x768xf32> to vector<8x256xf32>
    %410 = vector.extract_strided_slice %407 {offsets = [0, 256], sizes = [8, 256], strides = [1, 1]} : vector<8x768xf32> to vector<8x256xf32>
    %411 = vector.extract_strided_slice %407 {offsets = [0, 512], sizes = [8, 256], strides = [1, 1]} : vector<8x768xf32> to vector<8x256xf32>
    %412 = arith.mulf %410, %390 : vector<8x256xf32>
    %413 = arith.mulf %409, %408 : vector<8x256xf32>
    %414 = arith.addf %412, %413 : vector<8x256xf32>
    %415 = math.tanh %414 : vector<8x256xf32>
    %416 = arith.mulf %411, %415 : vector<8x256xf32>
    %417 = arith.truncf %416 : vector<8x256xf32> to vector<8x256xbf16>
    %418 = vector.extract_strided_slice %417 {offsets = [0, 0], sizes = [8, 128], strides = [1, 1]} : vector<8x256xbf16> to vector<8x128xbf16>
    %c0_163 = arith.constant 0 : index
    %c256 = arith.constant 256 : index
    %419 = vector.load %arg19[%c0_163, %c256] : memref<8x4096xbf16, #tpu.memory_space<vmem>>, vector<8x128xbf16>
    tpu.vector_store %arg19[%c0_163, %c256], %418 {strides = array<i32>} : memref<8x4096xbf16, #tpu.memory_space<vmem>>, vector<8x128xbf16>,
    %420 = vector.extract_strided_slice %417 {offsets = [0, 128], sizes = [8, 128], strides = [1, 1]} : vector<8x256xbf16> to vector<8x128xbf16>
    %c0_164 = arith.constant 0 : index
    %c3712 = arith.constant 3712 : index
    %421 = vector.load %arg19[%c0_164, %c3712] : memref<8x4096xbf16, #tpu.memory_space<vmem>>, vector<8x128xbf16>
    tpu.vector_store %arg19[%c0_164, %c3712], %420 {strides = array<i32>} : memref<8x4096xbf16, #tpu.memory_space<vmem>>, vector<8x128xbf16>,
    %c16_165 = arith.constant 16 : index
    %c0_166 = arith.constant 0 : index
    %422 = vector.load %arg18[%c16_165, %c0_166] : memref<128x1024xf32, #tpu.memory_space<vmem>>, vector<8x1024xf32>
    %423 = arith.truncf %416 : vector<8x256xf32> to vector<8x256xbf16>
    %cst_167 = arith.constant dense<0.000000e+00> : vector<8x1024xf32>
    %424 = tpu.matmul %423, %375, %cst_167 {dimension_numbers = #tpu.dot_dimension_numbers<[1], [0], [0], [1], [0, 0, 1, 1], [], []>} : vector<8x256xbf16>, vector<256x1024xbf16>, vector<8x1024xf32> -> vector<8x1024xf32>
    %425 = arith.addf %422, %424 : vector<8x1024xf32>
    %426 = math.tanh %425 : vector<8x1024xf32>
    %427 = vector.extract_strided_slice %426 {offsets = [0, 0], sizes = [8, 768], strides = [1, 1]} : vector<8x1024xf32> to vector<8x768xf32>
    %cst_168 = arith.constant 5.000000e-01 : f32
    %428 = vector.broadcast %cst_168 : f32 to vector<8x768xf32>
    %429 = arith.mulf %428, %427 : vector<8x768xf32>
    %cst_169 = arith.constant 5.000000e-01 : f32
    %430 = vector.broadcast %cst_169 : f32 to vector<8x768xf32>
    %431 = arith.addf %429, %430 : vector<8x768xf32>
    %432 = vector.extract_strided_slice %426 {offsets = [0, 768], sizes = [8, 256], strides = [1, 1]} : vector<8x1024xf32> to vector<8x256xf32>
    %433 = vector.extract_strided_slice %431 {offsets = [0, 0], sizes = [8, 256], strides = [1, 1]} : vector<8x768xf32> to vector<8x256xf32>
    %434 = vector.extract_strided_slice %431 {offsets = [0, 256], sizes = [8, 256], strides = [1, 1]} : vector<8x768xf32> to vector<8x256xf32>
    %435 = vector.extract_strided_slice %431 {offsets = [0, 512], sizes = [8, 256], strides = [1, 1]} : vector<8x768xf32> to vector<8x256xf32>
    %436 = arith.mulf %434, %414 : vector<8x256xf32>
    %437 = arith.mulf %433, %432 : vector<8x256xf32>
    %438 = arith.addf %436, %437 : vector<8x256xf32>
    %439 = math.tanh %438 : vector<8x256xf32>
    %440 = arith.mulf %435, %439 : vector<8x256xf32>
    %441 = arith.truncf %440 : vector<8x256xf32> to vector<8x256xbf16>
    %442 = vector.extract_strided_slice %441 {offsets = [0, 0], sizes = [8, 128], strides = [1, 1]} : vector<8x256xbf16> to vector<8x128xbf16>
    %c0_170 = arith.constant 0 : index
    %c512 = arith.constant 512 : index
    %443 = vector.load %arg19[%c0_170, %c512] : memref<8x4096xbf16, #tpu.memory_space<vmem>>, vector<8x128xbf16>
    tpu.vector_store %arg19[%c0_170, %c512], %442 {strides = array<i32>} : memref<8x4096xbf16, #tpu.memory_space<vmem>>, vector<8x128xbf16>,
    %444 = vector.extract_strided_slice %441 {offsets = [0, 128], sizes = [8, 128], strides = [1, 1]} : vector<8x256xbf16> to vector<8x128xbf16>
    %c0_171 = arith.constant 0 : index
    %c3456 = arith.constant 3456 : index
    %445 = vector.load %arg19[%c0_171, %c3456] : memref<8x4096xbf16, #tpu.memory_space<vmem>>, vector<8x128xbf16>
    tpu.vector_store %arg19[%c0_171, %c3456], %444 {strides = array<i32>} : memref<8x4096xbf16, #tpu.memory_space<vmem>>, vector<8x128xbf16>,
    %c24_172 = arith.constant 24 : index
    %c0_173 = arith.constant 0 : index
    %446 = vector.load %arg18[%c24_172, %c0_173] : memref<128x1024xf32, #tpu.memory_space<vmem>>, vector<8x1024xf32>
    %447 = arith.truncf %440 : vector<8x256xf32> to vector<8x256xbf16>
    %cst_174 = arith.constant dense<0.000000e+00> : vector<8x1024xf32>
    %448 = tpu.matmul %447, %375, %cst_174 {dimension_numbers = #tpu.dot_dimension_numbers<[1], [0], [0], [1], [0, 0, 1, 1], [], []>} : vector<8x256xbf16>, vector<256x1024xbf16>, vector<8x1024xf32> -> vector<8x1024xf32>
    %449 = arith.addf %446, %448 : vector<8x1024xf32>
    %450 = math.tanh %449 : vector<8x1024xf32>
    %451 = vector.extract_strided_slice %450 {offsets = [0, 0], sizes = [8, 768], strides = [1, 1]} : vector<8x1024xf32> to vector<8x768xf32>
    %cst_175 = arith.constant 5.000000e-01 : f32
    %452 = vector.broadcast %cst_175 : f32 to vector<8x768xf32>
    %453 = arith.mulf %452, %451 : vector<8x768xf32>
    %cst_176 = arith.constant 5.000000e-01 : f32
    %454 = vector.broadcast %cst_176 : f32 to vector<8x768xf32>
    %455 = arith.addf %453, %454 : vector<8x768xf32>
    %456 = vector.extract_strided_slice %450 {offsets = [0, 768], sizes = [8, 256], strides = [1, 1]} : vector<8x1024xf32> to vector<8x256xf32>
    %457 = vector.extract_strided_slice %455 {offsets = [0, 0], sizes = [8, 256], strides = [1, 1]} : vector<8x768xf32> to vector<8x256xf32>
    %458 = vector.extract_strided_slice %455 {offsets = [0, 256], sizes = [8, 256], strides = [1, 1]} : vector<8x768xf32> to vector<8x256xf32>
    %459 = vector.extract_strided_slice %455 {offsets = [0, 512], sizes = [8, 256], strides = [1, 1]} : vector<8x768xf32> to vector<8x256xf32>
    %460 = arith.mulf %458, %438 : vector<8x256xf32>
    %461 = arith.mulf %457, %456 : vector<8x256xf32>
    %462 = arith.addf %460, %461 : vector<8x256xf32>
    %463 = math.tanh %462 : vector<8x256xf32>
    %464 = arith.mulf %459, %463 : vector<8x256xf32>
    %465 = arith.truncf %464 : vector<8x256xf32> to vector<8x256xbf16>
    %466 = vector.extract_strided_slice %465 {offsets = [0, 0], sizes = [8, 128], strides = [1, 1]} : vector<8x256xbf16> to vector<8x128xbf16>
    %c0_177 = arith.constant 0 : index
    %c768 = arith.constant 768 : index
    %467 = vector.load %arg19[%c0_177, %c768] : memref<8x4096xbf16, #tpu.memory_space<vmem>>, vector<8x128xbf16>
    tpu.vector_store %arg19[%c0_177, %c768], %466 {strides = array<i32>} : memref<8x4096xbf16, #tpu.memory_space<vmem>>, vector<8x128xbf16>,
    %468 = vector.extract_strided_slice %465 {offsets = [0, 128], sizes = [8, 128], strides = [1, 1]} : vector<8x256xbf16> to vector<8x128xbf16>
    %c0_178 = arith.constant 0 : index
    %c3200 = arith.constant 3200 : index
    %469 = vector.load %arg19[%c0_178, %c3200] : memref<8x4096xbf16, #tpu.memory_space<vmem>>, vector<8x128xbf16>
    tpu.vector_store %arg19[%c0_178, %c3200], %468 {strides = array<i32>} : memref<8x4096xbf16, #tpu.memory_space<vmem>>, vector<8x128xbf16>,
    %c32_179 = arith.constant 32 : index
    %c0_180 = arith.constant 0 : index
    %470 = vector.load %arg18[%c32_179, %c0_180] : memref<128x1024xf32, #tpu.memory_space<vmem>>, vector<8x1024xf32>
    %471 = arith.truncf %464 : vector<8x256xf32> to vector<8x256xbf16>
    %cst_181 = arith.constant dense<0.000000e+00> : vector<8x1024xf32>
    %472 = tpu.matmul %471, %375, %cst_181 {dimension_numbers = #tpu.dot_dimension_numbers<[1], [0], [0], [1], [0, 0, 1, 1], [], []>} : vector<8x256xbf16>, vector<256x1024xbf16>, vector<8x1024xf32> -> vector<8x1024xf32>
    %473 = arith.addf %470, %472 : vector<8x1024xf32>
    %474 = math.tanh %473 : vector<8x1024xf32>
    %475 = vector.extract_strided_slice %474 {offsets = [0, 0], sizes = [8, 768], strides = [1, 1]} : vector<8x1024xf32> to vector<8x768xf32>
    %cst_182 = arith.constant 5.000000e-01 : f32
    %476 = vector.broadcast %cst_182 : f32 to vector<8x768xf32>
    %477 = arith.mulf %476, %475 : vector<8x768xf32>
    %cst_183 = arith.constant 5.000000e-01 : f32
    %478 = vector.broadcast %cst_183 : f32 to vector<8x768xf32>
    %479 = arith.addf %477, %478 : vector<8x768xf32>
    %480 = vector.extract_strided_slice %474 {offsets = [0, 768], sizes = [8, 256], strides = [1, 1]} : vector<8x1024xf32> to vector<8x256xf32>
    %481 = vector.extract_strided_slice %479 {offsets = [0, 0], sizes = [8, 256], strides = [1, 1]} : vector<8x768xf32> to vector<8x256xf32>
    %482 = vector.extract_strided_slice %479 {offsets = [0, 256], sizes = [8, 256], strides = [1, 1]} : vector<8x768xf32> to vector<8x256xf32>
    %483 = vector.extract_strided_slice %479 {offsets = [0, 512], sizes = [8, 256], strides = [1, 1]} : vector<8x768xf32> to vector<8x256xf32>
    %484 = arith.mulf %482, %462 : vector<8x256xf32>
    %485 = arith.mulf %481, %480 : vector<8x256xf32>
    %486 = arith.addf %484, %485 : vector<8x256xf32>
    %487 = math.tanh %486 : vector<8x256xf32>
    %488 = arith.mulf %483, %487 : vector<8x256xf32>
    %489 = arith.truncf %488 : vector<8x256xf32> to vector<8x256xbf16>
    %490 = vector.extract_strided_slice %489 {offsets = [0, 0], sizes = [8, 128], strides = [1, 1]} : vector<8x256xbf16> to vector<8x128xbf16>
    %c0_184 = arith.constant 0 : index
    %c1024 = arith.constant 1024 : index
    %491 = vector.load %arg19[%c0_184, %c1024] : memref<8x4096xbf16, #tpu.memory_space<vmem>>, vector<8x128xbf16>
    tpu.vector_store %arg19[%c0_184, %c1024], %490 {strides = array<i32>} : memref<8x4096xbf16, #tpu.memory_space<vmem>>, vector<8x128xbf16>,
    %492 = vector.extract_strided_slice %489 {offsets = [0, 128], sizes = [8, 128], strides = [1, 1]} : vector<8x256xbf16> to vector<8x128xbf16>
    %c0_185 = arith.constant 0 : index
    %c2944 = arith.constant 2944 : index
    %493 = vector.load %arg19[%c0_185, %c2944] : memref<8x4096xbf16, #tpu.memory_space<vmem>>, vector<8x128xbf16>
    tpu.vector_store %arg19[%c0_185, %c2944], %492 {strides = array<i32>} : memref<8x4096xbf16, #tpu.memory_space<vmem>>, vector<8x128xbf16>,
    %c40_186 = arith.constant 40 : index
    %c0_187 = arith.constant 0 : index
    %494 = vector.load %arg18[%c40_186, %c0_187] : memref<128x1024xf32, #tpu.memory_space<vmem>>, vector<8x1024xf32>
    %495 = arith.truncf %488 : vector<8x256xf32> to vector<8x256xbf16>
    %cst_188 = arith.constant dense<0.000000e+00> : vector<8x1024xf32>
    %496 = tpu.matmul %495, %375, %cst_188 {dimension_numbers = #tpu.dot_dimension_numbers<[1], [0], [0], [1], [0, 0, 1, 1], [], []>} : vector<8x256xbf16>, vector<256x1024xbf16>, vector<8x1024xf32> -> vector<8x1024xf32>
    %497 = arith.addf %494, %496 : vector<8x1024xf32>
    %498 = math.tanh %497 : vector<8x1024xf32>
    %499 = vector.extract_strided_slice %498 {offsets = [0, 0], sizes = [8, 768], strides = [1, 1]} : vector<8x1024xf32> to vector<8x768xf32>
    %cst_189 = arith.constant 5.000000e-01 : f32
    %500 = vector.broadcast %cst_189 : f32 to vector<8x768xf32>
    %501 = arith.mulf %500, %499 : vector<8x768xf32>
    %cst_190 = arith.constant 5.000000e-01 : f32
    %502 = vector.broadcast %cst_190 : f32 to vector<8x768xf32>
    %503 = arith.addf %501, %502 : vector<8x768xf32>
    %504 = vector.extract_strided_slice %498 {offsets = [0, 768], sizes = [8, 256], strides = [1, 1]} : vector<8x1024xf32> to vector<8x256xf32>
    %505 = vector.extract_strided_slice %503 {offsets = [0, 0], sizes = [8, 256], strides = [1, 1]} : vector<8x768xf32> to vector<8x256xf32>
    %506 = vector.extract_strided_slice %503 {offsets = [0, 256], sizes = [8, 256], strides = [1, 1]} : vector<8x768xf32> to vector<8x256xf32>
    %507 = vector.extract_strided_slice %503 {offsets = [0, 512], sizes = [8, 256], strides = [1, 1]} : vector<8x768xf32> to vector<8x256xf32>
    %508 = arith.mulf %506, %486 : vector<8x256xf32>
    %509 = arith.mulf %505, %504 : vector<8x256xf32>
    %510 = arith.addf %508, %509 : vector<8x256xf32>
    %511 = math.tanh %510 : vector<8x256xf32>
    %512 = arith.mulf %507, %511 : vector<8x256xf32>
    %513 = arith.truncf %512 : vector<8x256xf32> to vector<8x256xbf16>
    %514 = vector.extract_strided_slice %513 {offsets = [0, 0], sizes = [8, 128], strides = [1, 1]} : vector<8x256xbf16> to vector<8x128xbf16>
    %c0_191 = arith.constant 0 : index
    %c1280 = arith.constant 1280 : index
    %515 = vector.load %arg19[%c0_191, %c1280] : memref<8x4096xbf16, #tpu.memory_space<vmem>>, vector<8x128xbf16>
    tpu.vector_store %arg19[%c0_191, %c1280], %514 {strides = array<i32>} : memref<8x4096xbf16, #tpu.memory_space<vmem>>, vector<8x128xbf16>,
    %516 = vector.extract_strided_slice %513 {offsets = [0, 128], sizes = [8, 128], strides = [1, 1]} : vector<8x256xbf16> to vector<8x128xbf16>
    %c0_192 = arith.constant 0 : index
    %c2688 = arith.constant 2688 : index
    %517 = vector.load %arg19[%c0_192, %c2688] : memref<8x4096xbf16, #tpu.memory_space<vmem>>, vector<8x128xbf16>
    tpu.vector_store %arg19[%c0_192, %c2688], %516 {strides = array<i32>} : memref<8x4096xbf16, #tpu.memory_space<vmem>>, vector<8x128xbf16>,
    %c48_193 = arith.constant 48 : index
    %c0_194 = arith.constant 0 : index
    %518 = vector.load %arg18[%c48_193, %c0_194] : memref<128x1024xf32, #tpu.memory_space<vmem>>, vector<8x1024xf32>
    %519 = arith.truncf %512 : vector<8x256xf32> to vector<8x256xbf16>
    %cst_195 = arith.constant dense<0.000000e+00> : vector<8x1024xf32>
    %520 = tpu.matmul %519, %375, %cst_195 {dimension_numbers = #tpu.dot_dimension_numbers<[1], [0], [0], [1], [0, 0, 1, 1], [], []>} : vector<8x256xbf16>, vector<256x1024xbf16>, vector<8x1024xf32> -> vector<8x1024xf32>
    %521 = arith.addf %518, %520 : vector<8x1024xf32>
    %522 = math.tanh %521 : vector<8x1024xf32>
    %523 = vector.extract_strided_slice %522 {offsets = [0, 0], sizes = [8, 768], strides = [1, 1]} : vector<8x1024xf32> to vector<8x768xf32>
    %cst_196 = arith.constant 5.000000e-01 : f32
    %524 = vector.broadcast %cst_196 : f32 to vector<8x768xf32>
    %525 = arith.mulf %524, %523 : vector<8x768xf32>
    %cst_197 = arith.constant 5.000000e-01 : f32
    %526 = vector.broadcast %cst_197 : f32 to vector<8x768xf32>
    %527 = arith.addf %525, %526 : vector<8x768xf32>
    %528 = vector.extract_strided_slice %522 {offsets = [0, 768], sizes = [8, 256], strides = [1, 1]} : vector<8x1024xf32> to vector<8x256xf32>
    %529 = vector.extract_strided_slice %527 {offsets = [0, 0], sizes = [8, 256], strides = [1, 1]} : vector<8x768xf32> to vector<8x256xf32>
    %530 = vector.extract_strided_slice %527 {offsets = [0, 256], sizes = [8, 256], strides = [1, 1]} : vector<8x768xf32> to vector<8x256xf32>
    %531 = vector.extract_strided_slice %527 {offsets = [0, 512], sizes = [8, 256], strides = [1, 1]} : vector<8x768xf32> to vector<8x256xf32>
    %532 = arith.mulf %530, %510 : vector<8x256xf32>
    %533 = arith.mulf %529, %528 : vector<8x256xf32>
    %534 = arith.addf %532, %533 : vector<8x256xf32>
    %535 = math.tanh %534 : vector<8x256xf32>
    %536 = arith.mulf %531, %535 : vector<8x256xf32>
    %537 = arith.truncf %536 : vector<8x256xf32> to vector<8x256xbf16>
    %538 = vector.extract_strided_slice %537 {offsets = [0, 0], sizes = [8, 128], strides = [1, 1]} : vector<8x256xbf16> to vector<8x128xbf16>
    %c0_198 = arith.constant 0 : index
    %c1536 = arith.constant 1536 : index
    %539 = vector.load %arg19[%c0_198, %c1536] : memref<8x4096xbf16, #tpu.memory_space<vmem>>, vector<8x128xbf16>
    tpu.vector_store %arg19[%c0_198, %c1536], %538 {strides = array<i32>} : memref<8x4096xbf16, #tpu.memory_space<vmem>>, vector<8x128xbf16>,
    %540 = vector.extract_strided_slice %537 {offsets = [0, 128], sizes = [8, 128], strides = [1, 1]} : vector<8x256xbf16> to vector<8x128xbf16>
    %c0_199 = arith.constant 0 : index
    %c2432 = arith.constant 2432 : index
    %541 = vector.load %arg19[%c0_199, %c2432] : memref<8x4096xbf16, #tpu.memory_space<vmem>>, vector<8x128xbf16>
    tpu.vector_store %arg19[%c0_199, %c2432], %540 {strides = array<i32>} : memref<8x4096xbf16, #tpu.memory_space<vmem>>, vector<8x128xbf16>,
    %c56_200 = arith.constant 56 : index
    %c0_201 = arith.constant 0 : index
    %542 = vector.load %arg18[%c56_200, %c0_201] : memref<128x1024xf32, #tpu.memory_space<vmem>>, vector<8x1024xf32>
    %543 = arith.truncf %536 : vector<8x256xf32> to vector<8x256xbf16>
    %cst_202 = arith.constant dense<0.000000e+00> : vector<8x1024xf32>
    %544 = tpu.matmul %543, %375, %cst_202 {dimension_numbers = #tpu.dot_dimension_numbers<[1], [0], [0], [1], [0, 0, 1, 1], [], []>} : vector<8x256xbf16>, vector<256x1024xbf16>, vector<8x1024xf32> -> vector<8x1024xf32>
    %545 = arith.addf %542, %544 : vector<8x1024xf32>
    %546 = math.tanh %545 : vector<8x1024xf32>
    %547 = vector.extract_strided_slice %546 {offsets = [0, 0], sizes = [8, 768], strides = [1, 1]} : vector<8x1024xf32> to vector<8x768xf32>
    %cst_203 = arith.constant 5.000000e-01 : f32
    %548 = vector.broadcast %cst_203 : f32 to vector<8x768xf32>
    %549 = arith.mulf %548, %547 : vector<8x768xf32>
    %cst_204 = arith.constant 5.000000e-01 : f32
    %550 = vector.broadcast %cst_204 : f32 to vector<8x768xf32>
    %551 = arith.addf %549, %550 : vector<8x768xf32>
    %552 = vector.extract_strided_slice %546 {offsets = [0, 768], sizes = [8, 256], strides = [1, 1]} : vector<8x1024xf32> to vector<8x256xf32>
    %553 = vector.extract_strided_slice %551 {offsets = [0, 0], sizes = [8, 256], strides = [1, 1]} : vector<8x768xf32> to vector<8x256xf32>
    %554 = vector.extract_strided_slice %551 {offsets = [0, 256], sizes = [8, 256], strides = [1, 1]} : vector<8x768xf32> to vector<8x256xf32>
    %555 = vector.extract_strided_slice %551 {offsets = [0, 512], sizes = [8, 256], strides = [1, 1]} : vector<8x768xf32> to vector<8x256xf32>
    %556 = arith.mulf %554, %534 : vector<8x256xf32>
    %557 = arith.mulf %553, %552 : vector<8x256xf32>
    %558 = arith.addf %556, %557 : vector<8x256xf32>
    %559 = math.tanh %558 : vector<8x256xf32>
    %560 = arith.mulf %555, %559 : vector<8x256xf32>
    %561 = arith.truncf %560 : vector<8x256xf32> to vector<8x256xbf16>
    %562 = vector.extract_strided_slice %561 {offsets = [0, 0], sizes = [8, 128], strides = [1, 1]} : vector<8x256xbf16> to vector<8x128xbf16>
    %c0_205 = arith.constant 0 : index
    %c1792 = arith.constant 1792 : index
    %563 = vector.load %arg19[%c0_205, %c1792] : memref<8x4096xbf16, #tpu.memory_space<vmem>>, vector<8x128xbf16>
    tpu.vector_store %arg19[%c0_205, %c1792], %562 {strides = array<i32>} : memref<8x4096xbf16, #tpu.memory_space<vmem>>, vector<8x128xbf16>,
    %564 = vector.extract_strided_slice %561 {offsets = [0, 128], sizes = [8, 128], strides = [1, 1]} : vector<8x256xbf16> to vector<8x128xbf16>
    %c0_206 = arith.constant 0 : index
    %c2176 = arith.constant 2176 : index
    %565 = vector.load %arg19[%c0_206, %c2176] : memref<8x4096xbf16, #tpu.memory_space<vmem>>, vector<8x128xbf16>
    tpu.vector_store %arg19[%c0_206, %c2176], %564 {strides = array<i32>} : memref<8x4096xbf16, #tpu.memory_space<vmem>>, vector<8x128xbf16>,
    %c64_207 = arith.constant 64 : index
    %c0_208 = arith.constant 0 : index
    %566 = vector.load %arg18[%c64_207, %c0_208] : memref<128x1024xf32, #tpu.memory_space<vmem>>, vector<8x1024xf32>
    %567 = arith.truncf %560 : vector<8x256xf32> to vector<8x256xbf16>
    %cst_209 = arith.constant dense<0.000000e+00> : vector<8x1024xf32>
    %568 = tpu.matmul %567, %375, %cst_209 {dimension_numbers = #tpu.dot_dimension_numbers<[1], [0], [0], [1], [0, 0, 1, 1], [], []>} : vector<8x256xbf16>, vector<256x1024xbf16>, vector<8x1024xf32> -> vector<8x1024xf32>
    %569 = arith.addf %566, %568 : vector<8x1024xf32>
    %570 = math.tanh %569 : vector<8x1024xf32>
    %571 = vector.extract_strided_slice %570 {offsets = [0, 0], sizes = [8, 768], strides = [1, 1]} : vector<8x1024xf32> to vector<8x768xf32>
    %cst_210 = arith.constant 5.000000e-01 : f32
    %572 = vector.broadcast %cst_210 : f32 to vector<8x768xf32>
    %573 = arith.mulf %572, %571 : vector<8x768xf32>
    %cst_211 = arith.constant 5.000000e-01 : f32
    %574 = vector.broadcast %cst_211 : f32 to vector<8x768xf32>
    %575 = arith.addf %573, %574 : vector<8x768xf32>
    %576 = vector.extract_strided_slice %570 {offsets = [0, 768], sizes = [8, 256], strides = [1, 1]} : vector<8x1024xf32> to vector<8x256xf32>
    %577 = vector.extract_strided_slice %575 {offsets = [0, 0], sizes = [8, 256], strides = [1, 1]} : vector<8x768xf32> to vector<8x256xf32>
    %578 = vector.extract_strided_slice %575 {offsets = [0, 256], sizes = [8, 256], strides = [1, 1]} : vector<8x768xf32> to vector<8x256xf32>
    %579 = vector.extract_strided_slice %575 {offsets = [0, 512], sizes = [8, 256], strides = [1, 1]} : vector<8x768xf32> to vector<8x256xf32>
    %580 = arith.mulf %578, %558 : vector<8x256xf32>
    %581 = arith.mulf %577, %576 : vector<8x256xf32>
    %582 = arith.addf %580, %581 : vector<8x256xf32>
    %583 = math.tanh %582 : vector<8x256xf32>
    %584 = arith.mulf %579, %583 : vector<8x256xf32>
    %585 = arith.truncf %584 : vector<8x256xf32> to vector<8x256xbf16>
    %586 = vector.extract_strided_slice %585 {offsets = [0, 0], sizes = [8, 128], strides = [1, 1]} : vector<8x256xbf16> to vector<8x128xbf16>
    %c0_212 = arith.constant 0 : index
    %c2048 = arith.constant 2048 : index
    %587 = vector.load %arg19[%c0_212, %c2048] : memref<8x4096xbf16, #tpu.memory_space<vmem>>, vector<8x128xbf16>
    tpu.vector_store %arg19[%c0_212, %c2048], %586 {strides = array<i32>} : memref<8x4096xbf16, #tpu.memory_space<vmem>>, vector<8x128xbf16>,
    %588 = vector.extract_strided_slice %585 {offsets = [0, 128], sizes = [8, 128], strides = [1, 1]} : vector<8x256xbf16> to vector<8x128xbf16>
    %c0_213 = arith.constant 0 : index
    %c1920 = arith.constant 1920 : index
    %589 = vector.load %arg19[%c0_213, %c1920] : memref<8x4096xbf16, #tpu.memory_space<vmem>>, vector<8x128xbf16>
    tpu.vector_store %arg19[%c0_213, %c1920], %588 {strides = array<i32>} : memref<8x4096xbf16, #tpu.memory_space<vmem>>, vector<8x128xbf16>,
    %c72_214 = arith.constant 72 : index
    %c0_215 = arith.constant 0 : index
    %590 = vector.load %arg18[%c72_214, %c0_215] : memref<128x1024xf32, #tpu.memory_space<vmem>>, vector<8x1024xf32>
    %591 = arith.truncf %584 : vector<8x256xf32> to vector<8x256xbf16>
    %cst_216 = arith.constant dense<0.000000e+00> : vector<8x1024xf32>
    %592 = tpu.matmul %591, %375, %cst_216 {dimension_numbers = #tpu.dot_dimension_numbers<[1], [0], [0], [1], [0, 0, 1, 1], [], []>} : vector<8x256xbf16>, vector<256x1024xbf16>, vector<8x1024xf32> -> vector<8x1024xf32>
    %593 = arith.addf %590, %592 : vector<8x1024xf32>
    %594 = math.tanh %593 : vector<8x1024xf32>
    %595 = vector.extract_strided_slice %594 {offsets = [0, 0], sizes = [8, 768], strides = [1, 1]} : vector<8x1024xf32> to vector<8x768xf32>
    %cst_217 = arith.constant 5.000000e-01 : f32
    %596 = vector.broadcast %cst_217 : f32 to vector<8x768xf32>
    %597 = arith.mulf %596, %595 : vector<8x768xf32>
    %cst_218 = arith.constant 5.000000e-01 : f32
    %598 = vector.broadcast %cst_218 : f32 to vector<8x768xf32>
    %599 = arith.addf %597, %598 : vector<8x768xf32>
    %600 = vector.extract_strided_slice %594 {offsets = [0, 768], sizes = [8, 256], strides = [1, 1]} : vector<8x1024xf32> to vector<8x256xf32>
    %601 = vector.extract_strided_slice %599 {offsets = [0, 0], sizes = [8, 256], strides = [1, 1]} : vector<8x768xf32> to vector<8x256xf32>
    %602 = vector.extract_strided_slice %599 {offsets = [0, 256], sizes = [8, 256], strides = [1, 1]} : vector<8x768xf32> to vector<8x256xf32>
    %603 = vector.extract_strided_slice %599 {offsets = [0, 512], sizes = [8, 256], strides = [1, 1]} : vector<8x768xf32> to vector<8x256xf32>
    %604 = arith.mulf %602, %582 : vector<8x256xf32>
    %605 = arith.mulf %601, %600 : vector<8x256xf32>
    %606 = arith.addf %604, %605 : vector<8x256xf32>
    %607 = math.tanh %606 : vector<8x256xf32>
    %608 = arith.mulf %603, %607 : vector<8x256xf32>
    %609 = arith.truncf %608 : vector<8x256xf32> to vector<8x256xbf16>
    %610 = vector.extract_strided_slice %609 {offsets = [0, 0], sizes = [8, 128], strides = [1, 1]} : vector<8x256xbf16> to vector<8x128xbf16>
    %c0_219 = arith.constant 0 : index
    %c2304 = arith.constant 2304 : index
    %611 = vector.load %arg19[%c0_219, %c2304] : memref<8x4096xbf16, #tpu.memory_space<vmem>>, vector<8x128xbf16>
    tpu.vector_store %arg19[%c0_219, %c2304], %610 {strides = array<i32>} : memref<8x4096xbf16, #tpu.memory_space<vmem>>, vector<8x128xbf16>,
    %612 = vector.extract_strided_slice %609 {offsets = [0, 128], sizes = [8, 128], strides = [1, 1]} : vector<8x256xbf16> to vector<8x128xbf16>
    %c0_220 = arith.constant 0 : index
    %c1664 = arith.constant 1664 : index
    %613 = vector.load %arg19[%c0_220, %c1664] : memref<8x4096xbf16, #tpu.memory_space<vmem>>, vector<8x128xbf16>
    tpu.vector_store %arg19[%c0_220, %c1664], %612 {strides = array<i32>} : memref<8x4096xbf16, #tpu.memory_space<vmem>>, vector<8x128xbf16>,
    %c80_221 = arith.constant 80 : index
    %c0_222 = arith.constant 0 : index
    %614 = vector.load %arg18[%c80_221, %c0_222] : memref<128x1024xf32, #tpu.memory_space<vmem>>, vector<8x1024xf32>
    %615 = arith.truncf %608 : vector<8x256xf32> to vector<8x256xbf16>
    %cst_223 = arith.constant dense<0.000000e+00> : vector<8x1024xf32>
    %616 = tpu.matmul %615, %375, %cst_223 {dimension_numbers = #tpu.dot_dimension_numbers<[1], [0], [0], [1], [0, 0, 1, 1], [], []>} : vector<8x256xbf16>, vector<256x1024xbf16>, vector<8x1024xf32> -> vector<8x1024xf32>
    %617 = arith.addf %614, %616 : vector<8x1024xf32>
    %618 = math.tanh %617 : vector<8x1024xf32>
    %619 = vector.extract_strided_slice %618 {offsets = [0, 0], sizes = [8, 768], strides = [1, 1]} : vector<8x1024xf32> to vector<8x768xf32>
    %cst_224 = arith.constant 5.000000e-01 : f32
    %620 = vector.broadcast %cst_224 : f32 to vector<8x768xf32>
    %621 = arith.mulf %620, %619 : vector<8x768xf32>
    %cst_225 = arith.constant 5.000000e-01 : f32
    %622 = vector.broadcast %cst_225 : f32 to vector<8x768xf32>
    %623 = arith.addf %621, %622 : vector<8x768xf32>
    %624 = vector.extract_strided_slice %618 {offsets = [0, 768], sizes = [8, 256], strides = [1, 1]} : vector<8x1024xf32> to vector<8x256xf32>
    %625 = vector.extract_strided_slice %623 {offsets = [0, 0], sizes = [8, 256], strides = [1, 1]} : vector<8x768xf32> to vector<8x256xf32>
    %626 = vector.extract_strided_slice %623 {offsets = [0, 256], sizes = [8, 256], strides = [1, 1]} : vector<8x768xf32> to vector<8x256xf32>
    %627 = vector.extract_strided_slice %623 {offsets = [0, 512], sizes = [8, 256], strides = [1, 1]} : vector<8x768xf32> to vector<8x256xf32>
    %628 = arith.mulf %626, %606 : vector<8x256xf32>
    %629 = arith.mulf %625, %624 : vector<8x256xf32>
    %630 = arith.addf %628, %629 : vector<8x256xf32>
    %631 = math.tanh %630 : vector<8x256xf32>
    %632 = arith.mulf %627, %631 : vector<8x256xf32>
    %633 = arith.truncf %632 : vector<8x256xf32> to vector<8x256xbf16>
    %634 = vector.extract_strided_slice %633 {offsets = [0, 0], sizes = [8, 128], strides = [1, 1]} : vector<8x256xbf16> to vector<8x128xbf16>
    %c0_226 = arith.constant 0 : index
    %c2560 = arith.constant 2560 : index
    %635 = vector.load %arg19[%c0_226, %c2560] : memref<8x4096xbf16, #tpu.memory_space<vmem>>, vector<8x128xbf16>
    tpu.vector_store %arg19[%c0_226, %c2560], %634 {strides = array<i32>} : memref<8x4096xbf16, #tpu.memory_space<vmem>>, vector<8x128xbf16>,
    %636 = vector.extract_strided_slice %633 {offsets = [0, 128], sizes = [8, 128], strides = [1, 1]} : vector<8x256xbf16> to vector<8x128xbf16>
    %c0_227 = arith.constant 0 : index
    %c1408 = arith.constant 1408 : index
    %637 = vector.load %arg19[%c0_227, %c1408] : memref<8x4096xbf16, #tpu.memory_space<vmem>>, vector<8x128xbf16>
    tpu.vector_store %arg19[%c0_227, %c1408], %636 {strides = array<i32>} : memref<8x4096xbf16, #tpu.memory_space<vmem>>, vector<8x128xbf16>,
    %c88_228 = arith.constant 88 : index
    %c0_229 = arith.constant 0 : index
    %638 = vector.load %arg18[%c88_228, %c0_229] : memref<128x1024xf32, #tpu.memory_space<vmem>>, vector<8x1024xf32>
    %639 = arith.truncf %632 : vector<8x256xf32> to vector<8x256xbf16>
    %cst_230 = arith.constant dense<0.000000e+00> : vector<8x1024xf32>
    %640 = tpu.matmul %639, %375, %cst_230 {dimension_numbers = #tpu.dot_dimension_numbers<[1], [0], [0], [1], [0, 0, 1, 1], [], []>} : vector<8x256xbf16>, vector<256x1024xbf16>, vector<8x1024xf32> -> vector<8x1024xf32>
    %641 = arith.addf %638, %640 : vector<8x1024xf32>
    %642 = math.tanh %641 : vector<8x1024xf32>
    %643 = vector.extract_strided_slice %642 {offsets = [0, 0], sizes = [8, 768], strides = [1, 1]} : vector<8x1024xf32> to vector<8x768xf32>
    %cst_231 = arith.constant 5.000000e-01 : f32
    %644 = vector.broadcast %cst_231 : f32 to vector<8x768xf32>
    %645 = arith.mulf %644, %643 : vector<8x768xf32>
    %cst_232 = arith.constant 5.000000e-01 : f32
    %646 = vector.broadcast %cst_232 : f32 to vector<8x768xf32>
    %647 = arith.addf %645, %646 : vector<8x768xf32>
    %648 = vector.extract_strided_slice %642 {offsets = [0, 768], sizes = [8, 256], strides = [1, 1]} : vector<8x1024xf32> to vector<8x256xf32>
    %649 = vector.extract_strided_slice %647 {offsets = [0, 0], sizes = [8, 256], strides = [1, 1]} : vector<8x768xf32> to vector<8x256xf32>
    %650 = vector.extract_strided_slice %647 {offsets = [0, 256], sizes = [8, 256], strides = [1, 1]} : vector<8x768xf32> to vector<8x256xf32>
    %651 = vector.extract_strided_slice %647 {offsets = [0, 512], sizes = [8, 256], strides = [1, 1]} : vector<8x768xf32> to vector<8x256xf32>
    %652 = arith.mulf %650, %630 : vector<8x256xf32>
    %653 = arith.mulf %649, %648 : vector<8x256xf32>
    %654 = arith.addf %652, %653 : vector<8x256xf32>
    %655 = math.tanh %654 : vector<8x256xf32>
    %656 = arith.mulf %651, %655 : vector<8x256xf32>
    %657 = arith.truncf %656 : vector<8x256xf32> to vector<8x256xbf16>
    %658 = vector.extract_strided_slice %657 {offsets = [0, 0], sizes = [8, 128], strides = [1, 1]} : vector<8x256xbf16> to vector<8x128xbf16>
    %c0_233 = arith.constant 0 : index
    %c2816 = arith.constant 2816 : index
    %659 = vector.load %arg19[%c0_233, %c2816] : memref<8x4096xbf16, #tpu.memory_space<vmem>>, vector<8x128xbf16>
    tpu.vector_store %arg19[%c0_233, %c2816], %658 {strides = array<i32>} : memref<8x4096xbf16, #tpu.memory_space<vmem>>, vector<8x128xbf16>,
    %660 = vector.extract_strided_slice %657 {offsets = [0, 128], sizes = [8, 128], strides = [1, 1]} : vector<8x256xbf16> to vector<8x128xbf16>
    %c0_234 = arith.constant 0 : index
    %c1152 = arith.constant 1152 : index
    %661 = vector.load %arg19[%c0_234, %c1152] : memref<8x4096xbf16, #tpu.memory_space<vmem>>, vector<8x128xbf16>
    tpu.vector_store %arg19[%c0_234, %c1152], %660 {strides = array<i32>} : memref<8x4096xbf16, #tpu.memory_space<vmem>>, vector<8x128xbf16>,
    %c96_235 = arith.constant 96 : index
    %c0_236 = arith.constant 0 : index
    %662 = vector.load %arg18[%c96_235, %c0_236] : memref<128x1024xf32, #tpu.memory_space<vmem>>, vector<8x1024xf32>
    %663 = arith.truncf %656 : vector<8x256xf32> to vector<8x256xbf16>
    %cst_237 = arith.constant dense<0.000000e+00> : vector<8x1024xf32>
    %664 = tpu.matmul %663, %375, %cst_237 {dimension_numbers = #tpu.dot_dimension_numbers<[1], [0], [0], [1], [0, 0, 1, 1], [], []>} : vector<8x256xbf16>, vector<256x1024xbf16>, vector<8x1024xf32> -> vector<8x1024xf32>
    %665 = arith.addf %662, %664 : vector<8x1024xf32>
    %666 = math.tanh %665 : vector<8x1024xf32>
    %667 = vector.extract_strided_slice %666 {offsets = [0, 0], sizes = [8, 768], strides = [1, 1]} : vector<8x1024xf32> to vector<8x768xf32>
    %cst_238 = arith.constant 5.000000e-01 : f32
    %668 = vector.broadcast %cst_238 : f32 to vector<8x768xf32>
    %669 = arith.mulf %668, %667 : vector<8x768xf32>
    %cst_239 = arith.constant 5.000000e-01 : f32
    %670 = vector.broadcast %cst_239 : f32 to vector<8x768xf32>
    %671 = arith.addf %669, %670 : vector<8x768xf32>
    %672 = vector.extract_strided_slice %666 {offsets = [0, 768], sizes = [8, 256], strides = [1, 1]} : vector<8x1024xf32> to vector<8x256xf32>
    %673 = vector.extract_strided_slice %671 {offsets = [0, 0], sizes = [8, 256], strides = [1, 1]} : vector<8x768xf32> to vector<8x256xf32>
    %674 = vector.extract_strided_slice %671 {offsets = [0, 256], sizes = [8, 256], strides = [1, 1]} : vector<8x768xf32> to vector<8x256xf32>
    %675 = vector.extract_strided_slice %671 {offsets = [0, 512], sizes = [8, 256], strides = [1, 1]} : vector<8x768xf32> to vector<8x256xf32>
    %676 = arith.mulf %674, %654 : vector<8x256xf32>
    %677 = arith.mulf %673, %672 : vector<8x256xf32>
    %678 = arith.addf %676, %677 : vector<8x256xf32>
    %679 = math.tanh %678 : vector<8x256xf32>
    %680 = arith.mulf %675, %679 : vector<8x256xf32>
    %681 = arith.truncf %680 : vector<8x256xf32> to vector<8x256xbf16>
    %682 = vector.extract_strided_slice %681 {offsets = [0, 0], sizes = [8, 128], strides = [1, 1]} : vector<8x256xbf16> to vector<8x128xbf16>
    %c0_240 = arith.constant 0 : index
    %c3072 = arith.constant 3072 : index
    %683 = vector.load %arg19[%c0_240, %c3072] : memref<8x4096xbf16, #tpu.memory_space<vmem>>, vector<8x128xbf16>
    tpu.vector_store %arg19[%c0_240, %c3072], %682 {strides = array<i32>} : memref<8x4096xbf16, #tpu.memory_space<vmem>>, vector<8x128xbf16>,
    %684 = vector.extract_strided_slice %681 {offsets = [0, 128], sizes = [8, 128], strides = [1, 1]} : vector<8x256xbf16> to vector<8x128xbf16>
    %c0_241 = arith.constant 0 : index
    %c896 = arith.constant 896 : index
    %685 = vector.load %arg19[%c0_241, %c896] : memref<8x4096xbf16, #tpu.memory_space<vmem>>, vector<8x128xbf16>
    tpu.vector_store %arg19[%c0_241, %c896], %684 {strides = array<i32>} : memref<8x4096xbf16, #tpu.memory_space<vmem>>, vector<8x128xbf16>,
    %c104_242 = arith.constant 104 : index
    %c0_243 = arith.constant 0 : index
    %686 = vector.load %arg18[%c104_242, %c0_243] : memref<128x1024xf32, #tpu.memory_space<vmem>>, vector<8x1024xf32>
    %687 = arith.truncf %680 : vector<8x256xf32> to vector<8x256xbf16>
    %cst_244 = arith.constant dense<0.000000e+00> : vector<8x1024xf32>
    %688 = tpu.matmul %687, %375, %cst_244 {dimension_numbers = #tpu.dot_dimension_numbers<[1], [0], [0], [1], [0, 0, 1, 1], [], []>} : vector<8x256xbf16>, vector<256x1024xbf16>, vector<8x1024xf32> -> vector<8x1024xf32>
    %689 = arith.addf %686, %688 : vector<8x1024xf32>
    %690 = math.tanh %689 : vector<8x1024xf32>
    %691 = vector.extract_strided_slice %690 {offsets = [0, 0], sizes = [8, 768], strides = [1, 1]} : vector<8x1024xf32> to vector<8x768xf32>
    %cst_245 = arith.constant 5.000000e-01 : f32
    %692 = vector.broadcast %cst_245 : f32 to vector<8x768xf32>
    %693 = arith.mulf %692, %691 : vector<8x768xf32>
    %cst_246 = arith.constant 5.000000e-01 : f32
    %694 = vector.broadcast %cst_246 : f32 to vector<8x768xf32>
    %695 = arith.addf %693, %694 : vector<8x768xf32>
    %696 = vector.extract_strided_slice %690 {offsets = [0, 768], sizes = [8, 256], strides = [1, 1]} : vector<8x1024xf32> to vector<8x256xf32>
    %697 = vector.extract_strided_slice %695 {offsets = [0, 0], sizes = [8, 256], strides = [1, 1]} : vector<8x768xf32> to vector<8x256xf32>
    %698 = vector.extract_strided_slice %695 {offsets = [0, 256], sizes = [8, 256], strides = [1, 1]} : vector<8x768xf32> to vector<8x256xf32>
    %699 = vector.extract_strided_slice %695 {offsets = [0, 512], sizes = [8, 256], strides = [1, 1]} : vector<8x768xf32> to vector<8x256xf32>
    %700 = arith.mulf %698, %678 : vector<8x256xf32>
    %701 = arith.mulf %697, %696 : vector<8x256xf32>
    %702 = arith.addf %700, %701 : vector<8x256xf32>
    %703 = math.tanh %702 : vector<8x256xf32>
    %704 = arith.mulf %699, %703 : vector<8x256xf32>
    %705 = arith.truncf %704 : vector<8x256xf32> to vector<8x256xbf16>
    %706 = vector.extract_strided_slice %705 {offsets = [0, 0], sizes = [8, 128], strides = [1, 1]} : vector<8x256xbf16> to vector<8x128xbf16>
    %c0_247 = arith.constant 0 : index
    %c3328 = arith.constant 3328 : index
    %707 = vector.load %arg19[%c0_247, %c3328] : memref<8x4096xbf16, #tpu.memory_space<vmem>>, vector<8x128xbf16>
    tpu.vector_store %arg19[%c0_247, %c3328], %706 {strides = array<i32>} : memref<8x4096xbf16, #tpu.memory_space<vmem>>, vector<8x128xbf16>,
    %708 = vector.extract_strided_slice %705 {offsets = [0, 128], sizes = [8, 128], strides = [1, 1]} : vector<8x256xbf16> to vector<8x128xbf16>
    %c0_248 = arith.constant 0 : index
    %c640 = arith.constant 640 : index
    %709 = vector.load %arg19[%c0_248, %c640] : memref<8x4096xbf16, #tpu.memory_space<vmem>>, vector<8x128xbf16>
    tpu.vector_store %arg19[%c0_248, %c640], %708 {strides = array<i32>} : memref<8x4096xbf16, #tpu.memory_space<vmem>>, vector<8x128xbf16>,
    %c112_249 = arith.constant 112 : index
    %c0_250 = arith.constant 0 : index
    %710 = vector.load %arg18[%c112_249, %c0_250] : memref<128x1024xf32, #tpu.memory_space<vmem>>, vector<8x1024xf32>
    %711 = arith.truncf %704 : vector<8x256xf32> to vector<8x256xbf16>
    %cst_251 = arith.constant dense<0.000000e+00> : vector<8x1024xf32>
    %712 = tpu.matmul %711, %375, %cst_251 {dimension_numbers = #tpu.dot_dimension_numbers<[1], [0], [0], [1], [0, 0, 1, 1], [], []>} : vector<8x256xbf16>, vector<256x1024xbf16>, vector<8x1024xf32> -> vector<8x1024xf32>
    %713 = arith.addf %710, %712 : vector<8x1024xf32>
    %714 = math.tanh %713 : vector<8x1024xf32>
    %715 = vector.extract_strided_slice %714 {offsets = [0, 0], sizes = [8, 768], strides = [1, 1]} : vector<8x1024xf32> to vector<8x768xf32>
    %cst_252 = arith.constant 5.000000e-01 : f32
    %716 = vector.broadcast %cst_252 : f32 to vector<8x768xf32>
    %717 = arith.mulf %716, %715 : vector<8x768xf32>
    %cst_253 = arith.constant 5.000000e-01 : f32
    %718 = vector.broadcast %cst_253 : f32 to vector<8x768xf32>
    %719 = arith.addf %717, %718 : vector<8x768xf32>
    %720 = vector.extract_strided_slice %714 {offsets = [0, 768], sizes = [8, 256], strides = [1, 1]} : vector<8x1024xf32> to vector<8x256xf32>
    %721 = vector.extract_strided_slice %719 {offsets = [0, 0], sizes = [8, 256], strides = [1, 1]} : vector<8x768xf32> to vector<8x256xf32>
    %722 = vector.extract_strided_slice %719 {offsets = [0, 256], sizes = [8, 256], strides = [1, 1]} : vector<8x768xf32> to vector<8x256xf32>
    %723 = vector.extract_strided_slice %719 {offsets = [0, 512], sizes = [8, 256], strides = [1, 1]} : vector<8x768xf32> to vector<8x256xf32>
    %724 = arith.mulf %722, %702 : vector<8x256xf32>
    %725 = arith.mulf %721, %720 : vector<8x256xf32>
    %726 = arith.addf %724, %725 : vector<8x256xf32>
    %727 = math.tanh %726 : vector<8x256xf32>
    %728 = arith.mulf %723, %727 : vector<8x256xf32>
    %729 = arith.truncf %728 : vector<8x256xf32> to vector<8x256xbf16>
    %730 = vector.extract_strided_slice %729 {offsets = [0, 0], sizes = [8, 128], strides = [1, 1]} : vector<8x256xbf16> to vector<8x128xbf16>
    %c0_254 = arith.constant 0 : index
    %c3584 = arith.constant 3584 : index
    %731 = vector.load %arg19[%c0_254, %c3584] : memref<8x4096xbf16, #tpu.memory_space<vmem>>, vector<8x128xbf16>
    tpu.vector_store %arg19[%c0_254, %c3584], %730 {strides = array<i32>} : memref<8x4096xbf16, #tpu.memory_space<vmem>>, vector<8x128xbf16>,
    %732 = vector.extract_strided_slice %729 {offsets = [0, 128], sizes = [8, 128], strides = [1, 1]} : vector<8x256xbf16> to vector<8x128xbf16>
    %c0_255 = arith.constant 0 : index
    %c384 = arith.constant 384 : index
    %733 = vector.load %arg19[%c0_255, %c384] : memref<8x4096xbf16, #tpu.memory_space<vmem>>, vector<8x128xbf16>
    tpu.vector_store %arg19[%c0_255, %c384], %732 {strides = array<i32>} : memref<8x4096xbf16, #tpu.memory_space<vmem>>, vector<8x128xbf16>,
    %c120_256 = arith.constant 120 : index
    %c0_257 = arith.constant 0 : index
    %734 = vector.load %arg18[%c120_256, %c0_257] : memref<128x1024xf32, #tpu.memory_space<vmem>>, vector<8x1024xf32>
    %735 = arith.truncf %728 : vector<8x256xf32> to vector<8x256xbf16>
    %cst_258 = arith.constant dense<0.000000e+00> : vector<8x1024xf32>
    %736 = tpu.matmul %735, %375, %cst_258 {dimension_numbers = #tpu.dot_dimension_numbers<[1], [0], [0], [1], [0, 0, 1, 1], [], []>} : vector<8x256xbf16>, vector<256x1024xbf16>, vector<8x1024xf32> -> vector<8x1024xf32>
    %737 = arith.addf %734, %736 : vector<8x1024xf32>
    %738 = math.tanh %737 : vector<8x1024xf32>
    %739 = vector.extract_strided_slice %738 {offsets = [0, 0], sizes = [8, 768], strides = [1, 1]} : vector<8x1024xf32> to vector<8x768xf32>
    %cst_259 = arith.constant 5.000000e-01 : f32
    %740 = vector.broadcast %cst_259 : f32 to vector<8x768xf32>
    %741 = arith.mulf %740, %739 : vector<8x768xf32>
    %cst_260 = arith.constant 5.000000e-01 : f32
    %742 = vector.broadcast %cst_260 : f32 to vector<8x768xf32>
    %743 = arith.addf %741, %742 : vector<8x768xf32>
    %744 = vector.extract_strided_slice %738 {offsets = [0, 768], sizes = [8, 256], strides = [1, 1]} : vector<8x1024xf32> to vector<8x256xf32>
    %745 = vector.extract_strided_slice %743 {offsets = [0, 0], sizes = [8, 256], strides = [1, 1]} : vector<8x768xf32> to vector<8x256xf32>
    %746 = vector.extract_strided_slice %743 {offsets = [0, 256], sizes = [8, 256], strides = [1, 1]} : vector<8x768xf32> to vector<8x256xf32>
    %747 = vector.extract_strided_slice %743 {offsets = [0, 512], sizes = [8, 256], strides = [1, 1]} : vector<8x768xf32> to vector<8x256xf32>
    %748 = arith.mulf %746, %726 : vector<8x256xf32>
    %749 = arith.mulf %745, %744 : vector<8x256xf32>
    %750 = arith.addf %748, %749 : vector<8x256xf32>
    %751 = math.tanh %750 : vector<8x256xf32>
    %752 = arith.mulf %747, %751 : vector<8x256xf32>
    %753 = arith.truncf %752 : vector<8x256xf32> to vector<8x256xbf16>
    %754 = vector.extract_strided_slice %753 {offsets = [0, 0], sizes = [8, 128], strides = [1, 1]} : vector<8x256xbf16> to vector<8x128xbf16>
    %c0_261 = arith.constant 0 : index
    %c3840 = arith.constant 3840 : index
    %755 = vector.load %arg19[%c0_261, %c3840] : memref<8x4096xbf16, #tpu.memory_space<vmem>>, vector<8x128xbf16>
    tpu.vector_store %arg19[%c0_261, %c3840], %754 {strides = array<i32>} : memref<8x4096xbf16, #tpu.memory_space<vmem>>, vector<8x128xbf16>,
    %756 = vector.extract_strided_slice %753 {offsets = [0, 128], sizes = [8, 128], strides = [1, 1]} : vector<8x256xbf16> to vector<8x128xbf16>
    %c0_262 = arith.constant 0 : index
    %c128_263 = arith.constant 128 : index
    %757 = vector.load %arg19[%c0_262, %c128_263] : memref<8x4096xbf16, #tpu.memory_space<vmem>>, vector<8x128xbf16>
    tpu.vector_store %arg19[%c0_262, %c128_263], %756 {strides = array<i32>} : memref<8x4096xbf16, #tpu.memory_space<vmem>>, vector<8x128xbf16>,
    %c2_i32_264 = arith.constant 2 : i32
    %758 = tpu.memref_slice %arg15[%c2_i32_264] : memref<3x!tpu.dma_semaphore, #tpu.memory_space<semaphore_mem>> -> memref<1x!tpu.dma_semaphore, #tpu.memory_space<semaphore_mem>>
    %759 = tpu.memref_squeeze %758 : memref<1x!tpu.dma_semaphore, #tpu.memory_space<semaphore_mem>> -> memref<!tpu.dma_semaphore, #tpu.memory_space<semaphore_mem>>
    tpu.wait_dma2 semaphore(%759 : memref<!tpu.dma_semaphore, #tpu.memory_space<semaphore_mem>>) src(%arg7 : memref<4096x128xbf16, #tpu.memory_space<any>>) dst(%arg14 : memref<4096x128xbf16, #tpu.memory_space<vmem>>)
    %c0_265 = arith.constant 0 : index
    %c0_266 = arith.constant 0 : index
    %760 = vector.load %arg19[%c0_265, %c0_266] : memref<8x4096xbf16, #tpu.memory_space<vmem>>, vector<8x4096xbf16>
    %c0_267 = arith.constant 0 : index
    %c0_268 = arith.constant 0 : index
    %761 = vector.load %arg14[%c0_267, %c0_268] : memref<4096x128xbf16, #tpu.memory_space<vmem>>, vector<4096x128xbf16>
    %cst_269 = arith.constant dense<0.000000e+00> : vector<8x128xf32>
    %762 = tpu.matmul %760, %761, %cst_269 {dimension_numbers = #tpu.dot_dimension_numbers<[1], [0], [0], [1], [0, 0, 1, 1], [], []>} : vector<8x4096xbf16>, vector<4096x128xbf16>, vector<8x128xf32> -> vector<8x128xf32>
    %c0_270 = arith.constant 0 : index
    %c0_271 = arith.constant 0 : index
    %763 = vector.load %arg8[%c0_270, %c0_271] : memref<1x128xf32, #tpu.memory_space<vmem>>, vector<1x128xf32>
    %764 = vector.broadcast %763 : vector<1x128xf32> to vector<8x128xf32>
    %765 = arith.addf %762, %764 : vector<8x128xf32>
    %766 = math.tanh %765 : vector<8x128xf32>
    %767 = arith.truncf %766 : vector<8x128xf32> to vector<8x128xbf16>
    %c0_272 = arith.constant 0 : index
    %c0_273 = arith.constant 0 : index
    %768 = vector.load %arg9[%c0_272, %c0_273] : memref<128x128xbf16, #tpu.memory_space<vmem>>, vector<128x128xbf16>
    %cst_274 = arith.constant dense<0.000000e+00> : vector<8x128xf32>
    %769 = tpu.matmul %767, %768, %cst_274 {dimension_numbers = #tpu.dot_dimension_numbers<[1], [0], [0], [1], [0, 0, 1, 1], [], []>} : vector<8x128xbf16>, vector<128x128xbf16>, vector<8x128xf32> -> vector<8x128xf32>
    %c0_275 = arith.constant 0 : index
    %c0_276 = arith.constant 0 : index
    %770 = vector.load %arg10[%c0_275, %c0_276] : memref<1x128xf32, #tpu.memory_space<vmem>>, vector<1x128xf32>
    %771 = vector.broadcast %770 : vector<1x128xf32> to vector<8x128xf32>
    %772 = arith.addf %769, %771 : vector<8x128xf32>
    %c0_277 = arith.constant 0 : index
    %c0_278 = arith.constant 0 : index
    %773 = vector.load %arg11[%c0_277, %c0_278] : memref<8x128xf32, #tpu.memory_space<vmem>>, vector<8x128xf32>
    tpu.vector_store %arg11[%c0_277, %c0_278], %772 {strides = array<i32>} : memref<8x128xf32, #tpu.memory_space<vmem>>, vector<8x128xf32>,
    return
  }
}

</mosaic_0001>

<llo_original>
// kernel: bilstm_nilm_forward.1
$region0: #{bilstm_nilm_forward.1}
  #allocation0 [shape = 'u32[]', space=smem, size = 0x4, offset = 0x4, fixed_abs, tag = 'smem constant byte address 0x4 - core index']
  #allocation1 [shape = 'u32[72,128]{1,0:T(1,128)}', space=vmem, size = 0x9000, scoped, tag = 'internal scratch']
  #allocation2 [shape = 'bf16[256,1024]{1,0:T(8,128)(2,1)}', space=vmem, size = 0x80000, scoped, tag = 'scratch operand']
  #allocation3 [shape = 'bf16[256,1024]{1,0:T(8,128)(2,1)}', space=vmem, size = 0x80000, scoped, tag = 'scratch operand']
  #allocation4 [shape = 'bf16[4096,128]{1,0:T(8,128)(2,1)}', space=vmem, size = 0x100000, scoped, tag = 'scratch operand']
  #allocation5 [shape = 's32[3]{0}', space=sflag, size = 0xc, scoped, tag = 'scratch operand']
  #allocation6 [shape = 'f32[128,512]{1,0:T(8,128)}', space=vmem, size = 0x40000, scoped, tag = 'scratch operand']
  #allocation7 [shape = 'bf16[128,256]{1,0:T(8,128)(2,1)}', space=vmem, size = 0x10000, scoped, tag = 'scratch operand']
  #allocation8 [shape = 'f32[128,1024]{1,0:T(8,128)}', space=vmem, size = 0x80000, scoped, tag = 'scratch operand']
  #allocation9 [shape = 'bf16[8,4096]{1,0:T(8,128)(2,1)}', space=vmem, size = 0x10000, scoped, tag = 'scratch operand']
  #allocation10 [shape = 's32[]', space=sflag, size = 0x4, offset = 0, fixed_abs, tag = 'sflag constant byte address 0x0 - dummy sync flag']
  #allocation11 [shape = 's32[]', space=sflag, size = 0x4, offset = 0, fixed_abs, tag = 'sflag constant byte address 0x0 - dummy sync flag']
  #allocation12 [shape = 'u32[]', space=smem, size = 0x4, offset = 0x44, fixed_abs, tag = 'smem constant byte address 0x44 - assertion arg 0']
  #allocation13 [shape = 'u32[]', space=smem, size = 0x4, offset = 0x48, fixed_abs, tag = 'smem constant byte address 0x48 - assertion arg 1']
  #allocation14 [shape = 's32[]', space=sflag, size = 0x4, offset = 0, fixed_abs, tag = 'sflag constant byte address 0x0 - dummy sync flag']
  #allocation15 [shape = 's32[]', space=sflag, size = 0x4, offset = 0, fixed_abs, tag = 'sflag constant byte address 0x0 - dummy sync flag']
  #allocation16 [shape = 's32[]', space=sflag, size = 0x4, offset = 0, fixed_abs, tag = 'sflag constant byte address 0x0 - dummy sync flag']
  #allocation17 [shape = 's32[]', space=sflag, size = 0x4, offset = 0, fixed_abs, tag = 'sflag constant byte address 0x0 - dummy sync flag']
  %s0 = inlined_call_operand.vmem [shape: f32[128,8], index: 0, kind: input, shape index: {}]
  %s1 = inlined_call_operand.vmem [shape: f32[8,512], index: 1, kind: input, shape index: {}]
  %s2 = inlined_call_operand.vmem [shape: f32[1,512], index: 2, kind: input, shape index: {}]
  %s3 = inlined_call_operand.vmem [shape: bf16[128,512], index: 3, kind: input, shape index: {}]
  %s4 = inlined_call_operand.hbm [shape: bf16[256,1024], index: 4, kind: input, shape index: {}]
  %s5 = inlined_call_operand.hbm [shape: bf16[256,1024], index: 5, kind: input, shape index: {}]
  %s6 = inlined_call_operand.vmem [shape: f32[1,1024], index: 6, kind: input, shape index: {}]
  %s7 = inlined_call_operand.hbm [shape: bf16[4096,128], index: 7, kind: input, shape index: {}]
  %s8 = inlined_call_operand.vmem [shape: f32[1,128], index: 8, kind: input, shape index: {}]
  %s9 = inlined_call_operand.vmem [shape: bf16[128,128], index: 9, kind: input, shape index: {}]
  %s10 = inlined_call_operand.vmem [shape: f32[1,128], index: 10, kind: input, shape index: {}]
  %s11 = inlined_call_operand.vmem [shape: f32[8,128], index: 11, kind: output, shape index: {}]
  %s12 = sld [smem:[#allocation0]]
  $region54: #{bilstm_nilm_forward.1} parent=0
    _
  %s14 = ssub.s32 1, %s12
  %s15 = scalar_select 0, %s14, %s12
  // Predicated region
  $region2: #{bilstm_nilm_forward.1} parent=0 // pred_check
    _
  $region3: #{bilstm_nilm_forward.1} parent=0 // pred_check_branch
    %17 = sbr.rel (0) target = $region5
  $region4: #{bilstm_nilm_forward.1} parent=0 // pred_region
    _
  $region5: #{bilstm_nilm_forward.1} parent=0 // pred_fallthru
    _
  // Predicated region
  $region6: #{bilstm_nilm_forward.1} parent=0 // pred_check
    _
  $region7: #{bilstm_nilm_forward.1} parent=0 // pred_check_branch
    %19 = sbr.rel (0) target = $region9
  $region8: #{bilstm_nilm_forward.1} parent=0 // pred_region
    _
  $region9: #{bilstm_nilm_forward.1} parent=0 // pred_fallthru
    _
  // Predicated region
  $region10: #{bilstm_nilm_forward.1} parent=0 // pred_check
    _
  $region11: #{bilstm_nilm_forward.1} parent=0 // pred_check_branch
    %21 = sbr.rel (0) target = $region13
  $region12: #{bilstm_nilm_forward.1} parent=0 // pred_region
    _
  $region13: #{bilstm_nilm_forward.1} parent=0 // pred_fallthru
    _
  // Predicated region
  $region14: #{bilstm_nilm_forward.1} parent=0 // pred_check
    _
  $region15: #{bilstm_nilm_forward.1} parent=0 // pred_check_branch
    %23 = sbr.rel (0) target = $region17
  $region16: #{bilstm_nilm_forward.1} parent=0 // pred_region
    _
  $region17: #{bilstm_nilm_forward.1} parent=0 // pred_fallthru
    _
  // Predicated region
  $region18: #{bilstm_nilm_forward.1} parent=0 // pred_check
    _
  $region19: #{bilstm_nilm_forward.1} parent=0 // pred_check_branch
    %25 = sbr.rel (0) target = $region21
  $region20: #{bilstm_nilm_forward.1} parent=0 // pred_region
    _
  $region21: #{bilstm_nilm_forward.1} parent=0 // pred_fallthru
    _
  // Predicated region
  $region22: #{bilstm_nilm_forward.1} parent=0 // pred_check
    _
  $region23: #{bilstm_nilm_forward.1} parent=0 // pred_check_branch
    %27 = sbr.rel (0) target = $region25
  $region24: #{bilstm_nilm_forward.1} parent=0 // pred_region
    _
  $region25: #{bilstm_nilm_forward.1} parent=0 // pred_fallthru
    _
  // Predicated region
  $region26: #{bilstm_nilm_forward.1} parent=0 // pred_check
    _
  $region27: #{bilstm_nilm_forward.1} parent=0 // pred_check_branch
    %29 = sbr.rel (0) target = $region29
  $region28: #{bilstm_nilm_forward.1} parent=0 // pred_region
    _
  $region29: #{bilstm_nilm_forward.1} parent=0 // pred_fallthru
    _
  // Predicated region
  $region30: #{bilstm_nilm_forward.1} parent=0 // pred_check
    _
  $region31: #{bilstm_nilm_forward.1} parent=0 // pred_check_branch
    %31 = sbr.rel (0) target = $region33
  $region32: #{bilstm_nilm_forward.1} parent=0 // pred_region
    _
  $region33: #{bilstm_nilm_forward.1} parent=0 // pred_fallthru
    _
  // Predicated region
  $region34: #{bilstm_nilm_forward.1} parent=0 // pred_check
    _
  $region35: #{bilstm_nilm_forward.1} parent=0 // pred_check_branch
    %33 = sbr.rel target = $region37
  $region36: #{bilstm_nilm_forward.1} parent=0 // pred_region
    %34 = sst [smem:[#allocation12]] [#allocation11]
    %35 = sst [smem:[#allocation13]] [#allocation10]
  $region37: #{bilstm_nilm_forward.1} parent=0 // pred_fallthru
    _
  %37 = shalt.err (0)
  %s39 = sshll.u32 %s4, 4
  %s40 = int_to_ptr.hbm [resolvable:$true] %s39
  %s41 = sshll.u32 [#allocation2], 4
  %s42 = int_to_ptr.vmem [resolvable:$true] %s41
  %44 = dma.hbm_to_vmem [thread:$0]  %s40, 16384, %s42, [#allocation5]
  %s45 = scalar_lea.sflag [#allocation5], 1
  // Predicated region
  $region38: #{bilstm_nilm_forward.1} parent=0 // pred_check
    _
  $region39: #{bilstm_nilm_forward.1} parent=0 // pred_check_branch
    %47 = sbr.rel target = $region41
  $region40: #{bilstm_nilm_forward.1} parent=0 // pred_region
    %48 = sst [smem:[#allocation12]] [#allocation15]
    %49 = sst [smem:[#allocation13]] [#allocation14]
  $region41: #{bilstm_nilm_forward.1} parent=0 // pred_fallthru
    _
  %51 = shalt.err (0)
  %s53 = sshll.u32 %s5, 4
  %s54 = int_to_ptr.hbm [resolvable:$true] %s53
  %s55 = sshll.u32 [#allocation3], 4
  %s56 = int_to_ptr.vmem [resolvable:$true] %s55
  %58 = dma.hbm_to_vmem [thread:$0]  %s54, 16384, %s56, %s45
  %s59 = scalar_lea.sflag [#allocation5], 2
  // Predicated region
  $region42: #{bilstm_nilm_forward.1} parent=0 // pred_check
    _
  $region43: #{bilstm_nilm_forward.1} parent=0 // pred_check_branch
    %61 = sbr.rel target = $region45
  $region44: #{bilstm_nilm_forward.1} parent=0 // pred_region
    %62 = sst [smem:[#allocation12]] [#allocation17]
    %63 = sst [smem:[#allocation13]] [#allocation16]
  $region45: #{bilstm_nilm_forward.1} parent=0 // pred_fallthru
    _
  %65 = shalt.err (0)
  %s67 = sshll.u32 %s7, 4
  %s68 = int_to_ptr.hbm [resolvable:$true] %s67
  %s69 = sshll.u32 [#allocation4], 4
  %s70 = int_to_ptr.vmem [resolvable:$true] %s69
  %72 = dma.hbm_to_vmem [thread:$0]  %s68, 32768, %s70, %s59
  %v73 = vld [vmem:[%s0] sm:$0xff]
  %v74 = vld [vmem:[%s0 + $0x8] sm:$0xff]
  %v75 = vld [vmem:[%s0 + $0x10] sm:$0xff]
  %v76 = vld [vmem:[%s0 + $0x18] sm:$0xff]
  %v77 = vld [vmem:[%s0 + $0x20] sm:$0xff]
  %v78 = vld [vmem:[%s0 + $0x28] sm:$0xff]
  %v79 = vld [vmem:[%s0 + $0x30] sm:$0xff]
  %v80 = vld [vmem:[%s0 + $0x38] sm:$0xff]
  %v81 = vld [vmem:[%s0 + $0x40] sm:$0xff]
  %v82 = vld [vmem:[%s0 + $0x48] sm:$0xff]
  %v83 = vld [vmem:[%s0 + $0x50] sm:$0xff]
  %v84 = vld [vmem:[%s0 + $0x58] sm:$0xff]
  %v85 = vld [vmem:[%s0 + $0x60] sm:$0xff]
  %v86 = vld [vmem:[%s0 + $0x68] sm:$0xff]
  %v87 = vld [vmem:[%s0 + $0x70] sm:$0xff]
  %v88 = vld [vmem:[%s0 + $0x78] sm:$0xff]
  %v89 = vld [vmem:[%s1] sm:$0xff]
  %v90 = vld [vmem:[%s1 + $0x8] sm:$0xff]
  %v91 = vld [vmem:[%s1 + $0x10] sm:$0xff]
  %v92 = vld [vmem:[%s1 + $0x18] sm:$0xff]
  %v93 = vld [vmem:[%s2] sm:$0xf]
  %v95 = vperm.slane %v93, 0
  %v96 = vperm.slane %v93, 1
  %v97 = vperm.slane %v93, 2
  %v98 = vperm.slane %v93, 3
  %vm103 = vcmask 64512
  %v105 = vsel %vm103, %v73, 0
  %v108 = vsel %vm103, %v74, 0
  %v111 = vsel %vm103, %v75, 0
  %v114 = vsel %vm103, %v76, 0
  %v117 = vsel %vm103, %v77, 0
  %v120 = vsel %vm103, %v78, 0
  %v123 = vsel %vm103, %v79, 0
  %v126 = vsel %vm103, %v80, 0
  %v129 = vsel %vm103, %v81, 0
  %v132 = vsel %vm103, %v82, 0
  %v135 = vsel %vm103, %v83, 0
  %v138 = vsel %vm103, %v84, 0
  %v141 = vsel %vm103, %v85, 0
  %v144 = vsel %vm103, %v86, 0
  %v147 = vsel %vm103, %v87, 0
  %v150 = vsel %vm103, %v88, 0
  %152 = vmatpush.msra.mxu0 0.0
  %153 = vmatpush.msra.mxu0 0.0
  %154 = vmatpush.msra.mxu0 0.0
  %155 = vmatpush.msra.mxu0 0.0
  %156 = vmatpush.msra.mxu0 0.0
  %157 = vmatpush.msra.mxu0 0.0
  %158 = vmatpush.msra.mxu0 0.0
  %159 = vmatpush.msra.mxu0 0.0
  %160 = vmatpush.msra.mxu0 0.0
  %161 = vmatpush.msra.mxu0 0.0
  %162 = vmatpush.msra.mxu0 0.0
  %163 = vmatpush.msra.mxu0 0.0
  %164 = vmatpush.msra.mxu0 0.0
  %165 = vmatpush.msra.mxu0 0.0
  %166 = vmatpush.msra.mxu0 0.0
  %167 = vmatpush.msra.mxu0 %v89
  %168 = vmatmul.f32.gmra.mxu0 %v105
  %v169 = vpop.f32.mrf.mxu0
  %v170 = vadd.f32 %v95, %v169
  %171 = vmatmul.f32.gmra.mxu0 %v108
  %v172 = vpop.f32.mrf.mxu0
  %v173 = vadd.f32 %v95, %v172
  %174 = vmatmul.f32.gmra.mxu0 %v111
  %v175 = vpop.f32.mrf.mxu0
  %v176 = vadd.f32 %v95, %v175
  %177 = vmatmul.f32.gmra.mxu0 %v114
  %v178 = vpop.f32.mrf.mxu0
  %v179 = vadd.f32 %v95, %v178
  %180 = vmatmul.f32.gmra.mxu0 %v117
  %v181 = vpop.f32.mrf.mxu0
  %v182 = vadd.f32 %v95, %v181
  %183 = vmatmul.f32.gmra.mxu0 %v120
  %v184 = vpop.f32.mrf.mxu0
  %v185 = vadd.f32 %v95, %v184
  %186 = vmatmul.f32.gmra.mxu0 %v123
  %v187 = vpop.f32.mrf.mxu0
  %v188 = vadd.f32 %v95, %v187
  %189 = vmatmul.f32.gmra.mxu0 %v126
  %v190 = vpop.f32.mrf.mxu0
  %v191 = vadd.f32 %v95, %v190
  %192 = vmatmul.f32.gmra.mxu0 %v129
  %v193 = vpop.f32.mrf.mxu0
  %v194 = vadd.f32 %v95, %v193
  %195 = vmatmul.f32.gmra.mxu0 %v132
  %v196 = vpop.f32.mrf.mxu0
  %v197 = vadd.f32 %v95, %v196
  %198 = vmatmul.f32.gmra.mxu0 %v135
  %v199 = vpop.f32.mrf.mxu0
  %v200 = vadd.f32 %v95, %v199
  %201 = vmatmul.f32.gmra.mxu0 %v138
  %v202 = vpop.f32.mrf.mxu0
  %v203 = vadd.f32 %v95, %v202
  %204 = vmatmul.f32.gmra.mxu0 %v141
  %v205 = vpop.f32.mrf.mxu0
  %v206 = vadd.f32 %v95, %v205
  %207 = vmatmul.f32.gmra.mxu0 %v144
  %v208 = vpop.f32.mrf.mxu0
  %v209 = vadd.f32 %v95, %v208
  %210 = vmatmul.f32.gmra.mxu0 %v147
  %v211 = vpop.f32.mrf.mxu0
  %v212 = vadd.f32 %v95, %v211
  %213 = vmatmul.f32.gmra.mxu0 %v150
  %v214 = vpop.f32.mrf.mxu0
  %v215 = vadd.f32 %v95, %v214
  %216 = vdwg.mxu0
  %217 = vmatpush.msra.mxu0 0.0
  %218 = vmatpush.msra.mxu0 0.0
  %219 = vmatpush.msra.mxu0 0.0
  %220 = vmatpush.msra.mxu0 0.0
  %221 = vmatpush.msra.mxu0 0.0
  %222 = vmatpush.msra.mxu0 0.0
  %223 = vmatpush.msra.mxu0 0.0
  %224 = vmatpush.msra.mxu0 0.0
  %225 = vmatpush.msra.mxu0 0.0
  %226 = vmatpush.msra.mxu0 0.0
  %227 = vmatpush.msra.mxu0 0.0
  %228 = vmatpush.msra.mxu0 0.0
  %229 = vmatpush.msra.mxu0 0.0
  %230 = vmatpush.msra.mxu0 0.0
  %231 = vmatpush.msra.mxu0 0.0
  %232 = vmatpush.msra.mxu0 %v90
  %233 = vmatmul.f32.gmra.mxu0 %v105
  %v234 = vpop.f32.mrf.mxu0
  %v235 = vadd.f32 %v96, %v234
  %236 = vmatmul.f32.gmra.mxu0 %v108
  %v237 = vpop.f32.mrf.mxu0
  %v238 = vadd.f32 %v96, %v237
  %239 = vmatmul.f32.gmra.mxu0 %v111
  %v240 = vpop.f32.mrf.mxu0
  %v241 = vadd.f32 %v96, %v240
  %242 = vmatmul.f32.gmra.mxu0 %v114
  %v243 = vpop.f32.mrf.mxu0
  %v244 = vadd.f32 %v96, %v243
  %245 = vmatmul.f32.gmra.mxu0 %v117
  %v246 = vpop.f32.mrf.mxu0
  %v247 = vadd.f32 %v96, %v246
  %248 = vmatmul.f32.gmra.mxu0 %v120
  %v249 = vpop.f32.mrf.mxu0
  %v250 = vadd.f32 %v96, %v249
  %251 = vmatmul.f32.gmra.mxu0 %v123
  %v252 = vpop.f32.mrf.mxu0
  %v253 = vadd.f32 %v96, %v252
  %254 = vmatmul.f32.gmra.mxu0 %v126
  %v255 = vpop.f32.mrf.mxu0
  %v256 = vadd.f32 %v96, %v255
  %257 = vmatmul.f32.gmra.mxu0 %v129
  %v258 = vpop.f32.mrf.mxu0
  %v259 = vadd.f32 %v96, %v258
  %260 = vmatmul.f32.gmra.mxu0 %v132
  %v261 = vpop.f32.mrf.mxu0
  %v262 = vadd.f32 %v96, %v261
  %263 = vmatmul.f32.gmra.mxu0 %v135
  %v264 = vpop.f32.mrf.mxu0
  %v265 = vadd.f32 %v96, %v264
  %266 = vmatmul.f32.gmra.mxu0 %v138
  %v267 = vpop.f32.mrf.mxu0
  %v268 = vadd.f32 %v96, %v267
  %269 = vmatmul.f32.gmra.mxu0 %v141
  %v270 = vpop.f32.mrf.mxu0
  %v271 = vadd.f32 %v96, %v270
  %272 = vmatmul.f32.gmra.mxu0 %v144
  %v273 = vpop.f32.mrf.mxu0
  %v274 = vadd.f32 %v96, %v273
  %275 = vmatmul.f32.gmra.mxu0 %v147
  %v276 = vpop.f32.mrf.mxu0
  %v277 = vadd.f32 %v96, %v276
  %278 = vmatmul.f32.gmra.mxu0 %v150
  %v279 = vpop.f32.mrf.mxu0
  %v280 = vadd.f32 %v96, %v279
  %281 = vdwg.mxu0
  %282 = vmatpush.msra.mxu0 0.0
  %283 = vmatpush.msra.mxu0 0.0
  %284 = vmatpush.msra.mxu0 0.0
  %285 = vmatpush.msra.mxu0 0.0
  %286 = vmatpush.msra.mxu0 0.0
  %287 = vmatpush.msra.mxu0 0.0
  %288 = vmatpush.msra.mxu0 0.0
  %289 = vmatpush.msra.mxu0 0.0
  %290 = vmatpush.msra.mxu0 0.0
  %291 = vmatpush.msra.mxu0 0.0
  %292 = vmatpush.msra.mxu0 0.0
  %293 = vmatpush.msra.mxu0 0.0
  %294 = vmatpush.msra.mxu0 0.0
  %295 = vmatpush.msra.mxu0 0.0
  %296 = vmatpush.msra.mxu0 0.0
  %297 = vmatpush.msra.mxu0 %v91
  %298 = vmatmul.f32.gmra.mxu0 %v105
  %v299 = vpop.f32.mrf.mxu0
  %v300 = vadd.f32 %v97, %v299
  %301 = vmatmul.f32.gmra.mxu0 %v108
  %v302 = vpop.f32.mrf.mxu0
  %v303 = vadd.f32 %v97, %v302
  %304 = vmatmul.f32.gmra.mxu0 %v111
  %v305 = vpop.f32.mrf.mxu0
  %v306 = vadd.f32 %v97, %v305
  %307 = vmatmul.f32.gmra.mxu0 %v114
  %v308 = vpop.f32.mrf.mxu0
  %v309 = vadd.f32 %v97, %v308
  %310 = vmatmul.f32.gmra.mxu0 %v117
  %v311 = vpop.f32.mrf.mxu0
  %v312 = vadd.f32 %v97, %v311
  %313 = vmatmul.f32.gmra.mxu0 %v120
  %v314 = vpop.f32.mrf.mxu0
  %v315 = vadd.f32 %v97, %v314
  %316 = vmatmul.f32.gmra.mxu0 %v123
  %v317 = vpop.f32.mrf.mxu0
  %v318 = vadd.f32 %v97, %v317
  %319 = vmatmul.f32.gmra.mxu0 %v126
  %v320 = vpop.f32.mrf.mxu0
  %v321 = vadd.f32 %v97, %v320
  %322 = vmatmul.f32.gmra.mxu0 %v129
  %v323 = vpop.f32.mrf.mxu0
  %v324 = vadd.f32 %v97, %v323
  %325 = vmatmul.f32.gmra.mxu0 %v132
  %v326 = vpop.f32.mrf.mxu0
  %v327 = vadd.f32 %v97, %v326
  %328 = vmatmul.f32.gmra.mxu0 %v135
  %v329 = vpop.f32.mrf.mxu0
  %v330 = vadd.f32 %v97, %v329
  %331 = vmatmul.f32.gmra.mxu0 %v138
  %v332 = vpop.f32.mrf.mxu0
  %v333 = vadd.f32 %v97, %v332
  %334 = vmatmul.f32.gmra.mxu0 %v141
  %v335 = vpop.f32.mrf.mxu0
  %v336 = vadd.f32 %v97, %v335
  %337 = vmatmul.f32.gmra.mxu0 %v144
  %v338 = vpop.f32.mrf.mxu0
  %v339 = vadd.f32 %v97, %v338
  %340 = vmatmul.f32.gmra.mxu0 %v147
  %v341 = vpop.f32.mrf.mxu0
  %v342 = vadd.f32 %v97, %v341
  %343 = vmatmul.f32.gmra.mxu0 %v150
  %v344 = vpop.f32.mrf.mxu0
  %v345 = vadd.f32 %v97, %v344
  %346 = vdwg.mxu0
  %347 = vmatpush.msra.mxu0 0.0
  %348 = vmatpush.msra.mxu0 0.0
  %349 = vmatpush.msra.mxu0 0.0
  %350 = vmatpush.msra.mxu0 0.0
  %351 = vmatpush.msra.mxu0 0.0
  %352 = vmatpush.msra.mxu0 0.0
  %353 = vmatpush.msra.mxu0 0.0
  %354 = vmatpush.msra.mxu0 0.0
  %355 = vmatpush.msra.mxu0 0.0
  %356 = vmatpush.msra.mxu0 0.0
  %357 = vmatpush.msra.mxu0 0.0
  %358 = vmatpush.msra.mxu0 0.0
  %359 = vmatpush.msra.mxu0 0.0
  %360 = vmatpush.msra.mxu0 0.0
  %361 = vmatpush.msra.mxu0 0.0
  %362 = vmatpush.msra.mxu0 %v92
  %363 = vmatmul.f32.gmra.mxu0 %v105
  %v364 = vpop.f32.mrf.mxu0
  %v365 = vadd.f32 %v98, %v364
  %366 = vmatmul.f32.gmra.mxu0 %v108
  %v367 = vpop.f32.mrf.mxu0
  %v368 = vadd.f32 %v98, %v367
  %369 = vmatmul.f32.gmra.mxu0 %v111
  %v370 = vpop.f32.mrf.mxu0
  %v371 = vadd.f32 %v98, %v370
  %372 = vmatmul.f32.gmra.mxu0 %v114
  %v373 = vpop.f32.mrf.mxu0
  %v374 = vadd.f32 %v98, %v373
  %375 = vmatmul.f32.gmra.mxu0 %v117
  %v376 = vpop.f32.mrf.mxu0
  %v377 = vadd.f32 %v98, %v376
  %378 = vmatmul.f32.gmra.mxu0 %v120
  %v379 = vpop.f32.mrf.mxu0
  %v380 = vadd.f32 %v98, %v379
  %381 = vmatmul.f32.gmra.mxu0 %v123
  %v382 = vpop.f32.mrf.mxu0
  %v383 = vadd.f32 %v98, %v382
  %384 = vmatmul.f32.gmra.mxu0 %v126
  %v385 = vpop.f32.mrf.mxu0
  %v386 = vadd.f32 %v98, %v385
  %387 = vmatmul.f32.gmra.mxu0 %v129
  %v388 = vpop.f32.mrf.mxu0
  %v389 = vadd.f32 %v98, %v388
  %390 = vmatmul.f32.gmra.mxu0 %v132
  %v391 = vpop.f32.mrf.mxu0
  %v392 = vadd.f32 %v98, %v391
  %393 = vmatmul.f32.gmra.mxu0 %v135
  %v394 = vpop.f32.mrf.mxu0
  %v395 = vadd.f32 %v98, %v394
  %396 = vmatmul.f32.gmra.mxu0 %v138
  %v397 = vpop.f32.mrf.mxu0
  %v398 = vadd.f32 %v98, %v397
  %399 = vmatmul.f32.gmra.mxu0 %v141
  %v400 = vpop.f32.mrf.mxu0
  %v401 = vadd.f32 %v98, %v400
  %402 = vmatmul.f32.gmra.mxu0 %v144
  %v403 = vpop.f32.mrf.mxu0
  %v404 = vadd.f32 %v98, %v403
  %405 = vmatmul.f32.gmra.mxu0 %v147
  %v406 = vpop.f32.mrf.mxu0
  %v407 = vadd.f32 %v98, %v406
  %408 = vmatmul.f32.gmra.mxu0 %v150
  %v409 = vpop.f32.mrf.mxu0
  %v410 = vadd.f32 %v98, %v409
  %411 = vdwg.mxu0
  %412 = vst [vmem:[#allocation6] sm:$0xff] %v170
  %413 = vst [vmem:[#allocation6 + $0x8] sm:$0xff] %v235
  %414 = vst [vmem:[#allocation6 + $0x10] sm:$0xff] %v300
  %415 = vst [vmem:[#allocation6 + $0x18] sm:$0xff] %v365
  %416 = vst [vmem:[#allocation6 + $0x20] sm:$0xff] %v173
  %417 = vst [vmem:[#allocation6 + $0x28] sm:$0xff] %v238
  %418 = vst [vmem:[#allocation6 + $0x30] sm:$0xff] %v303
  %419 = vst [vmem:[#allocation6 + $0x38] sm:$0xff] %v368
  %420 = vst [vmem:[#allocation6 + $0x40] sm:$0xff] %v176
  %421 = vst [vmem:[#allocation6 + $0x48] sm:$0xff] %v241
  %422 = vst [vmem:[#allocation6 + $0x50] sm:$0xff] %v306
  %423 = vst [vmem:[#allocation6 + $0x58] sm:$0xff] %v371
  %424 = vst [vmem:[#allocation6 + $0x60] sm:$0xff] %v179
  %425 = vst [vmem:[#allocation6 + $0x68] sm:$0xff] %v244
  %426 = vst [vmem:[#allocation6 + $0x70] sm:$0xff] %v309
  %427 = vst [vmem:[#allocation6 + $0x78] sm:$0xff] %v374
  %428 = vst [vmem:[#allocation6 + $0x80] sm:$0xff] %v182
  %429 = vst [vmem:[#allocation6 + $0x88] sm:$0xff] %v247
  %430 = vst [vmem:[#allocation6 + $0x90] sm:$0xff] %v312
  %431 = vst [vmem:[#allocation6 + $0x98] sm:$0xff] %v377
  %432 = vst [vmem:[#allocation6 + $0xa0] sm:$0xff] %v185
  %433 = vst [vmem:[#allocation6 + $0xa8] sm:$0xff] %v250
  %434 = vst [vmem:[#allocation6 + $0xb0] sm:$0xff] %v315
  %435 = vst [vmem:[#allocation6 + $0xb8] sm:$0xff] %v380
  %436 = vst [vmem:[#allocation6 + $0xc0] sm:$0xff] %v188
  %437 = vst [vmem:[#allocation6 + $0xc8] sm:$0xff] %v253
  %438 = vst [vmem:[#allocation6 + $0xd0] sm:$0xff] %v318
  %439 = vst [vmem:[#allocation6 + $0xd8] sm:$0xff] %v383
  %440 = vst [vmem:[#allocation6 + $0xe0] sm:$0xff] %v191
  %441 = vst [vmem:[#allocation6 + $0xe8] sm:$0xff] %v256
  %442 = vst [vmem:[#allocation6 + $0xf0] sm:$0xff] %v321
  %443 = vst [vmem:[#allocation6 + $0xf8] sm:$0xff] %v386
  %444 = vst [vmem:[#allocation6 + $0x100] sm:$0xff] %v194
  %445 = vst [vmem:[#allocation6 + $0x108] sm:$0xff] %v259
  %446 = vst [vmem:[#allocation6 + $0x110] sm:$0xff] %v324
  %447 = vst [vmem:[#allocation6 + $0x118] sm:$0xff] %v389
  %448 = vst [vmem:[#allocation6 + $0x120] sm:$0xff] %v197
  %449 = vst [vmem:[#allocation6 + $0x128] sm:$0xff] %v262
  %450 = vst [vmem:[#allocation6 + $0x130] sm:$0xff] %v327
  %451 = vst [vmem:[#allocation6 + $0x138] sm:$0xff] %v392
  %452 = vst [vmem:[#allocation6 + $0x140] sm:$0xff] %v200
  %453 = vst [vmem:[#allocation6 + $0x148] sm:$0xff] %v265
  %454 = vst [vmem:[#allocation6 + $0x150] sm:$0xff] %v330
  %455 = vst [vmem:[#allocation6 + $0x158] sm:$0xff] %v395
  %456 = vst [vmem:[#allocation6 + $0x160] sm:$0xff] %v203
  %457 = vst [vmem:[#allocation6 + $0x168] sm:$0xff] %v268
  %458 = vst [vmem:[#allocation6 + $0x170] sm:$0xff] %v333
  %459 = vst [vmem:[#allocation6 + $0x178] sm:$0xff] %v398
  %460 = vst [vmem:[#allocation6 + $0x180] sm:$0xff] %v206
  %461 = vst [vmem:[#allocation6 + $0x188] sm:$0xff] %v271
  %462 = vst [vmem:[#allocation6 + $0x190] sm:$0xff] %v336
  %463 = vst [vmem:[#allocation6 + $0x198] sm:$0xff] %v401
  %464 = vst [vmem:[#allocation6 + $0x1a0] sm:$0xff] %v209
  %465 = vst [vmem:[#allocation6 + $0x1a8] sm:$0xff] %v274
  %466 = vst [vmem:[#allocation6 + $0x1b0] sm:$0xff] %v339
  %467 = vst [vmem:[#allocation6 + $0x1b8] sm:$0xff] %v404
  %468 = vst [vmem:[#allocation6 + $0x1c0] sm:$0xff] %v212
  %469 = vst [vmem:[#allocation6 + $0x1c8] sm:$0xff] %v277
  %470 = vst [vmem:[#allocation6 + $0x1d0] sm:$0xff] %v342
  %471 = vst [vmem:[#allocation6 + $0x1d8] sm:$0xff] %v407
  %472 = vst [vmem:[#allocation6 + $0x1e0] sm:$0xff] %v215
  %473 = vst [vmem:[#allocation6 + $0x1e8] sm:$0xff] %v280
  %474 = vst [vmem:[#allocation6 + $0x1f0] sm:$0xff] %v345
  %475 = vst [vmem:[#allocation6 + $0x1f8] sm:$0xff] %v410
  %v476 = vld [vmem:[%s3] sm:$0xff]
  %v477 = vld [vmem:[%s3 + $0x8] sm:$0xff]
  %v478 = vld [vmem:[%s3 + $0x10] sm:$0xff]
  %v479 = vld [vmem:[%s3 + $0x18] sm:$0xff]
  %v480 = vld [vmem:[%s3 + $0x20] sm:$0xff]
  %v481 = vld [vmem:[%s3 + $0x28] sm:$0xff]
  %v482 = vld [vmem:[%s3 + $0x30] sm:$0xff]
  %v483 = vld [vmem:[%s3 + $0x38] sm:$0xff]
  %v484 = vld [vmem:[%s3 + $0x40] sm:$0xff]
  %v485 = vld [vmem:[%s3 + $0x48] sm:$0xff]
  %v486 = vld [vmem:[%s3 + $0x50] sm:$0xff]
  %v487 = vld [vmem:[%s3 + $0x58] sm:$0xff]
  %v488 = vld [vmem:[%s3 + $0x60] sm:$0xff]
  %v489 = vld [vmem:[%s3 + $0x68] sm:$0xff]
  %v490 = vld [vmem:[%s3 + $0x70] sm:$0xff]
  %v491 = vld [vmem:[%s3 + $0x78] sm:$0xff]
  %v492 = vld [vmem:[%s3 + $0x80] sm:$0xff]
  %v493 = vld [vmem:[%s3 + $0x88] sm:$0xff]
  %v494 = vld [vmem:[%s3 + $0x90] sm:$0xff]
  %v495 = vld [vmem:[%s3 + $0x98] sm:$0xff]
  %v496 = vld [vmem:[%s3 + $0xa0] sm:$0xff]
  %v497 = vld [vmem:[%s3 + $0xa8] sm:$0xff]
  %v498 = vld [vmem:[%s3 + $0xb0] sm:$0xff]
  %v499 = vld [vmem:[%s3 + $0xb8] sm:$0xff]
  %v500 = vld [vmem:[%s3 + $0xc0] sm:$0xff]
  %v501 = vld [vmem:[%s3 + $0xc8] sm:$0xff]
  %v502 = vld [vmem:[%s3 + $0xd0] sm:$0xff]
  %v503 = vld [vmem:[%s3 + $0xd8] sm:$0xff]
  %v504 = vld [vmem:[%s3 + $0xe0] sm:$0xff]
  %v505 = vld [vmem:[%s3 + $0xe8] sm:$0xff]
  %v506 = vld [vmem:[%s3 + $0xf0] sm:$0xff]
  %v507 = vld [vmem:[%s3 + $0xf8] sm:$0xff]
  %v508 = vld [vmem:[#allocation6] sm:$0xff]
  %v509 = vld [vmem:[#allocation6 + $0x8] sm:$0xff]
  %v510 = vld [vmem:[#allocation6 + $0x10] sm:$0xff]
  %v511 = vld [vmem:[#allocation6 + $0x18] sm:$0xff]
  %v512 = vtanh.pop %v508
  %v513 = vtanh.pop %v509
  %v514 = vtanh.pop %v510
  %v515 = vtanh.pop %v511
  %v516 = vmul.f32 %v512, 0.5
  %v517 = vmul.f32 %v513, 0.5
  %v518 = vmul.f32 %v514, 0.5
  %v519 = vadd.f32 %v516, 0.5
  %v520 = vadd.f32 %v517, 0.5
  %v521 = vadd.f32 %v518, 0.5
  %v522 = vmul.f32 %v520, 0.0
  %v523 = vmul.f32 %v519, %v515
  %v524 = vadd.f32 %v522, %v523
  %v525 = vtanh.pop %v524
  %v526 = vmul.f32 %v521, %v525
  %v527 = vpack.c.bf16 %v526, %v526
  %528 = vst [vmem:[#allocation7] sm:$0xf] %v527
  %529 = vst [vmem:[#allocation7 + $0x7c] sm:$0xf] %v527
  %v530 = vld [vmem:[#allocation6 + $0x20] sm:$0xff]
  %v531 = vld [vmem:[#allocation6 + $0x28] sm:$0xff]
  %v532 = vld [vmem:[#allocation6 + $0x30] sm:$0xff]
  %v533 = vld [vmem:[#allocation6 + $0x38] sm:$0xff]
  %v566 = vunpack.c.l.b16 %v476
  %v567 = vunpack.c.h.b16 %v476
  %v568 = vunpack.c.l.b16 %v477
  %v569 = vunpack.c.h.b16 %v477
  %v570 = vunpack.c.l.b16 %v478
  %v571 = vunpack.c.h.b16 %v478
  %v572 = vunpack.c.l.b16 %v479
  %v573 = vunpack.c.h.b16 %v479
  %v574 = vunpack.c.l.b16 %v480
  %v575 = vunpack.c.h.b16 %v480
  %v576 = vunpack.c.l.b16 %v481
  %v577 = vunpack.c.h.b16 %v481
  %v578 = vunpack.c.l.b16 %v482
  %v579 = vunpack.c.h.b16 %v482
  %v580 = vunpack.c.l.b16 %v483
  %v581 = vunpack.c.h.b16 %v483
  %v582 = vunpack.c.l.b16 %v484
  %v583 = vunpack.c.h.b16 %v484
  %v584 = vunpack.c.l.b16 %v485
  %v585 = vunpack.c.h.b16 %v485
  %v586 = vunpack.c.l.b16 %v486
  %v587 = vunpack.c.h.b16 %v486
  %v588 = vunpack.c.l.b16 %v487
  %v589 = vunpack.c.h.b16 %v487
  %v590 = vunpack.c.l.b16 %v488
  %v591 = vunpack.c.h.b16 %v488
  %v592 = vunpack.c.l.b16 %v489
  %v593 = vunpack.c.h.b16 %v489
  %v594 = vunpack.c.l.b16 %v490
  %v595 = vunpack.c.h.b16 %v490
  %v596 = vunpack.c.l.b16 %v491
  %v597 = vunpack.c.h.b16 %v491
  %v598 = vunpack.c.l.b16 %v492
  %v599 = vunpack.c.h.b16 %v492
  %v600 = vunpack.c.l.b16 %v493
  %v601 = vunpack.c.h.b16 %v493
  %v602 = vunpack.c.l.b16 %v494
  %v603 = vunpack.c.h.b16 %v494
  %v604 = vunpack.c.l.b16 %v495
  %v605 = vunpack.c.h.b16 %v495
  %v606 = vunpack.c.l.b16 %v496
  %v607 = vunpack.c.h.b16 %v496
  %v608 = vunpack.c.l.b16 %v497
  %v609 = vunpack.c.h.b16 %v497
  %v610 = vunpack.c.l.b16 %v498
  %v611 = vunpack.c.h.b16 %v498
  %v612 = vunpack.c.l.b16 %v499
  %v613 = vunpack.c.h.b16 %v499
  %v614 = vunpack.c.l.b16 %v500
  %v615 = vunpack.c.h.b16 %v500
  %v616 = vunpack.c.l.b16 %v501
  %v617 = vunpack.c.h.b16 %v501
  %v618 = vunpack.c.l.b16 %v502
  %v619 = vunpack.c.h.b16 %v502
  %v620 = vunpack.c.l.b16 %v503
  %v621 = vunpack.c.h.b16 %v503
  %v622 = vunpack.c.l.b16 %v504
  %v623 = vunpack.c.h.b16 %v504
  %v624 = vunpack.c.l.b16 %v505
  %v625 = vunpack.c.h.b16 %v505
  %v626 = vunpack.c.l.b16 %v506
  %v627 = vunpack.c.h.b16 %v506
  %v628 = vunpack.c.l.b16 %v507
  %v629 = vunpack.c.h.b16 %v507
  %v630 = vpack.c.b16 %v570, %v566
  %v631 = vpack.c.b16 %v571, %v567
  %v632 = vpack.c.b16 %v572, %v568
  %v633 = vpack.c.b16 %v573, %v569
  %v634 = vpack.c.b16 %v578, %v574
  %v635 = vpack.c.b16 %v579, %v575
  %v636 = vpack.c.b16 %v580, %v576
  %v637 = vpack.c.b16 %v581, %v577
  %v638 = vpack.c.b16 %v586, %v582
  %v639 = vpack.c.b16 %v587, %v583
  %v640 = vpack.c.b16 %v588, %v584
  %v641 = vpack.c.b16 %v589, %v585
  %v642 = vpack.c.b16 %v594, %v590
  %v643 = vpack.c.b16 %v595, %v591
  %v644 = vpack.c.b16 %v596, %v592
  %v645 = vpack.c.b16 %v597, %v593
  %v646 = vpack.c.b16 %v602, %v598
  %v647 = vpack.c.b16 %v603, %v599
  %v648 = vpack.c.b16 %v604, %v600
  %v649 = vpack.c.b16 %v605, %v601
  %v650 = vpack.c.b16 %v610, %v606
  %v651 = vpack.c.b16 %v611, %v607
  %v652 = vpack.c.b16 %v612, %v608
  %v653 = vpack.c.b16 %v613, %v609
  %v654 = vpack.c.b16 %v618, %v614
  %v655 = vpack.c.b16 %v619, %v615
  %v656 = vpack.c.b16 %v620, %v616
  %v657 = vpack.c.b16 %v621, %v617
  %v658 = vpack.c.b16 %v626, %v622
  %v659 = vpack.c.b16 %v627, %v623
  %v660 = vpack.c.b16 %v628, %v624
  %v661 = vpack.c.b16 %v629, %v625
  %694 = vmatpush.bf16.msra.mxu0 %v658
  %695 = vmatpush.bf16.msra.mxu0 %v654
  %696 = vmatpush.bf16.msra.mxu0 %v650
  %697 = vmatpush.bf16.msra.mxu0 %v646
  %698 = vmatpush.bf16.msra.mxu0 %v642
  %699 = vmatpush.bf16.msra.mxu0 %v638
  %700 = vmatpush.bf16.msra.mxu0 %v634
  %701 = vmatpush.bf16.msra.mxu0 %v630
  %702 = vmatmul.bf16.gmra.mxu0 %v527
  %v703 = vpop.f32.mrf.mxu0
  %v704 = vadd.f32 0.0, %v703
  %v705 = vpop.f32.mrf.mxu0
  %706 = vdwg.mxu0
  %707 = vmatpush.bf16.msra.mxu0 %v659
  %708 = vmatpush.bf16.msra.mxu0 %v655
  %709 = vmatpush.bf16.msra.mxu0 %v651
  %710 = vmatpush.bf16.msra.mxu0 %v647
  %711 = vmatpush.bf16.msra.mxu0 %v643
  %712 = vmatpush.bf16.msra.mxu0 %v639
  %713 = vmatpush.bf16.msra.mxu0 %v635
  %714 = vmatpush.bf16.msra.mxu0 %v631
  %715 = vmatmul.bf16.gmra.mxu0 %v527
  %v716 = vpop.f32.mrf.mxu0
  %v717 = vadd.f32 0.0, %v716
  %v718 = vpop.f32.mrf.mxu0
  %719 = vdwg.mxu0
  %720 = vmatpush.bf16.msra.mxu0 %v660
  %721 = vmatpush.bf16.msra.mxu0 %v656
  %722 = vmatpush.bf16.msra.mxu0 %v652
  %723 = vmatpush.bf16.msra.mxu0 %v648
  %724 = vmatpush.bf16.msra.mxu0 %v644
  %725 = vmatpush.bf16.msra.mxu0 %v640
  %726 = vmatpush.bf16.msra.mxu0 %v636
  %727 = vmatpush.bf16.msra.mxu0 %v632
  %728 = vmatmul.bf16.gmra.mxu0 %v527
  %v729 = vpop.f32.mrf.mxu0
  %v730 = vadd.f32 0.0, %v729
  %v731 = vpop.f32.mrf.mxu0
  %732 = vdwg.mxu0
  %733 = vmatpush.bf16.msra.mxu0 %v661
  %734 = vmatpush.bf16.msra.mxu0 %v657
  %735 = vmatpush.bf16.msra.mxu0 %v653
  %736 = vmatpush.bf16.msra.mxu0 %v649
  %737 = vmatpush.bf16.msra.mxu0 %v645
  %738 = vmatpush.bf16.msra.mxu0 %v641
  %739 = vmatpush.bf16.msra.mxu0 %v637
  %740 = vmatpush.bf16.msra.mxu0 %v633
  %741 = vmatmul.bf16.gmra.mxu0 %v527
  %v742 = vpop.f32.mrf.mxu0
  %v743 = vadd.f32 0.0, %v742
  %v744 = vpop.f32.mrf.mxu0
  %745 = vdwg.mxu0
  %v746 = vadd.f32 %v530, %v704
  %v747 = vadd.f32 %v531, %v717
  %v748 = vadd.f32 %v532, %v730
  %v749 = vadd.f32 %v533, %v743
  %v750 = vtanh.pop %v746
  %v751 = vtanh.pop %v747
  %v752 = vtanh.pop %v748
  %v753 = vtanh.pop %v749
  %v754 = vmul.f32 %v750, 0.5
  %v755 = vmul.f32 %v751, 0.5
  %v756 = vmul.f32 %v752, 0.5
  %v757 = vadd.f32 %v754, 0.5
  %v758 = vadd.f32 %v755, 0.5
  %v759 = vadd.f32 %v756, 0.5
  %v760 = vmul.f32 %v758, %v524
  %v761 = vmul.f32 %v757, %v753
  %v762 = vadd.f32 %v760, %v761
  %v763 = vtanh.pop %v762
  %v764 = vmul.f32 %v759, %v763
  %v765 = vpack.c.bf16 %v764, %v764
  %766 = vst [vmem:[#allocation7 + $0x8] sm:$0xf] %v765
  %767 = vst [vmem:[#allocation7 + $0x74] sm:$0xf] %v765
  %v768 = vld [vmem:[#allocation6 + $0x40] sm:$0xff]
  %v769 = vld [vmem:[#allocation6 + $0x48] sm:$0xff]
  %v770 = vld [vmem:[#allocation6 + $0x50] sm:$0xff]
  %v771 = vld [vmem:[#allocation6 + $0x58] sm:$0xff]
  %772 = vmatpush.bf16.msra.mxu0 %v658
  %773 = vmatpush.bf16.msra.mxu0 %v654
  %774 = vmatpush.bf16.msra.mxu0 %v650
  %775 = vmatpush.bf16.msra.mxu0 %v646
  %776 = vmatpush.bf16.msra.mxu0 %v642
  %777 = vmatpush.bf16.msra.mxu0 %v638
  %778 = vmatpush.bf16.msra.mxu0 %v634
  %779 = vmatpush.bf16.msra.mxu0 %v630
  %780 = vmatmul.bf16.gmra.mxu0 %v765
  %v781 = vpop.f32.mrf.mxu0
  %v782 = vadd.f32 0.0, %v781
  %v783 = vpop.f32.mrf.mxu0
  %784 = vdwg.mxu0
  %785 = vmatpush.bf16.msra.mxu0 %v659
  %786 = vmatpush.bf16.msra.mxu0 %v655
  %787 = vmatpush.bf16.msra.mxu0 %v651
  %788 = vmatpush.bf16.msra.mxu0 %v647
  %789 = vmatpush.bf16.msra.mxu0 %v643
  %790 = vmatpush.bf16.msra.mxu0 %v639
  %791 = vmatpush.bf16.msra.mxu0 %v635
  %792 = vmatpush.bf16.msra.mxu0 %v631
  %793 = vmatmul.bf16.gmra.mxu0 %v765
  %v794 = vpop.f32.mrf.mxu0
  %v795 = vadd.f32 0.0, %v794
  %v796 = vpop.f32.mrf.mxu0
  %797 = vdwg.mxu0
  %798 = vmatpush.bf16.msra.mxu0 %v660
  %799 = vmatpush.bf16.msra.mxu0 %v656
  %800 = vmatpush.bf16.msra.mxu0 %v652
  %801 = vmatpush.bf16.msra.mxu0 %v648
  %802 = vmatpush.bf16.msra.mxu0 %v644
  %803 = vmatpush.bf16.msra.mxu0 %v640
  %804 = vmatpush.bf16.msra.mxu0 %v636
  %805 = vmatpush.bf16.msra.mxu0 %v632
  %806 = vmatmul.bf16.gmra.mxu0 %v765
  %v807 = vpop.f32.mrf.mxu0
  %v808 = vadd.f32 0.0, %v807
  %v809 = vpop.f32.mrf.mxu0
  %810 = vdwg.mxu0
  %811 = vmatpush.bf16.msra.mxu0 %v661
  %812 = vmatpush.bf16.msra.mxu0 %v657
  %813 = vmatpush.bf16.msra.mxu0 %v653
  %814 = vmatpush.bf16.msra.mxu0 %v649
  %815 = vmatpush.bf16.msra.mxu0 %v645
  %816 = vmatpush.bf16.msra.mxu0 %v641
  %817 = vmatpush.bf16.msra.mxu0 %v637
  %818 = vmatpush.bf16.msra.mxu0 %v633
  %819 = vmatmul.bf16.gmra.mxu0 %v765
  %v820 = vpop.f32.mrf.mxu0
  %v821 = vadd.f32 0.0, %v820
  %v822 = vpop.f32.mrf.mxu0
  %823 = vdwg.mxu0
  %v824 = vadd.f32 %v768, %v782
  %v825 = vadd.f32 %v769, %v795
  %v826 = vadd.f32 %v770, %v808
  %v827 = vadd.f32 %v771, %v821
  %v828 = vtanh.pop %v824
  %v829 = vtanh.pop %v825
  %v830 = vtanh.pop %v826
  %v831 = vtanh.pop %v827
  %v832 = vmul.f32 %v828, 0.5
  %v833 = vmul.f32 %v829, 0.5
  %v834 = vmul.f32 %v830, 0.5
  %v835 = vadd.f32 %v832, 0.5
  %v836 = vadd.f32 %v833, 0.5
  %v837 = vadd.f32 %v834, 0.5
  %v838 = vmul.f32 %v836, %v762
  %v839 = vmul.f32 %v835, %v831
  %v840 = vadd.f32 %v838, %v839
  %v841 = vtanh.pop %v840
  %v842 = vmul.f32 %v837, %v841
  %v843 = vpack.c.bf16 %v842, %v842
  %844 = vst [vmem:[#allocation7 + $0x10] sm:$0xf] %v843
  %845 = vst [vmem:[#allocation7 + $0x6c] sm:$0xf] %v843
  %v846 = vld [vmem:[#allocation6 + $0x60] sm:$0xff]
  %v847 = vld [vmem:[#allocation6 + $0x68] sm:$0xff]
  %v848 = vld [vmem:[#allocation6 + $0x70] sm:$0xff]
  %v849 = vld [vmem:[#allocation6 + $0x78] sm:$0xff]
  %850 = vmatpush.bf16.msra.mxu0 %v658
  %851 = vmatpush.bf16.msra.mxu0 %v654
  %852 = vmatpush.bf16.msra.mxu0 %v650
  %853 = vmatpush.bf16.msra.mxu0 %v646
  %854 = vmatpush.bf16.msra.mxu0 %v642
  %855 = vmatpush.bf16.msra.mxu0 %v638
  %856 = vmatpush.bf16.msra.mxu0 %v634
  %857 = vmatpush.bf16.msra.mxu0 %v630
  %858 = vmatmul.bf16.gmra.mxu0 %v843
  %v859 = vpop.f32.mrf.mxu0
  %v860 = vadd.f32 0.0, %v859
  %v861 = vpop.f32.mrf.mxu0
  %862 = vdwg.mxu0
  %863 = vmatpush.bf16.msra.mxu0 %v659
  %864 = vmatpush.bf16.msra.mxu0 %v655
  %865 = vmatpush.bf16.msra.mxu0 %v651
  %866 = vmatpush.bf16.msra.mxu0 %v647
  %867 = vmatpush.bf16.msra.mxu0 %v643
  %868 = vmatpush.bf16.msra.mxu0 %v639
  %869 = vmatpush.bf16.msra.mxu0 %v635
  %870 = vmatpush.bf16.msra.mxu0 %v631
  %871 = vmatmul.bf16.gmra.mxu0 %v843
  %v872 = vpop.f32.mrf.mxu0
  %v873 = vadd.f32 0.0, %v872
  %v874 = vpop.f32.mrf.mxu0
  %875 = vdwg.mxu0
  %876 = vmatpush.bf16.msra.mxu0 %v660
  %877 = vmatpush.bf16.msra.mxu0 %v656
  %878 = vmatpush.bf16.msra.mxu0 %v652
  %879 = vmatpush.bf16.msra.mxu0 %v648
  %880 = vmatpush.bf16.msra.mxu0 %v644
  %881 = vmatpush.bf16.msra.mxu0 %v640
  %882 = vmatpush.bf16.msra.mxu0 %v636
  %883 = vmatpush.bf16.msra.mxu0 %v632
  %884 = vmatmul.bf16.gmra.mxu0 %v843
  %v885 = vpop.f32.mrf.mxu0
  %v886 = vadd.f32 0.0, %v885
  %v887 = vpop.f32.mrf.mxu0
  %888 = vdwg.mxu0
  %889 = vmatpush.bf16.msra.mxu0 %v661
  %890 = vmatpush.bf16.msra.mxu0 %v657
  %891 = vmatpush.bf16.msra.mxu0 %v653
  %892 = vmatpush.bf16.msra.mxu0 %v649
  %893 = vmatpush.bf16.msra.mxu0 %v645
  %894 = vmatpush.bf16.msra.mxu0 %v641
  %895 = vmatpush.bf16.msra.mxu0 %v637
  %896 = vmatpush.bf16.msra.mxu0 %v633
  %897 = vmatmul.bf16.gmra.mxu0 %v843
  %v898 = vpop.f32.mrf.mxu0
  %v899 = vadd.f32 0.0, %v898
  %v900 = vpop.f32.mrf.mxu0
  %901 = vdwg.mxu0
  %v902 = vadd.f32 %v846, %v860
  %v903 = vadd.f32 %v847, %v873
  %v904 = vadd.f32 %v848, %v886
  %v905 = vadd.f32 %v849, %v899
  %v906 = vtanh.pop %v902
  %v907 = vtanh.pop %v903
  %v908 = vtanh.pop %v904
  %v909 = vtanh.pop %v905
  %v910 = vmul.f32 %v906, 0.5
  %v911 = vmul.f32 %v907, 0.5
  %v912 = vmul.f32 %v908, 0.5
  %v913 = vadd.f32 %v910, 0.5
  %v914 = vadd.f32 %v911, 0.5
  %v915 = vadd.f32 %v912, 0.5
  %v916 = vmul.f32 %v914, %v840
  %v917 = vmul.f32 %v913, %v909
  %v918 = vadd.f32 %v916, %v917
  %v919 = vtanh.pop %v918
  %v920 = vmul.f32 %v915, %v919
  %v921 = vpack.c.bf16 %v920, %v920
  %922 = vst [vmem:[#allocation7 + $0x18] sm:$0xf] %v921
  %923 = vst [vmem:[#allocation7 + $0x64] sm:$0xf] %v921
  %v924 = vld [vmem:[#allocation6 + $0x80] sm:$0xff]
  %v925 = vld [vmem:[#allocation6 + $0x88] sm:$0xff]
  %v926 = vld [vmem:[#allocation6 + $0x90] sm:$0xff]
  %v927 = vld [vmem:[#allocation6 + $0x98] sm:$0xff]
  %928 = vmatpush.bf16.msra.mxu0 %v658
  %929 = vmatpush.bf16.msra.mxu0 %v654
  %930 = vmatpush.bf16.msra.mxu0 %v650
  %931 = vmatpush.bf16.msra.mxu0 %v646
  %932 = vmatpush.bf16.msra.mxu0 %v642
  %933 = vmatpush.bf16.msra.mxu0 %v638
  %934 = vmatpush.bf16.msra.mxu0 %v634
  %935 = vmatpush.bf16.msra.mxu0 %v630
  %936 = vmatmul.bf16.gmra.mxu0 %v921
  %v937 = vpop.f32.mrf.mxu0
  %v938 = vadd.f32 0.0, %v937
  %v939 = vpop.f32.mrf.mxu0
  %940 = vdwg.mxu0
  %941 = vmatpush.bf16.msra.mxu0 %v659
  %942 = vmatpush.bf16.msra.mxu0 %v655
  %943 = vmatpush.bf16.msra.mxu0 %v651
  %944 = vmatpush.bf16.msra.mxu0 %v647
  %945 = vmatpush.bf16.msra.mxu0 %v643
  %946 = vmatpush.bf16.msra.mxu0 %v639
  %947 = vmatpush.bf16.msra.mxu0 %v635
  %948 = vmatpush.bf16.msra.mxu0 %v631
  %949 = vmatmul.bf16.gmra.mxu0 %v921
  %v950 = vpop.f32.mrf.mxu0
  %v951 = vadd.f32 0.0, %v950
  %v952 = vpop.f32.mrf.mxu0
  %953 = vdwg.mxu0
  %954 = vmatpush.bf16.msra.mxu0 %v660
  %955 = vmatpush.bf16.msra.mxu0 %v656
  %956 = vmatpush.bf16.msra.mxu0 %v652
  %957 = vmatpush.bf16.msra.mxu0 %v648
  %958 = vmatpush.bf16.msra.mxu0 %v644
  %959 = vmatpush.bf16.msra.mxu0 %v640
  %960 = vmatpush.bf16.msra.mxu0 %v636
  %961 = vmatpush.bf16.msra.mxu0 %v632
  %962 = vmatmul.bf16.gmra.mxu0 %v921
  %v963 = vpop.f32.mrf.mxu0
  %v964 = vadd.f32 0.0, %v963
  %v965 = vpop.f32.mrf.mxu0
  %966 = vdwg.mxu0
  %967 = vmatpush.bf16.msra.mxu0 %v661
  %968 = vmatpush.bf16.msra.mxu0 %v657
  %969 = vmatpush.bf16.msra.mxu0 %v653
  %970 = vmatpush.bf16.msra.mxu0 %v649
  %971 = vmatpush.bf16.msra.mxu0 %v645
  %972 = vmatpush.bf16.msra.mxu0 %v641
  %973 = vmatpush.bf16.msra.mxu0 %v637
  %974 = vmatpush.bf16.msra.mxu0 %v633
  %975 = vmatmul.bf16.gmra.mxu0 %v921
  %v976 = vpop.f32.mrf.mxu0
  %v977 = vadd.f32 0.0, %v976
  %v978 = vpop.f32.mrf.mxu0
  %979 = vdwg.mxu0
  %v980 = vadd.f32 %v924, %v938
  %v981 = vadd.f32 %v925, %v951
  %v982 = vadd.f32 %v926, %v964
  %v983 = vadd.f32 %v927, %v977
  %v984 = vtanh.pop %v980
  %v985 = vtanh.pop %v981
  %v986 = vtanh.pop %v982
  %v987 = vtanh.pop %v983
  %v988 = vmul.f32 %v984, 0.5
  %v989 = vmul.f32 %v985, 0.5
  %v990 = vmul.f32 %v986, 0.5
  %v991 = vadd.f32 %v988, 0.5
  %v992 = vadd.f32 %v989, 0.5
  %v993 = vadd.f32 %v990, 0.5
  %v994 = vmul.f32 %v992, %v918
  %v995 = vmul.f32 %v991, %v987
  %v996 = vadd.f32 %v994, %v995
  %v997 = vtanh.pop %v996
  %v998 = vmul.f32 %v993, %v997
  %v999 = vpack.c.bf16 %v998, %v998
  %1000 = vst [vmem:[#allocation7 + $0x20] sm:$0xf] %v999
  %1001 = vst [vmem:[#allocation7 + $0x5c] sm:$0xf] %v999
  %v1002 = vld [vmem:[#allocation6 + $0xa0] sm:$0xff]
  %v1003 = vld [vmem:[#allocation6 + $0xa8] sm:$0xff]
  %v1004 = vld [vmem:[#allocation6 + $0xb0] sm:$0xff]
  %v1005 = vld [vmem:[#allocation6 + $0xb8] sm:$0xff]
  %1006 = vmatpush.bf16.msra.mxu0 %v658
  %1007 = vmatpush.bf16.msra.mxu0 %v654
  %1008 = vmatpush.bf16.msra.mxu0 %v650
  %1009 = vmatpush.bf16.msra.mxu0 %v646
  %1010 = vmatpush.bf16.msra.mxu0 %v642
  %1011 = vmatpush.bf16.msra.mxu0 %v638
  %1012 = vmatpush.bf16.msra.mxu0 %v634
  %1013 = vmatpush.bf16.msra.mxu0 %v630
  %1014 = vmatmul.bf16.gmra.mxu0 %v999
  %v1015 = vpop.f32.mrf.mxu0
  %v1016 = vadd.f32 0.0, %v1015
  %v1017 = vpop.f32.mrf.mxu0
  %1018 = vdwg.mxu0
  %1019 = vmatpush.bf16.msra.mxu0 %v659
  %1020 = vmatpush.bf16.msra.mxu0 %v655
  %1021 = vmatpush.bf16.msra.mxu0 %v651
  %1022 = vmatpush.bf16.msra.mxu0 %v647
  %1023 = vmatpush.bf16.msra.mxu0 %v643
  %1024 = vmatpush.bf16.msra.mxu0 %v639
  %1025 = vmatpush.bf16.msra.mxu0 %v635
  %1026 = vmatpush.bf16.msra.mxu0 %v631
  %1027 = vmatmul.bf16.gmra.mxu0 %v999
  %v1028 = vpop.f32.mrf.mxu0
  %v1029 = vadd.f32 0.0, %v1028
  %v1030 = vpop.f32.mrf.mxu0
  %1031 = vdwg.mxu0
  %1032 = vmatpush.bf16.msra.mxu0 %v660
  %1033 = vmatpush.bf16.msra.mxu0 %v656
  %1034 = vmatpush.bf16.msra.mxu0 %v652
  %1035 = vmatpush.bf16.msra.mxu0 %v648
  %1036 = vmatpush.bf16.msra.mxu0 %v644
  %1037 = vmatpush.bf16.msra.mxu0 %v640
  %1038 = vmatpush.bf16.msra.mxu0 %v636
  %1039 = vmatpush.bf16.msra.mxu0 %v632
  %1040 = vmatmul.bf16.gmra.mxu0 %v999
  %v1041 = vpop.f32.mrf.mxu0
  %v1042 = vadd.f32 0.0, %v1041
  %v1043 = vpop.f32.mrf.mxu0
  %1044 = vdwg.mxu0
  %1045 = vmatpush.bf16.msra.mxu0 %v661
  %1046 = vmatpush.bf16.msra.mxu0 %v657
  %1047 = vmatpush.bf16.msra.mxu0 %v653
  %1048 = vmatpush.bf16.msra.mxu0 %v649
  %1049 = vmatpush.bf16.msra.mxu0 %v645
  %1050 = vmatpush.bf16.msra.mxu0 %v641
  %1051 = vmatpush.bf16.msra.mxu0 %v637
  %1052 = vmatpush.bf16.msra.mxu0 %v633
  %1053 = vmatmul.bf16.gmra.mxu0 %v999
  %v1054 = vpop.f32.mrf.mxu0
  %v1055 = vadd.f32 0.0, %v1054
  %v1056 = vpop.f32.mrf.mxu0
  %1057 = vdwg.mxu0
  %v1058 = vadd.f32 %v1002, %v1016
  %v1059 = vadd.f32 %v1003, %v1029
  %v1060 = vadd.f32 %v1004, %v1042
  %v1061 = vadd.f32 %v1005, %v1055
  %v1062 = vtanh.pop %v1058
  %v1063 = vtanh.pop %v1059
  %v1064 = vtanh.pop %v1060
  %v1065 = vtanh.pop %v1061
  %v1066 = vmul.f32 %v1062, 0.5
  %v1067 = vmul.f32 %v1063, 0.5
  %v1068 = vmul.f32 %v1064, 0.5
  %v1069 = vadd.f32 %v1066, 0.5
  %v1070 = vadd.f32 %v1067, 0.5
  %v1071 = vadd.f32 %v1068, 0.5
  %v1072 = vmul.f32 %v1070, %v996
  %v1073 = vmul.f32 %v1069, %v1065
  %v1074 = vadd.f32 %v1072, %v1073
  %v1075 = vtanh.pop %v1074
  %v1076 = vmul.f32 %v1071, %v1075
  %v1077 = vpack.c.bf16 %v1076, %v1076
  %1078 = vst [vmem:[#allocation7 + $0x28] sm:$0xf] %v1077
  %1079 = vst [vmem:[#allocation7 + $0x54] sm:$0xf] %v1077
  %v1080 = vld [vmem:[#allocation6 + $0xc0] sm:$0xff]
  %v1081 = vld [vmem:[#allocation6 + $0xc8] sm:$0xff]
  %v1082 = vld [vmem:[#allocation6 + $0xd0] sm:$0xff]
  %v1083 = vld [vmem:[#allocation6 + $0xd8] sm:$0xff]
  %1084 = vmatpush.bf16.msra.mxu0 %v658
  %1085 = vmatpush.bf16.msra.mxu0 %v654
  %1086 = vmatpush.bf16.msra.mxu0 %v650
  %1087 = vmatpush.bf16.msra.mxu0 %v646
  %1088 = vmatpush.bf16.msra.mxu0 %v642
  %1089 = vmatpush.bf16.msra.mxu0 %v638
  %1090 = vmatpush.bf16.msra.mxu0 %v634
  %1091 = vmatpush.bf16.msra.mxu0 %v630
  %1092 = vmatmul.bf16.gmra.mxu0 %v1077
  %v1093 = vpop.f32.mrf.mxu0
  %v1094 = vadd.f32 0.0, %v1093
  %v1095 = vpop.f32.mrf.mxu0
  %1096 = vdwg.mxu0
  %1097 = vmatpush.bf16.msra.mxu0 %v659
  %1098 = vmatpush.bf16.msra.mxu0 %v655
  %1099 = vmatpush.bf16.msra.mxu0 %v651
  %1100 = vmatpush.bf16.msra.mxu0 %v647
  %1101 = vmatpush.bf16.msra.mxu0 %v643
  %1102 = vmatpush.bf16.msra.mxu0 %v639
  %1103 = vmatpush.bf16.msra.mxu0 %v635
  %1104 = vmatpush.bf16.msra.mxu0 %v631
  %1105 = vmatmul.bf16.gmra.mxu0 %v1077
  %v1106 = vpop.f32.mrf.mxu0
  %v1107 = vadd.f32 0.0, %v1106
  %v1108 = vpop.f32.mrf.mxu0
  %1109 = vdwg.mxu0
  %1110 = vmatpush.bf16.msra.mxu0 %v660
  %1111 = vmatpush.bf16.msra.mxu0 %v656
  %1112 = vmatpush.bf16.msra.mxu0 %v652
  %1113 = vmatpush.bf16.msra.mxu0 %v648
  %1114 = vmatpush.bf16.msra.mxu0 %v644
  %1115 = vmatpush.bf16.msra.mxu0 %v640
  %1116 = vmatpush.bf16.msra.mxu0 %v636
  %1117 = vmatpush.bf16.msra.mxu0 %v632
  %1118 = vmatmul.bf16.gmra.mxu0 %v1077
  %v1119 = vpop.f32.mrf.mxu0
  %v1120 = vadd.f32 0.0, %v1119
  %v1121 = vpop.f32.mrf.mxu0
  %1122 = vdwg.mxu0
  %1123 = vmatpush.bf16.msra.mxu0 %v661
  %1124 = vmatpush.bf16.msra.mxu0 %v657
  %1125 = vmatpush.bf16.msra.mxu0 %v653
  %1126 = vmatpush.bf16.msra.mxu0 %v649
  %1127 = vmatpush.bf16.msra.mxu0 %v645
  %1128 = vmatpush.bf16.msra.mxu0 %v641
  %1129 = vmatpush.bf16.msra.mxu0 %v637
  %1130 = vmatpush.bf16.msra.mxu0 %v633
  %1131 = vmatmul.bf16.gmra.mxu0 %v1077
  %v1132 = vpop.f32.mrf.mxu0
  %v1133 = vadd.f32 0.0, %v1132
  %v1134 = vpop.f32.mrf.mxu0
  %1135 = vdwg.mxu0
  %v1136 = vadd.f32 %v1080, %v1094
  %v1137 = vadd.f32 %v1081, %v1107
  %v1138 = vadd.f32 %v1082, %v1120
  %v1139 = vadd.f32 %v1083, %v1133
  %v1140 = vtanh.pop %v1136
  %v1141 = vtanh.pop %v1137
  %v1142 = vtanh.pop %v1138
  %v1143 = vtanh.pop %v1139
  %v1144 = vmul.f32 %v1140, 0.5
  %v1145 = vmul.f32 %v1141, 0.5
  %v1146 = vmul.f32 %v1142, 0.5
  %v1147 = vadd.f32 %v1144, 0.5
  %v1148 = vadd.f32 %v1145, 0.5
  %v1149 = vadd.f32 %v1146, 0.5
  %v1150 = vmul.f32 %v1148, %v1074
  %v1151 = vmul.f32 %v1147, %v1143
  %v1152 = vadd.f32 %v1150, %v1151
  %v1153 = vtanh.pop %v1152
  %v1154 = vmul.f32 %v1149, %v1153
  %v1155 = vpack.c.bf16 %v1154, %v1154
  %1156 = vst [vmem:[#allocation7 + $0x30] sm:$0xf] %v1155
  %1157 = vst [vmem:[#allocation7 + $0x4c] sm:$0xf] %v1155
  %v1158 = vld [vmem:[#allocation6 + $0xe0] sm:$0xff]
  %v1159 = vld [vmem:[#allocation6 + $0xe8] sm:$0xff]
  %v1160 = vld [vmem:[#allocation6 + $0xf0] sm:$0xff]
  %v1161 = vld [vmem:[#allocation6 + $0xf8] sm:$0xff]
  %1162 = vmatpush.bf16.msra.mxu0 %v658
  %1163 = vmatpush.bf16.msra.mxu0 %v654
  %1164 = vmatpush.bf16.msra.mxu0 %v650
  %1165 = vmatpush.bf16.msra.mxu0 %v646
  %1166 = vmatpush.bf16.msra.mxu0 %v642
  %1167 = vmatpush.bf16.msra.mxu0 %v638
  %1168 = vmatpush.bf16.msra.mxu0 %v634
  %1169 = vmatpush.bf16.msra.mxu0 %v630
  %1170 = vmatmul.bf16.gmra.mxu0 %v1155
  %v1171 = vpop.f32.mrf.mxu0
  %v1172 = vadd.f32 0.0, %v1171
  %v1173 = vpop.f32.mrf.mxu0
  %1174 = vdwg.mxu0
  %1175 = vmatpush.bf16.msra.mxu0 %v659
  %1176 = vmatpush.bf16.msra.mxu0 %v655
  %1177 = vmatpush.bf16.msra.mxu0 %v651
  %1178 = vmatpush.bf16.msra.mxu0 %v647
  %1179 = vmatpush.bf16.msra.mxu0 %v643
  %1180 = vmatpush.bf16.msra.mxu0 %v639
  %1181 = vmatpush.bf16.msra.mxu0 %v635
  %1182 = vmatpush.bf16.msra.mxu0 %v631
  %1183 = vmatmul.bf16.gmra.mxu0 %v1155
  %v1184 = vpop.f32.mrf.mxu0
  %v1185 = vadd.f32 0.0, %v1184
  %v1186 = vpop.f32.mrf.mxu0
  %1187 = vdwg.mxu0
  %1188 = vmatpush.bf16.msra.mxu0 %v660
  %1189 = vmatpush.bf16.msra.mxu0 %v656
  %1190 = vmatpush.bf16.msra.mxu0 %v652
  %1191 = vmatpush.bf16.msra.mxu0 %v648
  %1192 = vmatpush.bf16.msra.mxu0 %v644
  %1193 = vmatpush.bf16.msra.mxu0 %v640
  %1194 = vmatpush.bf16.msra.mxu0 %v636
  %1195 = vmatpush.bf16.msra.mxu0 %v632
  %1196 = vmatmul.bf16.gmra.mxu0 %v1155
  %v1197 = vpop.f32.mrf.mxu0
  %v1198 = vadd.f32 0.0, %v1197
  %v1199 = vpop.f32.mrf.mxu0
  %1200 = vdwg.mxu0
  %1201 = vmatpush.bf16.msra.mxu0 %v661
  %1202 = vmatpush.bf16.msra.mxu0 %v657
  %1203 = vmatpush.bf16.msra.mxu0 %v653
  %1204 = vmatpush.bf16.msra.mxu0 %v649
  %1205 = vmatpush.bf16.msra.mxu0 %v645
  %1206 = vmatpush.bf16.msra.mxu0 %v641
  %1207 = vmatpush.bf16.msra.mxu0 %v637
  %1208 = vmatpush.bf16.msra.mxu0 %v633
  %1209 = vmatmul.bf16.gmra.mxu0 %v1155
  %v1210 = vpop.f32.mrf.mxu0
  %v1211 = vadd.f32 0.0, %v1210
  %v1212 = vpop.f32.mrf.mxu0
  %1213 = vdwg.mxu0
  %v1214 = vadd.f32 %v1158, %v1172
  %v1215 = vadd.f32 %v1159, %v1185
  %v1216 = vadd.f32 %v1160, %v1198
  %v1217 = vadd.f32 %v1161, %v1211
  %v1218 = vtanh.pop %v1214
  %v1219 = vtanh.pop %v1215
  %v1220 = vtanh.pop %v1216
  %v1221 = vtanh.pop %v1217
  %v1222 = vmul.f32 %v1218, 0.5
  %v1223 = vmul.f32 %v1219, 0.5
  %v1224 = vmul.f32 %v1220, 0.5
  %v1225 = vadd.f32 %v1222, 0.5
  %v1226 = vadd.f32 %v1223, 0.5
  %v1227 = vadd.f32 %v1224, 0.5
  %v1228 = vmul.f32 %v1226, %v1152
  %v1229 = vmul.f32 %v1225, %v1221
  %v1230 = vadd.f32 %v1228, %v1229
  %v1231 = vtanh.pop %v1230
  %v1232 = vmul.f32 %v1227, %v1231
  %v1233 = vpack.c.bf16 %v1232, %v1232
  %1234 = vst [vmem:[#allocation7 + $0x38] sm:$0xf] %v1233
  %1235 = vst [vmem:[#allocation7 + $0x44] sm:$0xf] %v1233
  %v1236 = vld [vmem:[#allocation6 + $0x100] sm:$0xff]
  %v1237 = vld [vmem:[#allocation6 + $0x108] sm:$0xff]
  %v1238 = vld [vmem:[#allocation6 + $0x110] sm:$0xff]
  %v1239 = vld [vmem:[#allocation6 + $0x118] sm:$0xff]
  %1240 = vmatpush.bf16.msra.mxu0 %v658
  %1241 = vmatpush.bf16.msra.mxu0 %v654
  %1242 = vmatpush.bf16.msra.mxu0 %v650
  %1243 = vmatpush.bf16.msra.mxu0 %v646
  %1244 = vmatpush.bf16.msra.mxu0 %v642
  %1245 = vmatpush.bf16.msra.mxu0 %v638
  %1246 = vmatpush.bf16.msra.mxu0 %v634
  %1247 = vmatpush.bf16.msra.mxu0 %v630
  %1248 = vmatmul.bf16.gmra.mxu0 %v1233
  %v1249 = vpop.f32.mrf.mxu0
  %v1250 = vadd.f32 0.0, %v1249
  %v1251 = vpop.f32.mrf.mxu0
  %1252 = vdwg.mxu0
  %1253 = vmatpush.bf16.msra.mxu0 %v659
  %1254 = vmatpush.bf16.msra.mxu0 %v655
  %1255 = vmatpush.bf16.msra.mxu0 %v651
  %1256 = vmatpush.bf16.msra.mxu0 %v647
  %1257 = vmatpush.bf16.msra.mxu0 %v643
  %1258 = vmatpush.bf16.msra.mxu0 %v639
  %1259 = vmatpush.bf16.msra.mxu0 %v635
  %1260 = vmatpush.bf16.msra.mxu0 %v631
  %1261 = vmatmul.bf16.gmra.mxu0 %v1233
  %v1262 = vpop.f32.mrf.mxu0
  %v1263 = vadd.f32 0.0, %v1262
  %v1264 = vpop.f32.mrf.mxu0
  %1265 = vdwg.mxu0
  %1266 = vmatpush.bf16.msra.mxu0 %v660
  %1267 = vmatpush.bf16.msra.mxu0 %v656
  %1268 = vmatpush.bf16.msra.mxu0 %v652
  %1269 = vmatpush.bf16.msra.mxu0 %v648
  %1270 = vmatpush.bf16.msra.mxu0 %v644
  %1271 = vmatpush.bf16.msra.mxu0 %v640
  %1272 = vmatpush.bf16.msra.mxu0 %v636
  %1273 = vmatpush.bf16.msra.mxu0 %v632
  %1274 = vmatmul.bf16.gmra.mxu0 %v1233
  %v1275 = vpop.f32.mrf.mxu0
  %v1276 = vadd.f32 0.0, %v1275
  %v1277 = vpop.f32.mrf.mxu0
  %1278 = vdwg.mxu0
  %1279 = vmatpush.bf16.msra.mxu0 %v661
  %1280 = vmatpush.bf16.msra.mxu0 %v657
  %1281 = vmatpush.bf16.msra.mxu0 %v653
  %1282 = vmatpush.bf16.msra.mxu0 %v649
  %1283 = vmatpush.bf16.msra.mxu0 %v645
  %1284 = vmatpush.bf16.msra.mxu0 %v641
  %1285 = vmatpush.bf16.msra.mxu0 %v637
  %1286 = vmatpush.bf16.msra.mxu0 %v633
  %1287 = vmatmul.bf16.gmra.mxu0 %v1233
  %v1288 = vpop.f32.mrf.mxu0
  %v1289 = vadd.f32 0.0, %v1288
  %v1290 = vpop.f32.mrf.mxu0
  %1291 = vdwg.mxu0
  %v1292 = vadd.f32 %v1236, %v1250
  %v1293 = vadd.f32 %v1237, %v1263
  %v1294 = vadd.f32 %v1238, %v1276
  %v1295 = vadd.f32 %v1239, %v1289
  %v1296 = vtanh.pop %v1292
  %v1297 = vtanh.pop %v1293
  %v1298 = vtanh.pop %v1294
  %v1299 = vtanh.pop %v1295
  %v1300 = vmul.f32 %v1296, 0.5
  %v1301 = vmul.f32 %v1297, 0.5
  %v1302 = vmul.f32 %v1298, 0.5
  %v1303 = vadd.f32 %v1300, 0.5
  %v1304 = vadd.f32 %v1301, 0.5
  %v1305 = vadd.f32 %v1302, 0.5
  %v1306 = vmul.f32 %v1304, %v1230
  %v1307 = vmul.f32 %v1303, %v1299
  %v1308 = vadd.f32 %v1306, %v1307
  %v1309 = vtanh.pop %v1308
  %v1310 = vmul.f32 %v1305, %v1309
  %v1311 = vpack.c.bf16 %v1310, %v1310
  %1312 = vst [vmem:[#allocation7 + $0x40] sm:$0xf] %v1311
  %1313 = vst [vmem:[#allocation7 + $0x3c] sm:$0xf] %v1311
  %v1314 = vld [vmem:[#allocation6 + $0x120] sm:$0xff]
  %v1315 = vld [vmem:[#allocation6 + $0x128] sm:$0xff]
  %v1316 = vld [vmem:[#allocation6 + $0x130] sm:$0xff]
  %v1317 = vld [vmem:[#allocation6 + $0x138] sm:$0xff]
  %1318 = vmatpush.bf16.msra.mxu0 %v658
  %1319 = vmatpush.bf16.msra.mxu0 %v654
  %1320 = vmatpush.bf16.msra.mxu0 %v650
  %1321 = vmatpush.bf16.msra.mxu0 %v646
  %1322 = vmatpush.bf16.msra.mxu0 %v642
  %1323 = vmatpush.bf16.msra.mxu0 %v638
  %1324 = vmatpush.bf16.msra.mxu0 %v634
  %1325 = vmatpush.bf16.msra.mxu0 %v630
  %1326 = vmatmul.bf16.gmra.mxu0 %v1311
  %v1327 = vpop.f32.mrf.mxu0
  %v1328 = vadd.f32 0.0, %v1327
  %v1329 = vpop.f32.mrf.mxu0
  %1330 = vdwg.mxu0
  %1331 = vmatpush.bf16.msra.mxu0 %v659
  %1332 = vmatpush.bf16.msra.mxu0 %v655
  %1333 = vmatpush.bf16.msra.mxu0 %v651
  %1334 = vmatpush.bf16.msra.mxu0 %v647
  %1335 = vmatpush.bf16.msra.mxu0 %v643
  %1336 = vmatpush.bf16.msra.mxu0 %v639
  %1337 = vmatpush.bf16.msra.mxu0 %v635
  %1338 = vmatpush.bf16.msra.mxu0 %v631
  %1339 = vmatmul.bf16.gmra.mxu0 %v1311
  %v1340 = vpop.f32.mrf.mxu0
  %v1341 = vadd.f32 0.0, %v1340
  %v1342 = vpop.f32.mrf.mxu0
  %1343 = vdwg.mxu0
  %1344 = vmatpush.bf16.msra.mxu0 %v660
  %1345 = vmatpush.bf16.msra.mxu0 %v656
  %1346 = vmatpush.bf16.msra.mxu0 %v652
  %1347 = vmatpush.bf16.msra.mxu0 %v648
  %1348 = vmatpush.bf16.msra.mxu0 %v644
  %1349 = vmatpush.bf16.msra.mxu0 %v640
  %1350 = vmatpush.bf16.msra.mxu0 %v636
  %1351 = vmatpush.bf16.msra.mxu0 %v632
  %1352 = vmatmul.bf16.gmra.mxu0 %v1311
  %v1353 = vpop.f32.mrf.mxu0
  %v1354 = vadd.f32 0.0, %v1353
  %v1355 = vpop.f32.mrf.mxu0
  %1356 = vdwg.mxu0
  %1357 = vmatpush.bf16.msra.mxu0 %v661
  %1358 = vmatpush.bf16.msra.mxu0 %v657
  %1359 = vmatpush.bf16.msra.mxu0 %v653
  %1360 = vmatpush.bf16.msra.mxu0 %v649
  %1361 = vmatpush.bf16.msra.mxu0 %v645
  %1362 = vmatpush.bf16.msra.mxu0 %v641
  %1363 = vmatpush.bf16.msra.mxu0 %v637
  %1364 = vmatpush.bf16.msra.mxu0 %v633
  %1365 = vmatmul.bf16.gmra.mxu0 %v1311
  %v1366 = vpop.f32.mrf.mxu0
  %v1367 = vadd.f32 0.0, %v1366
  %v1368 = vpop.f32.mrf.mxu0
  %1369 = vdwg.mxu0
  %v1370 = vadd.f32 %v1314, %v1328
  %v1371 = vadd.f32 %v1315, %v1341
  %v1372 = vadd.f32 %v1316, %v1354
  %v1373 = vadd.f32 %v1317, %v1367
  %v1374 = vtanh.pop %v1370
  %v1375 = vtanh.pop %v1371
  %v1376 = vtanh.pop %v1372
  %v1377 = vtanh.pop %v1373
  %v1378 = vmul.f32 %v1374, 0.5
  %v1379 = vmul.f32 %v1375, 0.5
  %v1380 = vmul.f32 %v1376, 0.5
  %v1381 = vadd.f32 %v1378, 0.5
  %v1382 = vadd.f32 %v1379, 0.5
  %v1383 = vadd.f32 %v1380, 0.5
  %v1384 = vmul.f32 %v1382, %v1308
  %v1385 = vmul.f32 %v1381, %v1377
  %v1386 = vadd.f32 %v1384, %v1385
  %v1387 = vtanh.pop %v1386
  %v1388 = vmul.f32 %v1383, %v1387
  %v1389 = vpack.c.bf16 %v1388, %v1388
  %1390 = vst [vmem:[#allocation7 + $0x48] sm:$0xf] %v1389
  %1391 = vst [vmem:[#allocation7 + $0x34] sm:$0xf] %v1389
  %v1392 = vld [vmem:[#allocation6 + $0x140] sm:$0xff]
  %v1393 = vld [vmem:[#allocation6 + $0x148] sm:$0xff]
  %v1394 = vld [vmem:[#allocation6 + $0x150] sm:$0xff]
  %v1395 = vld [vmem:[#allocation6 + $0x158] sm:$0xff]
  %1396 = vmatpush.bf16.msra.mxu0 %v658
  %1397 = vmatpush.bf16.msra.mxu0 %v654
  %1398 = vmatpush.bf16.msra.mxu0 %v650
  %1399 = vmatpush.bf16.msra.mxu0 %v646
  %1400 = vmatpush.bf16.msra.mxu0 %v642
  %1401 = vmatpush.bf16.msra.mxu0 %v638
  %1402 = vmatpush.bf16.msra.mxu0 %v634
  %1403 = vmatpush.bf16.msra.mxu0 %v630
  %1404 = vmatmul.bf16.gmra.mxu0 %v1389
  %v1405 = vpop.f32.mrf.mxu0
  %v1406 = vadd.f32 0.0, %v1405
  %v1407 = vpop.f32.mrf.mxu0
  %1408 = vdwg.mxu0
  %1409 = vmatpush.bf16.msra.mxu0 %v659
  %1410 = vmatpush.bf16.msra.mxu0 %v655
  %1411 = vmatpush.bf16.msra.mxu0 %v651
  %1412 = vmatpush.bf16.msra.mxu0 %v647
  %1413 = vmatpush.bf16.msra.mxu0 %v643
  %1414 = vmatpush.bf16.msra.mxu0 %v639
  %1415 = vmatpush.bf16.msra.mxu0 %v635
  %1416 = vmatpush.bf16.msra.mxu0 %v631
  %1417 = vmatmul.bf16.gmra.mxu0 %v1389
  %v1418 = vpop.f32.mrf.mxu0
  %v1419 = vadd.f32 0.0, %v1418
  %v1420 = vpop.f32.mrf.mxu0
  %1421 = vdwg.mxu0
  %1422 = vmatpush.bf16.msra.mxu0 %v660
  %1423 = vmatpush.bf16.msra.mxu0 %v656
  %1424 = vmatpush.bf16.msra.mxu0 %v652
  %1425 = vmatpush.bf16.msra.mxu0 %v648
  %1426 = vmatpush.bf16.msra.mxu0 %v644
  %1427 = vmatpush.bf16.msra.mxu0 %v640
  %1428 = vmatpush.bf16.msra.mxu0 %v636
  %1429 = vmatpush.bf16.msra.mxu0 %v632
  %1430 = vmatmul.bf16.gmra.mxu0 %v1389
  %v1431 = vpop.f32.mrf.mxu0
  %v1432 = vadd.f32 0.0, %v1431
  %v1433 = vpop.f32.mrf.mxu0
  %1434 = vdwg.mxu0
  %1435 = vmatpush.bf16.msra.mxu0 %v661
  %1436 = vmatpush.bf16.msra.mxu0 %v657
  %1437 = vmatpush.bf16.msra.mxu0 %v653
  %1438 = vmatpush.bf16.msra.mxu0 %v649
  %1439 = vmatpush.bf16.msra.mxu0 %v645
  %1440 = vmatpush.bf16.msra.mxu0 %v641
  %1441 = vmatpush.bf16.msra.mxu0 %v637
  %1442 = vmatpush.bf16.msra.mxu0 %v633
  %1443 = vmatmul.bf16.gmra.mxu0 %v1389
  %v1444 = vpop.f32.mrf.mxu0
  %v1445 = vadd.f32 0.0, %v1444
  %v1446 = vpop.f32.mrf.mxu0
  %1447 = vdwg.mxu0
  %v1448 = vadd.f32 %v1392, %v1406
  %v1449 = vadd.f32 %v1393, %v1419
  %v1450 = vadd.f32 %v1394, %v1432
  %v1451 = vadd.f32 %v1395, %v1445
  %v1452 = vtanh.pop %v1448
  %v1453 = vtanh.pop %v1449
  %v1454 = vtanh.pop %v1450
  %v1455 = vtanh.pop %v1451
  %v1456 = vmul.f32 %v1452, 0.5
  %v1457 = vmul.f32 %v1453, 0.5
  %v1458 = vmul.f32 %v1454, 0.5
  %v1459 = vadd.f32 %v1456, 0.5
  %v1460 = vadd.f32 %v1457, 0.5
  %v1461 = vadd.f32 %v1458, 0.5
  %v1462 = vmul.f32 %v1460, %v1386
  %v1463 = vmul.f32 %v1459, %v1455
  %v1464 = vadd.f32 %v1462, %v1463
  %v1465 = vtanh.pop %v1464
  %v1466 = vmul.f32 %v1461, %v1465
  %v1467 = vpack.c.bf16 %v1466, %v1466
  %1468 = vst [vmem:[#allocation7 + $0x50] sm:$0xf] %v1467
  %1469 = vst [vmem:[#allocation7 + $0x2c] sm:$0xf] %v1467
  %v1470 = vld [vmem:[#allocation6 + $0x160] sm:$0xff]
  %v1471 = vld [vmem:[#allocation6 + $0x168] sm:$0xff]
  %v1472 = vld [vmem:[#allocation6 + $0x170] sm:$0xff]
  %v1473 = vld [vmem:[#allocation6 + $0x178] sm:$0xff]
  %1474 = vmatpush.bf16.msra.mxu0 %v658
  %1475 = vmatpush.bf16.msra.mxu0 %v654
  %1476 = vmatpush.bf16.msra.mxu0 %v650
  %1477 = vmatpush.bf16.msra.mxu0 %v646
  %1478 = vmatpush.bf16.msra.mxu0 %v642
  %1479 = vmatpush.bf16.msra.mxu0 %v638
  %1480 = vmatpush.bf16.msra.mxu0 %v634
  %1481 = vmatpush.bf16.msra.mxu0 %v630
  %1482 = vmatmul.bf16.gmra.mxu0 %v1467
  %v1483 = vpop.f32.mrf.mxu0
  %v1484 = vadd.f32 0.0, %v1483
  %v1485 = vpop.f32.mrf.mxu0
  %1486 = vdwg.mxu0
  %1487 = vmatpush.bf16.msra.mxu0 %v659
  %1488 = vmatpush.bf16.msra.mxu0 %v655
  %1489 = vmatpush.bf16.msra.mxu0 %v651
  %1490 = vmatpush.bf16.msra.mxu0 %v647
  %1491 = vmatpush.bf16.msra.mxu0 %v643
  %1492 = vmatpush.bf16.msra.mxu0 %v639
  %1493 = vmatpush.bf16.msra.mxu0 %v635
  %1494 = vmatpush.bf16.msra.mxu0 %v631
  %1495 = vmatmul.bf16.gmra.mxu0 %v1467
  %v1496 = vpop.f32.mrf.mxu0
  %v1497 = vadd.f32 0.0, %v1496
  %v1498 = vpop.f32.mrf.mxu0
  %1499 = vdwg.mxu0
  %1500 = vmatpush.bf16.msra.mxu0 %v660
  %1501 = vmatpush.bf16.msra.mxu0 %v656
  %1502 = vmatpush.bf16.msra.mxu0 %v652
  %1503 = vmatpush.bf16.msra.mxu0 %v648
  %1504 = vmatpush.bf16.msra.mxu0 %v644
  %1505 = vmatpush.bf16.msra.mxu0 %v640
  %1506 = vmatpush.bf16.msra.mxu0 %v636
  %1507 = vmatpush.bf16.msra.mxu0 %v632
  %1508 = vmatmul.bf16.gmra.mxu0 %v1467
  %v1509 = vpop.f32.mrf.mxu0
  %v1510 = vadd.f32 0.0, %v1509
  %v1511 = vpop.f32.mrf.mxu0
  %1512 = vdwg.mxu0
  %1513 = vmatpush.bf16.msra.mxu0 %v661
  %1514 = vmatpush.bf16.msra.mxu0 %v657
  %1515 = vmatpush.bf16.msra.mxu0 %v653
  %1516 = vmatpush.bf16.msra.mxu0 %v649
  %1517 = vmatpush.bf16.msra.mxu0 %v645
  %1518 = vmatpush.bf16.msra.mxu0 %v641
  %1519 = vmatpush.bf16.msra.mxu0 %v637
  %1520 = vmatpush.bf16.msra.mxu0 %v633
  %1521 = vmatmul.bf16.gmra.mxu0 %v1467
  %v1522 = vpop.f32.mrf.mxu0
  %v1523 = vadd.f32 0.0, %v1522
  %v1524 = vpop.f32.mrf.mxu0
  %1525 = vdwg.mxu0
  %v1526 = vadd.f32 %v1470, %v1484
  %v1527 = vadd.f32 %v1471, %v1497
  %v1528 = vadd.f32 %v1472, %v1510
  %v1529 = vadd.f32 %v1473, %v1523
  %v1530 = vtanh.pop %v1526
  %v1531 = vtanh.pop %v1527
  %v1532 = vtanh.pop %v1528
  %v1533 = vtanh.pop %v1529
  %v1534 = vmul.f32 %v1530, 0.5
  %v1535 = vmul.f32 %v1531, 0.5
  %v1536 = vmul.f32 %v1532, 0.5
  %v1537 = vadd.f32 %v1534, 0.5
  %v1538 = vadd.f32 %v1535, 0.5
  %v1539 = vadd.f32 %v1536, 0.5
  %v1540 = vmul.f32 %v1538, %v1464
  %v1541 = vmul.f32 %v1537, %v1533
  %v1542 = vadd.f32 %v1540, %v1541
  %v1543 = vtanh.pop %v1542
  %v1544 = vmul.f32 %v1539, %v1543
  %v1545 = vpack.c.bf16 %v1544, %v1544
  %1546 = vst [vmem:[#allocation7 + $0x58] sm:$0xf] %v1545
  %1547 = vst [vmem:[#allocation7 + $0x24] sm:$0xf] %v1545
  %v1548 = vld [vmem:[#allocation6 + $0x180] sm:$0xff]
  %v1549 = vld [vmem:[#allocation6 + $0x188] sm:$0xff]
  %v1550 = vld [vmem:[#allocation6 + $0x190] sm:$0xff]
  %v1551 = vld [vmem:[#allocation6 + $0x198] sm:$0xff]
  %1552 = vmatpush.bf16.msra.mxu0 %v658
  %1553 = vmatpush.bf16.msra.mxu0 %v654
  %1554 = vmatpush.bf16.msra.mxu0 %v650
  %1555 = vmatpush.bf16.msra.mxu0 %v646
  %1556 = vmatpush.bf16.msra.mxu0 %v642
  %1557 = vmatpush.bf16.msra.mxu0 %v638
  %1558 = vmatpush.bf16.msra.mxu0 %v634
  %1559 = vmatpush.bf16.msra.mxu0 %v630
  %1560 = vmatmul.bf16.gmra.mxu0 %v1545
  %v1561 = vpop.f32.mrf.mxu0
  %v1562 = vadd.f32 0.0, %v1561
  %v1563 = vpop.f32.mrf.mxu0
  %1564 = vdwg.mxu0
  %1565 = vmatpush.bf16.msra.mxu0 %v659
  %1566 = vmatpush.bf16.msra.mxu0 %v655
  %1567 = vmatpush.bf16.msra.mxu0 %v651
  %1568 = vmatpush.bf16.msra.mxu0 %v647
  %1569 = vmatpush.bf16.msra.mxu0 %v643
  %1570 = vmatpush.bf16.msra.mxu0 %v639
  %1571 = vmatpush.bf16.msra.mxu0 %v635
  %1572 = vmatpush.bf16.msra.mxu0 %v631
  %1573 = vmatmul.bf16.gmra.mxu0 %v1545
  %v1574 = vpop.f32.mrf.mxu0
  %v1575 = vadd.f32 0.0, %v1574
  %v1576 = vpop.f32.mrf.mxu0
  %1577 = vdwg.mxu0
  %1578 = vmatpush.bf16.msra.mxu0 %v660
  %1579 = vmatpush.bf16.msra.mxu0 %v656
  %1580 = vmatpush.bf16.msra.mxu0 %v652
  %1581 = vmatpush.bf16.msra.mxu0 %v648
  %1582 = vmatpush.bf16.msra.mxu0 %v644
  %1583 = vmatpush.bf16.msra.mxu0 %v640
  %1584 = vmatpush.bf16.msra.mxu0 %v636
  %1585 = vmatpush.bf16.msra.mxu0 %v632
  %1586 = vmatmul.bf16.gmra.mxu0 %v1545
  %v1587 = vpop.f32.mrf.mxu0
  %v1588 = vadd.f32 0.0, %v1587
  %v1589 = vpop.f32.mrf.mxu0
  %1590 = vdwg.mxu0
  %1591 = vmatpush.bf16.msra.mxu0 %v661
  %1592 = vmatpush.bf16.msra.mxu0 %v657
  %1593 = vmatpush.bf16.msra.mxu0 %v653
  %1594 = vmatpush.bf16.msra.mxu0 %v649
  %1595 = vmatpush.bf16.msra.mxu0 %v645
  %1596 = vmatpush.bf16.msra.mxu0 %v641
  %1597 = vmatpush.bf16.msra.mxu0 %v637
  %1598 = vmatpush.bf16.msra.mxu0 %v633
  %1599 = vmatmul.bf16.gmra.mxu0 %v1545
  %v1600 = vpop.f32.mrf.mxu0
  %v1601 = vadd.f32 0.0, %v1600
  %v1602 = vpop.f32.mrf.mxu0
  %1603 = vdwg.mxu0
  %v1604 = vadd.f32 %v1548, %v1562
  %v1605 = vadd.f32 %v1549, %v1575
  %v1606 = vadd.f32 %v1550, %v1588
  %v1607 = vadd.f32 %v1551, %v1601
  %v1608 = vtanh.pop %v1604
  %v1609 = vtanh.pop %v1605
  %v1610 = vtanh.pop %v1606
  %v1611 = vtanh.pop %v1607
  %v1612 = vmul.f32 %v1608, 0.5
  %v1613 = vmul.f32 %v1609, 0.5
  %v1614 = vmul.f32 %v1610, 0.5
  %v1615 = vadd.f32 %v1612, 0.5
  %v1616 = vadd.f32 %v1613, 0.5
  %v1617 = vadd.f32 %v1614, 0.5
  %v1618 = vmul.f32 %v1616, %v1542
  %v1619 = vmul.f32 %v1615, %v1611
  %v1620 = vadd.f32 %v1618, %v1619
  %v1621 = vtanh.pop %v1620
  %v1622 = vmul.f32 %v1617, %v1621
  %v1623 = vpack.c.bf16 %v1622, %v1622
  %1624 = vst [vmem:[#allocation7 + $0x60] sm:$0xf] %v1623
  %1625 = vst [vmem:[#allocation7 + $0x1c] sm:$0xf] %v1623
  %v1626 = vld [vmem:[#allocation6 + $0x1a0] sm:$0xff]
  %v1627 = vld [vmem:[#allocation6 + $0x1a8] sm:$0xff]
  %v1628 = vld [vmem:[#allocation6 + $0x1b0] sm:$0xff]
  %v1629 = vld [vmem:[#allocation6 + $0x1b8] sm:$0xff]
  %1630 = vmatpush.bf16.msra.mxu0 %v658
  %1631 = vmatpush.bf16.msra.mxu0 %v654
  %1632 = vmatpush.bf16.msra.mxu0 %v650
  %1633 = vmatpush.bf16.msra.mxu0 %v646
  %1634 = vmatpush.bf16.msra.mxu0 %v642
  %1635 = vmatpush.bf16.msra.mxu0 %v638
  %1636 = vmatpush.bf16.msra.mxu0 %v634
  %1637 = vmatpush.bf16.msra.mxu0 %v630
  %1638 = vmatmul.bf16.gmra.mxu0 %v1623
  %v1639 = vpop.f32.mrf.mxu0
  %v1640 = vadd.f32 0.0, %v1639
  %v1641 = vpop.f32.mrf.mxu0
  %1642 = vdwg.mxu0
  %1643 = vmatpush.bf16.msra.mxu0 %v659
  %1644 = vmatpush.bf16.msra.mxu0 %v655
  %1645 = vmatpush.bf16.msra.mxu0 %v651
  %1646 = vmatpush.bf16.msra.mxu0 %v647
  %1647 = vmatpush.bf16.msra.mxu0 %v643
  %1648 = vmatpush.bf16.msra.mxu0 %v639
  %1649 = vmatpush.bf16.msra.mxu0 %v635
  %1650 = vmatpush.bf16.msra.mxu0 %v631
  %1651 = vmatmul.bf16.gmra.mxu0 %v1623
  %v1652 = vpop.f32.mrf.mxu0
  %v1653 = vadd.f32 0.0, %v1652
  %v1654 = vpop.f32.mrf.mxu0
  %1655 = vdwg.mxu0
  %1656 = vmatpush.bf16.msra.mxu0 %v660
  %1657 = vmatpush.bf16.msra.mxu0 %v656
  %1658 = vmatpush.bf16.msra.mxu0 %v652
  %1659 = vmatpush.bf16.msra.mxu0 %v648
  %1660 = vmatpush.bf16.msra.mxu0 %v644
  %1661 = vmatpush.bf16.msra.mxu0 %v640
  %1662 = vmatpush.bf16.msra.mxu0 %v636
  %1663 = vmatpush.bf16.msra.mxu0 %v632
  %1664 = vmatmul.bf16.gmra.mxu0 %v1623
  %v1665 = vpop.f32.mrf.mxu0
  %v1666 = vadd.f32 0.0, %v1665
  %v1667 = vpop.f32.mrf.mxu0
  %1668 = vdwg.mxu0
  %1669 = vmatpush.bf16.msra.mxu0 %v661
  %1670 = vmatpush.bf16.msra.mxu0 %v657
  %1671 = vmatpush.bf16.msra.mxu0 %v653
  %1672 = vmatpush.bf16.msra.mxu0 %v649
  %1673 = vmatpush.bf16.msra.mxu0 %v645
  %1674 = vmatpush.bf16.msra.mxu0 %v641
  %1675 = vmatpush.bf16.msra.mxu0 %v637
  %1676 = vmatpush.bf16.msra.mxu0 %v633
  %1677 = vmatmul.bf16.gmra.mxu0 %v1623
  %v1678 = vpop.f32.mrf.mxu0
  %v1679 = vadd.f32 0.0, %v1678
  %v1680 = vpop.f32.mrf.mxu0
  %1681 = vdwg.mxu0
  %v1682 = vadd.f32 %v1626, %v1640
  %v1683 = vadd.f32 %v1627, %v1653
  %v1684 = vadd.f32 %v1628, %v1666
  %v1685 = vadd.f32 %v1629, %v1679
  %v1686 = vtanh.pop %v1682
  %v1687 = vtanh.pop %v1683
  %v1688 = vtanh.pop %v1684
  %v1689 = vtanh.pop %v1685
  %v1690 = vmul.f32 %v1686, 0.5
  %v1691 = vmul.f32 %v1687, 0.5
  %v1692 = vmul.f32 %v1688, 0.5
  %v1693 = vadd.f32 %v1690, 0.5
  %v1694 = vadd.f32 %v1691, 0.5
  %v1695 = vadd.f32 %v1692, 0.5
  %v1696 = vmul.f32 %v1694, %v1620
  %v1697 = vmul.f32 %v1693, %v1689
  %v1698 = vadd.f32 %v1696, %v1697
  %v1699 = vtanh.pop %v1698
  %v1700 = vmul.f32 %v1695, %v1699
  %v1701 = vpack.c.bf16 %v1700, %v1700
  %1702 = vst [vmem:[#allocation7 + $0x68] sm:$0xf] %v1701
  %1703 = vst [vmem:[#allocation7 + $0x14] sm:$0xf] %v1701
  %v1704 = vld [vmem:[#allocation6 + $0x1c0] sm:$0xff]
  %v1705 = vld [vmem:[#allocation6 + $0x1c8] sm:$0xff]
  %v1706 = vld [vmem:[#allocation6 + $0x1d0] sm:$0xff]
  %v1707 = vld [vmem:[#allocation6 + $0x1d8] sm:$0xff]
  %1708 = vmatpush.bf16.msra.mxu0 %v658
  %1709 = vmatpush.bf16.msra.mxu0 %v654
  %1710 = vmatpush.bf16.msra.mxu0 %v650
  %1711 = vmatpush.bf16.msra.mxu0 %v646
  %1712 = vmatpush.bf16.msra.mxu0 %v642
  %1713 = vmatpush.bf16.msra.mxu0 %v638
  %1714 = vmatpush.bf16.msra.mxu0 %v634
  %1715 = vmatpush.bf16.msra.mxu0 %v630
  %1716 = vmatmul.bf16.gmra.mxu0 %v1701
  %v1717 = vpop.f32.mrf.mxu0
  %v1718 = vadd.f32 0.0, %v1717
  %v1719 = vpop.f32.mrf.mxu0
  %1720 = vdwg.mxu0
  %1721 = vmatpush.bf16.msra.mxu0 %v659
  %1722 = vmatpush.bf16.msra.mxu0 %v655
  %1723 = vmatpush.bf16.msra.mxu0 %v651
  %1724 = vmatpush.bf16.msra.mxu0 %v647
  %1725 = vmatpush.bf16.msra.mxu0 %v643
  %1726 = vmatpush.bf16.msra.mxu0 %v639
  %1727 = vmatpush.bf16.msra.mxu0 %v635
  %1728 = vmatpush.bf16.msra.mxu0 %v631
  %1729 = vmatmul.bf16.gmra.mxu0 %v1701
  %v1730 = vpop.f32.mrf.mxu0
  %v1731 = vadd.f32 0.0, %v1730
  %v1732 = vpop.f32.mrf.mxu0
  %1733 = vdwg.mxu0
  %1734 = vmatpush.bf16.msra.mxu0 %v660
  %1735 = vmatpush.bf16.msra.mxu0 %v656
  %1736 = vmatpush.bf16.msra.mxu0 %v652
  %1737 = vmatpush.bf16.msra.mxu0 %v648
  %1738 = vmatpush.bf16.msra.mxu0 %v644
  %1739 = vmatpush.bf16.msra.mxu0 %v640
  %1740 = vmatpush.bf16.msra.mxu0 %v636
  %1741 = vmatpush.bf16.msra.mxu0 %v632
  %1742 = vmatmul.bf16.gmra.mxu0 %v1701
  %v1743 = vpop.f32.mrf.mxu0
  %v1744 = vadd.f32 0.0, %v1743
  %v1745 = vpop.f32.mrf.mxu0
  %1746 = vdwg.mxu0
  %1747 = vmatpush.bf16.msra.mxu0 %v661
  %1748 = vmatpush.bf16.msra.mxu0 %v657
  %1749 = vmatpush.bf16.msra.mxu0 %v653
  %1750 = vmatpush.bf16.msra.mxu0 %v649
  %1751 = vmatpush.bf16.msra.mxu0 %v645
  %1752 = vmatpush.bf16.msra.mxu0 %v641
  %1753 = vmatpush.bf16.msra.mxu0 %v637
  %1754 = vmatpush.bf16.msra.mxu0 %v633
  %1755 = vmatmul.bf16.gmra.mxu0 %v1701
  %v1756 = vpop.f32.mrf.mxu0
  %v1757 = vadd.f32 0.0, %v1756
  %v1758 = vpop.f32.mrf.mxu0
  %1759 = vdwg.mxu0
  %v1760 = vadd.f32 %v1704, %v1718
  %v1761 = vadd.f32 %v1705, %v1731
  %v1762 = vadd.f32 %v1706, %v1744
  %v1763 = vadd.f32 %v1707, %v1757
  %v1764 = vtanh.pop %v1760
  %v1765 = vtanh.pop %v1761
  %v1766 = vtanh.pop %v1762
  %v1767 = vtanh.pop %v1763
  %v1768 = vmul.f32 %v1764, 0.5
  %v1769 = vmul.f32 %v1765, 0.5
  %v1770 = vmul.f32 %v1766, 0.5
  %v1771 = vadd.f32 %v1768, 0.5
  %v1772 = vadd.f32 %v1769, 0.5
  %v1773 = vadd.f32 %v1770, 0.5
  %v1774 = vmul.f32 %v1772, %v1698
  %v1775 = vmul.f32 %v1771, %v1767
  %v1776 = vadd.f32 %v1774, %v1775
  %v1777 = vtanh.pop %v1776
  %v1778 = vmul.f32 %v1773, %v1777
  %v1779 = vpack.c.bf16 %v1778, %v1778
  %1780 = vst [vmem:[#allocation7 + $0x70] sm:$0xf] %v1779
  %1781 = vst [vmem:[#allocation7 + $0xc] sm:$0xf] %v1779
  %v1782 = vld [vmem:[#allocation6 + $0x1e0] sm:$0xff]
  %v1783 = vld [vmem:[#allocation6 + $0x1e8] sm:$0xff]
  %v1784 = vld [vmem:[#allocation6 + $0x1f0] sm:$0xff]
  %v1785 = vld [vmem:[#allocation6 + $0x1f8] sm:$0xff]
  %1786 = vmatpush.bf16.msra.mxu0 %v658
  %1787 = vmatpush.bf16.msra.mxu0 %v654
  %1788 = vmatpush.bf16.msra.mxu0 %v650
  %1789 = vmatpush.bf16.msra.mxu0 %v646
  %1790 = vmatpush.bf16.msra.mxu0 %v642
  %1791 = vmatpush.bf16.msra.mxu0 %v638
  %1792 = vmatpush.bf16.msra.mxu0 %v634
  %1793 = vmatpush.bf16.msra.mxu0 %v630
  %1794 = vmatmul.bf16.gmra.mxu0 %v1779
  %v1795 = vpop.f32.mrf.mxu0
  %v1796 = vadd.f32 0.0, %v1795
  %v1797 = vpop.f32.mrf.mxu0
  %1798 = vdwg.mxu0
  %1799 = vmatpush.bf16.msra.mxu0 %v659
  %1800 = vmatpush.bf16.msra.mxu0 %v655
  %1801 = vmatpush.bf16.msra.mxu0 %v651
  %1802 = vmatpush.bf16.msra.mxu0 %v647
  %1803 = vmatpush.bf16.msra.mxu0 %v643
  %1804 = vmatpush.bf16.msra.mxu0 %v639
  %1805 = vmatpush.bf16.msra.mxu0 %v635
  %1806 = vmatpush.bf16.msra.mxu0 %v631
  %1807 = vmatmul.bf16.gmra.mxu0 %v1779
  %v1808 = vpop.f32.mrf.mxu0
  %v1809 = vadd.f32 0.0, %v1808
  %v1810 = vpop.f32.mrf.mxu0
  %1811 = vdwg.mxu0
  %1812 = vmatpush.bf16.msra.mxu0 %v660
  %1813 = vmatpush.bf16.msra.mxu0 %v656
  %1814 = vmatpush.bf16.msra.mxu0 %v652
  %1815 = vmatpush.bf16.msra.mxu0 %v648
  %1816 = vmatpush.bf16.msra.mxu0 %v644
  %1817 = vmatpush.bf16.msra.mxu0 %v640
  %1818 = vmatpush.bf16.msra.mxu0 %v636
  %1819 = vmatpush.bf16.msra.mxu0 %v632
  %1820 = vmatmul.bf16.gmra.mxu0 %v1779
  %v1821 = vpop.f32.mrf.mxu0
  %v1822 = vadd.f32 0.0, %v1821
  %v1823 = vpop.f32.mrf.mxu0
  %1824 = vdwg.mxu0
  %1825 = vmatpush.bf16.msra.mxu0 %v661
  %1826 = vmatpush.bf16.msra.mxu0 %v657
  %1827 = vmatpush.bf16.msra.mxu0 %v653
  %1828 = vmatpush.bf16.msra.mxu0 %v649
  %1829 = vmatpush.bf16.msra.mxu0 %v645
  %1830 = vmatpush.bf16.msra.mxu0 %v641
  %1831 = vmatpush.bf16.msra.mxu0 %v637
  %1832 = vmatpush.bf16.msra.mxu0 %v633
  %1833 = vmatmul.bf16.gmra.mxu0 %v1779
  %v1834 = vpop.f32.mrf.mxu0
  %v1835 = vadd.f32 0.0, %v1834
  %v1836 = vpop.f32.mrf.mxu0
  %1837 = vdwg.mxu0
  %v1838 = vadd.f32 %v1782, %v1796
  %v1839 = vadd.f32 %v1783, %v1809
  %v1840 = vadd.f32 %v1784, %v1822
  %v1841 = vadd.f32 %v1785, %v1835
  %v1842 = vtanh.pop %v1838
  %v1843 = vtanh.pop %v1839
  %v1844 = vtanh.pop %v1840
  %v1845 = vtanh.pop %v1841
  %v1846 = vmul.f32 %v1842, 0.5
  %v1847 = vmul.f32 %v1843, 0.5
  %v1848 = vmul.f32 %v1844, 0.5
  %v1849 = vadd.f32 %v1846, 0.5
  %v1850 = vadd.f32 %v1847, 0.5
  %v1851 = vadd.f32 %v1848, 0.5
  %v1852 = vmul.f32 %v1850, %v1776
  %v1853 = vmul.f32 %v1849, %v1845
  %v1854 = vadd.f32 %v1852, %v1853
  %v1855 = vtanh.pop %v1854
  %v1856 = vmul.f32 %v1851, %v1855
  %v1857 = vpack.c.bf16 %v1856, %v1856
  %1858 = vst [vmem:[#allocation7 + $0x78] sm:$0xf] %v1857
  %1859 = vst [vmem:[#allocation7 + $0x4] sm:$0xf] %v1857
  %s1860 = smul.u32 4, 32
  %s1861 = smul.u32 %s1860, 8
  %s1862 = sshll.u32 %s1861, 4
  %1863 = dma.done [#allocation5], %s1862
  %v1864 = vld [vmem:[#allocation7] sm:$0xff]
  %v1865 = vld [vmem:[#allocation7 + $0x8] sm:$0xff]
  %v1866 = vld [vmem:[#allocation7 + $0x10] sm:$0xff]
  %v1867 = vld [vmem:[#allocation7 + $0x18] sm:$0xff]
  %v1868 = vld [vmem:[#allocation7 + $0x20] sm:$0xff]
  %v1869 = vld [vmem:[#allocation7 + $0x28] sm:$0xff]
  %v1870 = vld [vmem:[#allocation7 + $0x30] sm:$0xff]
  %v1871 = vld [vmem:[#allocation7 + $0x38] sm:$0xff]
  %v1872 = vld [vmem:[#allocation7 + $0x40] sm:$0xff]
  %v1873 = vld [vmem:[#allocation7 + $0x48] sm:$0xff]
  %v1874 = vld [vmem:[#allocation7 + $0x50] sm:$0xff]
  %v1875 = vld [vmem:[#allocation7 + $0x58] sm:$0xff]
  %v1876 = vld [vmem:[#allocation7 + $0x60] sm:$0xff]
  %v1877 = vld [vmem:[#allocation7 + $0x68] sm:$0xff]
  %v1878 = vld [vmem:[#allocation7 + $0x70] sm:$0xff]
  %v1879 = vld [vmem:[#allocation7 + $0x78] sm:$0xff]
  %v1880 = vld [vmem:[#allocation2] sm:$0xff]
  %v1881 = vld [vmem:[#allocation2 + $0x8] sm:$0xff]
  %v1882 = vld [vmem:[#allocation2 + $0x10] sm:$0xff]
  %v1883 = vld [vmem:[#allocation2 + $0x18] sm:$0xff]
  %v1884 = vld [vmem:[#allocation2 + $0x20] sm:$0xff]
  %v1885 = vld [vmem:[#allocation2 + $0x28] sm:$0xff]
  %v1886 = vld [vmem:[#allocation2 + $0x30] sm:$0xff]
  %v1887 = vld [vmem:[#allocation2 + $0x38] sm:$0xff]
  %v1888 = vld [vmem:[#allocation2 + $0x40] sm:$0xff]
  %v1889 = vld [vmem:[#allocation2 + $0x48] sm:$0xff]
  %v1890 = vld [vmem:[#allocation2 + $0x50] sm:$0xff]
  %v1891 = vld [vmem:[#allocation2 + $0x58] sm:$0xff]
  %v1892 = vld [vmem:[#allocation2 + $0x60] sm:$0xff]
  %v1893 = vld [vmem:[#allocation2 + $0x68] sm:$0xff]
  %v1894 = vld [vmem:[#allocation2 + $0x70] sm:$0xff]
  %v1895 = vld [vmem:[#allocation2 + $0x78] sm:$0xff]
  %v1896 = vld [vmem:[#allocation2 + $0x80] sm:$0xff]
  %v1897 = vld [vmem:[#allocation2 + $0x88] sm:$0xff]
  %v1898 = vld [vmem:[#allocation2 + $0x90] sm:$0xff]
  %v1899 = vld [vmem:[#allocation2 + $0x98] sm:$0xff]
  %v1900 = vld [vmem:[#allocation2 + $0xa0] sm:$0xff]
  %v1901 = vld [vmem:[#allocation2 + $0xa8] sm:$0xff]
  %v1902 = vld [vmem:[#allocation2 + $0xb0] sm:$0xff]
  %v1903 = vld [vmem:[#allocation2 + $0xb8] sm:$0xff]
  %v1904 = vld [vmem:[#allocation2 + $0xc0] sm:$0xff]
  %v1905 = vld [vmem:[#allocation2 + $0xc8] sm:$0xff]
  %v1906 = vld [vmem:[#allocation2 + $0xd0] sm:$0xff]
  %v1907 = vld [vmem:[#allocation2 + $0xd8] sm:$0xff]
  %v1908 = vld [vmem:[#allocation2 + $0xe0] sm:$0xff]
  %v1909 = vld [vmem:[#allocation2 + $0xe8] sm:$0xff]
  %v1910 = vld [vmem:[#allocation2 + $0xf0] sm:$0xff]
  %v1911 = vld [vmem:[#allocation2 + $0xf8] sm:$0xff]
  %v1912 = vld [vmem:[#allocation2 + $0x100] sm:$0xff]
  %v1913 = vld [vmem:[#allocation2 + $0x108] sm:$0xff]
  %v1914 = vld [vmem:[#allocation2 + $0x110] sm:$0xff]
  %v1915 = vld [vmem:[#allocation2 + $0x118] sm:$0xff]
  %v1916 = vld [vmem:[#allocation2 + $0x120] sm:$0xff]
  %v1917 = vld [vmem:[#allocation2 + $0x128] sm:$0xff]
  %v1918 = vld [vmem:[#allocation2 + $0x130] sm:$0xff]
  %v1919 = vld [vmem:[#allocation2 + $0x138] sm:$0xff]
  %v1920 = vld [vmem:[#allocation2 + $0x140] sm:$0xff]
  %v1921 = vld [vmem:[#allocation2 + $0x148] sm:$0xff]
  %v1922 = vld [vmem:[#allocation2 + $0x150] sm:$0xff]
  %v1923 = vld [vmem:[#allocation2 + $0x158] sm:$0xff]
  %v1924 = vld [vmem:[#allocation2 + $0x160] sm:$0xff]
  %v1925 = vld [vmem:[#allocation2 + $0x168] sm:$0xff]
  %v1926 = vld [vmem:[#allocation2 + $0x170] sm:$0xff]
  %v1927 = vld [vmem:[#allocation2 + $0x178] sm:$0xff]
  %v1928 = vld [vmem:[#allocation2 + $0x180] sm:$0xff]
  %v1929 = vld [vmem:[#allocation2 + $0x188] sm:$0xff]
  %v1930 = vld [vmem:[#allocation2 + $0x190] sm:$0xff]
  %v1931 = vld [vmem:[#allocation2 + $0x198] sm:$0xff]
  %v1932 = vld [vmem:[#allocation2 + $0x1a0] sm:$0xff]
  %v1933 = vld [vmem:[#allocation2 + $0x1a8] sm:$0xff]
  %v1934 = vld [vmem:[#allocation2 + $0x1b0] sm:$0xff]
  %v1935 = vld [vmem:[#allocation2 + $0x1b8] sm:$0xff]
  %v1936 = vld [vmem:[#allocation2 + $0x1c0] sm:$0xff]
  %v1937 = vld [vmem:[#allocation2 + $0x1c8] sm:$0xff]
  %v1938 = vld [vmem:[#allocation2 + $0x1d0] sm:$0xff]
  %v1939 = vld [vmem:[#allocation2 + $0x1d8] sm:$0xff]
  %v1940 = vld [vmem:[#allocation2 + $0x1e0] sm:$0xff]
  %v1941 = vld [vmem:[#allocation2 + $0x1e8] sm:$0xff]
  %v1942 = vld [vmem:[#allocation2 + $0x1f0] sm:$0xff]
  %v1943 = vld [vmem:[#allocation2 + $0x1f8] sm:$0xff]
  %v1944 = vld [vmem:[#allocation2 + $0x200] sm:$0xff]
  %v1945 = vld [vmem:[#allocation2 + $0x208] sm:$0xff]
  %v1946 = vld [vmem:[#allocation2 + $0x210] sm:$0xff]
  %v1947 = vld [vmem:[#allocation2 + $0x218] sm:$0xff]
  %v1948 = vld [vmem:[#allocation2 + $0x220] sm:$0xff]
  %v1949 = vld [vmem:[#allocation2 + $0x228] sm:$0xff]
  %v1950 = vld [vmem:[#allocation2 + $0x230] sm:$0xff]
  %v1951 = vld [vmem:[#allocation2 + $0x238] sm:$0xff]
  %v1952 = vld [vmem:[#allocation2 + $0x240] sm:$0xff]
  %v1953 = vld [vmem:[#allocation2 + $0x248] sm:$0xff]
  %v1954 = vld [vmem:[#allocation2 + $0x250] sm:$0xff]
  %v1955 = vld [vmem:[#allocation2 + $0x258] sm:$0xff]
  %v1956 = vld [vmem:[#allocation2 + $0x260] sm:$0xff]
  %v1957 = vld [vmem:[#allocation2 + $0x268] sm:$0xff]
  %v1958 = vld [vmem:[#allocation2 + $0x270] sm:$0xff]
  %v1959 = vld [vmem:[#allocation2 + $0x278] sm:$0xff]
  %v1960 = vld [vmem:[#allocation2 + $0x280] sm:$0xff]
  %v1961 = vld [vmem:[#allocation2 + $0x288] sm:$0xff]
  %v1962 = vld [vmem:[#allocation2 + $0x290] sm:$0xff]
  %v1963 = vld [vmem:[#allocation2 + $0x298] sm:$0xff]
  %v1964 = vld [vmem:[#allocation2 + $0x2a0] sm:$0xff]
  %v1965 = vld [vmem:[#allocation2 + $0x2a8] sm:$0xff]
  %v1966 = vld [vmem:[#allocation2 + $0x2b0] sm:$0xff]
  %v1967 = vld [vmem:[#allocation2 + $0x2b8] sm:$0xff]
  %v1968 = vld [vmem:[#allocation2 + $0x2c0] sm:$0xff]
  %v1969 = vld [vmem:[#allocation2 + $0x2c8] sm:$0xff]
  %v1970 = vld [vmem:[#allocation2 + $0x2d0] sm:$0xff]
  %v1971 = vld [vmem:[#allocation2 + $0x2d8] sm:$0xff]
  %v1972 = vld [vmem:[#allocation2 + $0x2e0] sm:$0xff]
  %v1973 = vld [vmem:[#allocation2 + $0x2e8] sm:$0xff]
  %v1974 = vld [vmem:[#allocation2 + $0x2f0] sm:$0xff]
  %v1975 = vld [vmem:[#allocation2 + $0x2f8] sm:$0xff]
  %v1976 = vld [vmem:[#allocation2 + $0x300] sm:$0xff]
  %v1977 = vld [vmem:[#allocation2 + $0x308] sm:$0xff]
  %v1978 = vld [vmem:[#allocation2 + $0x310] sm:$0xff]
  %v1979 = vld [vmem:[#allocation2 + $0x318] sm:$0xff]
  %v1980 = vld [vmem:[#allocation2 + $0x320] sm:$0xff]
  %v1981 = vld [vmem:[#allocation2 + $0x328] sm:$0xff]
  %v1982 = vld [vmem:[#allocation2 + $0x330] sm:$0xff]
  %v1983 = vld [vmem:[#allocation2 + $0x338] sm:$0xff]
  %v1984 = vld [vmem:[#allocation2 + $0x340] sm:$0xff]
  %v1985 = vld [vmem:[#allocation2 + $0x348] sm:$0xff]
  %v1986 = vld [vmem:[#allocation2 + $0x350] sm:$0xff]
  %v1987 = vld [vmem:[#allocation2 + $0x358] sm:$0xff]
  %v1988 = vld [vmem:[#allocation2 + $0x360] sm:$0xff]
  %v1989 = vld [vmem:[#allocation2 + $0x368] sm:$0xff]
  %v1990 = vld [vmem:[#allocation2 + $0x370] sm:$0xff]
  %v1991 = vld [vmem:[#allocation2 + $0x378] sm:$0xff]
  %v1992 = vld [vmem:[#allocation2 + $0x380] sm:$0xff]
  %v1993 = vld [vmem:[#allocation2 + $0x388] sm:$0xff]
  %v1994 = vld [vmem:[#allocation2 + $0x390] sm:$0xff]
  %v1995 = vld [vmem:[#allocation2 + $0x398] sm:$0xff]
  %v1996 = vld [vmem:[#allocation2 + $0x3a0] sm:$0xff]
  %v1997 = vld [vmem:[#allocation2 + $0x3a8] sm:$0xff]
  %v1998 = vld [vmem:[#allocation2 + $0x3b0] sm:$0xff]
  %v1999 = vld [vmem:[#allocation2 + $0x3b8] sm:$0xff]
  %v2000 = vld [vmem:[#allocation2 + $0x3c0] sm:$0xff]
  %v2001 = vld [vmem:[#allocation2 + $0x3c8] sm:$0xff]
  %v2002 = vld [vmem:[#allocation2 + $0x3d0] sm:$0xff]
  %v2003 = vld [vmem:[#allocation2 + $0x3d8] sm:$0xff]
  %v2004 = vld [vmem:[#allocation2 + $0x3e0] sm:$0xff]
  %v2005 = vld [vmem:[#allocation2 + $0x3e8] sm:$0xff]
  %v2006 = vld [vmem:[#allocation2 + $0x3f0] sm:$0xff]
  %v2007 = vld [vmem:[#allocation2 + $0x3f8] sm:$0xff]
  %v2008 = vld [vmem:[%s6] sm:$0xff]
  %v2010 = vperm.slane %v2008, 0
  %v2011 = vperm.slane %v2008, 1
  %v2012 = vperm.slane %v2008, 2
  %v2013 = vperm.slane %v2008, 3
  %v2014 = vperm.slane %v2008, 4
  %v2015 = vperm.slane %v2008, 5
  %v2016 = vperm.slane %v2008, 6
  %v2017 = vperm.slane %v2008, 7
  %v2042 = vunpack.c.l.b16 %v1864
  %v2043 = vunpack.c.h.b16 %v1864
  %v2044 = vunpack.c.l.b16 %v1865
  %v2045 = vunpack.c.h.b16 %v1865
  %v2046 = vunpack.c.l.b16 %v1866
  %v2047 = vunpack.c.h.b16 %v1866
  %v2048 = vunpack.c.l.b16 %v1867
  %v2049 = vunpack.c.h.b16 %v1867
  %v2050 = vunpack.c.l.b16 %v1868
  %v2051 = vunpack.c.h.b16 %v1868
  %v2052 = vunpack.c.l.b16 %v1869
  %v2053 = vunpack.c.h.b16 %v1869
  %v2054 = vunpack.c.l.b16 %v1870
  %v2055 = vunpack.c.h.b16 %v1870
  %v2056 = vunpack.c.l.b16 %v1871
  %v2057 = vunpack.c.h.b16 %v1871
  %v2058 = vunpack.c.l.b16 %v1872
  %v2059 = vunpack.c.h.b16 %v1872
  %v2060 = vunpack.c.l.b16 %v1873
  %v2061 = vunpack.c.h.b16 %v1873
  %v2062 = vunpack.c.l.b16 %v1874
  %v2063 = vunpack.c.h.b16 %v1874
  %v2064 = vunpack.c.l.b16 %v1875
  %v2065 = vunpack.c.h.b16 %v1875
  %v2066 = vunpack.c.l.b16 %v1876
  %v2067 = vunpack.c.h.b16 %v1876
  %v2068 = vunpack.c.l.b16 %v1877
  %v2069 = vunpack.c.h.b16 %v1877
  %v2070 = vunpack.c.l.b16 %v1878
  %v2071 = vunpack.c.h.b16 %v1878
  %v2072 = vunpack.c.l.b16 %v1879
  %v2073 = vunpack.c.h.b16 %v1879
  %v2074 = vpack.c.b16 %v2044, %v2042
  %v2075 = vpack.c.b16 %v2045, %v2043
  %v2076 = vpack.c.b16 %v2048, %v2046
  %v2077 = vpack.c.b16 %v2049, %v2047
  %v2078 = vpack.c.b16 %v2052, %v2050
  %v2079 = vpack.c.b16 %v2053, %v2051
  %v2080 = vpack.c.b16 %v2056, %v2054
  %v2081 = vpack.c.b16 %v2057, %v2055
  %v2082 = vpack.c.b16 %v2060, %v2058
  %v2083 = vpack.c.b16 %v2061, %v2059
  %v2084 = vpack.c.b16 %v2064, %v2062
  %v2085 = vpack.c.b16 %v2065, %v2063
  %v2086 = vpack.c.b16 %v2068, %v2066
  %v2087 = vpack.c.b16 %v2069, %v2067
  %v2088 = vpack.c.b16 %v2072, %v2070
  %v2089 = vpack.c.b16 %v2073, %v2071
  %v2234 = vunpack.c.l.b16 %v1880
  %v2235 = vunpack.c.h.b16 %v1880
  %v2236 = vunpack.c.l.b16 %v1881
  %v2237 = vunpack.c.h.b16 %v1881
  %v2238 = vunpack.c.l.b16 %v1882
  %v2239 = vunpack.c.h.b16 %v1882
  %v2240 = vunpack.c.l.b16 %v1883
  %v2241 = vunpack.c.h.b16 %v1883
  %v2242 = vunpack.c.l.b16 %v1884
  %v2243 = vunpack.c.h.b16 %v1884
  %v2244 = vunpack.c.l.b16 %v1885
  %v2245 = vunpack.c.h.b16 %v1885
  %v2246 = vunpack.c.l.b16 %v1886
  %v2247 = vunpack.c.h.b16 %v1886
  %v2248 = vunpack.c.l.b16 %v1887
  %v2249 = vunpack.c.h.b16 %v1887
  %v2250 = vunpack.c.l.b16 %v1888
  %v2251 = vunpack.c.h.b16 %v1888
  %v2252 = vunpack.c.l.b16 %v1889
  %v2253 = vunpack.c.h.b16 %v1889
  %v2254 = vunpack.c.l.b16 %v1890
  %v2255 = vunpack.c.h.b16 %v1890
  %v2256 = vunpack.c.l.b16 %v1891
  %v2257 = vunpack.c.h.b16 %v1891
  %v2258 = vunpack.c.l.b16 %v1892
  %v2259 = vunpack.c.h.b16 %v1892
  %v2260 = vunpack.c.l.b16 %v1893
  %v2261 = vunpack.c.h.b16 %v1893
  %v2262 = vunpack.c.l.b16 %v1894
  %v2263 = vunpack.c.h.b16 %v1894
  %v2264 = vunpack.c.l.b16 %v1895
  %v2265 = vunpack.c.h.b16 %v1895
  %v2266 = vunpack.c.l.b16 %v1896
  %v2267 = vunpack.c.h.b16 %v1896
  %v2268 = vunpack.c.l.b16 %v1897
  %v2269 = vunpack.c.h.b16 %v1897
  %v2270 = vunpack.c.l.b16 %v1898
  %v2271 = vunpack.c.h.b16 %v1898
  %v2272 = vunpack.c.l.b16 %v1899
  %v2273 = vunpack.c.h.b16 %v1899
  %v2274 = vunpack.c.l.b16 %v1900
  %v2275 = vunpack.c.h.b16 %v1900
  %v2276 = vunpack.c.l.b16 %v1901
  %v2277 = vunpack.c.h.b16 %v1901
  %v2278 = vunpack.c.l.b16 %v1902
  %v2279 = vunpack.c.h.b16 %v1902
  %v2280 = vunpack.c.l.b16 %v1903
  %v2281 = vunpack.c.h.b16 %v1903
  %v2282 = vunpack.c.l.b16 %v1904
  %v2283 = vunpack.c.h.b16 %v1904
  %v2284 = vunpack.c.l.b16 %v1905
  %v2285 = vunpack.c.h.b16 %v1905
  %v2286 = vunpack.c.l.b16 %v1906
  %v2287 = vunpack.c.h.b16 %v1906
  %v2288 = vunpack.c.l.b16 %v1907
  %v2289 = vunpack.c.h.b16 %v1907
  %v2290 = vunpack.c.l.b16 %v1908
  %v2291 = vunpack.c.h.b16 %v1908
  %v2292 = vunpack.c.l.b16 %v1909
  %v2293 = vunpack.c.h.b16 %v1909
  %v2294 = vunpack.c.l.b16 %v1910
  %v2295 = vunpack.c.h.b16 %v1910
  %v2296 = vunpack.c.l.b16 %v1911
  %v2297 = vunpack.c.h.b16 %v1911
  %v2298 = vunpack.c.l.b16 %v1912
  %v2299 = vunpack.c.h.b16 %v1912
  %v2300 = vunpack.c.l.b16 %v1913
  %v2301 = vunpack.c.h.b16 %v1913
  %v2302 = vunpack.c.l.b16 %v1914
  %v2303 = vunpack.c.h.b16 %v1914
  %v2304 = vunpack.c.l.b16 %v1915
  %v2305 = vunpack.c.h.b16 %v1915
  %v2306 = vunpack.c.l.b16 %v1916
  %v2307 = vunpack.c.h.b16 %v1916
  %v2308 = vunpack.c.l.b16 %v1917
  %v2309 = vunpack.c.h.b16 %v1917
  %v2310 = vunpack.c.l.b16 %v1918
  %v2311 = vunpack.c.h.b16 %v1918
  %v2312 = vunpack.c.l.b16 %v1919
  %v2313 = vunpack.c.h.b16 %v1919
  %v2314 = vunpack.c.l.b16 %v1920
  %v2315 = vunpack.c.h.b16 %v1920
  %v2316 = vunpack.c.l.b16 %v1921
  %v2317 = vunpack.c.h.b16 %v1921
  %v2318 = vunpack.c.l.b16 %v1922
  %v2319 = vunpack.c.h.b16 %v1922
  %v2320 = vunpack.c.l.b16 %v1923
  %v2321 = vunpack.c.h.b16 %v1923
  %v2322 = vunpack.c.l.b16 %v1924
  %v2323 = vunpack.c.h.b16 %v1924
  %v2324 = vunpack.c.l.b16 %v1925
  %v2325 = vunpack.c.h.b16 %v1925
  %v2326 = vunpack.c.l.b16 %v1926
  %v2327 = vunpack.c.h.b16 %v1926
  %v2328 = vunpack.c.l.b16 %v1927
  %v2329 = vunpack.c.h.b16 %v1927
  %v2330 = vunpack.c.l.b16 %v1928
  %v2331 = vunpack.c.h.b16 %v1928
  %v2332 = vunpack.c.l.b16 %v1929
  %v2333 = vunpack.c.h.b16 %v1929
  %v2334 = vunpack.c.l.b16 %v1930
  %v2335 = vunpack.c.h.b16 %v1930
  %v2336 = vunpack.c.l.b16 %v1931
  %v2337 = vunpack.c.h.b16 %v1931
  %v2338 = vunpack.c.l.b16 %v1932
  %v2339 = vunpack.c.h.b16 %v1932
  %v2340 = vunpack.c.l.b16 %v1933
  %v2341 = vunpack.c.h.b16 %v1933
  %v2342 = vunpack.c.l.b16 %v1934
  %v2343 = vunpack.c.h.b16 %v1934
  %v2344 = vunpack.c.l.b16 %v1935
  %v2345 = vunpack.c.h.b16 %v1935
  %v2346 = vunpack.c.l.b16 %v1936
  %v2347 = vunpack.c.h.b16 %v1936
  %v2348 = vunpack.c.l.b16 %v1937
  %v2349 = vunpack.c.h.b16 %v1937
  %v2350 = vunpack.c.l.b16 %v1938
  %v2351 = vunpack.c.h.b16 %v1938
  %v2352 = vunpack.c.l.b16 %v1939
  %v2353 = vunpack.c.h.b16 %v1939
  %v2354 = vunpack.c.l.b16 %v1940
  %v2355 = vunpack.c.h.b16 %v1940
  %v2356 = vunpack.c.l.b16 %v1941
  %v2357 = vunpack.c.h.b16 %v1941
  %v2358 = vunpack.c.l.b16 %v1942
  %v2359 = vunpack.c.h.b16 %v1942
  %v2360 = vunpack.c.l.b16 %v1943
  %v2361 = vunpack.c.h.b16 %v1943
  %v2362 = vunpack.c.l.b16 %v1944
  %v2363 = vunpack.c.h.b16 %v1944
  %v2364 = vunpack.c.l.b16 %v1945
  %v2365 = vunpack.c.h.b16 %v1945
  %v2366 = vunpack.c.l.b16 %v1946
  %v2367 = vunpack.c.h.b16 %v1946
  %v2368 = vunpack.c.l.b16 %v1947
  %v2369 = vunpack.c.h.b16 %v1947
  %v2370 = vunpack.c.l.b16 %v1948
  %v2371 = vunpack.c.h.b16 %v1948
  %v2372 = vunpack.c.l.b16 %v1949
  %v2373 = vunpack.c.h.b16 %v1949
  %v2374 = vunpack.c.l.b16 %v1950
  %v2375 = vunpack.c.h.b16 %v1950
  %v2376 = vunpack.c.l.b16 %v1951
  %v2377 = vunpack.c.h.b16 %v1951
  %v2378 = vunpack.c.l.b16 %v1952
  %v2379 = vunpack.c.h.b16 %v1952
  %v2380 = vunpack.c.l.b16 %v1953
  %v2381 = vunpack.c.h.b16 %v1953
  %v2382 = vunpack.c.l.b16 %v1954
  %v2383 = vunpack.c.h.b16 %v1954
  %v2384 = vunpack.c.l.b16 %v1955
  %v2385 = vunpack.c.h.b16 %v1955
  %v2386 = vunpack.c.l.b16 %v1956
  %v2387 = vunpack.c.h.b16 %v1956
  %v2388 = vunpack.c.l.b16 %v1957
  %v2389 = vunpack.c.h.b16 %v1957
  %v2390 = vunpack.c.l.b16 %v1958
  %v2391 = vunpack.c.h.b16 %v1958
  %v2392 = vunpack.c.l.b16 %v1959
  %v2393 = vunpack.c.h.b16 %v1959
  %v2394 = vunpack.c.l.b16 %v1960
  %v2395 = vunpack.c.h.b16 %v1960
  %v2396 = vunpack.c.l.b16 %v1961
  %v2397 = vunpack.c.h.b16 %v1961
  %v2398 = vunpack.c.l.b16 %v1962
  %v2399 = vunpack.c.h.b16 %v1962
  %v2400 = vunpack.c.l.b16 %v1963
  %v2401 = vunpack.c.h.b16 %v1963
  %v2402 = vunpack.c.l.b16 %v1964
  %v2403 = vunpack.c.h.b16 %v1964
  %v2404 = vunpack.c.l.b16 %v1965
  %v2405 = vunpack.c.h.b16 %v1965
  %v2406 = vunpack.c.l.b16 %v1966
  %v2407 = vunpack.c.h.b16 %v1966
  %v2408 = vunpack.c.l.b16 %v1967
  %v2409 = vunpack.c.h.b16 %v1967
  %v2410 = vunpack.c.l.b16 %v1968
  %v2411 = vunpack.c.h.b16 %v1968
  %v2412 = vunpack.c.l.b16 %v1969
  %v2413 = vunpack.c.h.b16 %v1969
  %v2414 = vunpack.c.l.b16 %v1970
  %v2415 = vunpack.c.h.b16 %v1970
  %v2416 = vunpack.c.l.b16 %v1971
  %v2417 = vunpack.c.h.b16 %v1971
  %v2418 = vunpack.c.l.b16 %v1972
  %v2419 = vunpack.c.h.b16 %v1972
  %v2420 = vunpack.c.l.b16 %v1973
  %v2421 = vunpack.c.h.b16 %v1973
  %v2422 = vunpack.c.l.b16 %v1974
  %v2423 = vunpack.c.h.b16 %v1974
  %v2424 = vunpack.c.l.b16 %v1975
  %v2425 = vunpack.c.h.b16 %v1975
  %v2426 = vunpack.c.l.b16 %v1976
  %v2427 = vunpack.c.h.b16 %v1976
  %v2428 = vunpack.c.l.b16 %v1977
  %v2429 = vunpack.c.h.b16 %v1977
  %v2430 = vunpack.c.l.b16 %v1978
  %v2431 = vunpack.c.h.b16 %v1978
  %v2432 = vunpack.c.l.b16 %v1979
  %v2433 = vunpack.c.h.b16 %v1979
  %v2434 = vunpack.c.l.b16 %v1980
  %v2435 = vunpack.c.h.b16 %v1980
  %v2436 = vunpack.c.l.b16 %v1981
  %v2437 = vunpack.c.h.b16 %v1981
  %v2438 = vunpack.c.l.b16 %v1982
  %v2439 = vunpack.c.h.b16 %v1982
  %v2440 = vunpack.c.l.b16 %v1983
  %v2441 = vunpack.c.h.b16 %v1983
  %v2442 = vunpack.c.l.b16 %v1984
  %v2443 = vunpack.c.h.b16 %v1984
  %v2444 = vunpack.c.l.b16 %v1985
  %v2445 = vunpack.c.h.b16 %v1985
  %v2446 = vunpack.c.l.b16 %v1986
  %v2447 = vunpack.c.h.b16 %v1986
  %v2448 = vunpack.c.l.b16 %v1987
  %v2449 = vunpack.c.h.b16 %v1987
  %v2450 = vunpack.c.l.b16 %v1988
  %v2451 = vunpack.c.h.b16 %v1988
  %v2452 = vunpack.c.l.b16 %v1989
  %v2453 = vunpack.c.h.b16 %v1989
  %v2454 = vunpack.c.l.b16 %v1990
  %v2455 = vunpack.c.h.b16 %v1990
  %v2456 = vunpack.c.l.b16 %v1991
  %v2457 = vunpack.c.h.b16 %v1991
  %v2458 = vunpack.c.l.b16 %v1992
  %v2459 = vunpack.c.h.b16 %v1992
  %v2460 = vunpack.c.l.b16 %v1993
  %v2461 = vunpack.c.h.b16 %v1993
  %v2462 = vunpack.c.l.b16 %v1994
  %v2463 = vunpack.c.h.b16 %v1994
  %v2464 = vunpack.c.l.b16 %v1995
  %v2465 = vunpack.c.h.b16 %v1995
  %v2466 = vunpack.c.l.b16 %v1996
  %v2467 = vunpack.c.h.b16 %v1996
  %v2468 = vunpack.c.l.b16 %v1997
  %v2469 = vunpack.c.h.b16 %v1997
  %v2470 = vunpack.c.l.b16 %v1998
  %v2471 = vunpack.c.h.b16 %v1998
  %v2472 = vunpack.c.l.b16 %v1999
  %v2473 = vunpack.c.h.b16 %v1999
  %v2474 = vunpack.c.l.b16 %v2000
  %v2475 = vunpack.c.h.b16 %v2000
  %v2476 = vunpack.c.l.b16 %v2001
  %v2477 = vunpack.c.h.b16 %v2001
  %v2478 = vunpack.c.l.b16 %v2002
  %v2479 = vunpack.c.h.b16 %v2002
  %v2480 = vunpack.c.l.b16 %v2003
  %v2481 = vunpack.c.h.b16 %v2003
  %v2482 = vunpack.c.l.b16 %v2004
  %v2483 = vunpack.c.h.b16 %v2004
  %v2484 = vunpack.c.l.b16 %v2005
  %v2485 = vunpack.c.h.b16 %v2005
  %v2486 = vunpack.c.l.b16 %v2006
  %v2487 = vunpack.c.h.b16 %v2006
  %v2488 = vunpack.c.l.b16 %v2007
  %v2489 = vunpack.c.h.b16 %v2007
  %v2490 = vpack.c.b16 %v2242, %v2234
  %v2491 = vpack.c.b16 %v2243, %v2235
  %v2492 = vpack.c.b16 %v2244, %v2236
  %v2493 = vpack.c.b16 %v2245, %v2237
  %v2494 = vpack.c.b16 %v2246, %v2238
  %v2495 = vpack.c.b16 %v2247, %v2239
  %v2496 = vpack.c.b16 %v2248, %v2240
  %v2497 = vpack.c.b16 %v2249, %v2241
  %v2498 = vpack.c.b16 %v2258, %v2250
  %v2499 = vpack.c.b16 %v2259, %v2251
  %v2500 = vpack.c.b16 %v2260, %v2252
  %v2501 = vpack.c.b16 %v2261, %v2253
  %v2502 = vpack.c.b16 %v2262, %v2254
  %v2503 = vpack.c.b16 %v2263, %v2255
  %v2504 = vpack.c.b16 %v2264, %v2256
  %v2505 = vpack.c.b16 %v2265, %v2257
  %v2506 = vpack.c.b16 %v2274, %v2266
  %v2507 = vpack.c.b16 %v2275, %v2267
  %v2508 = vpack.c.b16 %v2276, %v2268
  %v2509 = vpack.c.b16 %v2277, %v2269
  %v2510 = vpack.c.b16 %v2278, %v2270
  %v2511 = vpack.c.b16 %v2279, %v2271
  %v2512 = vpack.c.b16 %v2280, %v2272
  %v2513 = vpack.c.b16 %v2281, %v2273
  %v2514 = vpack.c.b16 %v2290, %v2282
  %v2515 = vpack.c.b16 %v2291, %v2283
  %v2516 = vpack.c.b16 %v2292, %v2284
  %v2517 = vpack.c.b16 %v2293, %v2285
  %v2518 = vpack.c.b16 %v2294, %v2286
  %v2519 = vpack.c.b16 %v2295, %v2287
  %v2520 = vpack.c.b16 %v2296, %v2288
  %v2521 = vpack.c.b16 %v2297, %v2289
  %v2522 = vpack.c.b16 %v2306, %v2298
  %v2523 = vpack.c.b16 %v2307, %v2299
  %v2524 = vpack.c.b16 %v2308, %v2300
  %v2525 = vpack.c.b16 %v2309, %v2301
  %v2526 = vpack.c.b16 %v2310, %v2302
  %v2527 = vpack.c.b16 %v2311, %v2303
  %v2528 = vpack.c.b16 %v2312, %v2304
  %v2529 = vpack.c.b16 %v2313, %v2305
  %v2530 = vpack.c.b16 %v2322, %v2314
  %v2531 = vpack.c.b16 %v2323, %v2315
  %v2532 = vpack.c.b16 %v2324, %v2316
  %v2533 = vpack.c.b16 %v2325, %v2317
  %v2534 = vpack.c.b16 %v2326, %v2318
  %v2535 = vpack.c.b16 %v2327, %v2319
  %v2536 = vpack.c.b16 %v2328, %v2320
  %v2537 = vpack.c.b16 %v2329, %v2321
  %v2538 = vpack.c.b16 %v2338, %v2330
  %v2539 = vpack.c.b16 %v2339, %v2331
  %v2540 = vpack.c.b16 %v2340, %v2332
  %v2541 = vpack.c.b16 %v2341, %v2333
  %v2542 = vpack.c.b16 %v2342, %v2334
  %v2543 = vpack.c.b16 %v2343, %v2335
  %v2544 = vpack.c.b16 %v2344, %v2336
  %v2545 = vpack.c.b16 %v2345, %v2337
  %v2546 = vpack.c.b16 %v2354, %v2346
  %v2547 = vpack.c.b16 %v2355, %v2347
  %v2548 = vpack.c.b16 %v2356, %v2348
  %v2549 = vpack.c.b16 %v2357, %v2349
  %v2550 = vpack.c.b16 %v2358, %v2350
  %v2551 = vpack.c.b16 %v2359, %v2351
  %v2552 = vpack.c.b16 %v2360, %v2352
  %v2553 = vpack.c.b16 %v2361, %v2353
  %v2554 = vpack.c.b16 %v2370, %v2362
  %v2555 = vpack.c.b16 %v2371, %v2363
  %v2556 = vpack.c.b16 %v2372, %v2364
  %v2557 = vpack.c.b16 %v2373, %v2365
  %v2558 = vpack.c.b16 %v2374, %v2366
  %v2559 = vpack.c.b16 %v2375, %v2367
  %v2560 = vpack.c.b16 %v2376, %v2368
  %v2561 = vpack.c.b16 %v2377, %v2369
  %v2562 = vpack.c.b16 %v2386, %v2378
  %v2563 = vpack.c.b16 %v2387, %v2379
  %v2564 = vpack.c.b16 %v2388, %v2380
  %v2565 = vpack.c.b16 %v2389, %v2381
  %v2566 = vpack.c.b16 %v2390, %v2382
  %v2567 = vpack.c.b16 %v2391, %v2383
  %v2568 = vpack.c.b16 %v2392, %v2384
  %v2569 = vpack.c.b16 %v2393, %v2385
  %v2570 = vpack.c.b16 %v2402, %v2394
  %v2571 = vpack.c.b16 %v2403, %v2395
  %v2572 = vpack.c.b16 %v2404, %v2396
  %v2573 = vpack.c.b16 %v2405, %v2397
  %v2574 = vpack.c.b16 %v2406, %v2398
  %v2575 = vpack.c.b16 %v2407, %v2399
  %v2576 = vpack.c.b16 %v2408, %v2400
  %v2577 = vpack.c.b16 %v2409, %v2401
  %v2578 = vpack.c.b16 %v2418, %v2410
  %v2579 = vpack.c.b16 %v2419, %v2411
  %v2580 = vpack.c.b16 %v2420, %v2412
  %v2581 = vpack.c.b16 %v2421, %v2413
  %v2582 = vpack.c.b16 %v2422, %v2414
  %v2583 = vpack.c.b16 %v2423, %v2415
  %v2584 = vpack.c.b16 %v2424, %v2416
  %v2585 = vpack.c.b16 %v2425, %v2417
  %v2586 = vpack.c.b16 %v2434, %v2426
  %v2587 = vpack.c.b16 %v2435, %v2427
  %v2588 = vpack.c.b16 %v2436, %v2428
  %v2589 = vpack.c.b16 %v2437, %v2429
  %v2590 = vpack.c.b16 %v2438, %v2430
  %v2591 = vpack.c.b16 %v2439, %v2431
  %v2592 = vpack.c.b16 %v2440, %v2432
  %v2593 = vpack.c.b16 %v2441, %v2433
  %v2594 = vpack.c.b16 %v2450, %v2442
  %v2595 = vpack.c.b16 %v2451, %v2443
  %v2596 = vpack.c.b16 %v2452, %v2444
  %v2597 = vpack.c.b16 %v2453, %v2445
  %v2598 = vpack.c.b16 %v2454, %v2446
  %v2599 = vpack.c.b16 %v2455, %v2447
  %v2600 = vpack.c.b16 %v2456, %v2448
  %v2601 = vpack.c.b16 %v2457, %v2449
  %v2602 = vpack.c.b16 %v2466, %v2458
  %v2603 = vpack.c.b16 %v2467, %v2459
  %v2604 = vpack.c.b16 %v2468, %v2460
  %v2605 = vpack.c.b16 %v2469, %v2461
  %v2606 = vpack.c.b16 %v2470, %v2462
  %v2607 = vpack.c.b16 %v2471, %v2463
  %v2608 = vpack.c.b16 %v2472, %v2464
  %v2609 = vpack.c.b16 %v2473, %v2465
  %v2610 = vpack.c.b16 %v2482, %v2474
  %v2611 = vpack.c.b16 %v2483, %v2475
  %v2612 = vpack.c.b16 %v2484, %v2476
  %v2613 = vpack.c.b16 %v2485, %v2477
  %v2614 = vpack.c.b16 %v2486, %v2478
  %v2615 = vpack.c.b16 %v2487, %v2479
  %v2616 = vpack.c.b16 %v2488, %v2480
  %v2617 = vpack.c.b16 %v2489, %v2481
  %2746 = vmatpush.bf16.msra.mxu0 %v2546
  %2747 = vmatpush.bf16.msra.mxu0 %v2538
  %2748 = vmatpush.bf16.msra.mxu0 %v2530
  %2749 = vmatpush.bf16.msra.mxu0 %v2522
  %2750 = vmatpush.bf16.msra.mxu0 %v2514
  %2751 = vmatpush.bf16.msra.mxu0 %v2506
  %2752 = vmatpush.bf16.msra.mxu0 %v2498
  %2753 = vmatpush.bf16.msra.mxu0 %v2490
  %2754 = vmatmul.bf16.gmra.mxu0 %v2074
  %v2755 = vpop.f32.mrf.mxu0
  %v2756 = vadd.f32 %v2010, %v2755
  %v2757 = vpop.f32.mrf.mxu0
  %v2758 = vadd.f32 %v2010, %v2757
  %2759 = vmatmul.bf16.gmra.mxu0 %v2076
  %v2760 = vpop.f32.mrf.mxu0
  %v2761 = vadd.f32 %v2010, %v2760
  %v2762 = vpop.f32.mrf.mxu0
  %v2763 = vadd.f32 %v2010, %v2762
  %2764 = vmatmul.bf16.gmra.mxu0 %v2078
  %v2765 = vpop.f32.mrf.mxu0
  %v2766 = vadd.f32 %v2010, %v2765
  %v2767 = vpop.f32.mrf.mxu0
  %v2768 = vadd.f32 %v2010, %v2767
  %2769 = vmatmul.bf16.gmra.mxu0 %v2080
  %v2770 = vpop.f32.mrf.mxu0
  %v2771 = vadd.f32 %v2010, %v2770
  %v2772 = vpop.f32.mrf.mxu0
  %v2773 = vadd.f32 %v2010, %v2772
  %2774 = vmatmul.bf16.gmra.mxu0 %v2082
  %v2775 = vpop.f32.mrf.mxu0
  %v2776 = vadd.f32 %v2010, %v2775
  %v2777 = vpop.f32.mrf.mxu0
  %v2778 = vadd.f32 %v2010, %v2777
  %2779 = vmatmul.bf16.gmra.mxu0 %v2084
  %v2780 = vpop.f32.mrf.mxu0
  %v2781 = vadd.f32 %v2010, %v2780
  %v2782 = vpop.f32.mrf.mxu0
  %v2783 = vadd.f32 %v2010, %v2782
  %2784 = vmatmul.bf16.gmra.mxu0 %v2086
  %v2785 = vpop.f32.mrf.mxu0
  %v2786 = vadd.f32 %v2010, %v2785
  %v2787 = vpop.f32.mrf.mxu0
  %v2788 = vadd.f32 %v2010, %v2787
  %2789 = vmatmul.bf16.gmra.mxu0 %v2088
  %v2790 = vpop.f32.mrf.mxu0
  %v2791 = vadd.f32 %v2010, %v2790
  %v2792 = vpop.f32.mrf.mxu0
  %v2793 = vadd.f32 %v2010, %v2792
  %2794 = vdwg.mxu0
  %2795 = vmatpush.bf16.msra.mxu0 %v2610
  %2796 = vmatpush.bf16.msra.mxu0 %v2602
  %2797 = vmatpush.bf16.msra.mxu0 %v2594
  %2798 = vmatpush.bf16.msra.mxu0 %v2586
  %2799 = vmatpush.bf16.msra.mxu0 %v2578
  %2800 = vmatpush.bf16.msra.mxu0 %v2570
  %2801 = vmatpush.bf16.msra.mxu0 %v2562
  %2802 = vmatpush.bf16.msra.mxu0 %v2554
  %2803 = vmatmul.bf16.gmra.mxu0 %v2075
  %v2804 = vpop.f32.mrf.mxu0
  %v2805 = vadd.f32 %v2756, %v2804
  %v2806 = vpop.f32.mrf.mxu0
  %v2807 = vadd.f32 %v2758, %v2806
  %2808 = vmatmul.bf16.gmra.mxu0 %v2077
  %v2809 = vpop.f32.mrf.mxu0
  %v2810 = vadd.f32 %v2761, %v2809
  %v2811 = vpop.f32.mrf.mxu0
  %v2812 = vadd.f32 %v2763, %v2811
  %2813 = vmatmul.bf16.gmra.mxu0 %v2079
  %v2814 = vpop.f32.mrf.mxu0
  %v2815 = vadd.f32 %v2766, %v2814
  %v2816 = vpop.f32.mrf.mxu0
  %v2817 = vadd.f32 %v2768, %v2816
  %2818 = vmatmul.bf16.gmra.mxu0 %v2081
  %v2819 = vpop.f32.mrf.mxu0
  %v2820 = vadd.f32 %v2771, %v2819
  %v2821 = vpop.f32.mrf.mxu0
  %v2822 = vadd.f32 %v2773, %v2821
  %2823 = vmatmul.bf16.gmra.mxu0 %v2083
  %v2824 = vpop.f32.mrf.mxu0
  %v2825 = vadd.f32 %v2776, %v2824
  %v2826 = vpop.f32.mrf.mxu0
  %v2827 = vadd.f32 %v2778, %v2826
  %2828 = vmatmul.bf16.gmra.mxu0 %v2085
  %v2829 = vpop.f32.mrf.mxu0
  %v2830 = vadd.f32 %v2781, %v2829
  %v2831 = vpop.f32.mrf.mxu0
  %v2832 = vadd.f32 %v2783, %v2831
  %2833 = vmatmul.bf16.gmra.mxu0 %v2087
  %v2834 = vpop.f32.mrf.mxu0
  %v2835 = vadd.f32 %v2786, %v2834
  %v2836 = vpop.f32.mrf.mxu0
  %v2837 = vadd.f32 %v2788, %v2836
  %2838 = vmatmul.bf16.gmra.mxu0 %v2089
  %v2839 = vpop.f32.mrf.mxu0
  %v2840 = vadd.f32 %v2791, %v2839
  %v2841 = vpop.f32.mrf.mxu0
  %v2842 = vadd.f32 %v2793, %v2841
  %2843 = vdwg.mxu0
  %2844 = vmatpush.bf16.msra.mxu0 %v2547
  %2845 = vmatpush.bf16.msra.mxu0 %v2539
  %2846 = vmatpush.bf16.msra.mxu0 %v2531
  %2847 = vmatpush.bf16.msra.mxu0 %v2523
  %2848 = vmatpush.bf16.msra.mxu0 %v2515
  %2849 = vmatpush.bf16.msra.mxu0 %v2507
  %2850 = vmatpush.bf16.msra.mxu0 %v2499
  %2851 = vmatpush.bf16.msra.mxu0 %v2491
  %2852 = vmatmul.bf16.gmra.mxu0 %v2074
  %v2853 = vpop.f32.mrf.mxu0
  %v2854 = vadd.f32 %v2011, %v2853
  %v2855 = vpop.f32.mrf.mxu0
  %v2856 = vadd.f32 %v2011, %v2855
  %2857 = vmatmul.bf16.gmra.mxu0 %v2076
  %v2858 = vpop.f32.mrf.mxu0
  %v2859 = vadd.f32 %v2011, %v2858
  %v2860 = vpop.f32.mrf.mxu0
  %v2861 = vadd.f32 %v2011, %v2860
  %2862 = vmatmul.bf16.gmra.mxu0 %v2078
  %v2863 = vpop.f32.mrf.mxu0
  %v2864 = vadd.f32 %v2011, %v2863
  %v2865 = vpop.f32.mrf.mxu0
  %v2866 = vadd.f32 %v2011, %v2865
  %2867 = vmatmul.bf16.gmra.mxu0 %v2080
  %v2868 = vpop.f32.mrf.mxu0
  %v2869 = vadd.f32 %v2011, %v2868
  %v2870 = vpop.f32.mrf.mxu0
  %v2871 = vadd.f32 %v2011, %v2870
  %2872 = vmatmul.bf16.gmra.mxu0 %v2082
  %v2873 = vpop.f32.mrf.mxu0
  %v2874 = vadd.f32 %v2011, %v2873
  %v2875 = vpop.f32.mrf.mxu0
  %v2876 = vadd.f32 %v2011, %v2875
  %2877 = vmatmul.bf16.gmra.mxu0 %v2084
  %v2878 = vpop.f32.mrf.mxu0
  %v2879 = vadd.f32 %v2011, %v2878
  %v2880 = vpop.f32.mrf.mxu0
  %v2881 = vadd.f32 %v2011, %v2880
  %2882 = vmatmul.bf16.gmra.mxu0 %v2086
  %v2883 = vpop.f32.mrf.mxu0
  %v2884 = vadd.f32 %v2011, %v2883
  %v2885 = vpop.f32.mrf.mxu0
  %v2886 = vadd.f32 %v2011, %v2885
  %2887 = vmatmul.bf16.gmra.mxu0 %v2088
  %v2888 = vpop.f32.mrf.mxu0
  %v2889 = vadd.f32 %v2011, %v2888
  %v2890 = vpop.f32.mrf.mxu0
  %v2891 = vadd.f32 %v2011, %v2890
  %2892 = vdwg.mxu0
  %2893 = vmatpush.bf16.msra.mxu0 %v2611
  %2894 = vmatpush.bf16.msra.mxu0 %v2603
  %2895 = vmatpush.bf16.msra.mxu0 %v2595
  %2896 = vmatpush.bf16.msra.mxu0 %v2587
  %2897 = vmatpush.bf16.msra.mxu0 %v2579
  %2898 = vmatpush.bf16.msra.mxu0 %v2571
  %2899 = vmatpush.bf16.msra.mxu0 %v2563
  %2900 = vmatpush.bf16.msra.mxu0 %v2555
  %2901 = vmatmul.bf16.gmra.mxu0 %v2075
  %v2902 = vpop.f32.mrf.mxu0
  %v2903 = vadd.f32 %v2854, %v2902
  %v2904 = vpop.f32.mrf.mxu0
  %v2905 = vadd.f32 %v2856, %v2904
  %2906 = vmatmul.bf16.gmra.mxu0 %v2077
  %v2907 = vpop.f32.mrf.mxu0
  %v2908 = vadd.f32 %v2859, %v2907
  %v2909 = vpop.f32.mrf.mxu0
  %v2910 = vadd.f32 %v2861, %v2909
  %2911 = vmatmul.bf16.gmra.mxu0 %v2079
  %v2912 = vpop.f32.mrf.mxu0
  %v2913 = vadd.f32 %v2864, %v2912
  %v2914 = vpop.f32.mrf.mxu0
  %v2915 = vadd.f32 %v2866, %v2914
  %2916 = vmatmul.bf16.gmra.mxu0 %v2081
  %v2917 = vpop.f32.mrf.mxu0
  %v2918 = vadd.f32 %v2869, %v2917
  %v2919 = vpop.f32.mrf.mxu0
  %v2920 = vadd.f32 %v2871, %v2919
  %2921 = vmatmul.bf16.gmra.mxu0 %v2083
  %v2922 = vpop.f32.mrf.mxu0
  %v2923 = vadd.f32 %v2874, %v2922
  %v2924 = vpop.f32.mrf.mxu0
  %v2925 = vadd.f32 %v2876, %v2924
  %2926 = vmatmul.bf16.gmra.mxu0 %v2085
  %v2927 = vpop.f32.mrf.mxu0
  %v2928 = vadd.f32 %v2879, %v2927
  %v2929 = vpop.f32.mrf.mxu0
  %v2930 = vadd.f32 %v2881, %v2929
  %2931 = vmatmul.bf16.gmra.mxu0 %v2087
  %v2932 = vpop.f32.mrf.mxu0
  %v2933 = vadd.f32 %v2884, %v2932
  %v2934 = vpop.f32.mrf.mxu0
  %v2935 = vadd.f32 %v2886, %v2934
  %2936 = vmatmul.bf16.gmra.mxu0 %v2089
  %v2937 = vpop.f32.mrf.mxu0
  %v2938 = vadd.f32 %v2889, %v2937
  %v2939 = vpop.f32.mrf.mxu0
  %v2940 = vadd.f32 %v2891, %v2939
  %2941 = vdwg.mxu0
  %2942 = vmatpush.bf16.msra.mxu0 %v2548
  %2943 = vmatpush.bf16.msra.mxu0 %v2540
  %2944 = vmatpush.bf16.msra.mxu0 %v2532
  %2945 = vmatpush.bf16.msra.mxu0 %v2524
  %2946 = vmatpush.bf16.msra.mxu0 %v2516
  %2947 = vmatpush.bf16.msra.mxu0 %v2508
  %2948 = vmatpush.bf16.msra.mxu0 %v2500
  %2949 = vmatpush.bf16.msra.mxu0 %v2492
  %2950 = vmatmul.bf16.gmra.mxu0 %v2074
  %v2951 = vpop.f32.mrf.mxu0
  %v2952 = vadd.f32 %v2012, %v2951
  %v2953 = vpop.f32.mrf.mxu0
  %v2954 = vadd.f32 %v2012, %v2953
  %2955 = vmatmul.bf16.gmra.mxu0 %v2076
  %v2956 = vpop.f32.mrf.mxu0
  %v2957 = vadd.f32 %v2012, %v2956
  %v2958 = vpop.f32.mrf.mxu0
  %v2959 = vadd.f32 %v2012, %v2958
  %2960 = vmatmul.bf16.gmra.mxu0 %v2078
  %v2961 = vpop.f32.mrf.mxu0
  %v2962 = vadd.f32 %v2012, %v2961
  %v2963 = vpop.f32.mrf.mxu0
  %v2964 = vadd.f32 %v2012, %v2963
  %2965 = vmatmul.bf16.gmra.mxu0 %v2080
  %v2966 = vpop.f32.mrf.mxu0
  %v2967 = vadd.f32 %v2012, %v2966
  %v2968 = vpop.f32.mrf.mxu0
  %v2969 = vadd.f32 %v2012, %v2968
  %2970 = vmatmul.bf16.gmra.mxu0 %v2082
  %v2971 = vpop.f32.mrf.mxu0
  %v2972 = vadd.f32 %v2012, %v2971
  %v2973 = vpop.f32.mrf.mxu0
  %v2974 = vadd.f32 %v2012, %v2973
  %2975 = vmatmul.bf16.gmra.mxu0 %v2084
  %v2976 = vpop.f32.mrf.mxu0
  %v2977 = vadd.f32 %v2012, %v2976
  %v2978 = vpop.f32.mrf.mxu0
  %v2979 = vadd.f32 %v2012, %v2978
  %2980 = vmatmul.bf16.gmra.mxu0 %v2086
  %v2981 = vpop.f32.mrf.mxu0
  %v2982 = vadd.f32 %v2012, %v2981
  %v2983 = vpop.f32.mrf.mxu0
  %v2984 = vadd.f32 %v2012, %v2983
  %2985 = vmatmul.bf16.gmra.mxu0 %v2088
  %v2986 = vpop.f32.mrf.mxu0
  %v2987 = vadd.f32 %v2012, %v2986
  %v2988 = vpop.f32.mrf.mxu0
  %v2989 = vadd.f32 %v2012, %v2988
  %2990 = vdwg.mxu0
  %2991 = vmatpush.bf16.msra.mxu0 %v2612
  %2992 = vmatpush.bf16.msra.mxu0 %v2604
  %2993 = vmatpush.bf16.msra.mxu0 %v2596
  %2994 = vmatpush.bf16.msra.mxu0 %v2588
  %2995 = vmatpush.bf16.msra.mxu0 %v2580
  %2996 = vmatpush.bf16.msra.mxu0 %v2572
  %2997 = vmatpush.bf16.msra.mxu0 %v2564
  %2998 = vmatpush.bf16.msra.mxu0 %v2556
  %2999 = vmatmul.bf16.gmra.mxu0 %v2075
  %v3000 = vpop.f32.mrf.mxu0
  %v3001 = vadd.f32 %v2952, %v3000
  %v3002 = vpop.f32.mrf.mxu0
  %v3003 = vadd.f32 %v2954, %v3002
  %3004 = vmatmul.bf16.gmra.mxu0 %v2077
  %v3005 = vpop.f32.mrf.mxu0
  %v3006 = vadd.f32 %v2957, %v3005
  %v3007 = vpop.f32.mrf.mxu0
  %v3008 = vadd.f32 %v2959, %v3007
  %3009 = vmatmul.bf16.gmra.mxu0 %v2079
  %v3010 = vpop.f32.mrf.mxu0
  %v3011 = vadd.f32 %v2962, %v3010
  %v3012 = vpop.f32.mrf.mxu0
  %v3013 = vadd.f32 %v2964, %v3012
  %3014 = vmatmul.bf16.gmra.mxu0 %v2081
  %v3015 = vpop.f32.mrf.mxu0
  %v3016 = vadd.f32 %v2967, %v3015
  %v3017 = vpop.f32.mrf.mxu0
  %v3018 = vadd.f32 %v2969, %v3017
  %3019 = vmatmul.bf16.gmra.mxu0 %v2083
  %v3020 = vpop.f32.mrf.mxu0
  %v3021 = vadd.f32 %v2972, %v3020
  %v3022 = vpop.f32.mrf.mxu0
  %v3023 = vadd.f32 %v2974, %v3022
  %3024 = vmatmul.bf16.gmra.mxu0 %v2085
  %v3025 = vpop.f32.mrf.mxu0
  %v3026 = vadd.f32 %v2977, %v3025
  %v3027 = vpop.f32.mrf.mxu0
  %v3028 = vadd.f32 %v2979, %v3027
  %3029 = vmatmul.bf16.gmra.mxu0 %v2087
  %v3030 = vpop.f32.mrf.mxu0
  %v3031 = vadd.f32 %v2982, %v3030
  %v3032 = vpop.f32.mrf.mxu0
  %v3033 = vadd.f32 %v2984, %v3032
  %3034 = vmatmul.bf16.gmra.mxu0 %v2089
  %v3035 = vpop.f32.mrf.mxu0
  %v3036 = vadd.f32 %v2987, %v3035
  %v3037 = vpop.f32.mrf.mxu0
  %v3038 = vadd.f32 %v2989, %v3037
  %3039 = vdwg.mxu0
  %3040 = vmatpush.bf16.msra.mxu0 %v2549
  %3041 = vmatpush.bf16.msra.mxu0 %v2541
  %3042 = vmatpush.bf16.msra.mxu0 %v2533
  %3043 = vmatpush.bf16.msra.mxu0 %v2525
  %3044 = vmatpush.bf16.msra.mxu0 %v2517
  %3045 = vmatpush.bf16.msra.mxu0 %v2509
  %3046 = vmatpush.bf16.msra.mxu0 %v2501
  %3047 = vmatpush.bf16.msra.mxu0 %v2493
  %3048 = vmatmul.bf16.gmra.mxu0 %v2074
  %v3049 = vpop.f32.mrf.mxu0
  %v3050 = vadd.f32 %v2013, %v3049
  %v3051 = vpop.f32.mrf.mxu0
  %v3052 = vadd.f32 %v2013, %v3051
  %3053 = vmatmul.bf16.gmra.mxu0 %v2076
  %v3054 = vpop.f32.mrf.mxu0
  %v3055 = vadd.f32 %v2013, %v3054
  %v3056 = vpop.f32.mrf.mxu0
  %v3057 = vadd.f32 %v2013, %v3056
  %3058 = vmatmul.bf16.gmra.mxu0 %v2078
  %v3059 = vpop.f32.mrf.mxu0
  %v3060 = vadd.f32 %v2013, %v3059
  %v3061 = vpop.f32.mrf.mxu0
  %v3062 = vadd.f32 %v2013, %v3061
  %3063 = vmatmul.bf16.gmra.mxu0 %v2080
  %v3064 = vpop.f32.mrf.mxu0
  %v3065 = vadd.f32 %v2013, %v3064
  %v3066 = vpop.f32.mrf.mxu0
  %v3067 = vadd.f32 %v2013, %v3066
  %3068 = vmatmul.bf16.gmra.mxu0 %v2082
  %v3069 = vpop.f32.mrf.mxu0
  %v3070 = vadd.f32 %v2013, %v3069
  %v3071 = vpop.f32.mrf.mxu0
  %v3072 = vadd.f32 %v2013, %v3071
  %3073 = vmatmul.bf16.gmra.mxu0 %v2084
  %v3074 = vpop.f32.mrf.mxu0
  %v3075 = vadd.f32 %v2013, %v3074
  %v3076 = vpop.f32.mrf.mxu0
  %v3077 = vadd.f32 %v2013, %v3076
  %3078 = vmatmul.bf16.gmra.mxu0 %v2086
  %v3079 = vpop.f32.mrf.mxu0
  %v3080 = vadd.f32 %v2013, %v3079
  %v3081 = vpop.f32.mrf.mxu0
  %v3082 = vadd.f32 %v2013, %v3081
  %3083 = vmatmul.bf16.gmra.mxu0 %v2088
  %v3084 = vpop.f32.mrf.mxu0
  %v3085 = vadd.f32 %v2013, %v3084
  %v3086 = vpop.f32.mrf.mxu0
  %v3087 = vadd.f32 %v2013, %v3086
  %3088 = vdwg.mxu0
  %3089 = vmatpush.bf16.msra.mxu0 %v2613
  %3090 = vmatpush.bf16.msra.mxu0 %v2605
  %3091 = vmatpush.bf16.msra.mxu0 %v2597
  %3092 = vmatpush.bf16.msra.mxu0 %v2589
  %3093 = vmatpush.bf16.msra.mxu0 %v2581
  %3094 = vmatpush.bf16.msra.mxu0 %v2573
  %3095 = vmatpush.bf16.msra.mxu0 %v2565
  %3096 = vmatpush.bf16.msra.mxu0 %v2557
  %3097 = vmatmul.bf16.gmra.mxu0 %v2075
  %v3098 = vpop.f32.mrf.mxu0
  %v3099 = vadd.f32 %v3050, %v3098
  %v3100 = vpop.f32.mrf.mxu0
  %v3101 = vadd.f32 %v3052, %v3100
  %3102 = vmatmul.bf16.gmra.mxu0 %v2077
  %v3103 = vpop.f32.mrf.mxu0
  %v3104 = vadd.f32 %v3055, %v3103
  %v3105 = vpop.f32.mrf.mxu0
  %v3106 = vadd.f32 %v3057, %v3105
  %3107 = vmatmul.bf16.gmra.mxu0 %v2079
  %v3108 = vpop.f32.mrf.mxu0
  %v3109 = vadd.f32 %v3060, %v3108
  %v3110 = vpop.f32.mrf.mxu0
  %v3111 = vadd.f32 %v3062, %v3110
  %3112 = vmatmul.bf16.gmra.mxu0 %v2081
  %v3113 = vpop.f32.mrf.mxu0
  %v3114 = vadd.f32 %v3065, %v3113
  %v3115 = vpop.f32.mrf.mxu0
  %v3116 = vadd.f32 %v3067, %v3115
  %3117 = vmatmul.bf16.gmra.mxu0 %v2083
  %v3118 = vpop.f32.mrf.mxu0
  %v3119 = vadd.f32 %v3070, %v3118
  %v3120 = vpop.f32.mrf.mxu0
  %v3121 = vadd.f32 %v3072, %v3120
  %3122 = vmatmul.bf16.gmra.mxu0 %v2085
  %v3123 = vpop.f32.mrf.mxu0
  %v3124 = vadd.f32 %v3075, %v3123
  %v3125 = vpop.f32.mrf.mxu0
  %v3126 = vadd.f32 %v3077, %v3125
  %3127 = vmatmul.bf16.gmra.mxu0 %v2087
  %v3128 = vpop.f32.mrf.mxu0
  %v3129 = vadd.f32 %v3080, %v3128
  %v3130 = vpop.f32.mrf.mxu0
  %v3131 = vadd.f32 %v3082, %v3130
  %3132 = vmatmul.bf16.gmra.mxu0 %v2089
  %v3133 = vpop.f32.mrf.mxu0
  %v3134 = vadd.f32 %v3085, %v3133
  %v3135 = vpop.f32.mrf.mxu0
  %v3136 = vadd.f32 %v3087, %v3135
  %3137 = vdwg.mxu0
  %3138 = vmatpush.bf16.msra.mxu0 %v2550
  %3139 = vmatpush.bf16.msra.mxu0 %v2542
  %3140 = vmatpush.bf16.msra.mxu0 %v2534
  %3141 = vmatpush.bf16.msra.mxu0 %v2526
  %3142 = vmatpush.bf16.msra.mxu0 %v2518
  %3143 = vmatpush.bf16.msra.mxu0 %v2510
  %3144 = vmatpush.bf16.msra.mxu0 %v2502
  %3145 = vmatpush.bf16.msra.mxu0 %v2494
  %3146 = vmatmul.bf16.gmra.mxu0 %v2074
  %v3147 = vpop.f32.mrf.mxu0
  %v3148 = vadd.f32 %v2014, %v3147
  %v3149 = vpop.f32.mrf.mxu0
  %v3150 = vadd.f32 %v2014, %v3149
  %3151 = vmatmul.bf16.gmra.mxu0 %v2076
  %v3152 = vpop.f32.mrf.mxu0
  %v3153 = vadd.f32 %v2014, %v3152
  %v3154 = vpop.f32.mrf.mxu0
  %v3155 = vadd.f32 %v2014, %v3154
  %3156 = vmatmul.bf16.gmra.mxu0 %v2078
  %v3157 = vpop.f32.mrf.mxu0
  %v3158 = vadd.f32 %v2014, %v3157
  %v3159 = vpop.f32.mrf.mxu0
  %v3160 = vadd.f32 %v2014, %v3159
  %3161 = vmatmul.bf16.gmra.mxu0 %v2080
  %v3162 = vpop.f32.mrf.mxu0
  %v3163 = vadd.f32 %v2014, %v3162
  %v3164 = vpop.f32.mrf.mxu0
  %v3165 = vadd.f32 %v2014, %v3164
  %3166 = vmatmul.bf16.gmra.mxu0 %v2082
  %v3167 = vpop.f32.mrf.mxu0
  %v3168 = vadd.f32 %v2014, %v3167
  %v3169 = vpop.f32.mrf.mxu0
  %v3170 = vadd.f32 %v2014, %v3169
  %3171 = vmatmul.bf16.gmra.mxu0 %v2084
  %v3172 = vpop.f32.mrf.mxu0
  %v3173 = vadd.f32 %v2014, %v3172
  %v3174 = vpop.f32.mrf.mxu0
  %v3175 = vadd.f32 %v2014, %v3174
  %3176 = vmatmul.bf16.gmra.mxu0 %v2086
  %v3177 = vpop.f32.mrf.mxu0
  %v3178 = vadd.f32 %v2014, %v3177
  %v3179 = vpop.f32.mrf.mxu0
  %v3180 = vadd.f32 %v2014, %v3179
  %3181 = vmatmul.bf16.gmra.mxu0 %v2088
  %v3182 = vpop.f32.mrf.mxu0
  %v3183 = vadd.f32 %v2014, %v3182
  %v3184 = vpop.f32.mrf.mxu0
  %v3185 = vadd.f32 %v2014, %v3184
  %3186 = vdwg.mxu0
  %3187 = vmatpush.bf16.msra.mxu0 %v2614
  %3188 = vmatpush.bf16.msra.mxu0 %v2606
  %3189 = vmatpush.bf16.msra.mxu0 %v2598
  %3190 = vmatpush.bf16.msra.mxu0 %v2590
  %3191 = vmatpush.bf16.msra.mxu0 %v2582
  %3192 = vmatpush.bf16.msra.mxu0 %v2574
  %3193 = vmatpush.bf16.msra.mxu0 %v2566
  %3194 = vmatpush.bf16.msra.mxu0 %v2558
  %3195 = vmatmul.bf16.gmra.mxu0 %v2075
  %v3196 = vpop.f32.mrf.mxu0
  %v3197 = vadd.f32 %v3148, %v3196
  %v3198 = vpop.f32.mrf.mxu0
  %v3199 = vadd.f32 %v3150, %v3198
  %3200 = vmatmul.bf16.gmra.mxu0 %v2077
  %v3201 = vpop.f32.mrf.mxu0
  %v3202 = vadd.f32 %v3153, %v3201
  %v3203 = vpop.f32.mrf.mxu0
  %v3204 = vadd.f32 %v3155, %v3203
  %3205 = vmatmul.bf16.gmra.mxu0 %v2079
  %v3206 = vpop.f32.mrf.mxu0
  %v3207 = vadd.f32 %v3158, %v3206
  %v3208 = vpop.f32.mrf.mxu0
  %v3209 = vadd.f32 %v3160, %v3208
  %3210 = vmatmul.bf16.gmra.mxu0 %v2081
  %v3211 = vpop.f32.mrf.mxu0
  %v3212 = vadd.f32 %v3163, %v3211
  %v3213 = vpop.f32.mrf.mxu0
  %v3214 = vadd.f32 %v3165, %v3213
  %3215 = vmatmul.bf16.gmra.mxu0 %v2083
  %v3216 = vpop.f32.mrf.mxu0
  %v3217 = vadd.f32 %v3168, %v3216
  %v3218 = vpop.f32.mrf.mxu0
  %v3219 = vadd.f32 %v3170, %v3218
  %3220 = vmatmul.bf16.gmra.mxu0 %v2085
  %v3221 = vpop.f32.mrf.mxu0
  %v3222 = vadd.f32 %v3173, %v3221
  %v3223 = vpop.f32.mrf.mxu0
  %v3224 = vadd.f32 %v3175, %v3223
  %3225 = vmatmul.bf16.gmra.mxu0 %v2087
  %v3226 = vpop.f32.mrf.mxu0
  %v3227 = vadd.f32 %v3178, %v3226
  %v3228 = vpop.f32.mrf.mxu0
  %v3229 = vadd.f32 %v3180, %v3228
  %3230 = vmatmul.bf16.gmra.mxu0 %v2089
  %v3231 = vpop.f32.mrf.mxu0
  %v3232 = vadd.f32 %v3183, %v3231
  %v3233 = vpop.f32.mrf.mxu0
  %v3234 = vadd.f32 %v3185, %v3233
  %3235 = vdwg.mxu0
  %3236 = vmatpush.bf16.msra.mxu0 %v2551
  %3237 = vmatpush.bf16.msra.mxu0 %v2543
  %3238 = vmatpush.bf16.msra.mxu0 %v2535
  %3239 = vmatpush.bf16.msra.mxu0 %v2527
  %3240 = vmatpush.bf16.msra.mxu0 %v2519
  %3241 = vmatpush.bf16.msra.mxu0 %v2511
  %3242 = vmatpush.bf16.msra.mxu0 %v2503
  %3243 = vmatpush.bf16.msra.mxu0 %v2495
  %3244 = vmatmul.bf16.gmra.mxu0 %v2074
  %v3245 = vpop.f32.mrf.mxu0
  %v3246 = vadd.f32 %v2015, %v3245
  %v3247 = vpop.f32.mrf.mxu0
  %v3248 = vadd.f32 %v2015, %v3247
  %3249 = vmatmul.bf16.gmra.mxu0 %v2076
  %v3250 = vpop.f32.mrf.mxu0
  %v3251 = vadd.f32 %v2015, %v3250
  %v3252 = vpop.f32.mrf.mxu0
  %v3253 = vadd.f32 %v2015, %v3252
  %3254 = vmatmul.bf16.gmra.mxu0 %v2078
  %v3255 = vpop.f32.mrf.mxu0
  %v3256 = vadd.f32 %v2015, %v3255
  %v3257 = vpop.f32.mrf.mxu0
  %v3258 = vadd.f32 %v2015, %v3257
  %3259 = vmatmul.bf16.gmra.mxu0 %v2080
  %v3260 = vpop.f32.mrf.mxu0
  %v3261 = vadd.f32 %v2015, %v3260
  %v3262 = vpop.f32.mrf.mxu0
  %v3263 = vadd.f32 %v2015, %v3262
  %3264 = vmatmul.bf16.gmra.mxu0 %v2082
  %v3265 = vpop.f32.mrf.mxu0
  %v3266 = vadd.f32 %v2015, %v3265
  %v3267 = vpop.f32.mrf.mxu0
  %v3268 = vadd.f32 %v2015, %v3267
  %3269 = vmatmul.bf16.gmra.mxu0 %v2084
  %v3270 = vpop.f32.mrf.mxu0
  %v3271 = vadd.f32 %v2015, %v3270
  %v3272 = vpop.f32.mrf.mxu0
  %v3273 = vadd.f32 %v2015, %v3272
  %3274 = vmatmul.bf16.gmra.mxu0 %v2086
  %v3275 = vpop.f32.mrf.mxu0
  %v3276 = vadd.f32 %v2015, %v3275
  %v3277 = vpop.f32.mrf.mxu0
  %v3278 = vadd.f32 %v2015, %v3277
  %3279 = vmatmul.bf16.gmra.mxu0 %v2088
  %v3280 = vpop.f32.mrf.mxu0
  %v3281 = vadd.f32 %v2015, %v3280
  %v3282 = vpop.f32.mrf.mxu0
  %v3283 = vadd.f32 %v2015, %v3282
  %3284 = vdwg.mxu0
  %3285 = vmatpush.bf16.msra.mxu0 %v2615
  %3286 = vmatpush.bf16.msra.mxu0 %v2607
  %3287 = vmatpush.bf16.msra.mxu0 %v2599
  %3288 = vmatpush.bf16.msra.mxu0 %v2591
  %3289 = vmatpush.bf16.msra.mxu0 %v2583
  %3290 = vmatpush.bf16.msra.mxu0 %v2575
  %3291 = vmatpush.bf16.msra.mxu0 %v2567
  %3292 = vmatpush.bf16.msra.mxu0 %v2559
  %3293 = vmatmul.bf16.gmra.mxu0 %v2075
  %v3294 = vpop.f32.mrf.mxu0
  %v3295 = vadd.f32 %v3246, %v3294
  %v3296 = vpop.f32.mrf.mxu0
  %v3297 = vadd.f32 %v3248, %v3296
  %3298 = vmatmul.bf16.gmra.mxu0 %v2077
  %v3299 = vpop.f32.mrf.mxu0
  %v3300 = vadd.f32 %v3251, %v3299
  %v3301 = vpop.f32.mrf.mxu0
  %v3302 = vadd.f32 %v3253, %v3301
  %3303 = vmatmul.bf16.gmra.mxu0 %v2079
  %v3304 = vpop.f32.mrf.mxu0
  %v3305 = vadd.f32 %v3256, %v3304
  %v3306 = vpop.f32.mrf.mxu0
  %v3307 = vadd.f32 %v3258, %v3306
  %3308 = vmatmul.bf16.gmra.mxu0 %v2081
  %v3309 = vpop.f32.mrf.mxu0
  %v3310 = vadd.f32 %v3261, %v3309
  %v3311 = vpop.f32.mrf.mxu0
  %v3312 = vadd.f32 %v3263, %v3311
  %3313 = vmatmul.bf16.gmra.mxu0 %v2083
  %v3314 = vpop.f32.mrf.mxu0
  %v3315 = vadd.f32 %v3266, %v3314
  %v3316 = vpop.f32.mrf.mxu0
  %v3317 = vadd.f32 %v3268, %v3316
  %3318 = vmatmul.bf16.gmra.mxu0 %v2085
  %v3319 = vpop.f32.mrf.mxu0
  %v3320 = vadd.f32 %v3271, %v3319
  %v3321 = vpop.f32.mrf.mxu0
  %v3322 = vadd.f32 %v3273, %v3321
  %3323 = vmatmul.bf16.gmra.mxu0 %v2087
  %v3324 = vpop.f32.mrf.mxu0
  %v3325 = vadd.f32 %v3276, %v3324
  %v3326 = vpop.f32.mrf.mxu0
  %v3327 = vadd.f32 %v3278, %v3326
  %3328 = vmatmul.bf16.gmra.mxu0 %v2089
  %v3329 = vpop.f32.mrf.mxu0
  %v3330 = vadd.f32 %v3281, %v3329
  %v3331 = vpop.f32.mrf.mxu0
  %v3332 = vadd.f32 %v3283, %v3331
  %3333 = vdwg.mxu0
  %3334 = vmatpush.bf16.msra.mxu0 %v2552
  %3335 = vmatpush.bf16.msra.mxu0 %v2544
  %3336 = vmatpush.bf16.msra.mxu0 %v2536
  %3337 = vmatpush.bf16.msra.mxu0 %v2528
  %3338 = vmatpush.bf16.msra.mxu0 %v2520
  %3339 = vmatpush.bf16.msra.mxu0 %v2512
  %3340 = vmatpush.bf16.msra.mxu0 %v2504
  %3341 = vmatpush.bf16.msra.mxu0 %v2496
  %3342 = vmatmul.bf16.gmra.mxu0 %v2074
  %v3343 = vpop.f32.mrf.mxu0
  %v3344 = vadd.f32 %v2016, %v3343
  %v3345 = vpop.f32.mrf.mxu0
  %v3346 = vadd.f32 %v2016, %v3345
  %3347 = vmatmul.bf16.gmra.mxu0 %v2076
  %v3348 = vpop.f32.mrf.mxu0
  %v3349 = vadd.f32 %v2016, %v3348
  %v3350 = vpop.f32.mrf.mxu0
  %v3351 = vadd.f32 %v2016, %v3350
  %3352 = vmatmul.bf16.gmra.mxu0 %v2078
  %v3353 = vpop.f32.mrf.mxu0
  %v3354 = vadd.f32 %v2016, %v3353
  %v3355 = vpop.f32.mrf.mxu0
  %v3356 = vadd.f32 %v2016, %v3355
  %3357 = vmatmul.bf16.gmra.mxu0 %v2080
  %v3358 = vpop.f32.mrf.mxu0
  %v3359 = vadd.f32 %v2016, %v3358
  %v3360 = vpop.f32.mrf.mxu0
  %v3361 = vadd.f32 %v2016, %v3360
  %3362 = vmatmul.bf16.gmra.mxu0 %v2082
  %v3363 = vpop.f32.mrf.mxu0
  %v3364 = vadd.f32 %v2016, %v3363
  %v3365 = vpop.f32.mrf.mxu0
  %v3366 = vadd.f32 %v2016, %v3365
  %3367 = vmatmul.bf16.gmra.mxu0 %v2084
  %v3368 = vpop.f32.mrf.mxu0
  %v3369 = vadd.f32 %v2016, %v3368
  %v3370 = vpop.f32.mrf.mxu0
  %v3371 = vadd.f32 %v2016, %v3370
  %3372 = vmatmul.bf16.gmra.mxu0 %v2086
  %v3373 = vpop.f32.mrf.mxu0
  %v3374 = vadd.f32 %v2016, %v3373
  %v3375 = vpop.f32.mrf.mxu0
  %v3376 = vadd.f32 %v2016, %v3375
  %3377 = vmatmul.bf16.gmra.mxu0 %v2088
  %v3378 = vpop.f32.mrf.mxu0
  %v3379 = vadd.f32 %v2016, %v3378
  %v3380 = vpop.f32.mrf.mxu0
  %v3381 = vadd.f32 %v2016, %v3380
  %3382 = vdwg.mxu0
  %3383 = vmatpush.bf16.msra.mxu0 %v2616
  %3384 = vmatpush.bf16.msra.mxu0 %v2608
  %3385 = vmatpush.bf16.msra.mxu0 %v2600
  %3386 = vmatpush.bf16.msra.mxu0 %v2592
  %3387 = vmatpush.bf16.msra.mxu0 %v2584
  %3388 = vmatpush.bf16.msra.mxu0 %v2576
  %3389 = vmatpush.bf16.msra.mxu0 %v2568
  %3390 = vmatpush.bf16.msra.mxu0 %v2560
  %3391 = vmatmul.bf16.gmra.mxu0 %v2075
  %v3392 = vpop.f32.mrf.mxu0
  %v3393 = vadd.f32 %v3344, %v3392
  %v3394 = vpop.f32.mrf.mxu0
  %v3395 = vadd.f32 %v3346, %v3394
  %3396 = vmatmul.bf16.gmra.mxu0 %v2077
  %v3397 = vpop.f32.mrf.mxu0
  %v3398 = vadd.f32 %v3349, %v3397
  %v3399 = vpop.f32.mrf.mxu0
  %v3400 = vadd.f32 %v3351, %v3399
  %3401 = vmatmul.bf16.gmra.mxu0 %v2079
  %v3402 = vpop.f32.mrf.mxu0
  %v3403 = vadd.f32 %v3354, %v3402
  %v3404 = vpop.f32.mrf.mxu0
  %v3405 = vadd.f32 %v3356, %v3404
  %3406 = vmatmul.bf16.gmra.mxu0 %v2081
  %v3407 = vpop.f32.mrf.mxu0
  %v3408 = vadd.f32 %v3359, %v3407
  %v3409 = vpop.f32.mrf.mxu0
  %v3410 = vadd.f32 %v3361, %v3409
  %3411 = vmatmul.bf16.gmra.mxu0 %v2083
  %v3412 = vpop.f32.mrf.mxu0
  %v3413 = vadd.f32 %v3364, %v3412
  %v3414 = vpop.f32.mrf.mxu0
  %v3415 = vadd.f32 %v3366, %v3414
  %3416 = vmatmul.bf16.gmra.mxu0 %v2085
  %v3417 = vpop.f32.mrf.mxu0
  %v3418 = vadd.f32 %v3369, %v3417
  %v3419 = vpop.f32.mrf.mxu0
  %v3420 = vadd.f32 %v3371, %v3419
  %3421 = vmatmul.bf16.gmra.mxu0 %v2087
  %v3422 = vpop.f32.mrf.mxu0
  %v3423 = vadd.f32 %v3374, %v3422
  %v3424 = vpop.f32.mrf.mxu0
  %v3425 = vadd.f32 %v3376, %v3424
  %3426 = vmatmul.bf16.gmra.mxu0 %v2089
  %v3427 = vpop.f32.mrf.mxu0
  %v3428 = vadd.f32 %v3379, %v3427
  %v3429 = vpop.f32.mrf.mxu0
  %v3430 = vadd.f32 %v3381, %v3429
  %3431 = vdwg.mxu0
  %3432 = vmatpush.bf16.msra.mxu0 %v2553
  %3433 = vmatpush.bf16.msra.mxu0 %v2545
  %3434 = vmatpush.bf16.msra.mxu0 %v2537
  %3435 = vmatpush.bf16.msra.mxu0 %v2529
  %3436 = vmatpush.bf16.msra.mxu0 %v2521
  %3437 = vmatpush.bf16.msra.mxu0 %v2513
  %3438 = vmatpush.bf16.msra.mxu0 %v2505
  %3439 = vmatpush.bf16.msra.mxu0 %v2497
  %3440 = vmatmul.bf16.gmra.mxu0 %v2074
  %v3441 = vpop.f32.mrf.mxu0
  %v3442 = vadd.f32 %v2017, %v3441
  %v3443 = vpop.f32.mrf.mxu0
  %v3444 = vadd.f32 %v2017, %v3443
  %3445 = vmatmul.bf16.gmra.mxu0 %v2076
  %v3446 = vpop.f32.mrf.mxu0
  %v3447 = vadd.f32 %v2017, %v3446
  %v3448 = vpop.f32.mrf.mxu0
  %v3449 = vadd.f32 %v2017, %v3448
  %3450 = vmatmul.bf16.gmra.mxu0 %v2078
  %v3451 = vpop.f32.mrf.mxu0
  %v3452 = vadd.f32 %v2017, %v3451
  %v3453 = vpop.f32.mrf.mxu0
  %v3454 = vadd.f32 %v2017, %v3453
  %3455 = vmatmul.bf16.gmra.mxu0 %v2080
  %v3456 = vpop.f32.mrf.mxu0
  %v3457 = vadd.f32 %v2017, %v3456
  %v3458 = vpop.f32.mrf.mxu0
  %v3459 = vadd.f32 %v2017, %v3458
  %3460 = vmatmul.bf16.gmra.mxu0 %v2082
  %v3461 = vpop.f32.mrf.mxu0
  %v3462 = vadd.f32 %v2017, %v3461
  %v3463 = vpop.f32.mrf.mxu0
  %v3464 = vadd.f32 %v2017, %v3463
  %3465 = vmatmul.bf16.gmra.mxu0 %v2084
  %v3466 = vpop.f32.mrf.mxu0
  %v3467 = vadd.f32 %v2017, %v3466
  %v3468 = vpop.f32.mrf.mxu0
  %v3469 = vadd.f32 %v2017, %v3468
  %3470 = vmatmul.bf16.gmra.mxu0 %v2086
  %v3471 = vpop.f32.mrf.mxu0
  %v3472 = vadd.f32 %v2017, %v3471
  %v3473 = vpop.f32.mrf.mxu0
  %v3474 = vadd.f32 %v2017, %v3473
  %3475 = vmatmul.bf16.gmra.mxu0 %v2088
  %v3476 = vpop.f32.mrf.mxu0
  %v3477 = vadd.f32 %v2017, %v3476
  %v3478 = vpop.f32.mrf.mxu0
  %v3479 = vadd.f32 %v2017, %v3478
  %3480 = vdwg.mxu0
  %3481 = vmatpush.bf16.msra.mxu0 %v2617
  %3482 = vmatpush.bf16.msra.mxu0 %v2609
  %3483 = vmatpush.bf16.msra.mxu0 %v2601
  %3484 = vmatpush.bf16.msra.mxu0 %v2593
  %3485 = vmatpush.bf16.msra.mxu0 %v2585
  %3486 = vmatpush.bf16.msra.mxu0 %v2577
  %3487 = vmatpush.bf16.msra.mxu0 %v2569
  %3488 = vmatpush.bf16.msra.mxu0 %v2561
  %3489 = vmatmul.bf16.gmra.mxu0 %v2075
  %v3490 = vpop.f32.mrf.mxu0
  %v3491 = vadd.f32 %v3442, %v3490
  %v3492 = vpop.f32.mrf.mxu0
  %v3493 = vadd.f32 %v3444, %v3492
  %3494 = vmatmul.bf16.gmra.mxu0 %v2077
  %v3495 = vpop.f32.mrf.mxu0
  %v3496 = vadd.f32 %v3447, %v3495
  %v3497 = vpop.f32.mrf.mxu0
  %v3498 = vadd.f32 %v3449, %v3497
  %3499 = vmatmul.bf16.gmra.mxu0 %v2079
  %v3500 = vpop.f32.mrf.mxu0
  %v3501 = vadd.f32 %v3452, %v3500
  %v3502 = vpop.f32.mrf.mxu0
  %v3503 = vadd.f32 %v3454, %v3502
  %3504 = vmatmul.bf16.gmra.mxu0 %v2081
  %v3505 = vpop.f32.mrf.mxu0
  %v3506 = vadd.f32 %v3457, %v3505
  %v3507 = vpop.f32.mrf.mxu0
  %v3508 = vadd.f32 %v3459, %v3507
  %3509 = vmatmul.bf16.gmra.mxu0 %v2083
  %v3510 = vpop.f32.mrf.mxu0
  %v3511 = vadd.f32 %v3462, %v3510
  %v3512 = vpop.f32.mrf.mxu0
  %v3513 = vadd.f32 %v3464, %v3512
  %3514 = vmatmul.bf16.gmra.mxu0 %v2085
  %v3515 = vpop.f32.mrf.mxu0
  %v3516 = vadd.f32 %v3467, %v3515
  %v3517 = vpop.f32.mrf.mxu0
  %v3518 = vadd.f32 %v3469, %v3517
  %3519 = vmatmul.bf16.gmra.mxu0 %v2087
  %v3520 = vpop.f32.mrf.mxu0
  %v3521 = vadd.f32 %v3472, %v3520
  %v3522 = vpop.f32.mrf.mxu0
  %v3523 = vadd.f32 %v3474, %v3522
  %3524 = vmatmul.bf16.gmra.mxu0 %v2089
  %v3525 = vpop.f32.mrf.mxu0
  %v3526 = vadd.f32 %v3477, %v3525
  %v3527 = vpop.f32.mrf.mxu0
  %v3528 = vadd.f32 %v3479, %v3527
  %3529 = vdwg.mxu0
  %3530 = vst [vmem:[#allocation8] sm:$0xff] %v2805
  %3531 = vst [vmem:[#allocation8 + $0x8] sm:$0xff] %v2903
  %3532 = vst [vmem:[#allocation8 + $0x10] sm:$0xff] %v3001
  %3533 = vst [vmem:[#allocation8 + $0x18] sm:$0xff] %v3099
  %3534 = vst [vmem:[#allocation8 + $0x20] sm:$0xff] %v3197
  %3535 = vst [vmem:[#allocation8 + $0x28] sm:$0xff] %v3295
  %3536 = vst [vmem:[#allocation8 + $0x30] sm:$0xff] %v3393
  %3537 = vst [vmem:[#allocation8 + $0x38] sm:$0xff] %v3491
  %3538 = vst [vmem:[#allocation8 + $0x40] sm:$0xff] %v2807
  %3539 = vst [vmem:[#allocation8 + $0x48] sm:$0xff] %v2905
  %3540 = vst [vmem:[#allocation8 + $0x50] sm:$0xff] %v3003
  %3541 = vst [vmem:[#allocation8 + $0x58] sm:$0xff] %v3101
  %3542 = vst [vmem:[#allocation8 + $0x60] sm:$0xff] %v3199
  %3543 = vst [vmem:[#allocation8 + $0x68] sm:$0xff] %v3297
  %3544 = vst [vmem:[#allocation8 + $0x70] sm:$0xff] %v3395
  %3545 = vst [vmem:[#allocation8 + $0x78] sm:$0xff] %v3493
  %3546 = vst [vmem:[#allocation8 + $0x80] sm:$0xff] %v2810
  %3547 = vst [vmem:[#allocation8 + $0x88] sm:$0xff] %v2908
  %3548 = vst [vmem:[#allocation8 + $0x90] sm:$0xff] %v3006
  %3549 = vst [vmem:[#allocation8 + $0x98] sm:$0xff] %v3104
  %3550 = vst [vmem:[#allocation8 + $0xa0] sm:$0xff] %v3202
  %3551 = vst [vmem:[#allocation8 + $0xa8] sm:$0xff] %v3300
  %3552 = vst [vmem:[#allocation8 + $0xb0] sm:$0xff] %v3398
  %3553 = vst [vmem:[#allocation8 + $0xb8] sm:$0xff] %v3496
  %3554 = vst [vmem:[#allocation8 + $0xc0] sm:$0xff] %v2812
  %3555 = vst [vmem:[#allocation8 + $0xc8] sm:$0xff] %v2910
  %3556 = vst [vmem:[#allocation8 + $0xd0] sm:$0xff] %v3008
  %3557 = vst [vmem:[#allocation8 + $0xd8] sm:$0xff] %v3106
  %3558 = vst [vmem:[#allocation8 + $0xe0] sm:$0xff] %v3204
  %3559 = vst [vmem:[#allocation8 + $0xe8] sm:$0xff] %v3302
  %3560 = vst [vmem:[#allocation8 + $0xf0] sm:$0xff] %v3400
  %3561 = vst [vmem:[#allocation8 + $0xf8] sm:$0xff] %v3498
  %3562 = vst [vmem:[#allocation8 + $0x100] sm:$0xff] %v2815
  %3563 = vst [vmem:[#allocation8 + $0x108] sm:$0xff] %v2913
  %3564 = vst [vmem:[#allocation8 + $0x110] sm:$0xff] %v3011
  %3565 = vst [vmem:[#allocation8 + $0x118] sm:$0xff] %v3109
  %3566 = vst [vmem:[#allocation8 + $0x120] sm:$0xff] %v3207
  %3567 = vst [vmem:[#allocation8 + $0x128] sm:$0xff] %v3305
  %3568 = vst [vmem:[#allocation8 + $0x130] sm:$0xff] %v3403
  %3569 = vst [vmem:[#allocation8 + $0x138] sm:$0xff] %v3501
  %3570 = vst [vmem:[#allocation8 + $0x140] sm:$0xff] %v2817
  %3571 = vst [vmem:[#allocation8 + $0x148] sm:$0xff] %v2915
  %3572 = vst [vmem:[#allocation8 + $0x150] sm:$0xff] %v3013
  %3573 = vst [vmem:[#allocation8 + $0x158] sm:$0xff] %v3111
  %3574 = vst [vmem:[#allocation8 + $0x160] sm:$0xff] %v3209
  %3575 = vst [vmem:[#allocation8 + $0x168] sm:$0xff] %v3307
  %3576 = vst [vmem:[#allocation8 + $0x170] sm:$0xff] %v3405
  %3577 = vst [vmem:[#allocation8 + $0x178] sm:$0xff] %v3503
  %3578 = vst [vmem:[#allocation8 + $0x180] sm:$0xff] %v2820
  %3579 = vst [vmem:[#allocation8 + $0x188] sm:$0xff] %v2918
  %3580 = vst [vmem:[#allocation8 + $0x190] sm:$0xff] %v3016
  %3581 = vst [vmem:[#allocation8 + $0x198] sm:$0xff] %v3114
  %3582 = vst [vmem:[#allocation8 + $0x1a0] sm:$0xff] %v3212
  %3583 = vst [vmem:[#allocation8 + $0x1a8] sm:$0xff] %v3310
  %3584 = vst [vmem:[#allocation8 + $0x1b0] sm:$0xff] %v3408
  %3585 = vst [vmem:[#allocation8 + $0x1b8] sm:$0xff] %v3506
  %3586 = vst [vmem:[#allocation8 + $0x1c0] sm:$0xff] %v2822
  %3587 = vst [vmem:[#allocation8 + $0x1c8] sm:$0xff] %v2920
  %3588 = vst [vmem:[#allocation8 + $0x1d0] sm:$0xff] %v3018
  %3589 = vst [vmem:[#allocation8 + $0x1d8] sm:$0xff] %v3116
  %3590 = vst [vmem:[#allocation8 + $0x1e0] sm:$0xff] %v3214
  %3591 = vst [vmem:[#allocation8 + $0x1e8] sm:$0xff] %v3312
  %3592 = vst [vmem:[#allocation8 + $0x1f0] sm:$0xff] %v3410
  %3593 = vst [vmem:[#allocation8 + $0x1f8] sm:$0xff] %v3508
  %3594 = vst [vmem:[#allocation8 + $0x200] sm:$0xff] %v2825
  %3595 = vst [vmem:[#allocation8 + $0x208] sm:$0xff] %v2923
  %3596 = vst [vmem:[#allocation8 + $0x210] sm:$0xff] %v3021
  %3597 = vst [vmem:[#allocation8 + $0x218] sm:$0xff] %v3119
  %3598 = vst [vmem:[#allocation8 + $0x220] sm:$0xff] %v3217
  %3599 = vst [vmem:[#allocation8 + $0x228] sm:$0xff] %v3315
  %3600 = vst [vmem:[#allocation8 + $0x230] sm:$0xff] %v3413
  %3601 = vst [vmem:[#allocation8 + $0x238] sm:$0xff] %v3511
  %3602 = vst [vmem:[#allocation8 + $0x240] sm:$0xff] %v2827
  %3603 = vst [vmem:[#allocation8 + $0x248] sm:$0xff] %v2925
  %3604 = vst [vmem:[#allocation8 + $0x250] sm:$0xff] %v3023
  %3605 = vst [vmem:[#allocation8 + $0x258] sm:$0xff] %v3121
  %3606 = vst [vmem:[#allocation8 + $0x260] sm:$0xff] %v3219
  %3607 = vst [vmem:[#allocation8 + $0x268] sm:$0xff] %v3317
  %3608 = vst [vmem:[#allocation8 + $0x270] sm:$0xff] %v3415
  %3609 = vst [vmem:[#allocation8 + $0x278] sm:$0xff] %v3513
  %3610 = vst [vmem:[#allocation8 + $0x280] sm:$0xff] %v2830
  %3611 = vst [vmem:[#allocation8 + $0x288] sm:$0xff] %v2928
  %3612 = vst [vmem:[#allocation8 + $0x290] sm:$0xff] %v3026
  %3613 = vst [vmem:[#allocation8 + $0x298] sm:$0xff] %v3124
  %3614 = vst [vmem:[#allocation8 + $0x2a0] sm:$0xff] %v3222
  %3615 = vst [vmem:[#allocation8 + $0x2a8] sm:$0xff] %v3320
  %3616 = vst [vmem:[#allocation8 + $0x2b0] sm:$0xff] %v3418
  %3617 = vst [vmem:[#allocation8 + $0x2b8] sm:$0xff] %v3516
  %3618 = vst [vmem:[#allocation8 + $0x2c0] sm:$0xff] %v2832
  %3619 = vst [vmem:[#allocation8 + $0x2c8] sm:$0xff] %v2930
  %3620 = vst [vmem:[#allocation8 + $0x2d0] sm:$0xff] %v3028
  %3621 = vst [vmem:[#allocation8 + $0x2d8] sm:$0xff] %v3126
  %3622 = vst [vmem:[#allocation8 + $0x2e0] sm:$0xff] %v3224
  %3623 = vst [vmem:[#allocation8 + $0x2e8] sm:$0xff] %v3322
  %3624 = vst [vmem:[#allocation8 + $0x2f0] sm:$0xff] %v3420
  %3625 = vst [vmem:[#allocation8 + $0x2f8] sm:$0xff] %v3518
  %3626 = vst [vmem:[#allocation8 + $0x300] sm:$0xff] %v2835
  %3627 = vst [vmem:[#allocation8 + $0x308] sm:$0xff] %v2933
  %3628 = vst [vmem:[#allocation8 + $0x310] sm:$0xff] %v3031
  %3629 = vst [vmem:[#allocation8 + $0x318] sm:$0xff] %v3129
  %3630 = vst [vmem:[#allocation8 + $0x320] sm:$0xff] %v3227
  %3631 = vst [vmem:[#allocation8 + $0x328] sm:$0xff] %v3325
  %3632 = vst [vmem:[#allocation8 + $0x330] sm:$0xff] %v3423
  %3633 = vst [vmem:[#allocation8 + $0x338] sm:$0xff] %v3521
  %3634 = vst [vmem:[#allocation8 + $0x340] sm:$0xff] %v2837
  %3635 = vst [vmem:[#allocation8 + $0x348] sm:$0xff] %v2935
  %3636 = vst [vmem:[#allocation8 + $0x350] sm:$0xff] %v3033
  %3637 = vst [vmem:[#allocation8 + $0x358] sm:$0xff] %v3131
  %3638 = vst [vmem:[#allocation8 + $0x360] sm:$0xff] %v3229
  %3639 = vst [vmem:[#allocation8 + $0x368] sm:$0xff] %v3327
  %3640 = vst [vmem:[#allocation8 + $0x370] sm:$0xff] %v3425
  %3641 = vst [vmem:[#allocation8 + $0x378] sm:$0xff] %v3523
  %3642 = vst [vmem:[#allocation8 + $0x380] sm:$0xff] %v2840
  %3643 = vst [vmem:[#allocation8 + $0x388] sm:$0xff] %v2938
  %3644 = vst [vmem:[#allocation8 + $0x390] sm:$0xff] %v3036
  %3645 = vst [vmem:[#allocation8 + $0x398] sm:$0xff] %v3134
  %3646 = vst [vmem:[#allocation8 + $0x3a0] sm:$0xff] %v3232
  %3647 = vst [vmem:[#allocation8 + $0x3a8] sm:$0xff] %v3330
  %3648 = vst [vmem:[#allocation8 + $0x3b0] sm:$0xff] %v3428
  %3649 = vst [vmem:[#allocation8 + $0x3b8] sm:$0xff] %v3526
  %3650 = vst [vmem:[#allocation8 + $0x3c0] sm:$0xff] %v2842
  %3651 = vst [vmem:[#allocation8 + $0x3c8] sm:$0xff] %v2940
  %3652 = vst [vmem:[#allocation8 + $0x3d0] sm:$0xff] %v3038
  %3653 = vst [vmem:[#allocation8 + $0x3d8] sm:$0xff] %v3136
  %3654 = vst [vmem:[#allocation8 + $0x3e0] sm:$0xff] %v3234
  %3655 = vst [vmem:[#allocation8 + $0x3e8] sm:$0xff] %v3332
  %3656 = vst [vmem:[#allocation8 + $0x3f0] sm:$0xff] %v3430
  %3657 = vst [vmem:[#allocation8 + $0x3f8] sm:$0xff] %v3528
  %s3658 = sshll.u32 %s1861, 4
  %3659 = dma.done %s45, %s3658
  %v3660 = vld [vmem:[#allocation3] sm:$0xff]
  %v3661 = vld [vmem:[#allocation3 + $0x8] sm:$0xff]
  %v3662 = vld [vmem:[#allocation3 + $0x10] sm:$0xff]
  %v3663 = vld [vmem:[#allocation3 + $0x18] sm:$0xff]
  %v3664 = vld [vmem:[#allocation3 + $0x20] sm:$0xff]
  %v3665 = vld [vmem:[#allocation3 + $0x28] sm:$0xff]
  %v3666 = vld [vmem:[#allocation3 + $0x30] sm:$0xff]
  %v3667 = vld [vmem:[#allocation3 + $0x38] sm:$0xff]
  %v3668 = vld [vmem:[#allocation3 + $0x40] sm:$0xff]
  %v3669 = vld [vmem:[#allocation3 + $0x48] sm:$0xff]
  %v3670 = vld [vmem:[#allocation3 + $0x50] sm:$0xff]
  %v3671 = vld [vmem:[#allocation3 + $0x58] sm:$0xff]
  %v3672 = vld [vmem:[#allocation3 + $0x60] sm:$0xff]
  %v3673 = vld [vmem:[#allocation3 + $0x68] sm:$0xff]
  %v3674 = vld [vmem:[#allocation3 + $0x70] sm:$0xff]
  %v3675 = vld [vmem:[#allocation3 + $0x78] sm:$0xff]
  %v3676 = vld [vmem:[#allocation3 + $0x80] sm:$0xff]
  %v3677 = vld [vmem:[#allocation3 + $0x88] sm:$0xff]
  %v3678 = vld [vmem:[#allocation3 + $0x90] sm:$0xff]
  %v3679 = vld [vmem:[#allocation3 + $0x98] sm:$0xff]
  %v3680 = vld [vmem:[#allocation3 + $0xa0] sm:$0xff]
  %v3681 = vld [vmem:[#allocation3 + $0xa8] sm:$0xff]
  %v3682 = vld [vmem:[#allocation3 + $0xb0] sm:$0xff]
  %v3683 = vld [vmem:[#allocation3 + $0xb8] sm:$0xff]
  %v3684 = vld [vmem:[#allocation3 + $0xc0] sm:$0xff]
  %v3685 = vld [vmem:[#allocation3 + $0xc8] sm:$0xff]
  %v3686 = vld [vmem:[#allocation3 + $0xd0] sm:$0xff]
  %v3687 = vld [vmem:[#allocation3 + $0xd8] sm:$0xff]
  %v3688 = vld [vmem:[#allocation3 + $0xe0] sm:$0xff]
  %v3689 = vld [vmem:[#allocation3 + $0xe8] sm:$0xff]
  %v3690 = vld [vmem:[#allocation3 + $0xf0] sm:$0xff]
  %v3691 = vld [vmem:[#allocation3 + $0xf8] sm:$0xff]
  %v3692 = vld [vmem:[#allocation3 + $0x100] sm:$0xff]
  %v3693 = vld [vmem:[#allocation3 + $0x108] sm:$0xff]
  %v3694 = vld [vmem:[#allocation3 + $0x110] sm:$0xff]
  %v3695 = vld [vmem:[#allocation3 + $0x118] sm:$0xff]
  %v3696 = vld [vmem:[#allocation3 + $0x120] sm:$0xff]
  %v3697 = vld [vmem:[#allocation3 + $0x128] sm:$0xff]
  %v3698 = vld [vmem:[#allocation3 + $0x130] sm:$0xff]
  %v3699 = vld [vmem:[#allocation3 + $0x138] sm:$0xff]
  %v3700 = vld [vmem:[#allocation3 + $0x140] sm:$0xff]
  %v3701 = vld [vmem:[#allocation3 + $0x148] sm:$0xff]
  %v3702 = vld [vmem:[#allocation3 + $0x150] sm:$0xff]
  %v3703 = vld [vmem:[#allocation3 + $0x158] sm:$0xff]
  %v3704 = vld [vmem:[#allocation3 + $0x160] sm:$0xff]
  %v3705 = vld [vmem:[#allocation3 + $0x168] sm:$0xff]
  %v3706 = vld [vmem:[#allocation3 + $0x170] sm:$0xff]
  %v3707 = vld [vmem:[#allocation3 + $0x178] sm:$0xff]
  %v3708 = vld [vmem:[#allocation3 + $0x180] sm:$0xff]
  %v3709 = vld [vmem:[#allocation3 + $0x188] sm:$0xff]
  %v3710 = vld [vmem:[#allocation3 + $0x190] sm:$0xff]
  %v3711 = vld [vmem:[#allocation3 + $0x198] sm:$0xff]
  %v3712 = vld [vmem:[#allocation3 + $0x1a0] sm:$0xff]
  %v3713 = vld [vmem:[#allocation3 + $0x1a8] sm:$0xff]
  %v3714 = vld [vmem:[#allocation3 + $0x1b0] sm:$0xff]
  %v3715 = vld [vmem:[#allocation3 + $0x1b8] sm:$0xff]
  %v3716 = vld [vmem:[#allocation3 + $0x1c0] sm:$0xff]
  %v3717 = vld [vmem:[#allocation3 + $0x1c8] sm:$0xff]
  %v3718 = vld [vmem:[#allocation3 + $0x1d0] sm:$0xff]
  %v3719 = vld [vmem:[#allocation3 + $0x1d8] sm:$0xff]
  %v3720 = vld [vmem:[#allocation3 + $0x1e0] sm:$0xff]
  %v3721 = vld [vmem:[#allocation3 + $0x1e8] sm:$0xff]
  %v3722 = vld [vmem:[#allocation3 + $0x1f0] sm:$0xff]
  %v3723 = vld [vmem:[#allocation3 + $0x1f8] sm:$0xff]
  %v3724 = vld [vmem:[#allocation3 + $0x200] sm:$0xff]
  %v3725 = vld [vmem:[#allocation3 + $0x208] sm:$0xff]
  %v3726 = vld [vmem:[#allocation3 + $0x210] sm:$0xff]
  %v3727 = vld [vmem:[#allocation3 + $0x218] sm:$0xff]
  %v3728 = vld [vmem:[#allocation3 + $0x220] sm:$0xff]
  %v3729 = vld [vmem:[#allocation3 + $0x228] sm:$0xff]
  %v3730 = vld [vmem:[#allocation3 + $0x230] sm:$0xff]
  %v3731 = vld [vmem:[#allocation3 + $0x238] sm:$0xff]
  %v3732 = vld [vmem:[#allocation3 + $0x240] sm:$0xff]
  %v3733 = vld [vmem:[#allocation3 + $0x248] sm:$0xff]
  %v3734 = vld [vmem:[#allocation3 + $0x250] sm:$0xff]
  %v3735 = vld [vmem:[#allocation3 + $0x258] sm:$0xff]
  %v3736 = vld [vmem:[#allocation3 + $0x260] sm:$0xff]
  %v3737 = vld [vmem:[#allocation3 + $0x268] sm:$0xff]
  %v3738 = vld [vmem:[#allocation3 + $0x270] sm:$0xff]
  %v3739 = vld [vmem:[#allocation3 + $0x278] sm:$0xff]
  %v3740 = vld [vmem:[#allocation3 + $0x280] sm:$0xff]
  %v3741 = vld [vmem:[#allocation3 + $0x288] sm:$0xff]
  %v3742 = vld [vmem:[#allocation3 + $0x290] sm:$0xff]
  %v3743 = vld [vmem:[#allocation3 + $0x298] sm:$0xff]
  %v3744 = vld [vmem:[#allocation3 + $0x2a0] sm:$0xff]
  %v3745 = vld [vmem:[#allocation3 + $0x2a8] sm:$0xff]
  %v3746 = vld [vmem:[#allocation3 + $0x2b0] sm:$0xff]
  %v3747 = vld [vmem:[#allocation3 + $0x2b8] sm:$0xff]
  %v3748 = vld [vmem:[#allocation3 + $0x2c0] sm:$0xff]
  %v3749 = vld [vmem:[#allocation3 + $0x2c8] sm:$0xff]
  %v3750 = vld [vmem:[#allocation3 + $0x2d0] sm:$0xff]
  %v3751 = vld [vmem:[#allocation3 + $0x2d8] sm:$0xff]
  %v3752 = vld [vmem:[#allocation3 + $0x2e0] sm:$0xff]
  %v3753 = vld [vmem:[#allocation3 + $0x2e8] sm:$0xff]
  %v3754 = vld [vmem:[#allocation3 + $0x2f0] sm:$0xff]
  %v3755 = vld [vmem:[#allocation3 + $0x2f8] sm:$0xff]
  %v3756 = vld [vmem:[#allocation3 + $0x300] sm:$0xff]
  %v3757 = vld [vmem:[#allocation3 + $0x308] sm:$0xff]
  %v3758 = vld [vmem:[#allocation3 + $0x310] sm:$0xff]
  %v3759 = vld [vmem:[#allocation3 + $0x318] sm:$0xff]
  %v3760 = vld [vmem:[#allocation3 + $0x320] sm:$0xff]
  %v3761 = vld [vmem:[#allocation3 + $0x328] sm:$0xff]
  %v3762 = vld [vmem:[#allocation3 + $0x330] sm:$0xff]
  %v3763 = vld [vmem:[#allocation3 + $0x338] sm:$0xff]
  %v3764 = vld [vmem:[#allocation3 + $0x340] sm:$0xff]
  %v3765 = vld [vmem:[#allocation3 + $0x348] sm:$0xff]
  %v3766 = vld [vmem:[#allocation3 + $0x350] sm:$0xff]
  %v3767 = vld [vmem:[#allocation3 + $0x358] sm:$0xff]
  %v3768 = vld [vmem:[#allocation3 + $0x360] sm:$0xff]
  %v3769 = vld [vmem:[#allocation3 + $0x368] sm:$0xff]
  %v3770 = vld [vmem:[#allocation3 + $0x370] sm:$0xff]
  %v3771 = vld [vmem:[#allocation3 + $0x378] sm:$0xff]
  %v3772 = vld [vmem:[#allocation3 + $0x380] sm:$0xff]
  %v3773 = vld [vmem:[#allocation3 + $0x388] sm:$0xff]
  %v3774 = vld [vmem:[#allocation3 + $0x390] sm:$0xff]
  %v3775 = vld [vmem:[#allocation3 + $0x398] sm:$0xff]
  %v3776 = vld [vmem:[#allocation3 + $0x3a0] sm:$0xff]
  %v3777 = vld [vmem:[#allocation3 + $0x3a8] sm:$0xff]
  %v3778 = vld [vmem:[#allocation3 + $0x3b0] sm:$0xff]
  %v3779 = vld [vmem:[#allocation3 + $0x3b8] sm:$0xff]
  %v3780 = vld [vmem:[#allocation3 + $0x3c0] sm:$0xff]
  %v3781 = vld [vmem:[#allocation3 + $0x3c8] sm:$0xff]
  %v3782 = vld [vmem:[#allocation3 + $0x3d0] sm:$0xff]
  %v3783 = vld [vmem:[#allocation3 + $0x3d8] sm:$0xff]
  %v3784 = vld [vmem:[#allocation3 + $0x3e0] sm:$0xff]
  %v3785 = vld [vmem:[#allocation3 + $0x3e8] sm:$0xff]
  %v3786 = vld [vmem:[#allocation3 + $0x3f0] sm:$0xff]
  %v3787 = vld [vmem:[#allocation3 + $0x3f8] sm:$0xff]
  %v3788 = vld [vmem:[#allocation8] sm:$0xff]
  %v3789 = vld [vmem:[#allocation8 + $0x8] sm:$0xff]
  %v3790 = vld [vmem:[#allocation8 + $0x10] sm:$0xff]
  %v3791 = vld [vmem:[#allocation8 + $0x18] sm:$0xff]
  %v3792 = vld [vmem:[#allocation8 + $0x20] sm:$0xff]
  %v3793 = vld [vmem:[#allocation8 + $0x28] sm:$0xff]
  %v3794 = vld [vmem:[#allocation8 + $0x30] sm:$0xff]
  %v3795 = vld [vmem:[#allocation8 + $0x38] sm:$0xff]
  %v3796 = vtanh.pop %v3788
  %v3797 = vtanh.pop %v3789
  %v3798 = vtanh.pop %v3790
  %v3799 = vtanh.pop %v3791
  %v3800 = vtanh.pop %v3792
  %v3801 = vtanh.pop %v3793
  %v3802 = vtanh.pop %v3794
  %v3803 = vtanh.pop %v3795
  %v3804 = vmul.f32 %v3796, 0.5
  %v3805 = vmul.f32 %v3797, 0.5
  %v3806 = vmul.f32 %v3798, 0.5
  %v3807 = vmul.f32 %v3799, 0.5
  %v3808 = vmul.f32 %v3800, 0.5
  %v3809 = vmul.f32 %v3801, 0.5
  %v3810 = vadd.f32 %v3804, 0.5
  %v3811 = vadd.f32 %v3805, 0.5
  %v3812 = vadd.f32 %v3806, 0.5
  %v3813 = vadd.f32 %v3807, 0.5
  %v3814 = vadd.f32 %v3808, 0.5
  %v3815 = vadd.f32 %v3809, 0.5
  %v3816 = vmul.f32 %v3812, 0.0
  %v3817 = vmul.f32 %v3813, 0.0
  %v3818 = vmul.f32 %v3810, %v3802
  %v3819 = vmul.f32 %v3811, %v3803
  %v3820 = vadd.f32 %v3816, %v3818
  %v3821 = vadd.f32 %v3817, %v3819
  %v3822 = vtanh.pop %v3820
  %v3823 = vtanh.pop %v3821
  %v3824 = vmul.f32 %v3814, %v3822
  %v3825 = vmul.f32 %v3815, %v3823
  %v3826 = vpack.c.bf16 %v3825, %v3824
  %3827 = vst [vmem:[#allocation9] sm:$0xf] %v3826
  %v3829 = vrot.slane %v3826, 4
  %3831 = vst [vmem:[#allocation9 + $0x7c] sm:$0xf] %v3829
  %v3832 = vld [vmem:[#allocation8 + $0x40] sm:$0xff]
  %v3833 = vld [vmem:[#allocation8 + $0x48] sm:$0xff]
  %v3834 = vld [vmem:[#allocation8 + $0x50] sm:$0xff]
  %v3835 = vld [vmem:[#allocation8 + $0x58] sm:$0xff]
  %v3836 = vld [vmem:[#allocation8 + $0x60] sm:$0xff]
  %v3837 = vld [vmem:[#allocation8 + $0x68] sm:$0xff]
  %v3838 = vld [vmem:[#allocation8 + $0x70] sm:$0xff]
  %v3839 = vld [vmem:[#allocation8 + $0x78] sm:$0xff]
  %v3840 = vunpack.c.l.b16 %v3826
  %v3841 = vunpack.c.h.b16 %v3826
  %v3842 = vpack.c.b16 %v3840, %v3840
  %v3843 = vpack.c.b16 %v3841, %v3841
  %v3974 = vunpack.c.l.b16 %v3660
  %v3975 = vunpack.c.h.b16 %v3660
  %v3976 = vunpack.c.l.b16 %v3661
  %v3977 = vunpack.c.h.b16 %v3661
  %v3978 = vunpack.c.l.b16 %v3662
  %v3979 = vunpack.c.h.b16 %v3662
  %v3980 = vunpack.c.l.b16 %v3663
  %v3981 = vunpack.c.h.b16 %v3663
  %v3982 = vunpack.c.l.b16 %v3664
  %v3983 = vunpack.c.h.b16 %v3664
  %v3984 = vunpack.c.l.b16 %v3665
  %v3985 = vunpack.c.h.b16 %v3665
  %v3986 = vunpack.c.l.b16 %v3666
  %v3987 = vunpack.c.h.b16 %v3666
  %v3988 = vunpack.c.l.b16 %v3667
  %v3989 = vunpack.c.h.b16 %v3667
  %v3990 = vunpack.c.l.b16 %v3668
  %v3991 = vunpack.c.h.b16 %v3668
  %v3992 = vunpack.c.l.b16 %v3669
  %v3993 = vunpack.c.h.b16 %v3669
  %v3994 = vunpack.c.l.b16 %v3670
  %v3995 = vunpack.c.h.b16 %v3670
  %v3996 = vunpack.c.l.b16 %v3671
  %v3997 = vunpack.c.h.b16 %v3671
  %v3998 = vunpack.c.l.b16 %v3672
  %v3999 = vunpack.c.h.b16 %v3672
  %v4000 = vunpack.c.l.b16 %v3673
  %v4001 = vunpack.c.h.b16 %v3673
  %v4002 = vunpack.c.l.b16 %v3674
  %v4003 = vunpack.c.h.b16 %v3674
  %v4004 = vunpack.c.l.b16 %v3675
  %v4005 = vunpack.c.h.b16 %v3675
  %v4006 = vunpack.c.l.b16 %v3676
  %v4007 = vunpack.c.h.b16 %v3676
  %v4008 = vunpack.c.l.b16 %v3677
  %v4009 = vunpack.c.h.b16 %v3677
  %v4010 = vunpack.c.l.b16 %v3678
  %v4011 = vunpack.c.h.b16 %v3678
  %v4012 = vunpack.c.l.b16 %v3679
  %v4013 = vunpack.c.h.b16 %v3679
  %v4014 = vunpack.c.l.b16 %v3680
  %v4015 = vunpack.c.h.b16 %v3680
  %v4016 = vunpack.c.l.b16 %v3681
  %v4017 = vunpack.c.h.b16 %v3681
  %v4018 = vunpack.c.l.b16 %v3682
  %v4019 = vunpack.c.h.b16 %v3682
  %v4020 = vunpack.c.l.b16 %v3683
  %v4021 = vunpack.c.h.b16 %v3683
  %v4022 = vunpack.c.l.b16 %v3684
  %v4023 = vunpack.c.h.b16 %v3684
  %v4024 = vunpack.c.l.b16 %v3685
  %v4025 = vunpack.c.h.b16 %v3685
  %v4026 = vunpack.c.l.b16 %v3686
  %v4027 = vunpack.c.h.b16 %v3686
  %v4028 = vunpack.c.l.b16 %v3687
  %v4029 = vunpack.c.h.b16 %v3687
  %v4030 = vunpack.c.l.b16 %v3688
  %v4031 = vunpack.c.h.b16 %v3688
  %v4032 = vunpack.c.l.b16 %v3689
  %v4033 = vunpack.c.h.b16 %v3689
  %v4034 = vunpack.c.l.b16 %v3690
  %v4035 = vunpack.c.h.b16 %v3690
  %v4036 = vunpack.c.l.b16 %v3691
  %v4037 = vunpack.c.h.b16 %v3691
  %v4038 = vunpack.c.l.b16 %v3692
  %v4039 = vunpack.c.h.b16 %v3692
  %v4040 = vunpack.c.l.b16 %v3693
  %v4041 = vunpack.c.h.b16 %v3693
  %v4042 = vunpack.c.l.b16 %v3694
  %v4043 = vunpack.c.h.b16 %v3694
  %v4044 = vunpack.c.l.b16 %v3695
  %v4045 = vunpack.c.h.b16 %v3695
  %v4046 = vunpack.c.l.b16 %v3696
  %v4047 = vunpack.c.h.b16 %v3696
  %v4048 = vunpack.c.l.b16 %v3697
  %v4049 = vunpack.c.h.b16 %v3697
  %v4050 = vunpack.c.l.b16 %v3698
  %v4051 = vunpack.c.h.b16 %v3698
  %v4052 = vunpack.c.l.b16 %v3699
  %v4053 = vunpack.c.h.b16 %v3699
  %v4054 = vunpack.c.l.b16 %v3700
  %v4055 = vunpack.c.h.b16 %v3700
  %v4056 = vunpack.c.l.b16 %v3701
  %v4057 = vunpack.c.h.b16 %v3701
  %v4058 = vunpack.c.l.b16 %v3702
  %v4059 = vunpack.c.h.b16 %v3702
  %v4060 = vunpack.c.l.b16 %v3703
  %v4061 = vunpack.c.h.b16 %v3703
  %v4062 = vunpack.c.l.b16 %v3704
  %v4063 = vunpack.c.h.b16 %v3704
  %v4064 = vunpack.c.l.b16 %v3705
  %v4065 = vunpack.c.h.b16 %v3705
  %v4066 = vunpack.c.l.b16 %v3706
  %v4067 = vunpack.c.h.b16 %v3706
  %v4068 = vunpack.c.l.b16 %v3707
  %v4069 = vunpack.c.h.b16 %v3707
  %v4070 = vunpack.c.l.b16 %v3708
  %v4071 = vunpack.c.h.b16 %v3708
  %v4072 = vunpack.c.l.b16 %v3709
  %v4073 = vunpack.c.h.b16 %v3709
  %v4074 = vunpack.c.l.b16 %v3710
  %v4075 = vunpack.c.h.b16 %v3710
  %v4076 = vunpack.c.l.b16 %v3711
  %v4077 = vunpack.c.h.b16 %v3711
  %v4078 = vunpack.c.l.b16 %v3712
  %v4079 = vunpack.c.h.b16 %v3712
  %v4080 = vunpack.c.l.b16 %v3713
  %v4081 = vunpack.c.h.b16 %v3713
  %v4082 = vunpack.c.l.b16 %v3714
  %v4083 = vunpack.c.h.b16 %v3714
  %v4084 = vunpack.c.l.b16 %v3715
  %v4085 = vunpack.c.h.b16 %v3715
  %v4086 = vunpack.c.l.b16 %v3716
  %v4087 = vunpack.c.h.b16 %v3716
  %v4088 = vunpack.c.l.b16 %v3717
  %v4089 = vunpack.c.h.b16 %v3717
  %v4090 = vunpack.c.l.b16 %v3718
  %v4091 = vunpack.c.h.b16 %v3718
  %v4092 = vunpack.c.l.b16 %v3719
  %v4093 = vunpack.c.h.b16 %v3719
  %v4094 = vunpack.c.l.b16 %v3720
  %v4095 = vunpack.c.h.b16 %v3720
  %v4096 = vunpack.c.l.b16 %v3721
  %v4097 = vunpack.c.h.b16 %v3721
  %v4098 = vunpack.c.l.b16 %v3722
  %v4099 = vunpack.c.h.b16 %v3722
  %v4100 = vunpack.c.l.b16 %v3723
  %v4101 = vunpack.c.h.b16 %v3723
  %v4102 = vunpack.c.l.b16 %v3724
  %v4103 = vunpack.c.h.b16 %v3724
  %v4104 = vunpack.c.l.b16 %v3725
  %v4105 = vunpack.c.h.b16 %v3725
  %v4106 = vunpack.c.l.b16 %v3726
  %v4107 = vunpack.c.h.b16 %v3726
  %v4108 = vunpack.c.l.b16 %v3727
  %v4109 = vunpack.c.h.b16 %v3727
  %v4110 = vunpack.c.l.b16 %v3728
  %v4111 = vunpack.c.h.b16 %v3728
  %v4112 = vunpack.c.l.b16 %v3729
  %v4113 = vunpack.c.h.b16 %v3729
  %v4114 = vunpack.c.l.b16 %v3730
  %v4115 = vunpack.c.h.b16 %v3730
  %v4116 = vunpack.c.l.b16 %v3731
  %v4117 = vunpack.c.h.b16 %v3731
  %v4118 = vunpack.c.l.b16 %v3732
  %v4119 = vunpack.c.h.b16 %v3732
  %v4120 = vunpack.c.l.b16 %v3733
  %v4121 = vunpack.c.h.b16 %v3733
  %v4122 = vunpack.c.l.b16 %v3734
  %v4123 = vunpack.c.h.b16 %v3734
  %v4124 = vunpack.c.l.b16 %v3735
  %v4125 = vunpack.c.h.b16 %v3735
  %v4126 = vunpack.c.l.b16 %v3736
  %v4127 = vunpack.c.h.b16 %v3736
  %v4128 = vunpack.c.l.b16 %v3737
  %v4129 = vunpack.c.h.b16 %v3737
  %v4130 = vunpack.c.l.b16 %v3738
  %v4131 = vunpack.c.h.b16 %v3738
  %v4132 = vunpack.c.l.b16 %v3739
  %v4133 = vunpack.c.h.b16 %v3739
  %v4134 = vunpack.c.l.b16 %v3740
  %v4135 = vunpack.c.h.b16 %v3740
  %v4136 = vunpack.c.l.b16 %v3741
  %v4137 = vunpack.c.h.b16 %v3741
  %v4138 = vunpack.c.l.b16 %v3742
  %v4139 = vunpack.c.h.b16 %v3742
  %v4140 = vunpack.c.l.b16 %v3743
  %v4141 = vunpack.c.h.b16 %v3743
  %v4142 = vunpack.c.l.b16 %v3744
  %v4143 = vunpack.c.h.b16 %v3744
  %v4144 = vunpack.c.l.b16 %v3745
  %v4145 = vunpack.c.h.b16 %v3745
  %v4146 = vunpack.c.l.b16 %v3746
  %v4147 = vunpack.c.h.b16 %v3746
  %v4148 = vunpack.c.l.b16 %v3747
  %v4149 = vunpack.c.h.b16 %v3747
  %v4150 = vunpack.c.l.b16 %v3748
  %v4151 = vunpack.c.h.b16 %v3748
  %v4152 = vunpack.c.l.b16 %v3749
  %v4153 = vunpack.c.h.b16 %v3749
  %v4154 = vunpack.c.l.b16 %v3750
  %v4155 = vunpack.c.h.b16 %v3750
  %v4156 = vunpack.c.l.b16 %v3751
  %v4157 = vunpack.c.h.b16 %v3751
  %v4158 = vunpack.c.l.b16 %v3752
  %v4159 = vunpack.c.h.b16 %v3752
  %v4160 = vunpack.c.l.b16 %v3753
  %v4161 = vunpack.c.h.b16 %v3753
  %v4162 = vunpack.c.l.b16 %v3754
  %v4163 = vunpack.c.h.b16 %v3754
  %v4164 = vunpack.c.l.b16 %v3755
  %v4165 = vunpack.c.h.b16 %v3755
  %v4166 = vunpack.c.l.b16 %v3756
  %v4167 = vunpack.c.h.b16 %v3756
  %v4168 = vunpack.c.l.b16 %v3757
  %v4169 = vunpack.c.h.b16 %v3757
  %v4170 = vunpack.c.l.b16 %v3758
  %v4171 = vunpack.c.h.b16 %v3758
  %v4172 = vunpack.c.l.b16 %v3759
  %v4173 = vunpack.c.h.b16 %v3759
  %v4174 = vunpack.c.l.b16 %v3760
  %v4175 = vunpack.c.h.b16 %v3760
  %v4176 = vunpack.c.l.b16 %v3761
  %v4177 = vunpack.c.h.b16 %v3761
  %v4178 = vunpack.c.l.b16 %v3762
  %v4179 = vunpack.c.h.b16 %v3762
  %v4180 = vunpack.c.l.b16 %v3763
  %v4181 = vunpack.c.h.b16 %v3763
  %v4182 = vunpack.c.l.b16 %v3764
  %v4183 = vunpack.c.h.b16 %v3764
  %v4184 = vunpack.c.l.b16 %v3765
  %v4185 = vunpack.c.h.b16 %v3765
  %v4186 = vunpack.c.l.b16 %v3766
  %v4187 = vunpack.c.h.b16 %v3766
  %v4188 = vunpack.c.l.b16 %v3767
  %v4189 = vunpack.c.h.b16 %v3767
  %v4190 = vunpack.c.l.b16 %v3768
  %v4191 = vunpack.c.h.b16 %v3768
  %v4192 = vunpack.c.l.b16 %v3769
  %v4193 = vunpack.c.h.b16 %v3769
  %v4194 = vunpack.c.l.b16 %v3770
  %v4195 = vunpack.c.h.b16 %v3770
  %v4196 = vunpack.c.l.b16 %v3771
  %v4197 = vunpack.c.h.b16 %v3771
  %v4198 = vunpack.c.l.b16 %v3772
  %v4199 = vunpack.c.h.b16 %v3772
  %v4200 = vunpack.c.l.b16 %v3773
  %v4201 = vunpack.c.h.b16 %v3773
  %v4202 = vunpack.c.l.b16 %v3774
  %v4203 = vunpack.c.h.b16 %v3774
  %v4204 = vunpack.c.l.b16 %v3775
  %v4205 = vunpack.c.h.b16 %v3775
  %v4206 = vunpack.c.l.b16 %v3776
  %v4207 = vunpack.c.h.b16 %v3776
  %v4208 = vunpack.c.l.b16 %v3777
  %v4209 = vunpack.c.h.b16 %v3777
  %v4210 = vunpack.c.l.b16 %v3778
  %v4211 = vunpack.c.h.b16 %v3778
  %v4212 = vunpack.c.l.b16 %v3779
  %v4213 = vunpack.c.h.b16 %v3779
  %v4214 = vunpack.c.l.b16 %v3780
  %v4215 = vunpack.c.h.b16 %v3780
  %v4216 = vunpack.c.l.b16 %v3781
  %v4217 = vunpack.c.h.b16 %v3781
  %v4218 = vunpack.c.l.b16 %v3782
  %v4219 = vunpack.c.h.b16 %v3782
  %v4220 = vunpack.c.l.b16 %v3783
  %v4221 = vunpack.c.h.b16 %v3783
  %v4222 = vunpack.c.l.b16 %v3784
  %v4223 = vunpack.c.h.b16 %v3784
  %v4224 = vunpack.c.l.b16 %v3785
  %v4225 = vunpack.c.h.b16 %v3785
  %v4226 = vunpack.c.l.b16 %v3786
  %v4227 = vunpack.c.h.b16 %v3786
  %v4228 = vunpack.c.l.b16 %v3787
  %v4229 = vunpack.c.h.b16 %v3787
  %v4230 = vpack.c.b16 %v3982, %v3974
  %v4231 = vpack.c.b16 %v3983, %v3975
  %v4232 = vpack.c.b16 %v3984, %v3976
  %v4233 = vpack.c.b16 %v3985, %v3977
  %v4234 = vpack.c.b16 %v3986, %v3978
  %v4235 = vpack.c.b16 %v3987, %v3979
  %v4236 = vpack.c.b16 %v3988, %v3980
  %v4237 = vpack.c.b16 %v3989, %v3981
  %v4238 = vpack.c.b16 %v3998, %v3990
  %v4239 = vpack.c.b16 %v3999, %v3991
  %v4240 = vpack.c.b16 %v4000, %v3992
  %v4241 = vpack.c.b16 %v4001, %v3993
  %v4242 = vpack.c.b16 %v4002, %v3994
  %v4243 = vpack.c.b16 %v4003, %v3995
  %v4244 = vpack.c.b16 %v4004, %v3996
  %v4245 = vpack.c.b16 %v4005, %v3997
  %v4246 = vpack.c.b16 %v4014, %v4006
  %v4247 = vpack.c.b16 %v4015, %v4007
  %v4248 = vpack.c.b16 %v4016, %v4008
  %v4249 = vpack.c.b16 %v4017, %v4009
  %v4250 = vpack.c.b16 %v4018, %v4010
  %v4251 = vpack.c.b16 %v4019, %v4011
  %v4252 = vpack.c.b16 %v4020, %v4012
  %v4253 = vpack.c.b16 %v4021, %v4013
  %v4254 = vpack.c.b16 %v4030, %v4022
  %v4255 = vpack.c.b16 %v4031, %v4023
  %v4256 = vpack.c.b16 %v4032, %v4024
  %v4257 = vpack.c.b16 %v4033, %v4025
  %v4258 = vpack.c.b16 %v4034, %v4026
  %v4259 = vpack.c.b16 %v4035, %v4027
  %v4260 = vpack.c.b16 %v4036, %v4028
  %v4261 = vpack.c.b16 %v4037, %v4029
  %v4262 = vpack.c.b16 %v4046, %v4038
  %v4263 = vpack.c.b16 %v4047, %v4039
  %v4264 = vpack.c.b16 %v4048, %v4040
  %v4265 = vpack.c.b16 %v4049, %v4041
  %v4266 = vpack.c.b16 %v4050, %v4042
  %v4267 = vpack.c.b16 %v4051, %v4043
  %v4268 = vpack.c.b16 %v4052, %v4044
  %v4269 = vpack.c.b16 %v4053, %v4045
  %v4270 = vpack.c.b16 %v4062, %v4054
  %v4271 = vpack.c.b16 %v4063, %v4055
  %v4272 = vpack.c.b16 %v4064, %v4056
  %v4273 = vpack.c.b16 %v4065, %v4057
  %v4274 = vpack.c.b16 %v4066, %v4058
  %v4275 = vpack.c.b16 %v4067, %v4059
  %v4276 = vpack.c.b16 %v4068, %v4060
  %v4277 = vpack.c.b16 %v4069, %v4061
  %v4278 = vpack.c.b16 %v4078, %v4070
  %v4279 = vpack.c.b16 %v4079, %v4071
  %v4280 = vpack.c.b16 %v4080, %v4072
  %v4281 = vpack.c.b16 %v4081, %v4073
  %v4282 = vpack.c.b16 %v4082, %v4074
  %v4283 = vpack.c.b16 %v4083, %v4075
  %v4284 = vpack.c.b16 %v4084, %v4076
  %v4285 = vpack.c.b16 %v4085, %v4077
  %v4286 = vpack.c.b16 %v4094, %v4086
  %v4287 = vpack.c.b16 %v4095, %v4087
  %v4288 = vpack.c.b16 %v4096, %v4088
  %v4289 = vpack.c.b16 %v4097, %v4089
  %v4290 = vpack.c.b16 %v4098, %v4090
  %v4291 = vpack.c.b16 %v4099, %v4091
  %v4292 = vpack.c.b16 %v4100, %v4092
  %v4293 = vpack.c.b16 %v4101, %v4093
  %v4294 = vpack.c.b16 %v4110, %v4102
  %v4295 = vpack.c.b16 %v4111, %v4103
  %v4296 = vpack.c.b16 %v4112, %v4104
  %v4297 = vpack.c.b16 %v4113, %v4105
  %v4298 = vpack.c.b16 %v4114, %v4106
  %v4299 = vpack.c.b16 %v4115, %v4107
  %v4300 = vpack.c.b16 %v4116, %v4108
  %v4301 = vpack.c.b16 %v4117, %v4109
  %v4302 = vpack.c.b16 %v4126, %v4118
  %v4303 = vpack.c.b16 %v4127, %v4119
  %v4304 = vpack.c.b16 %v4128, %v4120
  %v4305 = vpack.c.b16 %v4129, %v4121
  %v4306 = vpack.c.b16 %v4130, %v4122
  %v4307 = vpack.c.b16 %v4131, %v4123
  %v4308 = vpack.c.b16 %v4132, %v4124
  %v4309 = vpack.c.b16 %v4133, %v4125
  %v4310 = vpack.c.b16 %v4142, %v4134
  %v4311 = vpack.c.b16 %v4143, %v4135
  %v4312 = vpack.c.b16 %v4144, %v4136
  %v4313 = vpack.c.b16 %v4145, %v4137
  %v4314 = vpack.c.b16 %v4146, %v4138
  %v4315 = vpack.c.b16 %v4147, %v4139
  %v4316 = vpack.c.b16 %v4148, %v4140
  %v4317 = vpack.c.b16 %v4149, %v4141
  %v4318 = vpack.c.b16 %v4158, %v4150
  %v4319 = vpack.c.b16 %v4159, %v4151
  %v4320 = vpack.c.b16 %v4160, %v4152
  %v4321 = vpack.c.b16 %v4161, %v4153
  %v4322 = vpack.c.b16 %v4162, %v4154
  %v4323 = vpack.c.b16 %v4163, %v4155
  %v4324 = vpack.c.b16 %v4164, %v4156
  %v4325 = vpack.c.b16 %v4165, %v4157
  %v4326 = vpack.c.b16 %v4174, %v4166
  %v4327 = vpack.c.b16 %v4175, %v4167
  %v4328 = vpack.c.b16 %v4176, %v4168
  %v4329 = vpack.c.b16 %v4177, %v4169
  %v4330 = vpack.c.b16 %v4178, %v4170
  %v4331 = vpack.c.b16 %v4179, %v4171
  %v4332 = vpack.c.b16 %v4180, %v4172
  %v4333 = vpack.c.b16 %v4181, %v4173
  %v4334 = vpack.c.b16 %v4190, %v4182
  %v4335 = vpack.c.b16 %v4191, %v4183
  %v4336 = vpack.c.b16 %v4192, %v4184
  %v4337 = vpack.c.b16 %v4193, %v4185
  %v4338 = vpack.c.b16 %v4194, %v4186
  %v4339 = vpack.c.b16 %v4195, %v4187
  %v4340 = vpack.c.b16 %v4196, %v4188
  %v4341 = vpack.c.b16 %v4197, %v4189
  %v4342 = vpack.c.b16 %v4206, %v4198
  %v4343 = vpack.c.b16 %v4207, %v4199
  %v4344 = vpack.c.b16 %v4208, %v4200
  %v4345 = vpack.c.b16 %v4209, %v4201
  %v4346 = vpack.c.b16 %v4210, %v4202
  %v4347 = vpack.c.b16 %v4211, %v4203
  %v4348 = vpack.c.b16 %v4212, %v4204
  %v4349 = vpack.c.b16 %v4213, %v4205
  %v4350 = vpack.c.b16 %v4222, %v4214
  %v4351 = vpack.c.b16 %v4223, %v4215
  %v4352 = vpack.c.b16 %v4224, %v4216
  %v4353 = vpack.c.b16 %v4225, %v4217
  %v4354 = vpack.c.b16 %v4226, %v4218
  %v4355 = vpack.c.b16 %v4227, %v4219
  %v4356 = vpack.c.b16 %v4228, %v4220
  %v4357 = vpack.c.b16 %v4229, %v4221
  %4486 = vmatpush.bf16.msra.mxu0 %v4286
  %4487 = vmatpush.bf16.msra.mxu0 %v4278
  %4488 = vmatpush.bf16.msra.mxu0 %v4270
  %4489 = vmatpush.bf16.msra.mxu0 %v4262
  %4490 = vmatpush.bf16.msra.mxu0 %v4254
  %4491 = vmatpush.bf16.msra.mxu0 %v4246
  %4492 = vmatpush.bf16.msra.mxu0 %v4238
  %4493 = vmatpush.bf16.msra.mxu0 %v4230
  %4494 = vmatmul.bf16.gmra.mxu0 %v3842
  %v4495 = vpop.f32.mrf.mxu0
  %v4496 = vadd.f32 0.0, %v4495
  %v4497 = vpop.f32.mrf.mxu0
  %4498 = vdwg.mxu0
  %4499 = vmatpush.bf16.msra.mxu0 %v4350
  %4500 = vmatpush.bf16.msra.mxu0 %v4342
  %4501 = vmatpush.bf16.msra.mxu0 %v4334
  %4502 = vmatpush.bf16.msra.mxu0 %v4326
  %4503 = vmatpush.bf16.msra.mxu0 %v4318
  %4504 = vmatpush.bf16.msra.mxu0 %v4310
  %4505 = vmatpush.bf16.msra.mxu0 %v4302
  %4506 = vmatpush.bf16.msra.mxu0 %v4294
  %4507 = vmatmul.bf16.gmra.mxu0 %v3843
  %v4508 = vpop.f32.mrf.mxu0
  %v4509 = vadd.f32 %v4496, %v4508
  %v4510 = vpop.f32.mrf.mxu0
  %4511 = vdwg.mxu0
  %4512 = vmatpush.bf16.msra.mxu0 %v4287
  %4513 = vmatpush.bf16.msra.mxu0 %v4279
  %4514 = vmatpush.bf16.msra.mxu0 %v4271
  %4515 = vmatpush.bf16.msra.mxu0 %v4263
  %4516 = vmatpush.bf16.msra.mxu0 %v4255
  %4517 = vmatpush.bf16.msra.mxu0 %v4247
  %4518 = vmatpush.bf16.msra.mxu0 %v4239
  %4519 = vmatpush.bf16.msra.mxu0 %v4231
  %4520 = vmatmul.bf16.gmra.mxu0 %v3842
  %v4521 = vpop.f32.mrf.mxu0
  %v4522 = vadd.f32 0.0, %v4521
  %v4523 = vpop.f32.mrf.mxu0
  %4524 = vdwg.mxu0
  %4525 = vmatpush.bf16.msra.mxu0 %v4351
  %4526 = vmatpush.bf16.msra.mxu0 %v4343
  %4527 = vmatpush.bf16.msra.mxu0 %v4335
  %4528 = vmatpush.bf16.msra.mxu0 %v4327
  %4529 = vmatpush.bf16.msra.mxu0 %v4319
  %4530 = vmatpush.bf16.msra.mxu0 %v4311
  %4531 = vmatpush.bf16.msra.mxu0 %v4303
  %4532 = vmatpush.bf16.msra.mxu0 %v4295
  %4533 = vmatmul.bf16.gmra.mxu0 %v3843
  %v4534 = vpop.f32.mrf.mxu0
  %v4535 = vadd.f32 %v4522, %v4534
  %v4536 = vpop.f32.mrf.mxu0
  %4537 = vdwg.mxu0
  %4538 = vmatpush.bf16.msra.mxu0 %v4288
  %4539 = vmatpush.bf16.msra.mxu0 %v4280
  %4540 = vmatpush.bf16.msra.mxu0 %v4272
  %4541 = vmatpush.bf16.msra.mxu0 %v4264
  %4542 = vmatpush.bf16.msra.mxu0 %v4256
  %4543 = vmatpush.bf16.msra.mxu0 %v4248
  %4544 = vmatpush.bf16.msra.mxu0 %v4240
  %4545 = vmatpush.bf16.msra.mxu0 %v4232
  %4546 = vmatmul.bf16.gmra.mxu0 %v3842
  %v4547 = vpop.f32.mrf.mxu0
  %v4548 = vadd.f32 0.0, %v4547
  %v4549 = vpop.f32.mrf.mxu0
  %4550 = vdwg.mxu0
  %4551 = vmatpush.bf16.msra.mxu0 %v4352
  %4552 = vmatpush.bf16.msra.mxu0 %v4344
  %4553 = vmatpush.bf16.msra.mxu0 %v4336
  %4554 = vmatpush.bf16.msra.mxu0 %v4328
  %4555 = vmatpush.bf16.msra.mxu0 %v4320
  %4556 = vmatpush.bf16.msra.mxu0 %v4312
  %4557 = vmatpush.bf16.msra.mxu0 %v4304
  %4558 = vmatpush.bf16.msra.mxu0 %v4296
  %4559 = vmatmul.bf16.gmra.mxu0 %v3843
  %v4560 = vpop.f32.mrf.mxu0
  %v4561 = vadd.f32 %v4548, %v4560
  %v4562 = vpop.f32.mrf.mxu0
  %4563 = vdwg.mxu0
  %4564 = vmatpush.bf16.msra.mxu0 %v4289
  %4565 = vmatpush.bf16.msra.mxu0 %v4281
  %4566 = vmatpush.bf16.msra.mxu0 %v4273
  %4567 = vmatpush.bf16.msra.mxu0 %v4265
  %4568 = vmatpush.bf16.msra.mxu0 %v4257
  %4569 = vmatpush.bf16.msra.mxu0 %v4249
  %4570 = vmatpush.bf16.msra.mxu0 %v4241
  %4571 = vmatpush.bf16.msra.mxu0 %v4233
  %4572 = vmatmul.bf16.gmra.mxu0 %v3842
  %v4573 = vpop.f32.mrf.mxu0
  %v4574 = vadd.f32 0.0, %v4573
  %v4575 = vpop.f32.mrf.mxu0
  %4576 = vdwg.mxu0
  %4577 = vmatpush.bf16.msra.mxu0 %v4353
  %4578 = vmatpush.bf16.msra.mxu0 %v4345
  %4579 = vmatpush.bf16.msra.mxu0 %v4337
  %4580 = vmatpush.bf16.msra.mxu0 %v4329
  %4581 = vmatpush.bf16.msra.mxu0 %v4321
  %4582 = vmatpush.bf16.msra.mxu0 %v4313
  %4583 = vmatpush.bf16.msra.mxu0 %v4305
  %4584 = vmatpush.bf16.msra.mxu0 %v4297
  %4585 = vmatmul.bf16.gmra.mxu0 %v3843
  %v4586 = vpop.f32.mrf.mxu0
  %v4587 = vadd.f32 %v4574, %v4586
  %v4588 = vpop.f32.mrf.mxu0
  %4589 = vdwg.mxu0
  %4590 = vmatpush.bf16.msra.mxu0 %v4290
  %4591 = vmatpush.bf16.msra.mxu0 %v4282
  %4592 = vmatpush.bf16.msra.mxu0 %v4274
  %4593 = vmatpush.bf16.msra.mxu0 %v4266
  %4594 = vmatpush.bf16.msra.mxu0 %v4258
  %4595 = vmatpush.bf16.msra.mxu0 %v4250
  %4596 = vmatpush.bf16.msra.mxu0 %v4242
  %4597 = vmatpush.bf16.msra.mxu0 %v4234
  %4598 = vmatmul.bf16.gmra.mxu0 %v3842
  %v4599 = vpop.f32.mrf.mxu0
  %v4600 = vadd.f32 0.0, %v4599
  %v4601 = vpop.f32.mrf.mxu0
  %4602 = vdwg.mxu0
  %4603 = vmatpush.bf16.msra.mxu0 %v4354
  %4604 = vmatpush.bf16.msra.mxu0 %v4346
  %4605 = vmatpush.bf16.msra.mxu0 %v4338
  %4606 = vmatpush.bf16.msra.mxu0 %v4330
  %4607 = vmatpush.bf16.msra.mxu0 %v4322
  %4608 = vmatpush.bf16.msra.mxu0 %v4314
  %4609 = vmatpush.bf16.msra.mxu0 %v4306
  %4610 = vmatpush.bf16.msra.mxu0 %v4298
  %4611 = vmatmul.bf16.gmra.mxu0 %v3843
  %v4612 = vpop.f32.mrf.mxu0
  %v4613 = vadd.f32 %v4600, %v4612
  %v4614 = vpop.f32.mrf.mxu0
  %4615 = vdwg.mxu0
  %4616 = vmatpush.bf16.msra.mxu0 %v4291
  %4617 = vmatpush.bf16.msra.mxu0 %v4283
  %4618 = vmatpush.bf16.msra.mxu0 %v4275
  %4619 = vmatpush.bf16.msra.mxu0 %v4267
  %4620 = vmatpush.bf16.msra.mxu0 %v4259
  %4621 = vmatpush.bf16.msra.mxu0 %v4251
  %4622 = vmatpush.bf16.msra.mxu0 %v4243
  %4623 = vmatpush.bf16.msra.mxu0 %v4235
  %4624 = vmatmul.bf16.gmra.mxu0 %v3842
  %v4625 = vpop.f32.mrf.mxu0
  %v4626 = vadd.f32 0.0, %v4625
  %v4627 = vpop.f32.mrf.mxu0
  %4628 = vdwg.mxu0
  %4629 = vmatpush.bf16.msra.mxu0 %v4355
  %4630 = vmatpush.bf16.msra.mxu0 %v4347
  %4631 = vmatpush.bf16.msra.mxu0 %v4339
  %4632 = vmatpush.bf16.msra.mxu0 %v4331
  %4633 = vmatpush.bf16.msra.mxu0 %v4323
  %4634 = vmatpush.bf16.msra.mxu0 %v4315
  %4635 = vmatpush.bf16.msra.mxu0 %v4307
  %4636 = vmatpush.bf16.msra.mxu0 %v4299
  %4637 = vmatmul.bf16.gmra.mxu0 %v3843
  %v4638 = vpop.f32.mrf.mxu0
  %v4639 = vadd.f32 %v4626, %v4638
  %v4640 = vpop.f32.mrf.mxu0
  %4641 = vdwg.mxu0
  %4642 = vmatpush.bf16.msra.mxu0 %v4292
  %4643 = vmatpush.bf16.msra.mxu0 %v4284
  %4644 = vmatpush.bf16.msra.mxu0 %v4276
  %4645 = vmatpush.bf16.msra.mxu0 %v4268
  %4646 = vmatpush.bf16.msra.mxu0 %v4260
  %4647 = vmatpush.bf16.msra.mxu0 %v4252
  %4648 = vmatpush.bf16.msra.mxu0 %v4244
  %4649 = vmatpush.bf16.msra.mxu0 %v4236
  %4650 = vmatmul.bf16.gmra.mxu0 %v3842
  %v4651 = vpop.f32.mrf.mxu0
  %v4652 = vadd.f32 0.0, %v4651
  %v4653 = vpop.f32.mrf.mxu0
  %4654 = vdwg.mxu0
  %4655 = vmatpush.bf16.msra.mxu0 %v4356
  %4656 = vmatpush.bf16.msra.mxu0 %v4348
  %4657 = vmatpush.bf16.msra.mxu0 %v4340
  %4658 = vmatpush.bf16.msra.mxu0 %v4332
  %4659 = vmatpush.bf16.msra.mxu0 %v4324
  %4660 = vmatpush.bf16.msra.mxu0 %v4316
  %4661 = vmatpush.bf16.msra.mxu0 %v4308
  %4662 = vmatpush.bf16.msra.mxu0 %v4300
  %4663 = vmatmul.bf16.gmra.mxu0 %v3843
  %v4664 = vpop.f32.mrf.mxu0
  %v4665 = vadd.f32 %v4652, %v4664
  %v4666 = vpop.f32.mrf.mxu0
  %4667 = vdwg.mxu0
  %4668 = vmatpush.bf16.msra.mxu0 %v4293
  %4669 = vmatpush.bf16.msra.mxu0 %v4285
  %4670 = vmatpush.bf16.msra.mxu0 %v4277
  %4671 = vmatpush.bf16.msra.mxu0 %v4269
  %4672 = vmatpush.bf16.msra.mxu0 %v4261
  %4673 = vmatpush.bf16.msra.mxu0 %v4253
  %4674 = vmatpush.bf16.msra.mxu0 %v4245
  %4675 = vmatpush.bf16.msra.mxu0 %v4237
  %4676 = vmatmul.bf16.gmra.mxu0 %v3842
  %v4677 = vpop.f32.mrf.mxu0
  %v4678 = vadd.f32 0.0, %v4677
  %v4679 = vpop.f32.mrf.mxu0
  %4680 = vdwg.mxu0
  %4681 = vmatpush.bf16.msra.mxu0 %v4357
  %4682 = vmatpush.bf16.msra.mxu0 %v4349
  %4683 = vmatpush.bf16.msra.mxu0 %v4341
  %4684 = vmatpush.bf16.msra.mxu0 %v4333
  %4685 = vmatpush.bf16.msra.mxu0 %v4325
  %4686 = vmatpush.bf16.msra.mxu0 %v4317
  %4687 = vmatpush.bf16.msra.mxu0 %v4309
  %4688 = vmatpush.bf16.msra.mxu0 %v4301
  %4689 = vmatmul.bf16.gmra.mxu0 %v3843
  %v4690 = vpop.f32.mrf.mxu0
  %v4691 = vadd.f32 %v4678, %v4690
  %v4692 = vpop.f32.mrf.mxu0
  %4693 = vdwg.mxu0
  %v4694 = vadd.f32 %v3832, %v4509
  %v4695 = vadd.f32 %v3833, %v4535
  %v4696 = vadd.f32 %v3834, %v4561
  %v4697 = vadd.f32 %v3835, %v4587
  %v4698 = vadd.f32 %v3836, %v4613
  %v4699 = vadd.f32 %v3837, %v4639
  %v4700 = vadd.f32 %v3838, %v4665
  %v4701 = vadd.f32 %v3839, %v4691
  %v4702 = vtanh.pop %v4694
  %v4703 = vtanh.pop %v4695
  %v4704 = vtanh.pop %v4696
  %v4705 = vtanh.pop %v4697
  %v4706 = vtanh.pop %v4698
  %v4707 = vtanh.pop %v4699
  %v4708 = vtanh.pop %v4700
  %v4709 = vtanh.pop %v4701
  %v4710 = vmul.f32 %v4702, 0.5
  %v4711 = vmul.f32 %v4703, 0.5
  %v4712 = vmul.f32 %v4704, 0.5
  %v4713 = vmul.f32 %v4705, 0.5
  %v4714 = vmul.f32 %v4706, 0.5
  %v4715 = vmul.f32 %v4707, 0.5
  %v4716 = vadd.f32 %v4710, 0.5
  %v4717 = vadd.f32 %v4711, 0.5
  %v4718 = vadd.f32 %v4712, 0.5
  %v4719 = vadd.f32 %v4713, 0.5
  %v4720 = vadd.f32 %v4714, 0.5
  %v4721 = vadd.f32 %v4715, 0.5
  %v4722 = vmul.f32 %v4718, %v3820
  %v4723 = vmul.f32 %v4719, %v3821
  %v4724 = vmul.f32 %v4716, %v4708
  %v4725 = vmul.f32 %v4717, %v4709
  %v4726 = vadd.f32 %v4722, %v4724
  %v4727 = vadd.f32 %v4723, %v4725
  %v4728 = vtanh.pop %v4726
  %v4729 = vtanh.pop %v4727
  %v4730 = vmul.f32 %v4720, %v4728
  %v4731 = vmul.f32 %v4721, %v4729
  %v4732 = vpack.c.bf16 %v4731, %v4730
  %4733 = vst [vmem:[#allocation9 + $0x8] sm:$0xf] %v4732
  %v4735 = vrot.slane %v4732, 4
  %4737 = vst [vmem:[#allocation9 + $0x74] sm:$0xf] %v4735
  %v4738 = vld [vmem:[#allocation8 + $0x80] sm:$0xff]
  %v4739 = vld [vmem:[#allocation8 + $0x88] sm:$0xff]
  %v4740 = vld [vmem:[#allocation8 + $0x90] sm:$0xff]
  %v4741 = vld [vmem:[#allocation8 + $0x98] sm:$0xff]
  %v4742 = vld [vmem:[#allocation8 + $0xa0] sm:$0xff]
  %v4743 = vld [vmem:[#allocation8 + $0xa8] sm:$0xff]
  %v4744 = vld [vmem:[#allocation8 + $0xb0] sm:$0xff]
  %v4745 = vld [vmem:[#allocation8 + $0xb8] sm:$0xff]
  %v4746 = vunpack.c.l.b16 %v4732
  %v4747 = vunpack.c.h.b16 %v4732
  %v4748 = vpack.c.b16 %v4746, %v4746
  %v4749 = vpack.c.b16 %v4747, %v4747
  %4752 = vmatpush.bf16.msra.mxu0 %v4286
  %4753 = vmatpush.bf16.msra.mxu0 %v4278
  %4754 = vmatpush.bf16.msra.mxu0 %v4270
  %4755 = vmatpush.bf16.msra.mxu0 %v4262
  %4756 = vmatpush.bf16.msra.mxu0 %v4254
  %4757 = vmatpush.bf16.msra.mxu0 %v4246
  %4758 = vmatpush.bf16.msra.mxu0 %v4238
  %4759 = vmatpush.bf16.msra.mxu0 %v4230
  %4760 = vmatmul.bf16.gmra.mxu0 %v4748
  %v4761 = vpop.f32.mrf.mxu0
  %v4762 = vadd.f32 0.0, %v4761
  %v4763 = vpop.f32.mrf.mxu0
  %4764 = vdwg.mxu0
  %4765 = vmatpush.bf16.msra.mxu0 %v4350
  %4766 = vmatpush.bf16.msra.mxu0 %v4342
  %4767 = vmatpush.bf16.msra.mxu0 %v4334
  %4768 = vmatpush.bf16.msra.mxu0 %v4326
  %4769 = vmatpush.bf16.msra.mxu0 %v4318
  %4770 = vmatpush.bf16.msra.mxu0 %v4310
  %4771 = vmatpush.bf16.msra.mxu0 %v4302
  %4772 = vmatpush.bf16.msra.mxu0 %v4294
  %4773 = vmatmul.bf16.gmra.mxu0 %v4749
  %v4774 = vpop.f32.mrf.mxu0
  %v4775 = vadd.f32 %v4762, %v4774
  %v4776 = vpop.f32.mrf.mxu0
  %4777 = vdwg.mxu0
  %4778 = vmatpush.bf16.msra.mxu0 %v4287
  %4779 = vmatpush.bf16.msra.mxu0 %v4279
  %4780 = vmatpush.bf16.msra.mxu0 %v4271
  %4781 = vmatpush.bf16.msra.mxu0 %v4263
  %4782 = vmatpush.bf16.msra.mxu0 %v4255
  %4783 = vmatpush.bf16.msra.mxu0 %v4247
  %4784 = vmatpush.bf16.msra.mxu0 %v4239
  %4785 = vmatpush.bf16.msra.mxu0 %v4231
  %4786 = vmatmul.bf16.gmra.mxu0 %v4748
  %v4787 = vpop.f32.mrf.mxu0
  %v4788 = vadd.f32 0.0, %v4787
  %v4789 = vpop.f32.mrf.mxu0
  %4790 = vdwg.mxu0
  %4791 = vmatpush.bf16.msra.mxu0 %v4351
  %4792 = vmatpush.bf16.msra.mxu0 %v4343
  %4793 = vmatpush.bf16.msra.mxu0 %v4335
  %4794 = vmatpush.bf16.msra.mxu0 %v4327
  %4795 = vmatpush.bf16.msra.mxu0 %v4319
  %4796 = vmatpush.bf16.msra.mxu0 %v4311
  %4797 = vmatpush.bf16.msra.mxu0 %v4303
  %4798 = vmatpush.bf16.msra.mxu0 %v4295
  %4799 = vmatmul.bf16.gmra.mxu0 %v4749
  %v4800 = vpop.f32.mrf.mxu0
  %v4801 = vadd.f32 %v4788, %v4800
  %v4802 = vpop.f32.mrf.mxu0
  %4803 = vdwg.mxu0
  %4804 = vmatpush.bf16.msra.mxu0 %v4288
  %4805 = vmatpush.bf16.msra.mxu0 %v4280
  %4806 = vmatpush.bf16.msra.mxu0 %v4272
  %4807 = vmatpush.bf16.msra.mxu0 %v4264
  %4808 = vmatpush.bf16.msra.mxu0 %v4256
  %4809 = vmatpush.bf16.msra.mxu0 %v4248
  %4810 = vmatpush.bf16.msra.mxu0 %v4240
  %4811 = vmatpush.bf16.msra.mxu0 %v4232
  %4812 = vmatmul.bf16.gmra.mxu0 %v4748
  %v4813 = vpop.f32.mrf.mxu0
  %v4814 = vadd.f32 0.0, %v4813
  %v4815 = vpop.f32.mrf.mxu0
  %4816 = vdwg.mxu0
  %4817 = vmatpush.bf16.msra.mxu0 %v4352
  %4818 = vmatpush.bf16.msra.mxu0 %v4344
  %4819 = vmatpush.bf16.msra.mxu0 %v4336
  %4820 = vmatpush.bf16.msra.mxu0 %v4328
  %4821 = vmatpush.bf16.msra.mxu0 %v4320
  %4822 = vmatpush.bf16.msra.mxu0 %v4312
  %4823 = vmatpush.bf16.msra.mxu0 %v4304
  %4824 = vmatpush.bf16.msra.mxu0 %v4296
  %4825 = vmatmul.bf16.gmra.mxu0 %v4749
  %v4826 = vpop.f32.mrf.mxu0
  %v4827 = vadd.f32 %v4814, %v4826
  %v4828 = vpop.f32.mrf.mxu0
  %4829 = vdwg.mxu0
  %4830 = vmatpush.bf16.msra.mxu0 %v4289
  %4831 = vmatpush.bf16.msra.mxu0 %v4281
  %4832 = vmatpush.bf16.msra.mxu0 %v4273
  %4833 = vmatpush.bf16.msra.mxu0 %v4265
  %4834 = vmatpush.bf16.msra.mxu0 %v4257
  %4835 = vmatpush.bf16.msra.mxu0 %v4249
  %4836 = vmatpush.bf16.msra.mxu0 %v4241
  %4837 = vmatpush.bf16.msra.mxu0 %v4233
  %4838 = vmatmul.bf16.gmra.mxu0 %v4748
  %v4839 = vpop.f32.mrf.mxu0
  %v4840 = vadd.f32 0.0, %v4839
  %v4841 = vpop.f32.mrf.mxu0
  %4842 = vdwg.mxu0
  %4843 = vmatpush.bf16.msra.mxu0 %v4353
  %4844 = vmatpush.bf16.msra.mxu0 %v4345
  %4845 = vmatpush.bf16.msra.mxu0 %v4337
  %4846 = vmatpush.bf16.msra.mxu0 %v4329
  %4847 = vmatpush.bf16.msra.mxu0 %v4321
  %4848 = vmatpush.bf16.msra.mxu0 %v4313
  %4849 = vmatpush.bf16.msra.mxu0 %v4305
  %4850 = vmatpush.bf16.msra.mxu0 %v4297
  %4851 = vmatmul.bf16.gmra.mxu0 %v4749
  %v4852 = vpop.f32.mrf.mxu0
  %v4853 = vadd.f32 %v4840, %v4852
  %v4854 = vpop.f32.mrf.mxu0
  %4855 = vdwg.mxu0
  %4856 = vmatpush.bf16.msra.mxu0 %v4290
  %4857 = vmatpush.bf16.msra.mxu0 %v4282
  %4858 = vmatpush.bf16.msra.mxu0 %v4274
  %4859 = vmatpush.bf16.msra.mxu0 %v4266
  %4860 = vmatpush.bf16.msra.mxu0 %v4258
  %4861 = vmatpush.bf16.msra.mxu0 %v4250
  %4862 = vmatpush.bf16.msra.mxu0 %v4242
  %4863 = vmatpush.bf16.msra.mxu0 %v4234
  %4864 = vmatmul.bf16.gmra.mxu0 %v4748
  %v4865 = vpop.f32.mrf.mxu0
  %v4866 = vadd.f32 0.0, %v4865
  %v4867 = vpop.f32.mrf.mxu0
  %4868 = vdwg.mxu0
  %4869 = vmatpush.bf16.msra.mxu0 %v4354
  %4870 = vmatpush.bf16.msra.mxu0 %v4346
  %4871 = vmatpush.bf16.msra.mxu0 %v4338
  %4872 = vmatpush.bf16.msra.mxu0 %v4330
  %4873 = vmatpush.bf16.msra.mxu0 %v4322
  %4874 = vmatpush.bf16.msra.mxu0 %v4314
  %4875 = vmatpush.bf16.msra.mxu0 %v4306
  %4876 = vmatpush.bf16.msra.mxu0 %v4298
  %4877 = vmatmul.bf16.gmra.mxu0 %v4749
  %v4878 = vpop.f32.mrf.mxu0
  %v4879 = vadd.f32 %v4866, %v4878
  %v4880 = vpop.f32.mrf.mxu0
  %4881 = vdwg.mxu0
  %4882 = vmatpush.bf16.msra.mxu0 %v4291
  %4883 = vmatpush.bf16.msra.mxu0 %v4283
  %4884 = vmatpush.bf16.msra.mxu0 %v4275
  %4885 = vmatpush.bf16.msra.mxu0 %v4267
  %4886 = vmatpush.bf16.msra.mxu0 %v4259
  %4887 = vmatpush.bf16.msra.mxu0 %v4251
  %4888 = vmatpush.bf16.msra.mxu0 %v4243
  %4889 = vmatpush.bf16.msra.mxu0 %v4235
  %4890 = vmatmul.bf16.gmra.mxu0 %v4748
  %v4891 = vpop.f32.mrf.mxu0
  %v4892 = vadd.f32 0.0, %v4891
  %v4893 = vpop.f32.mrf.mxu0
  %4894 = vdwg.mxu0
  %4895 = vmatpush.bf16.msra.mxu0 %v4355
  %4896 = vmatpush.bf16.msra.mxu0 %v4347
  %4897 = vmatpush.bf16.msra.mxu0 %v4339
  %4898 = vmatpush.bf16.msra.mxu0 %v4331
  %4899 = vmatpush.bf16.msra.mxu0 %v4323
  %4900 = vmatpush.bf16.msra.mxu0 %v4315
  %4901 = vmatpush.bf16.msra.mxu0 %v4307
  %4902 = vmatpush.bf16.msra.mxu0 %v4299
  %4903 = vmatmul.bf16.gmra.mxu0 %v4749
  %v4904 = vpop.f32.mrf.mxu0
  %v4905 = vadd.f32 %v4892, %v4904
  %v4906 = vpop.f32.mrf.mxu0
  %4907 = vdwg.mxu0
  %4908 = vmatpush.bf16.msra.mxu0 %v4292
  %4909 = vmatpush.bf16.msra.mxu0 %v4284
  %4910 = vmatpush.bf16.msra.mxu0 %v4276
  %4911 = vmatpush.bf16.msra.mxu0 %v4268
  %4912 = vmatpush.bf16.msra.mxu0 %v4260
  %4913 = vmatpush.bf16.msra.mxu0 %v4252
  %4914 = vmatpush.bf16.msra.mxu0 %v4244
  %4915 = vmatpush.bf16.msra.mxu0 %v4236
  %4916 = vmatmul.bf16.gmra.mxu0 %v4748
  %v4917 = vpop.f32.mrf.mxu0
  %v4918 = vadd.f32 0.0, %v4917
  %v4919 = vpop.f32.mrf.mxu0
  %4920 = vdwg.mxu0
  %4921 = vmatpush.bf16.msra.mxu0 %v4356
  %4922 = vmatpush.bf16.msra.mxu0 %v4348
  %4923 = vmatpush.bf16.msra.mxu0 %v4340
  %4924 = vmatpush.bf16.msra.mxu0 %v4332
  %4925 = vmatpush.bf16.msra.mxu0 %v4324
  %4926 = vmatpush.bf16.msra.mxu0 %v4316
  %4927 = vmatpush.bf16.msra.mxu0 %v4308
  %4928 = vmatpush.bf16.msra.mxu0 %v4300
  %4929 = vmatmul.bf16.gmra.mxu0 %v4749
  %v4930 = vpop.f32.mrf.mxu0
  %v4931 = vadd.f32 %v4918, %v4930
  %v4932 = vpop.f32.mrf.mxu0
  %4933 = vdwg.mxu0
  %4934 = vmatpush.bf16.msra.mxu0 %v4293
  %4935 = vmatpush.bf16.msra.mxu0 %v4285
  %4936 = vmatpush.bf16.msra.mxu0 %v4277
  %4937 = vmatpush.bf16.msra.mxu0 %v4269
  %4938 = vmatpush.bf16.msra.mxu0 %v4261
  %4939 = vmatpush.bf16.msra.mxu0 %v4253
  %4940 = vmatpush.bf16.msra.mxu0 %v4245
  %4941 = vmatpush.bf16.msra.mxu0 %v4237
  %4942 = vmatmul.bf16.gmra.mxu0 %v4748
  %v4943 = vpop.f32.mrf.mxu0
  %v4944 = vadd.f32 0.0, %v4943
  %v4945 = vpop.f32.mrf.mxu0
  %4946 = vdwg.mxu0
  %4947 = vmatpush.bf16.msra.mxu0 %v4357
  %4948 = vmatpush.bf16.msra.mxu0 %v4349
  %4949 = vmatpush.bf16.msra.mxu0 %v4341
  %4950 = vmatpush.bf16.msra.mxu0 %v4333
  %4951 = vmatpush.bf16.msra.mxu0 %v4325
  %4952 = vmatpush.bf16.msra.mxu0 %v4317
  %4953 = vmatpush.bf16.msra.mxu0 %v4309
  %4954 = vmatpush.bf16.msra.mxu0 %v4301
  %4955 = vmatmul.bf16.gmra.mxu0 %v4749
  %v4956 = vpop.f32.mrf.mxu0
  %v4957 = vadd.f32 %v4944, %v4956
  %v4958 = vpop.f32.mrf.mxu0
  %4959 = vdwg.mxu0
  %v4960 = vadd.f32 %v4738, %v4775
  %v4961 = vadd.f32 %v4739, %v4801
  %v4962 = vadd.f32 %v4740, %v4827
  %v4963 = vadd.f32 %v4741, %v4853
  %v4964 = vadd.f32 %v4742, %v4879
  %v4965 = vadd.f32 %v4743, %v4905
  %v4966 = vadd.f32 %v4744, %v4931
  %v4967 = vadd.f32 %v4745, %v4957
  %v4968 = vtanh.pop %v4960
  %v4969 = vtanh.pop %v4961
  %v4970 = vtanh.pop %v4962
  %v4971 = vtanh.pop %v4963
  %v4972 = vtanh.pop %v4964
  %v4973 = vtanh.pop %v4965
  %v4974 = vtanh.pop %v4966
  %v4975 = vtanh.pop %v4967
  %v4976 = vmul.f32 %v4968, 0.5
  %v4977 = vmul.f32 %v4969, 0.5
  %v4978 = vmul.f32 %v4970, 0.5
  %v4979 = vmul.f32 %v4971, 0.5
  %v4980 = vmul.f32 %v4972, 0.5
  %v4981 = vmul.f32 %v4973, 0.5
  %v4982 = vadd.f32 %v4976, 0.5
  %v4983 = vadd.f32 %v4977, 0.5
  %v4984 = vadd.f32 %v4978, 0.5
  %v4985 = vadd.f32 %v4979, 0.5
  %v4986 = vadd.f32 %v4980, 0.5
  %v4987 = vadd.f32 %v4981, 0.5
  %v4988 = vmul.f32 %v4984, %v4726
  %v4989 = vmul.f32 %v4985, %v4727
  %v4990 = vmul.f32 %v4982, %v4974
  %v4991 = vmul.f32 %v4983, %v4975
  %v4992 = vadd.f32 %v4988, %v4990
  %v4993 = vadd.f32 %v4989, %v4991
  %v4994 = vtanh.pop %v4992
  %v4995 = vtanh.pop %v4993
  %v4996 = vmul.f32 %v4986, %v4994
  %v4997 = vmul.f32 %v4987, %v4995
  %v4998 = vpack.c.bf16 %v4997, %v4996
  %4999 = vst [vmem:[#allocation9 + $0x10] sm:$0xf] %v4998
  %v5001 = vrot.slane %v4998, 4
  %5003 = vst [vmem:[#allocation9 + $0x6c] sm:$0xf] %v5001
  %v5004 = vld [vmem:[#allocation8 + $0xc0] sm:$0xff]
  %v5005 = vld [vmem:[#allocation8 + $0xc8] sm:$0xff]
  %v5006 = vld [vmem:[#allocation8 + $0xd0] sm:$0xff]
  %v5007 = vld [vmem:[#allocation8 + $0xd8] sm:$0xff]
  %v5008 = vld [vmem:[#allocation8 + $0xe0] sm:$0xff]
  %v5009 = vld [vmem:[#allocation8 + $0xe8] sm:$0xff]
  %v5010 = vld [vmem:[#allocation8 + $0xf0] sm:$0xff]
  %v5011 = vld [vmem:[#allocation8 + $0xf8] sm:$0xff]
  %v5012 = vunpack.c.l.b16 %v4998
  %v5013 = vunpack.c.h.b16 %v4998
  %v5014 = vpack.c.b16 %v5012, %v5012
  %v5015 = vpack.c.b16 %v5013, %v5013
  %5018 = vmatpush.bf16.msra.mxu0 %v4286
  %5019 = vmatpush.bf16.msra.mxu0 %v4278
  %5020 = vmatpush.bf16.msra.mxu0 %v4270
  %5021 = vmatpush.bf16.msra.mxu0 %v4262
  %5022 = vmatpush.bf16.msra.mxu0 %v4254
  %5023 = vmatpush.bf16.msra.mxu0 %v4246
  %5024 = vmatpush.bf16.msra.mxu0 %v4238
  %5025 = vmatpush.bf16.msra.mxu0 %v4230
  %5026 = vmatmul.bf16.gmra.mxu0 %v5014
  %v5027 = vpop.f32.mrf.mxu0
  %v5028 = vadd.f32 0.0, %v5027
  %v5029 = vpop.f32.mrf.mxu0
  %5030 = vdwg.mxu0
  %5031 = vmatpush.bf16.msra.mxu0 %v4350
  %5032 = vmatpush.bf16.msra.mxu0 %v4342
  %5033 = vmatpush.bf16.msra.mxu0 %v4334
  %5034 = vmatpush.bf16.msra.mxu0 %v4326
  %5035 = vmatpush.bf16.msra.mxu0 %v4318
  %5036 = vmatpush.bf16.msra.mxu0 %v4310
  %5037 = vmatpush.bf16.msra.mxu0 %v4302
  %5038 = vmatpush.bf16.msra.mxu0 %v4294
  %5039 = vmatmul.bf16.gmra.mxu0 %v5015
  %v5040 = vpop.f32.mrf.mxu0
  %v5041 = vadd.f32 %v5028, %v5040
  %v5042 = vpop.f32.mrf.mxu0
  %5043 = vdwg.mxu0
  %5044 = vmatpush.bf16.msra.mxu0 %v4287
  %5045 = vmatpush.bf16.msra.mxu0 %v4279
  %5046 = vmatpush.bf16.msra.mxu0 %v4271
  %5047 = vmatpush.bf16.msra.mxu0 %v4263
  %5048 = vmatpush.bf16.msra.mxu0 %v4255
  %5049 = vmatpush.bf16.msra.mxu0 %v4247
  %5050 = vmatpush.bf16.msra.mxu0 %v4239
  %5051 = vmatpush.bf16.msra.mxu0 %v4231
  %5052 = vmatmul.bf16.gmra.mxu0 %v5014
  %v5053 = vpop.f32.mrf.mxu0
  %v5054 = vadd.f32 0.0, %v5053
  %v5055 = vpop.f32.mrf.mxu0
  %5056 = vdwg.mxu0
  %5057 = vmatpush.bf16.msra.mxu0 %v4351
  %5058 = vmatpush.bf16.msra.mxu0 %v4343
  %5059 = vmatpush.bf16.msra.mxu0 %v4335
  %5060 = vmatpush.bf16.msra.mxu0 %v4327
  %5061 = vmatpush.bf16.msra.mxu0 %v4319
  %5062 = vmatpush.bf16.msra.mxu0 %v4311
  %5063 = vmatpush.bf16.msra.mxu0 %v4303
  %5064 = vmatpush.bf16.msra.mxu0 %v4295
  %5065 = vmatmul.bf16.gmra.mxu0 %v5015
  %v5066 = vpop.f32.mrf.mxu0
  %v5067 = vadd.f32 %v5054, %v5066
  %v5068 = vpop.f32.mrf.mxu0
  %5069 = vdwg.mxu0
  %5070 = vmatpush.bf16.msra.mxu0 %v4288
  %5071 = vmatpush.bf16.msra.mxu0 %v4280
  %5072 = vmatpush.bf16.msra.mxu0 %v4272
  %5073 = vmatpush.bf16.msra.mxu0 %v4264
  %5074 = vmatpush.bf16.msra.mxu0 %v4256
  %5075 = vmatpush.bf16.msra.mxu0 %v4248
  %5076 = vmatpush.bf16.msra.mxu0 %v4240
  %5077 = vmatpush.bf16.msra.mxu0 %v4232
  %5078 = vmatmul.bf16.gmra.mxu0 %v5014
  %v5079 = vpop.f32.mrf.mxu0
  %v5080 = vadd.f32 0.0, %v5079
  %v5081 = vpop.f32.mrf.mxu0
  %5082 = vdwg.mxu0
  %5083 = vmatpush.bf16.msra.mxu0 %v4352
  %5084 = vmatpush.bf16.msra.mxu0 %v4344
  %5085 = vmatpush.bf16.msra.mxu0 %v4336
  %5086 = vmatpush.bf16.msra.mxu0 %v4328
  %5087 = vmatpush.bf16.msra.mxu0 %v4320
  %5088 = vmatpush.bf16.msra.mxu0 %v4312
  %5089 = vmatpush.bf16.msra.mxu0 %v4304
  %5090 = vmatpush.bf16.msra.mxu0 %v4296
  %5091 = vmatmul.bf16.gmra.mxu0 %v5015
  %v5092 = vpop.f32.mrf.mxu0
  %v5093 = vadd.f32 %v5080, %v5092
  %v5094 = vpop.f32.mrf.mxu0
  %5095 = vdwg.mxu0
  %5096 = vmatpush.bf16.msra.mxu0 %v4289
  %5097 = vmatpush.bf16.msra.mxu0 %v4281
  %5098 = vmatpush.bf16.msra.mxu0 %v4273
  %5099 = vmatpush.bf16.msra.mxu0 %v4265
  %5100 = vmatpush.bf16.msra.mxu0 %v4257
  %5101 = vmatpush.bf16.msra.mxu0 %v4249
  %5102 = vmatpush.bf16.msra.mxu0 %v4241
  %5103 = vmatpush.bf16.msra.mxu0 %v4233
  %5104 = vmatmul.bf16.gmra.mxu0 %v5014
  %v5105 = vpop.f32.mrf.mxu0
  %v5106 = vadd.f32 0.0, %v5105
  %v5107 = vpop.f32.mrf.mxu0
  %5108 = vdwg.mxu0
  %5109 = vmatpush.bf16.msra.mxu0 %v4353
  %5110 = vmatpush.bf16.msra.mxu0 %v4345
  %5111 = vmatpush.bf16.msra.mxu0 %v4337
  %5112 = vmatpush.bf16.msra.mxu0 %v4329
  %5113 = vmatpush.bf16.msra.mxu0 %v4321
  %5114 = vmatpush.bf16.msra.mxu0 %v4313
  %5115 = vmatpush.bf16.msra.mxu0 %v4305
  %5116 = vmatpush.bf16.msra.mxu0 %v4297
  %5117 = vmatmul.bf16.gmra.mxu0 %v5015
  %v5118 = vpop.f32.mrf.mxu0
  %v5119 = vadd.f32 %v5106, %v5118
  %v5120 = vpop.f32.mrf.mxu0
  %5121 = vdwg.mxu0
  %5122 = vmatpush.bf16.msra.mxu0 %v4290
  %5123 = vmatpush.bf16.msra.mxu0 %v4282
  %5124 = vmatpush.bf16.msra.mxu0 %v4274
  %5125 = vmatpush.bf16.msra.mxu0 %v4266
  %5126 = vmatpush.bf16.msra.mxu0 %v4258
  %5127 = vmatpush.bf16.msra.mxu0 %v4250
  %5128 = vmatpush.bf16.msra.mxu0 %v4242
  %5129 = vmatpush.bf16.msra.mxu0 %v4234
  %5130 = vmatmul.bf16.gmra.mxu0 %v5014
  %v5131 = vpop.f32.mrf.mxu0
  %v5132 = vadd.f32 0.0, %v5131
  %v5133 = vpop.f32.mrf.mxu0
  %5134 = vdwg.mxu0
  %5135 = vmatpush.bf16.msra.mxu0 %v4354
  %5136 = vmatpush.bf16.msra.mxu0 %v4346
  %5137 = vmatpush.bf16.msra.mxu0 %v4338
  %5138 = vmatpush.bf16.msra.mxu0 %v4330
  %5139 = vmatpush.bf16.msra.mxu0 %v4322
  %5140 = vmatpush.bf16.msra.mxu0 %v4314
  %5141 = vmatpush.bf16.msra.mxu0 %v4306
  %5142 = vmatpush.bf16.msra.mxu0 %v4298
  %5143 = vmatmul.bf16.gmra.mxu0 %v5015
  %v5144 = vpop.f32.mrf.mxu0
  %v5145 = vadd.f32 %v5132, %v5144
  %v5146 = vpop.f32.mrf.mxu0
  %5147 = vdwg.mxu0
  %5148 = vmatpush.bf16.msra.mxu0 %v4291
  %5149 = vmatpush.bf16.msra.mxu0 %v4283
  %5150 = vmatpush.bf16.msra.mxu0 %v4275
  %5151 = vmatpush.bf16.msra.mxu0 %v4267
  %5152 = vmatpush.bf16.msra.mxu0 %v4259
  %5153 = vmatpush.bf16.msra.mxu0 %v4251
  %5154 = vmatpush.bf16.msra.mxu0 %v4243
  %5155 = vmatpush.bf16.msra.mxu0 %v4235
  %5156 = vmatmul.bf16.gmra.mxu0 %v5014
  %v5157 = vpop.f32.mrf.mxu0
  %v5158 = vadd.f32 0.0, %v5157
  %v5159 = vpop.f32.mrf.mxu0
  %5160 = vdwg.mxu0
  %5161 = vmatpush.bf16.msra.mxu0 %v4355
  %5162 = vmatpush.bf16.msra.mxu0 %v4347
  %5163 = vmatpush.bf16.msra.mxu0 %v4339
  %5164 = vmatpush.bf16.msra.mxu0 %v4331
  %5165 = vmatpush.bf16.msra.mxu0 %v4323
  %5166 = vmatpush.bf16.msra.mxu0 %v4315
  %5167 = vmatpush.bf16.msra.mxu0 %v4307
  %5168 = vmatpush.bf16.msra.mxu0 %v4299
  %5169 = vmatmul.bf16.gmra.mxu0 %v5015
  %v5170 = vpop.f32.mrf.mxu0
  %v5171 = vadd.f32 %v5158, %v5170
  %v5172 = vpop.f32.mrf.mxu0
  %5173 = vdwg.mxu0
  %5174 = vmatpush.bf16.msra.mxu0 %v4292
  %5175 = vmatpush.bf16.msra.mxu0 %v4284
  %5176 = vmatpush.bf16.msra.mxu0 %v4276
  %5177 = vmatpush.bf16.msra.mxu0 %v4268
  %5178 = vmatpush.bf16.msra.mxu0 %v4260
  %5179 = vmatpush.bf16.msra.mxu0 %v4252
  %5180 = vmatpush.bf16.msra.mxu0 %v4244
  %5181 = vmatpush.bf16.msra.mxu0 %v4236
  %5182 = vmatmul.bf16.gmra.mxu0 %v5014
  %v5183 = vpop.f32.mrf.mxu0
  %v5184 = vadd.f32 0.0, %v5183
  %v5185 = vpop.f32.mrf.mxu0
  %5186 = vdwg.mxu0
  %5187 = vmatpush.bf16.msra.mxu0 %v4356
  %5188 = vmatpush.bf16.msra.mxu0 %v4348
  %5189 = vmatpush.bf16.msra.mxu0 %v4340
  %5190 = vmatpush.bf16.msra.mxu0 %v4332
  %5191 = vmatpush.bf16.msra.mxu0 %v4324
  %5192 = vmatpush.bf16.msra.mxu0 %v4316
  %5193 = vmatpush.bf16.msra.mxu0 %v4308
  %5194 = vmatpush.bf16.msra.mxu0 %v4300
  %5195 = vmatmul.bf16.gmra.mxu0 %v5015
  %v5196 = vpop.f32.mrf.mxu0
  %v5197 = vadd.f32 %v5184, %v5196
  %v5198 = vpop.f32.mrf.mxu0
  %5199 = vdwg.mxu0
  %5200 = vmatpush.bf16.msra.mxu0 %v4293
  %5201 = vmatpush.bf16.msra.mxu0 %v4285
  %5202 = vmatpush.bf16.msra.mxu0 %v4277
  %5203 = vmatpush.bf16.msra.mxu0 %v4269
  %5204 = vmatpush.bf16.msra.mxu0 %v4261
  %5205 = vmatpush.bf16.msra.mxu0 %v4253
  %5206 = vmatpush.bf16.msra.mxu0 %v4245
  %5207 = vmatpush.bf16.msra.mxu0 %v4237
  %5208 = vmatmul.bf16.gmra.mxu0 %v5014
  %v5209 = vpop.f32.mrf.mxu0
  %v5210 = vadd.f32 0.0, %v5209
  %v5211 = vpop.f32.mrf.mxu0
  %5212 = vdwg.mxu0
  %5213 = vmatpush.bf16.msra.mxu0 %v4357
  %5214 = vmatpush.bf16.msra.mxu0 %v4349
  %5215 = vmatpush.bf16.msra.mxu0 %v4341
  %5216 = vmatpush.bf16.msra.mxu0 %v4333
  %5217 = vmatpush.bf16.msra.mxu0 %v4325
  %5218 = vmatpush.bf16.msra.mxu0 %v4317
  %5219 = vmatpush.bf16.msra.mxu0 %v4309
  %5220 = vmatpush.bf16.msra.mxu0 %v4301
  %5221 = vmatmul.bf16.gmra.mxu0 %v5015
  %v5222 = vpop.f32.mrf.mxu0
  %v5223 = vadd.f32 %v5210, %v5222
  %v5224 = vpop.f32.mrf.mxu0
  %5225 = vdwg.mxu0
  %v5226 = vadd.f32 %v5004, %v5041
  %v5227 = vadd.f32 %v5005, %v5067
  %v5228 = vadd.f32 %v5006, %v5093
  %v5229 = vadd.f32 %v5007, %v5119
  %v5230 = vadd.f32 %v5008, %v5145
  %v5231 = vadd.f32 %v5009, %v5171
  %v5232 = vadd.f32 %v5010, %v5197
  %v5233 = vadd.f32 %v5011, %v5223
  %v5234 = vtanh.pop %v5226
  %v5235 = vtanh.pop %v5227
  %v5236 = vtanh.pop %v5228
  %v5237 = vtanh.pop %v5229
  %v5238 = vtanh.pop %v5230
  %v5239 = vtanh.pop %v5231
  %v5240 = vtanh.pop %v5232
  %v5241 = vtanh.pop %v5233
  %v5242 = vmul.f32 %v5234, 0.5
  %v5243 = vmul.f32 %v5235, 0.5
  %v5244 = vmul.f32 %v5236, 0.5
  %v5245 = vmul.f32 %v5237, 0.5
  %v5246 = vmul.f32 %v5238, 0.5
  %v5247 = vmul.f32 %v5239, 0.5
  %v5248 = vadd.f32 %v5242, 0.5
  %v5249 = vadd.f32 %v5243, 0.5
  %v5250 = vadd.f32 %v5244, 0.5
  %v5251 = vadd.f32 %v5245, 0.5
  %v5252 = vadd.f32 %v5246, 0.5
  %v5253 = vadd.f32 %v5247, 0.5
  %v5254 = vmul.f32 %v5250, %v4992
  %v5255 = vmul.f32 %v5251, %v4993
  %v5256 = vmul.f32 %v5248, %v5240
  %v5257 = vmul.f32 %v5249, %v5241
  %v5258 = vadd.f32 %v5254, %v5256
  %v5259 = vadd.f32 %v5255, %v5257
  %v5260 = vtanh.pop %v5258
  %v5261 = vtanh.pop %v5259
  %v5262 = vmul.f32 %v5252, %v5260
  %v5263 = vmul.f32 %v5253, %v5261
  %v5264 = vpack.c.bf16 %v5263, %v5262
  %5265 = vst [vmem:[#allocation9 + $0x18] sm:$0xf] %v5264
  %v5267 = vrot.slane %v5264, 4
  %5269 = vst [vmem:[#allocation9 + $0x64] sm:$0xf] %v5267
  %v5270 = vld [vmem:[#allocation8 + $0x100] sm:$0xff]
  %v5271 = vld [vmem:[#allocation8 + $0x108] sm:$0xff]
  %v5272 = vld [vmem:[#allocation8 + $0x110] sm:$0xff]
  %v5273 = vld [vmem:[#allocation8 + $0x118] sm:$0xff]
  %v5274 = vld [vmem:[#allocation8 + $0x120] sm:$0xff]
  %v5275 = vld [vmem:[#allocation8 + $0x128] sm:$0xff]
  %v5276 = vld [vmem:[#allocation8 + $0x130] sm:$0xff]
  %v5277 = vld [vmem:[#allocation8 + $0x138] sm:$0xff]
  %v5278 = vunpack.c.l.b16 %v5264
  %v5279 = vunpack.c.h.b16 %v5264
  %v5280 = vpack.c.b16 %v5278, %v5278
  %v5281 = vpack.c.b16 %v5279, %v5279
  %5284 = vmatpush.bf16.msra.mxu0 %v4286
  %5285 = vmatpush.bf16.msra.mxu0 %v4278
  %5286 = vmatpush.bf16.msra.mxu0 %v4270
  %5287 = vmatpush.bf16.msra.mxu0 %v4262
  %5288 = vmatpush.bf16.msra.mxu0 %v4254
  %5289 = vmatpush.bf16.msra.mxu0 %v4246
  %5290 = vmatpush.bf16.msra.mxu0 %v4238
  %5291 = vmatpush.bf16.msra.mxu0 %v4230
  %5292 = vmatmul.bf16.gmra.mxu0 %v5280
  %v5293 = vpop.f32.mrf.mxu0
  %v5294 = vadd.f32 0.0, %v5293
  %v5295 = vpop.f32.mrf.mxu0
  %5296 = vdwg.mxu0
  %5297 = vmatpush.bf16.msra.mxu0 %v4350
  %5298 = vmatpush.bf16.msra.mxu0 %v4342
  %5299 = vmatpush.bf16.msra.mxu0 %v4334
  %5300 = vmatpush.bf16.msra.mxu0 %v4326
  %5301 = vmatpush.bf16.msra.mxu0 %v4318
  %5302 = vmatpush.bf16.msra.mxu0 %v4310
  %5303 = vmatpush.bf16.msra.mxu0 %v4302
  %5304 = vmatpush.bf16.msra.mxu0 %v4294
  %5305 = vmatmul.bf16.gmra.mxu0 %v5281
  %v5306 = vpop.f32.mrf.mxu0
  %v5307 = vadd.f32 %v5294, %v5306
  %v5308 = vpop.f32.mrf.mxu0
  %5309 = vdwg.mxu0
  %5310 = vmatpush.bf16.msra.mxu0 %v4287
  %5311 = vmatpush.bf16.msra.mxu0 %v4279
  %5312 = vmatpush.bf16.msra.mxu0 %v4271
  %5313 = vmatpush.bf16.msra.mxu0 %v4263
  %5314 = vmatpush.bf16.msra.mxu0 %v4255
  %5315 = vmatpush.bf16.msra.mxu0 %v4247
  %5316 = vmatpush.bf16.msra.mxu0 %v4239
  %5317 = vmatpush.bf16.msra.mxu0 %v4231
  %5318 = vmatmul.bf16.gmra.mxu0 %v5280
  %v5319 = vpop.f32.mrf.mxu0
  %v5320 = vadd.f32 0.0, %v5319
  %v5321 = vpop.f32.mrf.mxu0
  %5322 = vdwg.mxu0
  %5323 = vmatpush.bf16.msra.mxu0 %v4351
  %5324 = vmatpush.bf16.msra.mxu0 %v4343
  %5325 = vmatpush.bf16.msra.mxu0 %v4335
  %5326 = vmatpush.bf16.msra.mxu0 %v4327
  %5327 = vmatpush.bf16.msra.mxu0 %v4319
  %5328 = vmatpush.bf16.msra.mxu0 %v4311
  %5329 = vmatpush.bf16.msra.mxu0 %v4303
  %5330 = vmatpush.bf16.msra.mxu0 %v4295
  %5331 = vmatmul.bf16.gmra.mxu0 %v5281
  %v5332 = vpop.f32.mrf.mxu0
  %v5333 = vadd.f32 %v5320, %v5332
  %v5334 = vpop.f32.mrf.mxu0
  %5335 = vdwg.mxu0
  %5336 = vmatpush.bf16.msra.mxu0 %v4288
  %5337 = vmatpush.bf16.msra.mxu0 %v4280
  %5338 = vmatpush.bf16.msra.mxu0 %v4272
  %5339 = vmatpush.bf16.msra.mxu0 %v4264
  %5340 = vmatpush.bf16.msra.mxu0 %v4256
  %5341 = vmatpush.bf16.msra.mxu0 %v4248
  %5342 = vmatpush.bf16.msra.mxu0 %v4240
  %5343 = vmatpush.bf16.msra.mxu0 %v4232
  %5344 = vmatmul.bf16.gmra.mxu0 %v5280
  %v5345 = vpop.f32.mrf.mxu0
  %v5346 = vadd.f32 0.0, %v5345
  %v5347 = vpop.f32.mrf.mxu0
  %5348 = vdwg.mxu0
  %5349 = vmatpush.bf16.msra.mxu0 %v4352
  %5350 = vmatpush.bf16.msra.mxu0 %v4344
  %5351 = vmatpush.bf16.msra.mxu0 %v4336
  %5352 = vmatpush.bf16.msra.mxu0 %v4328
  %5353 = vmatpush.bf16.msra.mxu0 %v4320
  %5354 = vmatpush.bf16.msra.mxu0 %v4312
  %5355 = vmatpush.bf16.msra.mxu0 %v4304
  %5356 = vmatpush.bf16.msra.mxu0 %v4296
  %5357 = vmatmul.bf16.gmra.mxu0 %v5281
  %v5358 = vpop.f32.mrf.mxu0
  %v5359 = vadd.f32 %v5346, %v5358
  %v5360 = vpop.f32.mrf.mxu0
  %5361 = vdwg.mxu0
  %5362 = vmatpush.bf16.msra.mxu0 %v4289
  %5363 = vmatpush.bf16.msra.mxu0 %v4281
  %5364 = vmatpush.bf16.msra.mxu0 %v4273
  %5365 = vmatpush.bf16.msra.mxu0 %v4265
  %5366 = vmatpush.bf16.msra.mxu0 %v4257
  %5367 = vmatpush.bf16.msra.mxu0 %v4249
  %5368 = vmatpush.bf16.msra.mxu0 %v4241
  %5369 = vmatpush.bf16.msra.mxu0 %v4233
  %5370 = vmatmul.bf16.gmra.mxu0 %v5280
  %v5371 = vpop.f32.mrf.mxu0
  %v5372 = vadd.f32 0.0, %v5371
  %v5373 = vpop.f32.mrf.mxu0
  %5374 = vdwg.mxu0
  %5375 = vmatpush.bf16.msra.mxu0 %v4353
  %5376 = vmatpush.bf16.msra.mxu0 %v4345
  %5377 = vmatpush.bf16.msra.mxu0 %v4337
  %5378 = vmatpush.bf16.msra.mxu0 %v4329
  %5379 = vmatpush.bf16.msra.mxu0 %v4321
  %5380 = vmatpush.bf16.msra.mxu0 %v4313
  %5381 = vmatpush.bf16.msra.mxu0 %v4305
  %5382 = vmatpush.bf16.msra.mxu0 %v4297
  %5383 = vmatmul.bf16.gmra.mxu0 %v5281
  %v5384 = vpop.f32.mrf.mxu0
  %v5385 = vadd.f32 %v5372, %v5384
  %v5386 = vpop.f32.mrf.mxu0
  %5387 = vdwg.mxu0
  %5388 = vmatpush.bf16.msra.mxu0 %v4290
  %5389 = vmatpush.bf16.msra.mxu0 %v4282
  %5390 = vmatpush.bf16.msra.mxu0 %v4274
  %5391 = vmatpush.bf16.msra.mxu0 %v4266
  %5392 = vmatpush.bf16.msra.mxu0 %v4258
  %5393 = vmatpush.bf16.msra.mxu0 %v4250
  %5394 = vmatpush.bf16.msra.mxu0 %v4242
  %5395 = vmatpush.bf16.msra.mxu0 %v4234
  %5396 = vmatmul.bf16.gmra.mxu0 %v5280
  %v5397 = vpop.f32.mrf.mxu0
  %v5398 = vadd.f32 0.0, %v5397
  %v5399 = vpop.f32.mrf.mxu0
  %5400 = vdwg.mxu0
  %5401 = vmatpush.bf16.msra.mxu0 %v4354
  %5402 = vmatpush.bf16.msra.mxu0 %v4346
  %5403 = vmatpush.bf16.msra.mxu0 %v4338
  %5404 = vmatpush.bf16.msra.mxu0 %v4330
  %5405 = vmatpush.bf16.msra.mxu0 %v4322
  %5406 = vmatpush.bf16.msra.mxu0 %v4314
  %5407 = vmatpush.bf16.msra.mxu0 %v4306
  %5408 = vmatpush.bf16.msra.mxu0 %v4298
  %5409 = vmatmul.bf16.gmra.mxu0 %v5281
  %v5410 = vpop.f32.mrf.mxu0
  %v5411 = vadd.f32 %v5398, %v5410
  %v5412 = vpop.f32.mrf.mxu0
  %5413 = vdwg.mxu0
  %5414 = vmatpush.bf16.msra.mxu0 %v4291
  %5415 = vmatpush.bf16.msra.mxu0 %v4283
  %5416 = vmatpush.bf16.msra.mxu0 %v4275
  %5417 = vmatpush.bf16.msra.mxu0 %v4267
  %5418 = vmatpush.bf16.msra.mxu0 %v4259
  %5419 = vmatpush.bf16.msra.mxu0 %v4251
  %5420 = vmatpush.bf16.msra.mxu0 %v4243
  %5421 = vmatpush.bf16.msra.mxu0 %v4235
  %5422 = vmatmul.bf16.gmra.mxu0 %v5280
  %v5423 = vpop.f32.mrf.mxu0
  %v5424 = vadd.f32 0.0, %v5423
  %v5425 = vpop.f32.mrf.mxu0
  %5426 = vdwg.mxu0
  %5427 = vmatpush.bf16.msra.mxu0 %v4355
  %5428 = vmatpush.bf16.msra.mxu0 %v4347
  %5429 = vmatpush.bf16.msra.mxu0 %v4339
  %5430 = vmatpush.bf16.msra.mxu0 %v4331
  %5431 = vmatpush.bf16.msra.mxu0 %v4323
  %5432 = vmatpush.bf16.msra.mxu0 %v4315
  %5433 = vmatpush.bf16.msra.mxu0 %v4307
  %5434 = vmatpush.bf16.msra.mxu0 %v4299
  %5435 = vmatmul.bf16.gmra.mxu0 %v5281
  %v5436 = vpop.f32.mrf.mxu0
  %v5437 = vadd.f32 %v5424, %v5436
  %v5438 = vpop.f32.mrf.mxu0
  %5439 = vdwg.mxu0
  %5440 = vmatpush.bf16.msra.mxu0 %v4292
  %5441 = vmatpush.bf16.msra.mxu0 %v4284
  %5442 = vmatpush.bf16.msra.mxu0 %v4276
  %5443 = vmatpush.bf16.msra.mxu0 %v4268
  %5444 = vmatpush.bf16.msra.mxu0 %v4260
  %5445 = vmatpush.bf16.msra.mxu0 %v4252
  %5446 = vmatpush.bf16.msra.mxu0 %v4244
  %5447 = vmatpush.bf16.msra.mxu0 %v4236
  %5448 = vmatmul.bf16.gmra.mxu0 %v5280
  %v5449 = vpop.f32.mrf.mxu0
  %v5450 = vadd.f32 0.0, %v5449
  %v5451 = vpop.f32.mrf.mxu0
  %5452 = vdwg.mxu0
  %5453 = vmatpush.bf16.msra.mxu0 %v4356
  %5454 = vmatpush.bf16.msra.mxu0 %v4348
  %5455 = vmatpush.bf16.msra.mxu0 %v4340
  %5456 = vmatpush.bf16.msra.mxu0 %v4332
  %5457 = vmatpush.bf16.msra.mxu0 %v4324
  %5458 = vmatpush.bf16.msra.mxu0 %v4316
  %5459 = vmatpush.bf16.msra.mxu0 %v4308
  %5460 = vmatpush.bf16.msra.mxu0 %v4300
  %5461 = vmatmul.bf16.gmra.mxu0 %v5281
  %v5462 = vpop.f32.mrf.mxu0
  %v5463 = vadd.f32 %v5450, %v5462
  %v5464 = vpop.f32.mrf.mxu0
  %5465 = vdwg.mxu0
  %5466 = vmatpush.bf16.msra.mxu0 %v4293
  %5467 = vmatpush.bf16.msra.mxu0 %v4285
  %5468 = vmatpush.bf16.msra.mxu0 %v4277
  %5469 = vmatpush.bf16.msra.mxu0 %v4269
  %5470 = vmatpush.bf16.msra.mxu0 %v4261
  %5471 = vmatpush.bf16.msra.mxu0 %v4253
  %5472 = vmatpush.bf16.msra.mxu0 %v4245
  %5473 = vmatpush.bf16.msra.mxu0 %v4237
  %5474 = vmatmul.bf16.gmra.mxu0 %v5280
  %v5475 = vpop.f32.mrf.mxu0
  %v5476 = vadd.f32 0.0, %v5475
  %v5477 = vpop.f32.mrf.mxu0
  %5478 = vdwg.mxu0
  %5479 = vmatpush.bf16.msra.mxu0 %v4357
  %5480 = vmatpush.bf16.msra.mxu0 %v4349
  %5481 = vmatpush.bf16.msra.mxu0 %v4341
  %5482 = vmatpush.bf16.msra.mxu0 %v4333
  %5483 = vmatpush.bf16.msra.mxu0 %v4325
  %5484 = vmatpush.bf16.msra.mxu0 %v4317
  %5485 = vmatpush.bf16.msra.mxu0 %v4309
  %5486 = vmatpush.bf16.msra.mxu0 %v4301
  %5487 = vmatmul.bf16.gmra.mxu0 %v5281
  %v5488 = vpop.f32.mrf.mxu0
  %v5489 = vadd.f32 %v5476, %v5488
  %v5490 = vpop.f32.mrf.mxu0
  %5491 = vdwg.mxu0
  %v5492 = vadd.f32 %v5270, %v5307
  %v5493 = vadd.f32 %v5271, %v5333
  %v5494 = vadd.f32 %v5272, %v5359
  %v5495 = vadd.f32 %v5273, %v5385
  %v5496 = vadd.f32 %v5274, %v5411
  %v5497 = vadd.f32 %v5275, %v5437
  %v5498 = vadd.f32 %v5276, %v5463
  %v5499 = vadd.f32 %v5277, %v5489
  %v5500 = vtanh.pop %v5492
  %v5501 = vtanh.pop %v5493
  %v5502 = vtanh.pop %v5494
  %v5503 = vtanh.pop %v5495
  %v5504 = vtanh.pop %v5496
  %v5505 = vtanh.pop %v5497
  %v5506 = vtanh.pop %v5498
  %v5507 = vtanh.pop %v5499
  %v5508 = vmul.f32 %v5500, 0.5
  %v5509 = vmul.f32 %v5501, 0.5
  %v5510 = vmul.f32 %v5502, 0.5
  %v5511 = vmul.f32 %v5503, 0.5
  %v5512 = vmul.f32 %v5504, 0.5
  %v5513 = vmul.f32 %v5505, 0.5
  %v5514 = vadd.f32 %v5508, 0.5
  %v5515 = vadd.f32 %v5509, 0.5
  %v5516 = vadd.f32 %v5510, 0.5
  %v5517 = vadd.f32 %v5511, 0.5
  %v5518 = vadd.f32 %v5512, 0.5
  %v5519 = vadd.f32 %v5513, 0.5
  %v5520 = vmul.f32 %v5516, %v5258
  %v5521 = vmul.f32 %v5517, %v5259
  %v5522 = vmul.f32 %v5514, %v5506
  %v5523 = vmul.f32 %v5515, %v5507
  %v5524 = vadd.f32 %v5520, %v5522
  %v5525 = vadd.f32 %v5521, %v5523
  %v5526 = vtanh.pop %v5524
  %v5527 = vtanh.pop %v5525
  %v5528 = vmul.f32 %v5518, %v5526
  %v5529 = vmul.f32 %v5519, %v5527
  %v5530 = vpack.c.bf16 %v5529, %v5528
  %5531 = vst [vmem:[#allocation9 + $0x20] sm:$0xf] %v5530
  %v5533 = vrot.slane %v5530, 4
  %5535 = vst [vmem:[#allocation9 + $0x5c] sm:$0xf] %v5533
  %v5536 = vld [vmem:[#allocation8 + $0x140] sm:$0xff]
  %v5537 = vld [vmem:[#allocation8 + $0x148] sm:$0xff]
  %v5538 = vld [vmem:[#allocation8 + $0x150] sm:$0xff]
  %v5539 = vld [vmem:[#allocation8 + $0x158] sm:$0xff]
  %v5540 = vld [vmem:[#allocation8 + $0x160] sm:$0xff]
  %v5541 = vld [vmem:[#allocation8 + $0x168] sm:$0xff]
  %v5542 = vld [vmem:[#allocation8 + $0x170] sm:$0xff]
  %v5543 = vld [vmem:[#allocation8 + $0x178] sm:$0xff]
  %v5544 = vunpack.c.l.b16 %v5530
  %v5545 = vunpack.c.h.b16 %v5530
  %v5546 = vpack.c.b16 %v5544, %v5544
  %v5547 = vpack.c.b16 %v5545, %v5545
  %5550 = vmatpush.bf16.msra.mxu0 %v4286
  %5551 = vmatpush.bf16.msra.mxu0 %v4278
  %5552 = vmatpush.bf16.msra.mxu0 %v4270
  %5553 = vmatpush.bf16.msra.mxu0 %v4262
  %5554 = vmatpush.bf16.msra.mxu0 %v4254
  %5555 = vmatpush.bf16.msra.mxu0 %v4246
  %5556 = vmatpush.bf16.msra.mxu0 %v4238
  %5557 = vmatpush.bf16.msra.mxu0 %v4230
  %5558 = vmatmul.bf16.gmra.mxu0 %v5546
  %v5559 = vpop.f32.mrf.mxu0
  %v5560 = vadd.f32 0.0, %v5559
  %v5561 = vpop.f32.mrf.mxu0
  %5562 = vdwg.mxu0
  %5563 = vmatpush.bf16.msra.mxu0 %v4350
  %5564 = vmatpush.bf16.msra.mxu0 %v4342
  %5565 = vmatpush.bf16.msra.mxu0 %v4334
  %5566 = vmatpush.bf16.msra.mxu0 %v4326
  %5567 = vmatpush.bf16.msra.mxu0 %v4318
  %5568 = vmatpush.bf16.msra.mxu0 %v4310
  %5569 = vmatpush.bf16.msra.mxu0 %v4302
  %5570 = vmatpush.bf16.msra.mxu0 %v4294
  %5571 = vmatmul.bf16.gmra.mxu0 %v5547
  %v5572 = vpop.f32.mrf.mxu0
  %v5573 = vadd.f32 %v5560, %v5572
  %v5574 = vpop.f32.mrf.mxu0
  %5575 = vdwg.mxu0
  %5576 = vmatpush.bf16.msra.mxu0 %v4287
  %5577 = vmatpush.bf16.msra.mxu0 %v4279
  %5578 = vmatpush.bf16.msra.mxu0 %v4271
  %5579 = vmatpush.bf16.msra.mxu0 %v4263
  %5580 = vmatpush.bf16.msra.mxu0 %v4255
  %5581 = vmatpush.bf16.msra.mxu0 %v4247
  %5582 = vmatpush.bf16.msra.mxu0 %v4239
  %5583 = vmatpush.bf16.msra.mxu0 %v4231
  %5584 = vmatmul.bf16.gmra.mxu0 %v5546
  %v5585 = vpop.f32.mrf.mxu0
  %v5586 = vadd.f32 0.0, %v5585
  %v5587 = vpop.f32.mrf.mxu0
  %5588 = vdwg.mxu0
  %5589 = vmatpush.bf16.msra.mxu0 %v4351
  %5590 = vmatpush.bf16.msra.mxu0 %v4343
  %5591 = vmatpush.bf16.msra.mxu0 %v4335
  %5592 = vmatpush.bf16.msra.mxu0 %v4327
  %5593 = vmatpush.bf16.msra.mxu0 %v4319
  %5594 = vmatpush.bf16.msra.mxu0 %v4311
  %5595 = vmatpush.bf16.msra.mxu0 %v4303
  %5596 = vmatpush.bf16.msra.mxu0 %v4295
  %5597 = vmatmul.bf16.gmra.mxu0 %v5547
  %v5598 = vpop.f32.mrf.mxu0
  %v5599 = vadd.f32 %v5586, %v5598
  %v5600 = vpop.f32.mrf.mxu0
  %5601 = vdwg.mxu0
  %5602 = vmatpush.bf16.msra.mxu0 %v4288
  %5603 = vmatpush.bf16.msra.mxu0 %v4280
  %5604 = vmatpush.bf16.msra.mxu0 %v4272
  %5605 = vmatpush.bf16.msra.mxu0 %v4264
  %5606 = vmatpush.bf16.msra.mxu0 %v4256
  %5607 = vmatpush.bf16.msra.mxu0 %v4248
  %5608 = vmatpush.bf16.msra.mxu0 %v4240
  %5609 = vmatpush.bf16.msra.mxu0 %v4232
  %5610 = vmatmul.bf16.gmra.mxu0 %v5546
  %v5611 = vpop.f32.mrf.mxu0
  %v5612 = vadd.f32 0.0, %v5611
  %v5613 = vpop.f32.mrf.mxu0
  %5614 = vdwg.mxu0
  %5615 = vmatpush.bf16.msra.mxu0 %v4352
  %5616 = vmatpush.bf16.msra.mxu0 %v4344
  %5617 = vmatpush.bf16.msra.mxu0 %v4336
  %5618 = vmatpush.bf16.msra.mxu0 %v4328
  %5619 = vmatpush.bf16.msra.mxu0 %v4320
  %5620 = vmatpush.bf16.msra.mxu0 %v4312
  %5621 = vmatpush.bf16.msra.mxu0 %v4304
  %5622 = vmatpush.bf16.msra.mxu0 %v4296
  %5623 = vmatmul.bf16.gmra.mxu0 %v5547
  %v5624 = vpop.f32.mrf.mxu0
  %v5625 = vadd.f32 %v5612, %v5624
  %v5626 = vpop.f32.mrf.mxu0
  %5627 = vdwg.mxu0
  %5628 = vmatpush.bf16.msra.mxu0 %v4289
  %5629 = vmatpush.bf16.msra.mxu0 %v4281
  %5630 = vmatpush.bf16.msra.mxu0 %v4273
  %5631 = vmatpush.bf16.msra.mxu0 %v4265
  %5632 = vmatpush.bf16.msra.mxu0 %v4257
  %5633 = vmatpush.bf16.msra.mxu0 %v4249
  %5634 = vmatpush.bf16.msra.mxu0 %v4241
  %5635 = vmatpush.bf16.msra.mxu0 %v4233
  %5636 = vmatmul.bf16.gmra.mxu0 %v5546
  %v5637 = vpop.f32.mrf.mxu0
  %v5638 = vadd.f32 0.0, %v5637
  %v5639 = vpop.f32.mrf.mxu0
  %5640 = vdwg.mxu0
  %5641 = vmatpush.bf16.msra.mxu0 %v4353
  %5642 = vmatpush.bf16.msra.mxu0 %v4345
  %5643 = vmatpush.bf16.msra.mxu0 %v4337
  %5644 = vmatpush.bf16.msra.mxu0 %v4329
  %5645 = vmatpush.bf16.msra.mxu0 %v4321
  %5646 = vmatpush.bf16.msra.mxu0 %v4313
  %5647 = vmatpush.bf16.msra.mxu0 %v4305
  %5648 = vmatpush.bf16.msra.mxu0 %v4297
  %5649 = vmatmul.bf16.gmra.mxu0 %v5547
  %v5650 = vpop.f32.mrf.mxu0
  %v5651 = vadd.f32 %v5638, %v5650
  %v5652 = vpop.f32.mrf.mxu0
  %5653 = vdwg.mxu0
  %5654 = vmatpush.bf16.msra.mxu0 %v4290
  %5655 = vmatpush.bf16.msra.mxu0 %v4282
  %5656 = vmatpush.bf16.msra.mxu0 %v4274
  %5657 = vmatpush.bf16.msra.mxu0 %v4266
  %5658 = vmatpush.bf16.msra.mxu0 %v4258
  %5659 = vmatpush.bf16.msra.mxu0 %v4250
  %5660 = vmatpush.bf16.msra.mxu0 %v4242
  %5661 = vmatpush.bf16.msra.mxu0 %v4234
  %5662 = vmatmul.bf16.gmra.mxu0 %v5546
  %v5663 = vpop.f32.mrf.mxu0
  %v5664 = vadd.f32 0.0, %v5663
  %v5665 = vpop.f32.mrf.mxu0
  %5666 = vdwg.mxu0
  %5667 = vmatpush.bf16.msra.mxu0 %v4354
  %5668 = vmatpush.bf16.msra.mxu0 %v4346
  %5669 = vmatpush.bf16.msra.mxu0 %v4338
  %5670 = vmatpush.bf16.msra.mxu0 %v4330
  %5671 = vmatpush.bf16.msra.mxu0 %v4322
  %5672 = vmatpush.bf16.msra.mxu0 %v4314
  %5673 = vmatpush.bf16.msra.mxu0 %v4306
  %5674 = vmatpush.bf16.msra.mxu0 %v4298
  %5675 = vmatmul.bf16.gmra.mxu0 %v5547
  %v5676 = vpop.f32.mrf.mxu0
  %v5677 = vadd.f32 %v5664, %v5676
  %v5678 = vpop.f32.mrf.mxu0
  %5679 = vdwg.mxu0
  %5680 = vmatpush.bf16.msra.mxu0 %v4291
  %5681 = vmatpush.bf16.msra.mxu0 %v4283
  %5682 = vmatpush.bf16.msra.mxu0 %v4275
  %5683 = vmatpush.bf16.msra.mxu0 %v4267
  %5684 = vmatpush.bf16.msra.mxu0 %v4259
  %5685 = vmatpush.bf16.msra.mxu0 %v4251
  %5686 = vmatpush.bf16.msra.mxu0 %v4243
  %5687 = vmatpush.bf16.msra.mxu0 %v4235
  %5688 = vmatmul.bf16.gmra.mxu0 %v5546
  %v5689 = vpop.f32.mrf.mxu0
  %v5690 = vadd.f32 0.0, %v5689
  %v5691 = vpop.f32.mrf.mxu0
  %5692 = vdwg.mxu0
  %5693 = vmatpush.bf16.msra.mxu0 %v4355
  %5694 = vmatpush.bf16.msra.mxu0 %v4347
  %5695 = vmatpush.bf16.msra.mxu0 %v4339
  %5696 = vmatpush.bf16.msra.mxu0 %v4331
  %5697 = vmatpush.bf16.msra.mxu0 %v4323
  %5698 = vmatpush.bf16.msra.mxu0 %v4315
  %5699 = vmatpush.bf16.msra.mxu0 %v4307
  %5700 = vmatpush.bf16.msra.mxu0 %v4299
  %5701 = vmatmul.bf16.gmra.mxu0 %v5547
  %v5702 = vpop.f32.mrf.mxu0
  %v5703 = vadd.f32 %v5690, %v5702
  %v5704 = vpop.f32.mrf.mxu0
  %5705 = vdwg.mxu0
  %5706 = vmatpush.bf16.msra.mxu0 %v4292
  %5707 = vmatpush.bf16.msra.mxu0 %v4284
  %5708 = vmatpush.bf16.msra.mxu0 %v4276
  %5709 = vmatpush.bf16.msra.mxu0 %v4268
  %5710 = vmatpush.bf16.msra.mxu0 %v4260
  %5711 = vmatpush.bf16.msra.mxu0 %v4252
  %5712 = vmatpush.bf16.msra.mxu0 %v4244
  %5713 = vmatpush.bf16.msra.mxu0 %v4236
  %5714 = vmatmul.bf16.gmra.mxu0 %v5546
  %v5715 = vpop.f32.mrf.mxu0
  %v5716 = vadd.f32 0.0, %v5715
  %v5717 = vpop.f32.mrf.mxu0
  %5718 = vdwg.mxu0
  %5719 = vmatpush.bf16.msra.mxu0 %v4356
  %5720 = vmatpush.bf16.msra.mxu0 %v4348
  %5721 = vmatpush.bf16.msra.mxu0 %v4340
  %5722 = vmatpush.bf16.msra.mxu0 %v4332
  %5723 = vmatpush.bf16.msra.mxu0 %v4324
  %5724 = vmatpush.bf16.msra.mxu0 %v4316
  %5725 = vmatpush.bf16.msra.mxu0 %v4308
  %5726 = vmatpush.bf16.msra.mxu0 %v4300
  %5727 = vmatmul.bf16.gmra.mxu0 %v5547
  %v5728 = vpop.f32.mrf.mxu0
  %v5729 = vadd.f32 %v5716, %v5728
  %v5730 = vpop.f32.mrf.mxu0
  %5731 = vdwg.mxu0
  %5732 = vmatpush.bf16.msra.mxu0 %v4293
  %5733 = vmatpush.bf16.msra.mxu0 %v4285
  %5734 = vmatpush.bf16.msra.mxu0 %v4277
  %5735 = vmatpush.bf16.msra.mxu0 %v4269
  %5736 = vmatpush.bf16.msra.mxu0 %v4261
  %5737 = vmatpush.bf16.msra.mxu0 %v4253
  %5738 = vmatpush.bf16.msra.mxu0 %v4245
  %5739 = vmatpush.bf16.msra.mxu0 %v4237
  %5740 = vmatmul.bf16.gmra.mxu0 %v5546
  %v5741 = vpop.f32.mrf.mxu0
  %v5742 = vadd.f32 0.0, %v5741
  %v5743 = vpop.f32.mrf.mxu0
  %5744 = vdwg.mxu0
  %5745 = vmatpush.bf16.msra.mxu0 %v4357
  %5746 = vmatpush.bf16.msra.mxu0 %v4349
  %5747 = vmatpush.bf16.msra.mxu0 %v4341
  %5748 = vmatpush.bf16.msra.mxu0 %v4333
  %5749 = vmatpush.bf16.msra.mxu0 %v4325
  %5750 = vmatpush.bf16.msra.mxu0 %v4317
  %5751 = vmatpush.bf16.msra.mxu0 %v4309
  %5752 = vmatpush.bf16.msra.mxu0 %v4301
  %5753 = vmatmul.bf16.gmra.mxu0 %v5547
  %v5754 = vpop.f32.mrf.mxu0
  %v5755 = vadd.f32 %v5742, %v5754
  %v5756 = vpop.f32.mrf.mxu0
  %5757 = vdwg.mxu0
  %v5758 = vadd.f32 %v5536, %v5573
  %v5759 = vadd.f32 %v5537, %v5599
  %v5760 = vadd.f32 %v5538, %v5625
  %v5761 = vadd.f32 %v5539, %v5651
  %v5762 = vadd.f32 %v5540, %v5677
  %v5763 = vadd.f32 %v5541, %v5703
  %v5764 = vadd.f32 %v5542, %v5729
  %v5765 = vadd.f32 %v5543, %v5755
  %v5766 = vtanh.pop %v5758
  %v5767 = vtanh.pop %v5759
  %v5768 = vtanh.pop %v5760
  %v5769 = vtanh.pop %v5761
  %v5770 = vtanh.pop %v5762
  %v5771 = vtanh.pop %v5763
  %v5772 = vtanh.pop %v5764
  %v5773 = vtanh.pop %v5765
  %v5774 = vmul.f32 %v5766, 0.5
  %v5775 = vmul.f32 %v5767, 0.5
  %v5776 = vmul.f32 %v5768, 0.5
  %v5777 = vmul.f32 %v5769, 0.5
  %v5778 = vmul.f32 %v5770, 0.5
  %v5779 = vmul.f32 %v5771, 0.5
  %v5780 = vadd.f32 %v5774, 0.5
  %v5781 = vadd.f32 %v5775, 0.5
  %v5782 = vadd.f32 %v5776, 0.5
  %v5783 = vadd.f32 %v5777, 0.5
  %v5784 = vadd.f32 %v5778, 0.5
  %v5785 = vadd.f32 %v5779, 0.5
  %v5786 = vmul.f32 %v5782, %v5524
  %v5787 = vmul.f32 %v5783, %v5525
  %v5788 = vmul.f32 %v5780, %v5772
  %v5789 = vmul.f32 %v5781, %v5773
  %v5790 = vadd.f32 %v5786, %v5788
  %v5791 = vadd.f32 %v5787, %v5789
  %v5792 = vtanh.pop %v5790
  %v5793 = vtanh.pop %v5791
  %v5794 = vmul.f32 %v5784, %v5792
  %v5795 = vmul.f32 %v5785, %v5793
  %v5796 = vpack.c.bf16 %v5795, %v5794
  %5797 = vst [vmem:[#allocation9 + $0x28] sm:$0xf] %v5796
  %v5799 = vrot.slane %v5796, 4
  %5801 = vst [vmem:[#allocation9 + $0x54] sm:$0xf] %v5799
  %v5802 = vld [vmem:[#allocation8 + $0x180] sm:$0xff]
  %v5803 = vld [vmem:[#allocation8 + $0x188] sm:$0xff]
  %v5804 = vld [vmem:[#allocation8 + $0x190] sm:$0xff]
  %v5805 = vld [vmem:[#allocation8 + $0x198] sm:$0xff]
  %v5806 = vld [vmem:[#allocation8 + $0x1a0] sm:$0xff]
  %v5807 = vld [vmem:[#allocation8 + $0x1a8] sm:$0xff]
  %v5808 = vld [vmem:[#allocation8 + $0x1b0] sm:$0xff]
  %v5809 = vld [vmem:[#allocation8 + $0x1b8] sm:$0xff]
  %v5810 = vunpack.c.l.b16 %v5796
  %v5811 = vunpack.c.h.b16 %v5796
  %v5812 = vpack.c.b16 %v5810, %v5810
  %v5813 = vpack.c.b16 %v5811, %v5811
  %5816 = vmatpush.bf16.msra.mxu0 %v4286
  %5817 = vmatpush.bf16.msra.mxu0 %v4278
  %5818 = vmatpush.bf16.msra.mxu0 %v4270
  %5819 = vmatpush.bf16.msra.mxu0 %v4262
  %5820 = vmatpush.bf16.msra.mxu0 %v4254
  %5821 = vmatpush.bf16.msra.mxu0 %v4246
  %5822 = vmatpush.bf16.msra.mxu0 %v4238
  %5823 = vmatpush.bf16.msra.mxu0 %v4230
  %5824 = vmatmul.bf16.gmra.mxu0 %v5812
  %v5825 = vpop.f32.mrf.mxu0
  %v5826 = vadd.f32 0.0, %v5825
  %v5827 = vpop.f32.mrf.mxu0
  %5828 = vdwg.mxu0
  %5829 = vmatpush.bf16.msra.mxu0 %v4350
  %5830 = vmatpush.bf16.msra.mxu0 %v4342
  %5831 = vmatpush.bf16.msra.mxu0 %v4334
  %5832 = vmatpush.bf16.msra.mxu0 %v4326
  %5833 = vmatpush.bf16.msra.mxu0 %v4318
  %5834 = vmatpush.bf16.msra.mxu0 %v4310
  %5835 = vmatpush.bf16.msra.mxu0 %v4302
  %5836 = vmatpush.bf16.msra.mxu0 %v4294
  %5837 = vmatmul.bf16.gmra.mxu0 %v5813
  %v5838 = vpop.f32.mrf.mxu0
  %v5839 = vadd.f32 %v5826, %v5838
  %v5840 = vpop.f32.mrf.mxu0
  %5841 = vdwg.mxu0
  %5842 = vmatpush.bf16.msra.mxu0 %v4287
  %5843 = vmatpush.bf16.msra.mxu0 %v4279
  %5844 = vmatpush.bf16.msra.mxu0 %v4271
  %5845 = vmatpush.bf16.msra.mxu0 %v4263
  %5846 = vmatpush.bf16.msra.mxu0 %v4255
  %5847 = vmatpush.bf16.msra.mxu0 %v4247
  %5848 = vmatpush.bf16.msra.mxu0 %v4239
  %5849 = vmatpush.bf16.msra.mxu0 %v4231
  %5850 = vmatmul.bf16.gmra.mxu0 %v5812
  %v5851 = vpop.f32.mrf.mxu0
  %v5852 = vadd.f32 0.0, %v5851
  %v5853 = vpop.f32.mrf.mxu0
  %5854 = vdwg.mxu0
  %5855 = vmatpush.bf16.msra.mxu0 %v4351
  %5856 = vmatpush.bf16.msra.mxu0 %v4343
  %5857 = vmatpush.bf16.msra.mxu0 %v4335
  %5858 = vmatpush.bf16.msra.mxu0 %v4327
  %5859 = vmatpush.bf16.msra.mxu0 %v4319
  %5860 = vmatpush.bf16.msra.mxu0 %v4311
  %5861 = vmatpush.bf16.msra.mxu0 %v4303
  %5862 = vmatpush.bf16.msra.mxu0 %v4295
  %5863 = vmatmul.bf16.gmra.mxu0 %v5813
  %v5864 = vpop.f32.mrf.mxu0
  %v5865 = vadd.f32 %v5852, %v5864
  %v5866 = vpop.f32.mrf.mxu0
  %5867 = vdwg.mxu0
  %5868 = vmatpush.bf16.msra.mxu0 %v4288
  %5869 = vmatpush.bf16.msra.mxu0 %v4280
  %5870 = vmatpush.bf16.msra.mxu0 %v4272
  %5871 = vmatpush.bf16.msra.mxu0 %v4264
  %5872 = vmatpush.bf16.msra.mxu0 %v4256
  %5873 = vmatpush.bf16.msra.mxu0 %v4248
  %5874 = vmatpush.bf16.msra.mxu0 %v4240
  %5875 = vmatpush.bf16.msra.mxu0 %v4232
  %5876 = vmatmul.bf16.gmra.mxu0 %v5812
  %v5877 = vpop.f32.mrf.mxu0
  %v5878 = vadd.f32 0.0, %v5877
  %v5879 = vpop.f32.mrf.mxu0
  %5880 = vdwg.mxu0
  %5881 = vmatpush.bf16.msra.mxu0 %v4352
  %5882 = vmatpush.bf16.msra.mxu0 %v4344
  %5883 = vmatpush.bf16.msra.mxu0 %v4336
  %5884 = vmatpush.bf16.msra.mxu0 %v4328
  %5885 = vmatpush.bf16.msra.mxu0 %v4320
  %5886 = vmatpush.bf16.msra.mxu0 %v4312
  %5887 = vmatpush.bf16.msra.mxu0 %v4304
  %5888 = vmatpush.bf16.msra.mxu0 %v4296
  %5889 = vmatmul.bf16.gmra.mxu0 %v5813
  %v5890 = vpop.f32.mrf.mxu0
  %v5891 = vadd.f32 %v5878, %v5890
  %v5892 = vpop.f32.mrf.mxu0
  %5893 = vdwg.mxu0
  %5894 = vmatpush.bf16.msra.mxu0 %v4289
  %5895 = vmatpush.bf16.msra.mxu0 %v4281
  %5896 = vmatpush.bf16.msra.mxu0 %v4273
  %5897 = vmatpush.bf16.msra.mxu0 %v4265
  %5898 = vmatpush.bf16.msra.mxu0 %v4257
  %5899 = vmatpush.bf16.msra.mxu0 %v4249
  %5900 = vmatpush.bf16.msra.mxu0 %v4241
  %5901 = vmatpush.bf16.msra.mxu0 %v4233
  %5902 = vmatmul.bf16.gmra.mxu0 %v5812
  %v5903 = vpop.f32.mrf.mxu0
  %v5904 = vadd.f32 0.0, %v5903
  %v5905 = vpop.f32.mrf.mxu0
  %5906 = vdwg.mxu0
  %5907 = vmatpush.bf16.msra.mxu0 %v4353
  %5908 = vmatpush.bf16.msra.mxu0 %v4345
  %5909 = vmatpush.bf16.msra.mxu0 %v4337
  %5910 = vmatpush.bf16.msra.mxu0 %v4329
  %5911 = vmatpush.bf16.msra.mxu0 %v4321
  %5912 = vmatpush.bf16.msra.mxu0 %v4313
  %5913 = vmatpush.bf16.msra.mxu0 %v4305
  %5914 = vmatpush.bf16.msra.mxu0 %v4297
  %5915 = vmatmul.bf16.gmra.mxu0 %v5813
  %v5916 = vpop.f32.mrf.mxu0
  %v5917 = vadd.f32 %v5904, %v5916
  %v5918 = vpop.f32.mrf.mxu0
  %5919 = vdwg.mxu0
  %5920 = vmatpush.bf16.msra.mxu0 %v4290
  %5921 = vmatpush.bf16.msra.mxu0 %v4282
  %5922 = vmatpush.bf16.msra.mxu0 %v4274
  %5923 = vmatpush.bf16.msra.mxu0 %v4266
  %5924 = vmatpush.bf16.msra.mxu0 %v4258
  %5925 = vmatpush.bf16.msra.mxu0 %v4250
  %5926 = vmatpush.bf16.msra.mxu0 %v4242
  %5927 = vmatpush.bf16.msra.mxu0 %v4234
  %5928 = vmatmul.bf16.gmra.mxu0 %v5812
  %v5929 = vpop.f32.mrf.mxu0
  %v5930 = vadd.f32 0.0, %v5929
  %v5931 = vpop.f32.mrf.mxu0
  %5932 = vdwg.mxu0
  %5933 = vmatpush.bf16.msra.mxu0 %v4354
  %5934 = vmatpush.bf16.msra.mxu0 %v4346
  %5935 = vmatpush.bf16.msra.mxu0 %v4338
  %5936 = vmatpush.bf16.msra.mxu0 %v4330
  %5937 = vmatpush.bf16.msra.mxu0 %v4322
  %5938 = vmatpush.bf16.msra.mxu0 %v4314
  %5939 = vmatpush.bf16.msra.mxu0 %v4306
  %5940 = vmatpush.bf16.msra.mxu0 %v4298
  %5941 = vmatmul.bf16.gmra.mxu0 %v5813
  %v5942 = vpop.f32.mrf.mxu0
  %v5943 = vadd.f32 %v5930, %v5942
  %v5944 = vpop.f32.mrf.mxu0
  %5945 = vdwg.mxu0
  %5946 = vmatpush.bf16.msra.mxu0 %v4291
  %5947 = vmatpush.bf16.msra.mxu0 %v4283
  %5948 = vmatpush.bf16.msra.mxu0 %v4275
  %5949 = vmatpush.bf16.msra.mxu0 %v4267
  %5950 = vmatpush.bf16.msra.mxu0 %v4259
  %5951 = vmatpush.bf16.msra.mxu0 %v4251
  %5952 = vmatpush.bf16.msra.mxu0 %v4243
  %5953 = vmatpush.bf16.msra.mxu0 %v4235
  %5954 = vmatmul.bf16.gmra.mxu0 %v5812
  %v5955 = vpop.f32.mrf.mxu0
  %v5956 = vadd.f32 0.0, %v5955
  %v5957 = vpop.f32.mrf.mxu0
  %5958 = vdwg.mxu0
  %5959 = vmatpush.bf16.msra.mxu0 %v4355
  %5960 = vmatpush.bf16.msra.mxu0 %v4347
  %5961 = vmatpush.bf16.msra.mxu0 %v4339
  %5962 = vmatpush.bf16.msra.mxu0 %v4331
  %5963 = vmatpush.bf16.msra.mxu0 %v4323
  %5964 = vmatpush.bf16.msra.mxu0 %v4315
  %5965 = vmatpush.bf16.msra.mxu0 %v4307
  %5966 = vmatpush.bf16.msra.mxu0 %v4299
  %5967 = vmatmul.bf16.gmra.mxu0 %v5813
  %v5968 = vpop.f32.mrf.mxu0
  %v5969 = vadd.f32 %v5956, %v5968
  %v5970 = vpop.f32.mrf.mxu0
  %5971 = vdwg.mxu0
  %5972 = vmatpush.bf16.msra.mxu0 %v4292
  %5973 = vmatpush.bf16.msra.mxu0 %v4284
  %5974 = vmatpush.bf16.msra.mxu0 %v4276
  %5975 = vmatpush.bf16.msra.mxu0 %v4268
  %5976 = vmatpush.bf16.msra.mxu0 %v4260
  %5977 = vmatpush.bf16.msra.mxu0 %v4252
  %5978 = vmatpush.bf16.msra.mxu0 %v4244
  %5979 = vmatpush.bf16.msra.mxu0 %v4236
  %5980 = vmatmul.bf16.gmra.mxu0 %v5812
  %v5981 = vpop.f32.mrf.mxu0
  %v5982 = vadd.f32 0.0, %v5981
  %v5983 = vpop.f32.mrf.mxu0
  %5984 = vdwg.mxu0
  %5985 = vmatpush.bf16.msra.mxu0 %v4356
  %5986 = vmatpush.bf16.msra.mxu0 %v4348
  %5987 = vmatpush.bf16.msra.mxu0 %v4340
  %5988 = vmatpush.bf16.msra.mxu0 %v4332
  %5989 = vmatpush.bf16.msra.mxu0 %v4324
  %5990 = vmatpush.bf16.msra.mxu0 %v4316
  %5991 = vmatpush.bf16.msra.mxu0 %v4308
  %5992 = vmatpush.bf16.msra.mxu0 %v4300
  %5993 = vmatmul.bf16.gmra.mxu0 %v5813
  %v5994 = vpop.f32.mrf.mxu0
  %v5995 = vadd.f32 %v5982, %v5994
  %v5996 = vpop.f32.mrf.mxu0
  %5997 = vdwg.mxu0
  %5998 = vmatpush.bf16.msra.mxu0 %v4293
  %5999 = vmatpush.bf16.msra.mxu0 %v4285
  %6000 = vmatpush.bf16.msra.mxu0 %v4277
  %6001 = vmatpush.bf16.msra.mxu0 %v4269
  %6002 = vmatpush.bf16.msra.mxu0 %v4261
  %6003 = vmatpush.bf16.msra.mxu0 %v4253
  %6004 = vmatpush.bf16.msra.mxu0 %v4245
  %6005 = vmatpush.bf16.msra.mxu0 %v4237
  %6006 = vmatmul.bf16.gmra.mxu0 %v5812
  %v6007 = vpop.f32.mrf.mxu0
  %v6008 = vadd.f32 0.0, %v6007
  %v6009 = vpop.f32.mrf.mxu0
  %6010 = vdwg.mxu0
  %6011 = vmatpush.bf16.msra.mxu0 %v4357
  %6012 = vmatpush.bf16.msra.mxu0 %v4349
  %6013 = vmatpush.bf16.msra.mxu0 %v4341
  %6014 = vmatpush.bf16.msra.mxu0 %v4333
  %6015 = vmatpush.bf16.msra.mxu0 %v4325
  %6016 = vmatpush.bf16.msra.mxu0 %v4317
  %6017 = vmatpush.bf16.msra.mxu0 %v4309
  %6018 = vmatpush.bf16.msra.mxu0 %v4301
  %6019 = vmatmul.bf16.gmra.mxu0 %v5813
  %v6020 = vpop.f32.mrf.mxu0
  %v6021 = vadd.f32 %v6008, %v6020
  %v6022 = vpop.f32.mrf.mxu0
  %6023 = vdwg.mxu0
  %v6024 = vadd.f32 %v5802, %v5839
  %v6025 = vadd.f32 %v5803, %v5865
  %v6026 = vadd.f32 %v5804, %v5891
  %v6027 = vadd.f32 %v5805, %v5917
  %v6028 = vadd.f32 %v5806, %v5943
  %v6029 = vadd.f32 %v5807, %v5969
  %v6030 = vadd.f32 %v5808, %v5995
  %v6031 = vadd.f32 %v5809, %v6021
  %v6032 = vtanh.pop %v6024
  %v6033 = vtanh.pop %v6025
  %v6034 = vtanh.pop %v6026
  %v6035 = vtanh.pop %v6027
  %v6036 = vtanh.pop %v6028
  %v6037 = vtanh.pop %v6029
  %v6038 = vtanh.pop %v6030
  %v6039 = vtanh.pop %v6031
  %v6040 = vmul.f32 %v6032, 0.5
  %v6041 = vmul.f32 %v6033, 0.5
  %v6042 = vmul.f32 %v6034, 0.5
  %v6043 = vmul.f32 %v6035, 0.5
  %v6044 = vmul.f32 %v6036, 0.5
  %v6045 = vmul.f32 %v6037, 0.5
  %v6046 = vadd.f32 %v6040, 0.5
  %v6047 = vadd.f32 %v6041, 0.5
  %v6048 = vadd.f32 %v6042, 0.5
  %v6049 = vadd.f32 %v6043, 0.5
  %v6050 = vadd.f32 %v6044, 0.5
  %v6051 = vadd.f32 %v6045, 0.5
  %v6052 = vmul.f32 %v6048, %v5790
  %v6053 = vmul.f32 %v6049, %v5791
  %v6054 = vmul.f32 %v6046, %v6038
  %v6055 = vmul.f32 %v6047, %v6039
  %v6056 = vadd.f32 %v6052, %v6054
  %v6057 = vadd.f32 %v6053, %v6055
  %v6058 = vtanh.pop %v6056
  %v6059 = vtanh.pop %v6057
  %v6060 = vmul.f32 %v6050, %v6058
  %v6061 = vmul.f32 %v6051, %v6059
  %v6062 = vpack.c.bf16 %v6061, %v6060
  %6063 = vst [vmem:[#allocation9 + $0x30] sm:$0xf] %v6062
  %v6065 = vrot.slane %v6062, 4
  %6067 = vst [vmem:[#allocation9 + $0x4c] sm:$0xf] %v6065
  %v6068 = vld [vmem:[#allocation8 + $0x1c0] sm:$0xff]
  %v6069 = vld [vmem:[#allocation8 + $0x1c8] sm:$0xff]
  %v6070 = vld [vmem:[#allocation8 + $0x1d0] sm:$0xff]
  %v6071 = vld [vmem:[#allocation8 + $0x1d8] sm:$0xff]
  %v6072 = vld [vmem:[#allocation8 + $0x1e0] sm:$0xff]
  %v6073 = vld [vmem:[#allocation8 + $0x1e8] sm:$0xff]
  %v6074 = vld [vmem:[#allocation8 + $0x1f0] sm:$0xff]
  %v6075 = vld [vmem:[#allocation8 + $0x1f8] sm:$0xff]
  %v6076 = vunpack.c.l.b16 %v6062
  %v6077 = vunpack.c.h.b16 %v6062
  %v6078 = vpack.c.b16 %v6076, %v6076
  %v6079 = vpack.c.b16 %v6077, %v6077
  %6082 = vmatpush.bf16.msra.mxu0 %v4286
  %6083 = vmatpush.bf16.msra.mxu0 %v4278
  %6084 = vmatpush.bf16.msra.mxu0 %v4270
  %6085 = vmatpush.bf16.msra.mxu0 %v4262
  %6086 = vmatpush.bf16.msra.mxu0 %v4254
  %6087 = vmatpush.bf16.msra.mxu0 %v4246
  %6088 = vmatpush.bf16.msra.mxu0 %v4238
  %6089 = vmatpush.bf16.msra.mxu0 %v4230
  %6090 = vmatmul.bf16.gmra.mxu0 %v6078
  %v6091 = vpop.f32.mrf.mxu0
  %v6092 = vadd.f32 0.0, %v6091
  %v6093 = vpop.f32.mrf.mxu0
  %6094 = vdwg.mxu0
  %6095 = vmatpush.bf16.msra.mxu0 %v4350
  %6096 = vmatpush.bf16.msra.mxu0 %v4342
  %6097 = vmatpush.bf16.msra.mxu0 %v4334
  %6098 = vmatpush.bf16.msra.mxu0 %v4326
  %6099 = vmatpush.bf16.msra.mxu0 %v4318
  %6100 = vmatpush.bf16.msra.mxu0 %v4310
  %6101 = vmatpush.bf16.msra.mxu0 %v4302
  %6102 = vmatpush.bf16.msra.mxu0 %v4294
  %6103 = vmatmul.bf16.gmra.mxu0 %v6079
  %v6104 = vpop.f32.mrf.mxu0
  %v6105 = vadd.f32 %v6092, %v6104
  %v6106 = vpop.f32.mrf.mxu0
  %6107 = vdwg.mxu0
  %6108 = vmatpush.bf16.msra.mxu0 %v4287
  %6109 = vmatpush.bf16.msra.mxu0 %v4279
  %6110 = vmatpush.bf16.msra.mxu0 %v4271
  %6111 = vmatpush.bf16.msra.mxu0 %v4263
  %6112 = vmatpush.bf16.msra.mxu0 %v4255
  %6113 = vmatpush.bf16.msra.mxu0 %v4247
  %6114 = vmatpush.bf16.msra.mxu0 %v4239
  %6115 = vmatpush.bf16.msra.mxu0 %v4231
  %6116 = vmatmul.bf16.gmra.mxu0 %v6078
  %v6117 = vpop.f32.mrf.mxu0
  %v6118 = vadd.f32 0.0, %v6117
  %v6119 = vpop.f32.mrf.mxu0
  %6120 = vdwg.mxu0
  %6121 = vmatpush.bf16.msra.mxu0 %v4351
  %6122 = vmatpush.bf16.msra.mxu0 %v4343
  %6123 = vmatpush.bf16.msra.mxu0 %v4335
  %6124 = vmatpush.bf16.msra.mxu0 %v4327
  %6125 = vmatpush.bf16.msra.mxu0 %v4319
  %6126 = vmatpush.bf16.msra.mxu0 %v4311
  %6127 = vmatpush.bf16.msra.mxu0 %v4303
  %6128 = vmatpush.bf16.msra.mxu0 %v4295
  %6129 = vmatmul.bf16.gmra.mxu0 %v6079
  %v6130 = vpop.f32.mrf.mxu0
  %v6131 = vadd.f32 %v6118, %v6130
  %v6132 = vpop.f32.mrf.mxu0
  %6133 = vdwg.mxu0
  %6134 = vmatpush.bf16.msra.mxu0 %v4288
  %6135 = vmatpush.bf16.msra.mxu0 %v4280
  %6136 = vmatpush.bf16.msra.mxu0 %v4272
  %6137 = vmatpush.bf16.msra.mxu0 %v4264
  %6138 = vmatpush.bf16.msra.mxu0 %v4256
  %6139 = vmatpush.bf16.msra.mxu0 %v4248
  %6140 = vmatpush.bf16.msra.mxu0 %v4240
  %6141 = vmatpush.bf16.msra.mxu0 %v4232
  %6142 = vmatmul.bf16.gmra.mxu0 %v6078
  %v6143 = vpop.f32.mrf.mxu0
  %v6144 = vadd.f32 0.0, %v6143
  %v6145 = vpop.f32.mrf.mxu0
  %6146 = vdwg.mxu0
  %6147 = vmatpush.bf16.msra.mxu0 %v4352
  %6148 = vmatpush.bf16.msra.mxu0 %v4344
  %6149 = vmatpush.bf16.msra.mxu0 %v4336
  %6150 = vmatpush.bf16.msra.mxu0 %v4328
  %6151 = vmatpush.bf16.msra.mxu0 %v4320
  %6152 = vmatpush.bf16.msra.mxu0 %v4312
  %6153 = vmatpush.bf16.msra.mxu0 %v4304
  %6154 = vmatpush.bf16.msra.mxu0 %v4296
  %6155 = vmatmul.bf16.gmra.mxu0 %v6079
  %v6156 = vpop.f32.mrf.mxu0
  %v6157 = vadd.f32 %v6144, %v6156
  %v6158 = vpop.f32.mrf.mxu0
  %6159 = vdwg.mxu0
  %6160 = vmatpush.bf16.msra.mxu0 %v4289
  %6161 = vmatpush.bf16.msra.mxu0 %v4281
  %6162 = vmatpush.bf16.msra.mxu0 %v4273
  %6163 = vmatpush.bf16.msra.mxu0 %v4265
  %6164 = vmatpush.bf16.msra.mxu0 %v4257
  %6165 = vmatpush.bf16.msra.mxu0 %v4249
  %6166 = vmatpush.bf16.msra.mxu0 %v4241
  %6167 = vmatpush.bf16.msra.mxu0 %v4233
  %6168 = vmatmul.bf16.gmra.mxu0 %v6078
  %v6169 = vpop.f32.mrf.mxu0
  %v6170 = vadd.f32 0.0, %v6169
  %v6171 = vpop.f32.mrf.mxu0
  %6172 = vdwg.mxu0
  %6173 = vmatpush.bf16.msra.mxu0 %v4353
  %6174 = vmatpush.bf16.msra.mxu0 %v4345
  %6175 = vmatpush.bf16.msra.mxu0 %v4337
  %6176 = vmatpush.bf16.msra.mxu0 %v4329
  %6177 = vmatpush.bf16.msra.mxu0 %v4321
  %6178 = vmatpush.bf16.msra.mxu0 %v4313
  %6179 = vmatpush.bf16.msra.mxu0 %v4305
  %6180 = vmatpush.bf16.msra.mxu0 %v4297
  %6181 = vmatmul.bf16.gmra.mxu0 %v6079
  %v6182 = vpop.f32.mrf.mxu0
  %v6183 = vadd.f32 %v6170, %v6182
  %v6184 = vpop.f32.mrf.mxu0
  %6185 = vdwg.mxu0
  %6186 = vmatpush.bf16.msra.mxu0 %v4290
  %6187 = vmatpush.bf16.msra.mxu0 %v4282
  %6188 = vmatpush.bf16.msra.mxu0 %v4274
  %6189 = vmatpush.bf16.msra.mxu0 %v4266
  %6190 = vmatpush.bf16.msra.mxu0 %v4258
  %6191 = vmatpush.bf16.msra.mxu0 %v4250
  %6192 = vmatpush.bf16.msra.mxu0 %v4242
  %6193 = vmatpush.bf16.msra.mxu0 %v4234
  %6194 = vmatmul.bf16.gmra.mxu0 %v6078
  %v6195 = vpop.f32.mrf.mxu0
  %v6196 = vadd.f32 0.0, %v6195
  %v6197 = vpop.f32.mrf.mxu0
  %6198 = vdwg.mxu0
  %6199 = vmatpush.bf16.msra.mxu0 %v4354
  %6200 = vmatpush.bf16.msra.mxu0 %v4346
  %6201 = vmatpush.bf16.msra.mxu0 %v4338
  %6202 = vmatpush.bf16.msra.mxu0 %v4330
  %6203 = vmatpush.bf16.msra.mxu0 %v4322
  %6204 = vmatpush.bf16.msra.mxu0 %v4314
  %6205 = vmatpush.bf16.msra.mxu0 %v4306
  %6206 = vmatpush.bf16.msra.mxu0 %v4298
  %6207 = vmatmul.bf16.gmra.mxu0 %v6079
  %v6208 = vpop.f32.mrf.mxu0
  %v6209 = vadd.f32 %v6196, %v6208
  %v6210 = vpop.f32.mrf.mxu0
  %6211 = vdwg.mxu0
  %6212 = vmatpush.bf16.msra.mxu0 %v4291
  %6213 = vmatpush.bf16.msra.mxu0 %v4283
  %6214 = vmatpush.bf16.msra.mxu0 %v4275
  %6215 = vmatpush.bf16.msra.mxu0 %v4267
  %6216 = vmatpush.bf16.msra.mxu0 %v4259
  %6217 = vmatpush.bf16.msra.mxu0 %v4251
  %6218 = vmatpush.bf16.msra.mxu0 %v4243
  %6219 = vmatpush.bf16.msra.mxu0 %v4235
  %6220 = vmatmul.bf16.gmra.mxu0 %v6078
  %v6221 = vpop.f32.mrf.mxu0
  %v6222 = vadd.f32 0.0, %v6221
  %v6223 = vpop.f32.mrf.mxu0
  %6224 = vdwg.mxu0
  %6225 = vmatpush.bf16.msra.mxu0 %v4355
  %6226 = vmatpush.bf16.msra.mxu0 %v4347
  %6227 = vmatpush.bf16.msra.mxu0 %v4339
  %6228 = vmatpush.bf16.msra.mxu0 %v4331
  %6229 = vmatpush.bf16.msra.mxu0 %v4323
  %6230 = vmatpush.bf16.msra.mxu0 %v4315
  %6231 = vmatpush.bf16.msra.mxu0 %v4307
  %6232 = vmatpush.bf16.msra.mxu0 %v4299
  %6233 = vmatmul.bf16.gmra.mxu0 %v6079
  %v6234 = vpop.f32.mrf.mxu0
  %v6235 = vadd.f32 %v6222, %v6234
  %v6236 = vpop.f32.mrf.mxu0
  %6237 = vdwg.mxu0
  %6238 = vmatpush.bf16.msra.mxu0 %v4292
  %6239 = vmatpush.bf16.msra.mxu0 %v4284
  %6240 = vmatpush.bf16.msra.mxu0 %v4276
  %6241 = vmatpush.bf16.msra.mxu0 %v4268
  %6242 = vmatpush.bf16.msra.mxu0 %v4260
  %6243 = vmatpush.bf16.msra.mxu0 %v4252
  %6244 = vmatpush.bf16.msra.mxu0 %v4244
  %6245 = vmatpush.bf16.msra.mxu0 %v4236
  %6246 = vmatmul.bf16.gmra.mxu0 %v6078
  %v6247 = vpop.f32.mrf.mxu0
  %v6248 = vadd.f32 0.0, %v6247
  %v6249 = vpop.f32.mrf.mxu0
  %6250 = vdwg.mxu0
  %6251 = vmatpush.bf16.msra.mxu0 %v4356
  %6252 = vmatpush.bf16.msra.mxu0 %v4348
  %6253 = vmatpush.bf16.msra.mxu0 %v4340
  %6254 = vmatpush.bf16.msra.mxu0 %v4332
  %6255 = vmatpush.bf16.msra.mxu0 %v4324
  %6256 = vmatpush.bf16.msra.mxu0 %v4316
  %6257 = vmatpush.bf16.msra.mxu0 %v4308
  %6258 = vmatpush.bf16.msra.mxu0 %v4300
  %6259 = vmatmul.bf16.gmra.mxu0 %v6079
  %v6260 = vpop.f32.mrf.mxu0
  %v6261 = vadd.f32 %v6248, %v6260
  %v6262 = vpop.f32.mrf.mxu0
  %6263 = vdwg.mxu0
  %6264 = vmatpush.bf16.msra.mxu0 %v4293
  %6265 = vmatpush.bf16.msra.mxu0 %v4285
  %6266 = vmatpush.bf16.msra.mxu0 %v4277
  %6267 = vmatpush.bf16.msra.mxu0 %v4269
  %6268 = vmatpush.bf16.msra.mxu0 %v4261
  %6269 = vmatpush.bf16.msra.mxu0 %v4253
  %6270 = vmatpush.bf16.msra.mxu0 %v4245
  %6271 = vmatpush.bf16.msra.mxu0 %v4237
  %6272 = vmatmul.bf16.gmra.mxu0 %v6078
  %v6273 = vpop.f32.mrf.mxu0
  %v6274 = vadd.f32 0.0, %v6273
  %v6275 = vpop.f32.mrf.mxu0
  %6276 = vdwg.mxu0
  %6277 = vmatpush.bf16.msra.mxu0 %v4357
  %6278 = vmatpush.bf16.msra.mxu0 %v4349
  %6279 = vmatpush.bf16.msra.mxu0 %v4341
  %6280 = vmatpush.bf16.msra.mxu0 %v4333
  %6281 = vmatpush.bf16.msra.mxu0 %v4325
  %6282 = vmatpush.bf16.msra.mxu0 %v4317
  %6283 = vmatpush.bf16.msra.mxu0 %v4309
  %6284 = vmatpush.bf16.msra.mxu0 %v4301
  %6285 = vmatmul.bf16.gmra.mxu0 %v6079
  %v6286 = vpop.f32.mrf.mxu0
  %v6287 = vadd.f32 %v6274, %v6286
  %v6288 = vpop.f32.mrf.mxu0
  %6289 = vdwg.mxu0
  %v6290 = vadd.f32 %v6068, %v6105
  %v6291 = vadd.f32 %v6069, %v6131
  %v6292 = vadd.f32 %v6070, %v6157
  %v6293 = vadd.f32 %v6071, %v6183
  %v6294 = vadd.f32 %v6072, %v6209
  %v6295 = vadd.f32 %v6073, %v6235
  %v6296 = vadd.f32 %v6074, %v6261
  %v6297 = vadd.f32 %v6075, %v6287
  %v6298 = vtanh.pop %v6290
  %v6299 = vtanh.pop %v6291
  %v6300 = vtanh.pop %v6292
  %v6301 = vtanh.pop %v6293
  %v6302 = vtanh.pop %v6294
  %v6303 = vtanh.pop %v6295
  %v6304 = vtanh.pop %v6296
  %v6305 = vtanh.pop %v6297
  %v6306 = vmul.f32 %v6298, 0.5
  %v6307 = vmul.f32 %v6299, 0.5
  %v6308 = vmul.f32 %v6300, 0.5
  %v6309 = vmul.f32 %v6301, 0.5
  %v6310 = vmul.f32 %v6302, 0.5
  %v6311 = vmul.f32 %v6303, 0.5
  %v6312 = vadd.f32 %v6306, 0.5
  %v6313 = vadd.f32 %v6307, 0.5
  %v6314 = vadd.f32 %v6308, 0.5
  %v6315 = vadd.f32 %v6309, 0.5
  %v6316 = vadd.f32 %v6310, 0.5
  %v6317 = vadd.f32 %v6311, 0.5
  %v6318 = vmul.f32 %v6314, %v6056
  %v6319 = vmul.f32 %v6315, %v6057
  %v6320 = vmul.f32 %v6312, %v6304
  %v6321 = vmul.f32 %v6313, %v6305
  %v6322 = vadd.f32 %v6318, %v6320
  %v6323 = vadd.f32 %v6319, %v6321
  %v6324 = vtanh.pop %v6322
  %v6325 = vtanh.pop %v6323
  %v6326 = vmul.f32 %v6316, %v6324
  %v6327 = vmul.f32 %v6317, %v6325
  %v6328 = vpack.c.bf16 %v6327, %v6326
  %6329 = vst [vmem:[#allocation9 + $0x38] sm:$0xf] %v6328
  %v6331 = vrot.slane %v6328, 4
  %6333 = vst [vmem:[#allocation9 + $0x44] sm:$0xf] %v6331
  %v6334 = vld [vmem:[#allocation8 + $0x200] sm:$0xff]
  %v6335 = vld [vmem:[#allocation8 + $0x208] sm:$0xff]
  %v6336 = vld [vmem:[#allocation8 + $0x210] sm:$0xff]
  %v6337 = vld [vmem:[#allocation8 + $0x218] sm:$0xff]
  %v6338 = vld [vmem:[#allocation8 + $0x220] sm:$0xff]
  %v6339 = vld [vmem:[#allocation8 + $0x228] sm:$0xff]
  %v6340 = vld [vmem:[#allocation8 + $0x230] sm:$0xff]
  %v6341 = vld [vmem:[#allocation8 + $0x238] sm:$0xff]
  %v6342 = vunpack.c.l.b16 %v6328
  %v6343 = vunpack.c.h.b16 %v6328
  %v6344 = vpack.c.b16 %v6342, %v6342
  %v6345 = vpack.c.b16 %v6343, %v6343
  %6348 = vmatpush.bf16.msra.mxu0 %v4286
  %6349 = vmatpush.bf16.msra.mxu0 %v4278
  %6350 = vmatpush.bf16.msra.mxu0 %v4270
  %6351 = vmatpush.bf16.msra.mxu0 %v4262
  %6352 = vmatpush.bf16.msra.mxu0 %v4254
  %6353 = vmatpush.bf16.msra.mxu0 %v4246
  %6354 = vmatpush.bf16.msra.mxu0 %v4238
  %6355 = vmatpush.bf16.msra.mxu0 %v4230
  %6356 = vmatmul.bf16.gmra.mxu0 %v6344
  %v6357 = vpop.f32.mrf.mxu0
  %v6358 = vadd.f32 0.0, %v6357
  %v6359 = vpop.f32.mrf.mxu0
  %6360 = vdwg.mxu0
  %6361 = vmatpush.bf16.msra.mxu0 %v4350
  %6362 = vmatpush.bf16.msra.mxu0 %v4342
  %6363 = vmatpush.bf16.msra.mxu0 %v4334
  %6364 = vmatpush.bf16.msra.mxu0 %v4326
  %6365 = vmatpush.bf16.msra.mxu0 %v4318
  %6366 = vmatpush.bf16.msra.mxu0 %v4310
  %6367 = vmatpush.bf16.msra.mxu0 %v4302
  %6368 = vmatpush.bf16.msra.mxu0 %v4294
  %6369 = vmatmul.bf16.gmra.mxu0 %v6345
  %v6370 = vpop.f32.mrf.mxu0
  %v6371 = vadd.f32 %v6358, %v6370
  %v6372 = vpop.f32.mrf.mxu0
  %6373 = vdwg.mxu0
  %6374 = vmatpush.bf16.msra.mxu0 %v4287
  %6375 = vmatpush.bf16.msra.mxu0 %v4279
  %6376 = vmatpush.bf16.msra.mxu0 %v4271
  %6377 = vmatpush.bf16.msra.mxu0 %v4263
  %6378 = vmatpush.bf16.msra.mxu0 %v4255
  %6379 = vmatpush.bf16.msra.mxu0 %v4247
  %6380 = vmatpush.bf16.msra.mxu0 %v4239
  %6381 = vmatpush.bf16.msra.mxu0 %v4231
  %6382 = vmatmul.bf16.gmra.mxu0 %v6344
  %v6383 = vpop.f32.mrf.mxu0
  %v6384 = vadd.f32 0.0, %v6383
  %v6385 = vpop.f32.mrf.mxu0
  %6386 = vdwg.mxu0
  %6387 = vmatpush.bf16.msra.mxu0 %v4351
  %6388 = vmatpush.bf16.msra.mxu0 %v4343
  %6389 = vmatpush.bf16.msra.mxu0 %v4335
  %6390 = vmatpush.bf16.msra.mxu0 %v4327
  %6391 = vmatpush.bf16.msra.mxu0 %v4319
  %6392 = vmatpush.bf16.msra.mxu0 %v4311
  %6393 = vmatpush.bf16.msra.mxu0 %v4303
  %6394 = vmatpush.bf16.msra.mxu0 %v4295
  %6395 = vmatmul.bf16.gmra.mxu0 %v6345
  %v6396 = vpop.f32.mrf.mxu0
  %v6397 = vadd.f32 %v6384, %v6396
  %v6398 = vpop.f32.mrf.mxu0
  %6399 = vdwg.mxu0
  %6400 = vmatpush.bf16.msra.mxu0 %v4288
  %6401 = vmatpush.bf16.msra.mxu0 %v4280
  %6402 = vmatpush.bf16.msra.mxu0 %v4272
  %6403 = vmatpush.bf16.msra.mxu0 %v4264
  %6404 = vmatpush.bf16.msra.mxu0 %v4256
  %6405 = vmatpush.bf16.msra.mxu0 %v4248
  %6406 = vmatpush.bf16.msra.mxu0 %v4240
  %6407 = vmatpush.bf16.msra.mxu0 %v4232
  %6408 = vmatmul.bf16.gmra.mxu0 %v6344
  %v6409 = vpop.f32.mrf.mxu0
  %v6410 = vadd.f32 0.0, %v6409
  %v6411 = vpop.f32.mrf.mxu0
  %6412 = vdwg.mxu0
  %6413 = vmatpush.bf16.msra.mxu0 %v4352
  %6414 = vmatpush.bf16.msra.mxu0 %v4344
  %6415 = vmatpush.bf16.msra.mxu0 %v4336
  %6416 = vmatpush.bf16.msra.mxu0 %v4328
  %6417 = vmatpush.bf16.msra.mxu0 %v4320
  %6418 = vmatpush.bf16.msra.mxu0 %v4312
  %6419 = vmatpush.bf16.msra.mxu0 %v4304
  %6420 = vmatpush.bf16.msra.mxu0 %v4296
  %6421 = vmatmul.bf16.gmra.mxu0 %v6345
  %v6422 = vpop.f32.mrf.mxu0
  %v6423 = vadd.f32 %v6410, %v6422
  %v6424 = vpop.f32.mrf.mxu0
  %6425 = vdwg.mxu0
  %6426 = vmatpush.bf16.msra.mxu0 %v4289
  %6427 = vmatpush.bf16.msra.mxu0 %v4281
  %6428 = vmatpush.bf16.msra.mxu0 %v4273
  %6429 = vmatpush.bf16.msra.mxu0 %v4265
  %6430 = vmatpush.bf16.msra.mxu0 %v4257
  %6431 = vmatpush.bf16.msra.mxu0 %v4249
  %6432 = vmatpush.bf16.msra.mxu0 %v4241
  %6433 = vmatpush.bf16.msra.mxu0 %v4233
  %6434 = vmatmul.bf16.gmra.mxu0 %v6344
  %v6435 = vpop.f32.mrf.mxu0
  %v6436 = vadd.f32 0.0, %v6435
  %v6437 = vpop.f32.mrf.mxu0
  %6438 = vdwg.mxu0
  %6439 = vmatpush.bf16.msra.mxu0 %v4353
  %6440 = vmatpush.bf16.msra.mxu0 %v4345
  %6441 = vmatpush.bf16.msra.mxu0 %v4337
  %6442 = vmatpush.bf16.msra.mxu0 %v4329
  %6443 = vmatpush.bf16.msra.mxu0 %v4321
  %6444 = vmatpush.bf16.msra.mxu0 %v4313
  %6445 = vmatpush.bf16.msra.mxu0 %v4305
  %6446 = vmatpush.bf16.msra.mxu0 %v4297
  %6447 = vmatmul.bf16.gmra.mxu0 %v6345
  %v6448 = vpop.f32.mrf.mxu0
  %v6449 = vadd.f32 %v6436, %v6448
  %v6450 = vpop.f32.mrf.mxu0
  %6451 = vdwg.mxu0
  %6452 = vmatpush.bf16.msra.mxu0 %v4290
  %6453 = vmatpush.bf16.msra.mxu0 %v4282
  %6454 = vmatpush.bf16.msra.mxu0 %v4274
  %6455 = vmatpush.bf16.msra.mxu0 %v4266
  %6456 = vmatpush.bf16.msra.mxu0 %v4258
  %6457 = vmatpush.bf16.msra.mxu0 %v4250
  %6458 = vmatpush.bf16.msra.mxu0 %v4242
  %6459 = vmatpush.bf16.msra.mxu0 %v4234
  %6460 = vmatmul.bf16.gmra.mxu0 %v6344
  %v6461 = vpop.f32.mrf.mxu0
  %v6462 = vadd.f32 0.0, %v6461
  %v6463 = vpop.f32.mrf.mxu0
  %6464 = vdwg.mxu0
  %6465 = vmatpush.bf16.msra.mxu0 %v4354
  %6466 = vmatpush.bf16.msra.mxu0 %v4346
  %6467 = vmatpush.bf16.msra.mxu0 %v4338
  %6468 = vmatpush.bf16.msra.mxu0 %v4330
  %6469 = vmatpush.bf16.msra.mxu0 %v4322
  %6470 = vmatpush.bf16.msra.mxu0 %v4314
  %6471 = vmatpush.bf16.msra.mxu0 %v4306
  %6472 = vmatpush.bf16.msra.mxu0 %v4298
  %6473 = vmatmul.bf16.gmra.mxu0 %v6345
  %v6474 = vpop.f32.mrf.mxu0
  %v6475 = vadd.f32 %v6462, %v6474
  %v6476 = vpop.f32.mrf.mxu0
  %6477 = vdwg.mxu0
  %6478 = vmatpush.bf16.msra.mxu0 %v4291
  %6479 = vmatpush.bf16.msra.mxu0 %v4283
  %6480 = vmatpush.bf16.msra.mxu0 %v4275
  %6481 = vmatpush.bf16.msra.mxu0 %v4267
  %6482 = vmatpush.bf16.msra.mxu0 %v4259
  %6483 = vmatpush.bf16.msra.mxu0 %v4251
  %6484 = vmatpush.bf16.msra.mxu0 %v4243
  %6485 = vmatpush.bf16.msra.mxu0 %v4235
  %6486 = vmatmul.bf16.gmra.mxu0 %v6344
  %v6487 = vpop.f32.mrf.mxu0
  %v6488 = vadd.f32 0.0, %v6487
  %v6489 = vpop.f32.mrf.mxu0
  %6490 = vdwg.mxu0
  %6491 = vmatpush.bf16.msra.mxu0 %v4355
  %6492 = vmatpush.bf16.msra.mxu0 %v4347
  %6493 = vmatpush.bf16.msra.mxu0 %v4339
  %6494 = vmatpush.bf16.msra.mxu0 %v4331
  %6495 = vmatpush.bf16.msra.mxu0 %v4323
  %6496 = vmatpush.bf16.msra.mxu0 %v4315
  %6497 = vmatpush.bf16.msra.mxu0 %v4307
  %6498 = vmatpush.bf16.msra.mxu0 %v4299
  %6499 = vmatmul.bf16.gmra.mxu0 %v6345
  %v6500 = vpop.f32.mrf.mxu0
  %v6501 = vadd.f32 %v6488, %v6500
  %v6502 = vpop.f32.mrf.mxu0
  %6503 = vdwg.mxu0
  %6504 = vmatpush.bf16.msra.mxu0 %v4292
  %6505 = vmatpush.bf16.msra.mxu0 %v4284
  %6506 = vmatpush.bf16.msra.mxu0 %v4276
  %6507 = vmatpush.bf16.msra.mxu0 %v4268
  %6508 = vmatpush.bf16.msra.mxu0 %v4260
  %6509 = vmatpush.bf16.msra.mxu0 %v4252
  %6510 = vmatpush.bf16.msra.mxu0 %v4244
  %6511 = vmatpush.bf16.msra.mxu0 %v4236
  %6512 = vmatmul.bf16.gmra.mxu0 %v6344
  %v6513 = vpop.f32.mrf.mxu0
  %v6514 = vadd.f32 0.0, %v6513
  %v6515 = vpop.f32.mrf.mxu0
  %6516 = vdwg.mxu0
  %6517 = vmatpush.bf16.msra.mxu0 %v4356
  %6518 = vmatpush.bf16.msra.mxu0 %v4348
  %6519 = vmatpush.bf16.msra.mxu0 %v4340
  %6520 = vmatpush.bf16.msra.mxu0 %v4332
  %6521 = vmatpush.bf16.msra.mxu0 %v4324
  %6522 = vmatpush.bf16.msra.mxu0 %v4316
  %6523 = vmatpush.bf16.msra.mxu0 %v4308
  %6524 = vmatpush.bf16.msra.mxu0 %v4300
  %6525 = vmatmul.bf16.gmra.mxu0 %v6345
  %v6526 = vpop.f32.mrf.mxu0
  %v6527 = vadd.f32 %v6514, %v6526
  %v6528 = vpop.f32.mrf.mxu0
  %6529 = vdwg.mxu0
  %6530 = vmatpush.bf16.msra.mxu0 %v4293
  %6531 = vmatpush.bf16.msra.mxu0 %v4285
  %6532 = vmatpush.bf16.msra.mxu0 %v4277
  %6533 = vmatpush.bf16.msra.mxu0 %v4269
  %6534 = vmatpush.bf16.msra.mxu0 %v4261
  %6535 = vmatpush.bf16.msra.mxu0 %v4253
  %6536 = vmatpush.bf16.msra.mxu0 %v4245
  %6537 = vmatpush.bf16.msra.mxu0 %v4237
  %6538 = vmatmul.bf16.gmra.mxu0 %v6344
  %v6539 = vpop.f32.mrf.mxu0
  %v6540 = vadd.f32 0.0, %v6539
  %v6541 = vpop.f32.mrf.mxu0
  %6542 = vdwg.mxu0
  %6543 = vmatpush.bf16.msra.mxu0 %v4357
  %6544 = vmatpush.bf16.msra.mxu0 %v4349
  %6545 = vmatpush.bf16.msra.mxu0 %v4341
  %6546 = vmatpush.bf16.msra.mxu0 %v4333
  %6547 = vmatpush.bf16.msra.mxu0 %v4325
  %6548 = vmatpush.bf16.msra.mxu0 %v4317
  %6549 = vmatpush.bf16.msra.mxu0 %v4309
  %6550 = vmatpush.bf16.msra.mxu0 %v4301
  %6551 = vmatmul.bf16.gmra.mxu0 %v6345
  %v6552 = vpop.f32.mrf.mxu0
  %v6553 = vadd.f32 %v6540, %v6552
  %v6554 = vpop.f32.mrf.mxu0
  %6555 = vdwg.mxu0
  %v6556 = vadd.f32 %v6334, %v6371
  %v6557 = vadd.f32 %v6335, %v6397
  %v6558 = vadd.f32 %v6336, %v6423
  %v6559 = vadd.f32 %v6337, %v6449
  %v6560 = vadd.f32 %v6338, %v6475
  %v6561 = vadd.f32 %v6339, %v6501
  %v6562 = vadd.f32 %v6340, %v6527
  %v6563 = vadd.f32 %v6341, %v6553
  %v6564 = vtanh.pop %v6556
  %v6565 = vtanh.pop %v6557
  %v6566 = vtanh.pop %v6558
  %v6567 = vtanh.pop %v6559
  %v6568 = vtanh.pop %v6560
  %v6569 = vtanh.pop %v6561
  %v6570 = vtanh.pop %v6562
  %v6571 = vtanh.pop %v6563
  %v6572 = vmul.f32 %v6564, 0.5
  %v6573 = vmul.f32 %v6565, 0.5
  %v6574 = vmul.f32 %v6566, 0.5
  %v6575 = vmul.f32 %v6567, 0.5
  %v6576 = vmul.f32 %v6568, 0.5
  %v6577 = vmul.f32 %v6569, 0.5
  %v6578 = vadd.f32 %v6572, 0.5
  %v6579 = vadd.f32 %v6573, 0.5
  %v6580 = vadd.f32 %v6574, 0.5
  %v6581 = vadd.f32 %v6575, 0.5
  %v6582 = vadd.f32 %v6576, 0.5
  %v6583 = vadd.f32 %v6577, 0.5
  %v6584 = vmul.f32 %v6580, %v6322
  %v6585 = vmul.f32 %v6581, %v6323
  %v6586 = vmul.f32 %v6578, %v6570
  %v6587 = vmul.f32 %v6579, %v6571
  %v6588 = vadd.f32 %v6584, %v6586
  %v6589 = vadd.f32 %v6585, %v6587
  %v6590 = vtanh.pop %v6588
  %v6591 = vtanh.pop %v6589
  %v6592 = vmul.f32 %v6582, %v6590
  %v6593 = vmul.f32 %v6583, %v6591
  %v6594 = vpack.c.bf16 %v6593, %v6592
  %6595 = vst [vmem:[#allocation9 + $0x40] sm:$0xf] %v6594
  %v6597 = vrot.slane %v6594, 4
  %6599 = vst [vmem:[#allocation9 + $0x3c] sm:$0xf] %v6597
  %v6600 = vld [vmem:[#allocation8 + $0x240] sm:$0xff]
  %v6601 = vld [vmem:[#allocation8 + $0x248] sm:$0xff]
  %v6602 = vld [vmem:[#allocation8 + $0x250] sm:$0xff]
  %v6603 = vld [vmem:[#allocation8 + $0x258] sm:$0xff]
  %v6604 = vld [vmem:[#allocation8 + $0x260] sm:$0xff]
  %v6605 = vld [vmem:[#allocation8 + $0x268] sm:$0xff]
  %v6606 = vld [vmem:[#allocation8 + $0x270] sm:$0xff]
  %v6607 = vld [vmem:[#allocation8 + $0x278] sm:$0xff]
  %v6608 = vunpack.c.l.b16 %v6594
  %v6609 = vunpack.c.h.b16 %v6594
  %v6610 = vpack.c.b16 %v6608, %v6608
  %v6611 = vpack.c.b16 %v6609, %v6609
  %6614 = vmatpush.bf16.msra.mxu0 %v4286
  %6615 = vmatpush.bf16.msra.mxu0 %v4278
  %6616 = vmatpush.bf16.msra.mxu0 %v4270
  %6617 = vmatpush.bf16.msra.mxu0 %v4262
  %6618 = vmatpush.bf16.msra.mxu0 %v4254
  %6619 = vmatpush.bf16.msra.mxu0 %v4246
  %6620 = vmatpush.bf16.msra.mxu0 %v4238
  %6621 = vmatpush.bf16.msra.mxu0 %v4230
  %6622 = vmatmul.bf16.gmra.mxu0 %v6610
  %v6623 = vpop.f32.mrf.mxu0
  %v6624 = vadd.f32 0.0, %v6623
  %v6625 = vpop.f32.mrf.mxu0
  %6626 = vdwg.mxu0
  %6627 = vmatpush.bf16.msra.mxu0 %v4350
  %6628 = vmatpush.bf16.msra.mxu0 %v4342
  %6629 = vmatpush.bf16.msra.mxu0 %v4334
  %6630 = vmatpush.bf16.msra.mxu0 %v4326
  %6631 = vmatpush.bf16.msra.mxu0 %v4318
  %6632 = vmatpush.bf16.msra.mxu0 %v4310
  %6633 = vmatpush.bf16.msra.mxu0 %v4302
  %6634 = vmatpush.bf16.msra.mxu0 %v4294
  %6635 = vmatmul.bf16.gmra.mxu0 %v6611
  %v6636 = vpop.f32.mrf.mxu0
  %v6637 = vadd.f32 %v6624, %v6636
  %v6638 = vpop.f32.mrf.mxu0
  %6639 = vdwg.mxu0
  %6640 = vmatpush.bf16.msra.mxu0 %v4287
  %6641 = vmatpush.bf16.msra.mxu0 %v4279
  %6642 = vmatpush.bf16.msra.mxu0 %v4271
  %6643 = vmatpush.bf16.msra.mxu0 %v4263
  %6644 = vmatpush.bf16.msra.mxu0 %v4255
  %6645 = vmatpush.bf16.msra.mxu0 %v4247
  %6646 = vmatpush.bf16.msra.mxu0 %v4239
  %6647 = vmatpush.bf16.msra.mxu0 %v4231
  %6648 = vmatmul.bf16.gmra.mxu0 %v6610
  %v6649 = vpop.f32.mrf.mxu0
  %v6650 = vadd.f32 0.0, %v6649
  %v6651 = vpop.f32.mrf.mxu0
  %6652 = vdwg.mxu0
  %6653 = vmatpush.bf16.msra.mxu0 %v4351
  %6654 = vmatpush.bf16.msra.mxu0 %v4343
  %6655 = vmatpush.bf16.msra.mxu0 %v4335
  %6656 = vmatpush.bf16.msra.mxu0 %v4327
  %6657 = vmatpush.bf16.msra.mxu0 %v4319
  %6658 = vmatpush.bf16.msra.mxu0 %v4311
  %6659 = vmatpush.bf16.msra.mxu0 %v4303
  %6660 = vmatpush.bf16.msra.mxu0 %v4295
  %6661 = vmatmul.bf16.gmra.mxu0 %v6611
  %v6662 = vpop.f32.mrf.mxu0
  %v6663 = vadd.f32 %v6650, %v6662
  %v6664 = vpop.f32.mrf.mxu0
  %6665 = vdwg.mxu0
  %6666 = vmatpush.bf16.msra.mxu0 %v4288
  %6667 = vmatpush.bf16.msra.mxu0 %v4280
  %6668 = vmatpush.bf16.msra.mxu0 %v4272
  %6669 = vmatpush.bf16.msra.mxu0 %v4264
  %6670 = vmatpush.bf16.msra.mxu0 %v4256
  %6671 = vmatpush.bf16.msra.mxu0 %v4248
  %6672 = vmatpush.bf16.msra.mxu0 %v4240
  %6673 = vmatpush.bf16.msra.mxu0 %v4232
  %6674 = vmatmul.bf16.gmra.mxu0 %v6610
  %v6675 = vpop.f32.mrf.mxu0
  %v6676 = vadd.f32 0.0, %v6675
  %v6677 = vpop.f32.mrf.mxu0
  %6678 = vdwg.mxu0
  %6679 = vmatpush.bf16.msra.mxu0 %v4352
  %6680 = vmatpush.bf16.msra.mxu0 %v4344
  %6681 = vmatpush.bf16.msra.mxu0 %v4336
  %6682 = vmatpush.bf16.msra.mxu0 %v4328
  %6683 = vmatpush.bf16.msra.mxu0 %v4320
  %6684 = vmatpush.bf16.msra.mxu0 %v4312
  %6685 = vmatpush.bf16.msra.mxu0 %v4304
  %6686 = vmatpush.bf16.msra.mxu0 %v4296
  %6687 = vmatmul.bf16.gmra.mxu0 %v6611
  %v6688 = vpop.f32.mrf.mxu0
  %v6689 = vadd.f32 %v6676, %v6688
  %v6690 = vpop.f32.mrf.mxu0
  %6691 = vdwg.mxu0
  %6692 = vmatpush.bf16.msra.mxu0 %v4289
  %6693 = vmatpush.bf16.msra.mxu0 %v4281
  %6694 = vmatpush.bf16.msra.mxu0 %v4273
  %6695 = vmatpush.bf16.msra.mxu0 %v4265
  %6696 = vmatpush.bf16.msra.mxu0 %v4257
  %6697 = vmatpush.bf16.msra.mxu0 %v4249
  %6698 = vmatpush.bf16.msra.mxu0 %v4241
  %6699 = vmatpush.bf16.msra.mxu0 %v4233
  %6700 = vmatmul.bf16.gmra.mxu0 %v6610
  %v6701 = vpop.f32.mrf.mxu0
  %v6702 = vadd.f32 0.0, %v6701
  %v6703 = vpop.f32.mrf.mxu0
  %6704 = vdwg.mxu0
  %6705 = vmatpush.bf16.msra.mxu0 %v4353
  %6706 = vmatpush.bf16.msra.mxu0 %v4345
  %6707 = vmatpush.bf16.msra.mxu0 %v4337
  %6708 = vmatpush.bf16.msra.mxu0 %v4329
  %6709 = vmatpush.bf16.msra.mxu0 %v4321
  %6710 = vmatpush.bf16.msra.mxu0 %v4313
  %6711 = vmatpush.bf16.msra.mxu0 %v4305
  %6712 = vmatpush.bf16.msra.mxu0 %v4297
  %6713 = vmatmul.bf16.gmra.mxu0 %v6611
  %v6714 = vpop.f32.mrf.mxu0
  %v6715 = vadd.f32 %v6702, %v6714
  %v6716 = vpop.f32.mrf.mxu0
  %6717 = vdwg.mxu0
  %6718 = vmatpush.bf16.msra.mxu0 %v4290
  %6719 = vmatpush.bf16.msra.mxu0 %v4282
  %6720 = vmatpush.bf16.msra.mxu0 %v4274
  %6721 = vmatpush.bf16.msra.mxu0 %v4266
  %6722 = vmatpush.bf16.msra.mxu0 %v4258
  %6723 = vmatpush.bf16.msra.mxu0 %v4250
  %6724 = vmatpush.bf16.msra.mxu0 %v4242
  %6725 = vmatpush.bf16.msra.mxu0 %v4234
  %6726 = vmatmul.bf16.gmra.mxu0 %v6610
  %v6727 = vpop.f32.mrf.mxu0
  %v6728 = vadd.f32 0.0, %v6727
  %v6729 = vpop.f32.mrf.mxu0
  %6730 = vdwg.mxu0
  %6731 = vmatpush.bf16.msra.mxu0 %v4354
  %6732 = vmatpush.bf16.msra.mxu0 %v4346
  %6733 = vmatpush.bf16.msra.mxu0 %v4338
  %6734 = vmatpush.bf16.msra.mxu0 %v4330
  %6735 = vmatpush.bf16.msra.mxu0 %v4322
  %6736 = vmatpush.bf16.msra.mxu0 %v4314
  %6737 = vmatpush.bf16.msra.mxu0 %v4306
  %6738 = vmatpush.bf16.msra.mxu0 %v4298
  %6739 = vmatmul.bf16.gmra.mxu0 %v6611
  %v6740 = vpop.f32.mrf.mxu0
  %v6741 = vadd.f32 %v6728, %v6740
  %v6742 = vpop.f32.mrf.mxu0
  %6743 = vdwg.mxu0
  %6744 = vmatpush.bf16.msra.mxu0 %v4291
  %6745 = vmatpush.bf16.msra.mxu0 %v4283
  %6746 = vmatpush.bf16.msra.mxu0 %v4275
  %6747 = vmatpush.bf16.msra.mxu0 %v4267
  %6748 = vmatpush.bf16.msra.mxu0 %v4259
  %6749 = vmatpush.bf16.msra.mxu0 %v4251
  %6750 = vmatpush.bf16.msra.mxu0 %v4243
  %6751 = vmatpush.bf16.msra.mxu0 %v4235
  %6752 = vmatmul.bf16.gmra.mxu0 %v6610
  %v6753 = vpop.f32.mrf.mxu0
  %v6754 = vadd.f32 0.0, %v6753
  %v6755 = vpop.f32.mrf.mxu0
  %6756 = vdwg.mxu0
  %6757 = vmatpush.bf16.msra.mxu0 %v4355
  %6758 = vmatpush.bf16.msra.mxu0 %v4347
  %6759 = vmatpush.bf16.msra.mxu0 %v4339
  %6760 = vmatpush.bf16.msra.mxu0 %v4331
  %6761 = vmatpush.bf16.msra.mxu0 %v4323
  %6762 = vmatpush.bf16.msra.mxu0 %v4315
  %6763 = vmatpush.bf16.msra.mxu0 %v4307
  %6764 = vmatpush.bf16.msra.mxu0 %v4299
  %6765 = vmatmul.bf16.gmra.mxu0 %v6611
  %v6766 = vpop.f32.mrf.mxu0
  %v6767 = vadd.f32 %v6754, %v6766
  %v6768 = vpop.f32.mrf.mxu0
  %6769 = vdwg.mxu0
  %6770 = vmatpush.bf16.msra.mxu0 %v4292
  %6771 = vmatpush.bf16.msra.mxu0 %v4284
  %6772 = vmatpush.bf16.msra.mxu0 %v4276
  %6773 = vmatpush.bf16.msra.mxu0 %v4268
  %6774 = vmatpush.bf16.msra.mxu0 %v4260
  %6775 = vmatpush.bf16.msra.mxu0 %v4252
  %6776 = vmatpush.bf16.msra.mxu0 %v4244
  %6777 = vmatpush.bf16.msra.mxu0 %v4236
  %6778 = vmatmul.bf16.gmra.mxu0 %v6610
  %v6779 = vpop.f32.mrf.mxu0
  %v6780 = vadd.f32 0.0, %v6779
  %v6781 = vpop.f32.mrf.mxu0
  %6782 = vdwg.mxu0
  %6783 = vmatpush.bf16.msra.mxu0 %v4356
  %6784 = vmatpush.bf16.msra.mxu0 %v4348
  %6785 = vmatpush.bf16.msra.mxu0 %v4340
  %6786 = vmatpush.bf16.msra.mxu0 %v4332
  %6787 = vmatpush.bf16.msra.mxu0 %v4324
  %6788 = vmatpush.bf16.msra.mxu0 %v4316
  %6789 = vmatpush.bf16.msra.mxu0 %v4308
  %6790 = vmatpush.bf16.msra.mxu0 %v4300
  %6791 = vmatmul.bf16.gmra.mxu0 %v6611
  %v6792 = vpop.f32.mrf.mxu0
  %v6793 = vadd.f32 %v6780, %v6792
  %v6794 = vpop.f32.mrf.mxu0
  %6795 = vdwg.mxu0
  %6796 = vmatpush.bf16.msra.mxu0 %v4293
  %6797 = vmatpush.bf16.msra.mxu0 %v4285
  %6798 = vmatpush.bf16.msra.mxu0 %v4277
  %6799 = vmatpush.bf16.msra.mxu0 %v4269
  %6800 = vmatpush.bf16.msra.mxu0 %v4261
  %6801 = vmatpush.bf16.msra.mxu0 %v4253
  %6802 = vmatpush.bf16.msra.mxu0 %v4245
  %6803 = vmatpush.bf16.msra.mxu0 %v4237
  %6804 = vmatmul.bf16.gmra.mxu0 %v6610
  %v6805 = vpop.f32.mrf.mxu0
  %v6806 = vadd.f32 0.0, %v6805
  %v6807 = vpop.f32.mrf.mxu0
  %6808 = vdwg.mxu0
  %6809 = vmatpush.bf16.msra.mxu0 %v4357
  %6810 = vmatpush.bf16.msra.mxu0 %v4349
  %6811 = vmatpush.bf16.msra.mxu0 %v4341
  %6812 = vmatpush.bf16.msra.mxu0 %v4333
  %6813 = vmatpush.bf16.msra.mxu0 %v4325
  %6814 = vmatpush.bf16.msra.mxu0 %v4317
  %6815 = vmatpush.bf16.msra.mxu0 %v4309
  %6816 = vmatpush.bf16.msra.mxu0 %v4301
  %6817 = vmatmul.bf16.gmra.mxu0 %v6611
  %v6818 = vpop.f32.mrf.mxu0
  %v6819 = vadd.f32 %v6806, %v6818
  %v6820 = vpop.f32.mrf.mxu0
  %6821 = vdwg.mxu0
  %v6822 = vadd.f32 %v6600, %v6637
  %v6823 = vadd.f32 %v6601, %v6663
  %v6824 = vadd.f32 %v6602, %v6689
  %v6825 = vadd.f32 %v6603, %v6715
  %v6826 = vadd.f32 %v6604, %v6741
  %v6827 = vadd.f32 %v6605, %v6767
  %v6828 = vadd.f32 %v6606, %v6793
  %v6829 = vadd.f32 %v6607, %v6819
  %v6830 = vtanh.pop %v6822
  %v6831 = vtanh.pop %v6823
  %v6832 = vtanh.pop %v6824
  %v6833 = vtanh.pop %v6825
  %v6834 = vtanh.pop %v6826
  %v6835 = vtanh.pop %v6827
  %v6836 = vtanh.pop %v6828
  %v6837 = vtanh.pop %v6829
  %v6838 = vmul.f32 %v6830, 0.5
  %v6839 = vmul.f32 %v6831, 0.5
  %v6840 = vmul.f32 %v6832, 0.5
  %v6841 = vmul.f32 %v6833, 0.5
  %v6842 = vmul.f32 %v6834, 0.5
  %v6843 = vmul.f32 %v6835, 0.5
  %v6844 = vadd.f32 %v6838, 0.5
  %v6845 = vadd.f32 %v6839, 0.5
  %v6846 = vadd.f32 %v6840, 0.5
  %v6847 = vadd.f32 %v6841, 0.5
  %v6848 = vadd.f32 %v6842, 0.5
  %v6849 = vadd.f32 %v6843, 0.5
  %v6850 = vmul.f32 %v6846, %v6588
  %v6851 = vmul.f32 %v6847, %v6589
  %v6852 = vmul.f32 %v6844, %v6836
  %v6853 = vmul.f32 %v6845, %v6837
  %v6854 = vadd.f32 %v6850, %v6852
  %v6855 = vadd.f32 %v6851, %v6853
  %v6856 = vtanh.pop %v6854
  %v6857 = vtanh.pop %v6855
  %v6858 = vmul.f32 %v6848, %v6856
  %v6859 = vmul.f32 %v6849, %v6857
  %v6860 = vpack.c.bf16 %v6859, %v6858
  %6861 = vst [vmem:[#allocation9 + $0x48] sm:$0xf] %v6860
  %v6863 = vrot.slane %v6860, 4
  %6865 = vst [vmem:[#allocation9 + $0x34] sm:$0xf] %v6863
  %v6866 = vld [vmem:[#allocation8 + $0x280] sm:$0xff]
  %v6867 = vld [vmem:[#allocation8 + $0x288] sm:$0xff]
  %v6868 = vld [vmem:[#allocation8 + $0x290] sm:$0xff]
  %v6869 = vld [vmem:[#allocation8 + $0x298] sm:$0xff]
  %v6870 = vld [vmem:[#allocation8 + $0x2a0] sm:$0xff]
  %v6871 = vld [vmem:[#allocation8 + $0x2a8] sm:$0xff]
  %v6872 = vld [vmem:[#allocation8 + $0x2b0] sm:$0xff]
  %v6873 = vld [vmem:[#allocation8 + $0x2b8] sm:$0xff]
  %v6874 = vunpack.c.l.b16 %v6860
  %v6875 = vunpack.c.h.b16 %v6860
  %v6876 = vpack.c.b16 %v6874, %v6874
  %v6877 = vpack.c.b16 %v6875, %v6875
  %6880 = vmatpush.bf16.msra.mxu0 %v4286
  %6881 = vmatpush.bf16.msra.mxu0 %v4278
  %6882 = vmatpush.bf16.msra.mxu0 %v4270
  %6883 = vmatpush.bf16.msra.mxu0 %v4262
  %6884 = vmatpush.bf16.msra.mxu0 %v4254
  %6885 = vmatpush.bf16.msra.mxu0 %v4246
  %6886 = vmatpush.bf16.msra.mxu0 %v4238
  %6887 = vmatpush.bf16.msra.mxu0 %v4230
  %6888 = vmatmul.bf16.gmra.mxu0 %v6876
  %v6889 = vpop.f32.mrf.mxu0
  %v6890 = vadd.f32 0.0, %v6889
  %v6891 = vpop.f32.mrf.mxu0
  %6892 = vdwg.mxu0
  %6893 = vmatpush.bf16.msra.mxu0 %v4350
  %6894 = vmatpush.bf16.msra.mxu0 %v4342
  %6895 = vmatpush.bf16.msra.mxu0 %v4334
  %6896 = vmatpush.bf16.msra.mxu0 %v4326
  %6897 = vmatpush.bf16.msra.mxu0 %v4318
  %6898 = vmatpush.bf16.msra.mxu0 %v4310
  %6899 = vmatpush.bf16.msra.mxu0 %v4302
  %6900 = vmatpush.bf16.msra.mxu0 %v4294
  %6901 = vmatmul.bf16.gmra.mxu0 %v6877
  %v6902 = vpop.f32.mrf.mxu0
  %v6903 = vadd.f32 %v6890, %v6902
  %v6904 = vpop.f32.mrf.mxu0
  %6905 = vdwg.mxu0
  %6906 = vmatpush.bf16.msra.mxu0 %v4287
  %6907 = vmatpush.bf16.msra.mxu0 %v4279
  %6908 = vmatpush.bf16.msra.mxu0 %v4271
  %6909 = vmatpush.bf16.msra.mxu0 %v4263
  %6910 = vmatpush.bf16.msra.mxu0 %v4255
  %6911 = vmatpush.bf16.msra.mxu0 %v4247
  %6912 = vmatpush.bf16.msra.mxu0 %v4239
  %6913 = vmatpush.bf16.msra.mxu0 %v4231
  %6914 = vmatmul.bf16.gmra.mxu0 %v6876
  %v6915 = vpop.f32.mrf.mxu0
  %v6916 = vadd.f32 0.0, %v6915
  %v6917 = vpop.f32.mrf.mxu0
  %6918 = vdwg.mxu0
  %6919 = vmatpush.bf16.msra.mxu0 %v4351
  %6920 = vmatpush.bf16.msra.mxu0 %v4343
  %6921 = vmatpush.bf16.msra.mxu0 %v4335
  %6922 = vmatpush.bf16.msra.mxu0 %v4327
  %6923 = vmatpush.bf16.msra.mxu0 %v4319
  %6924 = vmatpush.bf16.msra.mxu0 %v4311
  %6925 = vmatpush.bf16.msra.mxu0 %v4303
  %6926 = vmatpush.bf16.msra.mxu0 %v4295
  %6927 = vmatmul.bf16.gmra.mxu0 %v6877
  %v6928 = vpop.f32.mrf.mxu0
  %v6929 = vadd.f32 %v6916, %v6928
  %v6930 = vpop.f32.mrf.mxu0
  %6931 = vdwg.mxu0
  %6932 = vmatpush.bf16.msra.mxu0 %v4288
  %6933 = vmatpush.bf16.msra.mxu0 %v4280
  %6934 = vmatpush.bf16.msra.mxu0 %v4272
  %6935 = vmatpush.bf16.msra.mxu0 %v4264
  %6936 = vmatpush.bf16.msra.mxu0 %v4256
  %6937 = vmatpush.bf16.msra.mxu0 %v4248
  %6938 = vmatpush.bf16.msra.mxu0 %v4240
  %6939 = vmatpush.bf16.msra.mxu0 %v4232
  %6940 = vmatmul.bf16.gmra.mxu0 %v6876
  %v6941 = vpop.f32.mrf.mxu0
  %v6942 = vadd.f32 0.0, %v6941
  %v6943 = vpop.f32.mrf.mxu0
  %6944 = vdwg.mxu0
  %6945 = vmatpush.bf16.msra.mxu0 %v4352
  %6946 = vmatpush.bf16.msra.mxu0 %v4344
  %6947 = vmatpush.bf16.msra.mxu0 %v4336
  %6948 = vmatpush.bf16.msra.mxu0 %v4328
  %6949 = vmatpush.bf16.msra.mxu0 %v4320
  %6950 = vmatpush.bf16.msra.mxu0 %v4312
  %6951 = vmatpush.bf16.msra.mxu0 %v4304
  %6952 = vmatpush.bf16.msra.mxu0 %v4296
  %6953 = vmatmul.bf16.gmra.mxu0 %v6877
  %v6954 = vpop.f32.mrf.mxu0
  %v6955 = vadd.f32 %v6942, %v6954
  %v6956 = vpop.f32.mrf.mxu0
  %6957 = vdwg.mxu0
  %6958 = vmatpush.bf16.msra.mxu0 %v4289
  %6959 = vmatpush.bf16.msra.mxu0 %v4281
  %6960 = vmatpush.bf16.msra.mxu0 %v4273
  %6961 = vmatpush.bf16.msra.mxu0 %v4265
  %6962 = vmatpush.bf16.msra.mxu0 %v4257
  %6963 = vmatpush.bf16.msra.mxu0 %v4249
  %6964 = vmatpush.bf16.msra.mxu0 %v4241
  %6965 = vmatpush.bf16.msra.mxu0 %v4233
  %6966 = vmatmul.bf16.gmra.mxu0 %v6876
  %v6967 = vpop.f32.mrf.mxu0
  %v6968 = vadd.f32 0.0, %v6967
  %v6969 = vpop.f32.mrf.mxu0
  %6970 = vdwg.mxu0
  %6971 = vmatpush.bf16.msra.mxu0 %v4353
  %6972 = vmatpush.bf16.msra.mxu0 %v4345
  %6973 = vmatpush.bf16.msra.mxu0 %v4337
  %6974 = vmatpush.bf16.msra.mxu0 %v4329
  %6975 = vmatpush.bf16.msra.mxu0 %v4321
  %6976 = vmatpush.bf16.msra.mxu0 %v4313
  %6977 = vmatpush.bf16.msra.mxu0 %v4305
  %6978 = vmatpush.bf16.msra.mxu0 %v4297
  %6979 = vmatmul.bf16.gmra.mxu0 %v6877
  %v6980 = vpop.f32.mrf.mxu0
  %v6981 = vadd.f32 %v6968, %v6980
  %v6982 = vpop.f32.mrf.mxu0
  %6983 = vdwg.mxu0
  %6984 = vmatpush.bf16.msra.mxu0 %v4290
  %6985 = vmatpush.bf16.msra.mxu0 %v4282
  %6986 = vmatpush.bf16.msra.mxu0 %v4274
  %6987 = vmatpush.bf16.msra.mxu0 %v4266
  %6988 = vmatpush.bf16.msra.mxu0 %v4258
  %6989 = vmatpush.bf16.msra.mxu0 %v4250
  %6990 = vmatpush.bf16.msra.mxu0 %v4242
  %6991 = vmatpush.bf16.msra.mxu0 %v4234
  %6992 = vmatmul.bf16.gmra.mxu0 %v6876
  %v6993 = vpop.f32.mrf.mxu0
  %v6994 = vadd.f32 0.0, %v6993
  %v6995 = vpop.f32.mrf.mxu0
  %6996 = vdwg.mxu0
  %6997 = vmatpush.bf16.msra.mxu0 %v4354
  %6998 = vmatpush.bf16.msra.mxu0 %v4346
  %6999 = vmatpush.bf16.msra.mxu0 %v4338
  %7000 = vmatpush.bf16.msra.mxu0 %v4330
  %7001 = vmatpush.bf16.msra.mxu0 %v4322
  %7002 = vmatpush.bf16.msra.mxu0 %v4314
  %7003 = vmatpush.bf16.msra.mxu0 %v4306
  %7004 = vmatpush.bf16.msra.mxu0 %v4298
  %7005 = vmatmul.bf16.gmra.mxu0 %v6877
  %v7006 = vpop.f32.mrf.mxu0
  %v7007 = vadd.f32 %v6994, %v7006
  %v7008 = vpop.f32.mrf.mxu0
  %7009 = vdwg.mxu0
  %7010 = vmatpush.bf16.msra.mxu0 %v4291
  %7011 = vmatpush.bf16.msra.mxu0 %v4283
  %7012 = vmatpush.bf16.msra.mxu0 %v4275
  %7013 = vmatpush.bf16.msra.mxu0 %v4267
  %7014 = vmatpush.bf16.msra.mxu0 %v4259
  %7015 = vmatpush.bf16.msra.mxu0 %v4251
  %7016 = vmatpush.bf16.msra.mxu0 %v4243
  %7017 = vmatpush.bf16.msra.mxu0 %v4235
  %7018 = vmatmul.bf16.gmra.mxu0 %v6876
  %v7019 = vpop.f32.mrf.mxu0
  %v7020 = vadd.f32 0.0, %v7019
  %v7021 = vpop.f32.mrf.mxu0
  %7022 = vdwg.mxu0
  %7023 = vmatpush.bf16.msra.mxu0 %v4355
  %7024 = vmatpush.bf16.msra.mxu0 %v4347
  %7025 = vmatpush.bf16.msra.mxu0 %v4339
  %7026 = vmatpush.bf16.msra.mxu0 %v4331
  %7027 = vmatpush.bf16.msra.mxu0 %v4323
  %7028 = vmatpush.bf16.msra.mxu0 %v4315
  %7029 = vmatpush.bf16.msra.mxu0 %v4307
  %7030 = vmatpush.bf16.msra.mxu0 %v4299
  %7031 = vmatmul.bf16.gmra.mxu0 %v6877
  %v7032 = vpop.f32.mrf.mxu0
  %v7033 = vadd.f32 %v7020, %v7032
  %v7034 = vpop.f32.mrf.mxu0
  %7035 = vdwg.mxu0
  %7036 = vmatpush.bf16.msra.mxu0 %v4292
  %7037 = vmatpush.bf16.msra.mxu0 %v4284
  %7038 = vmatpush.bf16.msra.mxu0 %v4276
  %7039 = vmatpush.bf16.msra.mxu0 %v4268
  %7040 = vmatpush.bf16.msra.mxu0 %v4260
  %7041 = vmatpush.bf16.msra.mxu0 %v4252
  %7042 = vmatpush.bf16.msra.mxu0 %v4244
  %7043 = vmatpush.bf16.msra.mxu0 %v4236
  %7044 = vmatmul.bf16.gmra.mxu0 %v6876
  %v7045 = vpop.f32.mrf.mxu0
  %v7046 = vadd.f32 0.0, %v7045
  %v7047 = vpop.f32.mrf.mxu0
  %7048 = vdwg.mxu0
  %7049 = vmatpush.bf16.msra.mxu0 %v4356
  %7050 = vmatpush.bf16.msra.mxu0 %v4348
  %7051 = vmatpush.bf16.msra.mxu0 %v4340
  %7052 = vmatpush.bf16.msra.mxu0 %v4332
  %7053 = vmatpush.bf16.msra.mxu0 %v4324
  %7054 = vmatpush.bf16.msra.mxu0 %v4316
  %7055 = vmatpush.bf16.msra.mxu0 %v4308
  %7056 = vmatpush.bf16.msra.mxu0 %v4300
  %7057 = vmatmul.bf16.gmra.mxu0 %v6877
  %v7058 = vpop.f32.mrf.mxu0
  %v7059 = vadd.f32 %v7046, %v7058
  %v7060 = vpop.f32.mrf.mxu0
  %7061 = vdwg.mxu0
  %7062 = vmatpush.bf16.msra.mxu0 %v4293
  %7063 = vmatpush.bf16.msra.mxu0 %v4285
  %7064 = vmatpush.bf16.msra.mxu0 %v4277
  %7065 = vmatpush.bf16.msra.mxu0 %v4269
  %7066 = vmatpush.bf16.msra.mxu0 %v4261
  %7067 = vmatpush.bf16.msra.mxu0 %v4253
  %7068 = vmatpush.bf16.msra.mxu0 %v4245
  %7069 = vmatpush.bf16.msra.mxu0 %v4237
  %7070 = vmatmul.bf16.gmra.mxu0 %v6876
  %v7071 = vpop.f32.mrf.mxu0
  %v7072 = vadd.f32 0.0, %v7071
  %v7073 = vpop.f32.mrf.mxu0
  %7074 = vdwg.mxu0
  %7075 = vmatpush.bf16.msra.mxu0 %v4357
  %7076 = vmatpush.bf16.msra.mxu0 %v4349
  %7077 = vmatpush.bf16.msra.mxu0 %v4341
  %7078 = vmatpush.bf16.msra.mxu0 %v4333
  %7079 = vmatpush.bf16.msra.mxu0 %v4325
  %7080 = vmatpush.bf16.msra.mxu0 %v4317
  %7081 = vmatpush.bf16.msra.mxu0 %v4309
  %7082 = vmatpush.bf16.msra.mxu0 %v4301
  %7083 = vmatmul.bf16.gmra.mxu0 %v6877
  %v7084 = vpop.f32.mrf.mxu0
  %v7085 = vadd.f32 %v7072, %v7084
  %v7086 = vpop.f32.mrf.mxu0
  %7087 = vdwg.mxu0
  %v7088 = vadd.f32 %v6866, %v6903
  %v7089 = vadd.f32 %v6867, %v6929
  %v7090 = vadd.f32 %v6868, %v6955
  %v7091 = vadd.f32 %v6869, %v6981
  %v7092 = vadd.f32 %v6870, %v7007
  %v7093 = vadd.f32 %v6871, %v7033
  %v7094 = vadd.f32 %v6872, %v7059
  %v7095 = vadd.f32 %v6873, %v7085
  %v7096 = vtanh.pop %v7088
  %v7097 = vtanh.pop %v7089
  %v7098 = vtanh.pop %v7090
  %v7099 = vtanh.pop %v7091
  %v7100 = vtanh.pop %v7092
  %v7101 = vtanh.pop %v7093
  %v7102 = vtanh.pop %v7094
  %v7103 = vtanh.pop %v7095
  %v7104 = vmul.f32 %v7096, 0.5
  %v7105 = vmul.f32 %v7097, 0.5
  %v7106 = vmul.f32 %v7098, 0.5
  %v7107 = vmul.f32 %v7099, 0.5
  %v7108 = vmul.f32 %v7100, 0.5
  %v7109 = vmul.f32 %v7101, 0.5
  %v7110 = vadd.f32 %v7104, 0.5
  %v7111 = vadd.f32 %v7105, 0.5
  %v7112 = vadd.f32 %v7106, 0.5
  %v7113 = vadd.f32 %v7107, 0.5
  %v7114 = vadd.f32 %v7108, 0.5
  %v7115 = vadd.f32 %v7109, 0.5
  %v7116 = vmul.f32 %v7112, %v6854
  %v7117 = vmul.f32 %v7113, %v6855
  %v7118 = vmul.f32 %v7110, %v7102
  %v7119 = vmul.f32 %v7111, %v7103
  %v7120 = vadd.f32 %v7116, %v7118
  %v7121 = vadd.f32 %v7117, %v7119
  %v7122 = vtanh.pop %v7120
  %v7123 = vtanh.pop %v7121
  %v7124 = vmul.f32 %v7114, %v7122
  %v7125 = vmul.f32 %v7115, %v7123
  %v7126 = vpack.c.bf16 %v7125, %v7124
  %7127 = vst [vmem:[#allocation9 + $0x50] sm:$0xf] %v7126
  %v7129 = vrot.slane %v7126, 4
  %7131 = vst [vmem:[#allocation9 + $0x2c] sm:$0xf] %v7129
  %v7132 = vld [vmem:[#allocation8 + $0x2c0] sm:$0xff]
  %v7133 = vld [vmem:[#allocation8 + $0x2c8] sm:$0xff]
  %v7134 = vld [vmem:[#allocation8 + $0x2d0] sm:$0xff]
  %v7135 = vld [vmem:[#allocation8 + $0x2d8] sm:$0xff]
  %v7136 = vld [vmem:[#allocation8 + $0x2e0] sm:$0xff]
  %v7137 = vld [vmem:[#allocation8 + $0x2e8] sm:$0xff]
  %v7138 = vld [vmem:[#allocation8 + $0x2f0] sm:$0xff]
  %v7139 = vld [vmem:[#allocation8 + $0x2f8] sm:$0xff]
  %v7140 = vunpack.c.l.b16 %v7126
  %v7141 = vunpack.c.h.b16 %v7126
  %v7142 = vpack.c.b16 %v7140, %v7140
  %v7143 = vpack.c.b16 %v7141, %v7141
  %7146 = vmatpush.bf16.msra.mxu0 %v4286
  %7147 = vmatpush.bf16.msra.mxu0 %v4278
  %7148 = vmatpush.bf16.msra.mxu0 %v4270
  %7149 = vmatpush.bf16.msra.mxu0 %v4262
  %7150 = vmatpush.bf16.msra.mxu0 %v4254
  %7151 = vmatpush.bf16.msra.mxu0 %v4246
  %7152 = vmatpush.bf16.msra.mxu0 %v4238
  %7153 = vmatpush.bf16.msra.mxu0 %v4230
  %7154 = vmatmul.bf16.gmra.mxu0 %v7142
  %v7155 = vpop.f32.mrf.mxu0
  %v7156 = vadd.f32 0.0, %v7155
  %v7157 = vpop.f32.mrf.mxu0
  %7158 = vdwg.mxu0
  %7159 = vmatpush.bf16.msra.mxu0 %v4350
  %7160 = vmatpush.bf16.msra.mxu0 %v4342
  %7161 = vmatpush.bf16.msra.mxu0 %v4334
  %7162 = vmatpush.bf16.msra.mxu0 %v4326
  %7163 = vmatpush.bf16.msra.mxu0 %v4318
  %7164 = vmatpush.bf16.msra.mxu0 %v4310
  %7165 = vmatpush.bf16.msra.mxu0 %v4302
  %7166 = vmatpush.bf16.msra.mxu0 %v4294
  %7167 = vmatmul.bf16.gmra.mxu0 %v7143
  %v7168 = vpop.f32.mrf.mxu0
  %v7169 = vadd.f32 %v7156, %v7168
  %v7170 = vpop.f32.mrf.mxu0
  %7171 = vdwg.mxu0
  %7172 = vmatpush.bf16.msra.mxu0 %v4287
  %7173 = vmatpush.bf16.msra.mxu0 %v4279
  %7174 = vmatpush.bf16.msra.mxu0 %v4271
  %7175 = vmatpush.bf16.msra.mxu0 %v4263
  %7176 = vmatpush.bf16.msra.mxu0 %v4255
  %7177 = vmatpush.bf16.msra.mxu0 %v4247
  %7178 = vmatpush.bf16.msra.mxu0 %v4239
  %7179 = vmatpush.bf16.msra.mxu0 %v4231
  %7180 = vmatmul.bf16.gmra.mxu0 %v7142
  %v7181 = vpop.f32.mrf.mxu0
  %v7182 = vadd.f32 0.0, %v7181
  %v7183 = vpop.f32.mrf.mxu0
  %7184 = vdwg.mxu0
  %7185 = vmatpush.bf16.msra.mxu0 %v4351
  %7186 = vmatpush.bf16.msra.mxu0 %v4343
  %7187 = vmatpush.bf16.msra.mxu0 %v4335
  %7188 = vmatpush.bf16.msra.mxu0 %v4327
  %7189 = vmatpush.bf16.msra.mxu0 %v4319
  %7190 = vmatpush.bf16.msra.mxu0 %v4311
  %7191 = vmatpush.bf16.msra.mxu0 %v4303
  %7192 = vmatpush.bf16.msra.mxu0 %v4295
  %7193 = vmatmul.bf16.gmra.mxu0 %v7143
  %v7194 = vpop.f32.mrf.mxu0
  %v7195 = vadd.f32 %v7182, %v7194
  %v7196 = vpop.f32.mrf.mxu0
  %7197 = vdwg.mxu0
  %7198 = vmatpush.bf16.msra.mxu0 %v4288
  %7199 = vmatpush.bf16.msra.mxu0 %v4280
  %7200 = vmatpush.bf16.msra.mxu0 %v4272
  %7201 = vmatpush.bf16.msra.mxu0 %v4264
  %7202 = vmatpush.bf16.msra.mxu0 %v4256
  %7203 = vmatpush.bf16.msra.mxu0 %v4248
  %7204 = vmatpush.bf16.msra.mxu0 %v4240
  %7205 = vmatpush.bf16.msra.mxu0 %v4232
  %7206 = vmatmul.bf16.gmra.mxu0 %v7142
  %v7207 = vpop.f32.mrf.mxu0
  %v7208 = vadd.f32 0.0, %v7207
  %v7209 = vpop.f32.mrf.mxu0
  %7210 = vdwg.mxu0
  %7211 = vmatpush.bf16.msra.mxu0 %v4352
  %7212 = vmatpush.bf16.msra.mxu0 %v4344
  %7213 = vmatpush.bf16.msra.mxu0 %v4336
  %7214 = vmatpush.bf16.msra.mxu0 %v4328
  %7215 = vmatpush.bf16.msra.mxu0 %v4320
  %7216 = vmatpush.bf16.msra.mxu0 %v4312
  %7217 = vmatpush.bf16.msra.mxu0 %v4304
  %7218 = vmatpush.bf16.msra.mxu0 %v4296
  %7219 = vmatmul.bf16.gmra.mxu0 %v7143
  %v7220 = vpop.f32.mrf.mxu0
  %v7221 = vadd.f32 %v7208, %v7220
  %v7222 = vpop.f32.mrf.mxu0
  %7223 = vdwg.mxu0
  %7224 = vmatpush.bf16.msra.mxu0 %v4289
  %7225 = vmatpush.bf16.msra.mxu0 %v4281
  %7226 = vmatpush.bf16.msra.mxu0 %v4273
  %7227 = vmatpush.bf16.msra.mxu0 %v4265
  %7228 = vmatpush.bf16.msra.mxu0 %v4257
  %7229 = vmatpush.bf16.msra.mxu0 %v4249
  %7230 = vmatpush.bf16.msra.mxu0 %v4241
  %7231 = vmatpush.bf16.msra.mxu0 %v4233
  %7232 = vmatmul.bf16.gmra.mxu0 %v7142
  %v7233 = vpop.f32.mrf.mxu0
  %v7234 = vadd.f32 0.0, %v7233
  %v7235 = vpop.f32.mrf.mxu0
  %7236 = vdwg.mxu0
  %7237 = vmatpush.bf16.msra.mxu0 %v4353
  %7238 = vmatpush.bf16.msra.mxu0 %v4345
  %7239 = vmatpush.bf16.msra.mxu0 %v4337
  %7240 = vmatpush.bf16.msra.mxu0 %v4329
  %7241 = vmatpush.bf16.msra.mxu0 %v4321
  %7242 = vmatpush.bf16.msra.mxu0 %v4313
  %7243 = vmatpush.bf16.msra.mxu0 %v4305
  %7244 = vmatpush.bf16.msra.mxu0 %v4297
  %7245 = vmatmul.bf16.gmra.mxu0 %v7143
  %v7246 = vpop.f32.mrf.mxu0
  %v7247 = vadd.f32 %v7234, %v7246
  %v7248 = vpop.f32.mrf.mxu0
  %7249 = vdwg.mxu0
  %7250 = vmatpush.bf16.msra.mxu0 %v4290
  %7251 = vmatpush.bf16.msra.mxu0 %v4282
  %7252 = vmatpush.bf16.msra.mxu0 %v4274
  %7253 = vmatpush.bf16.msra.mxu0 %v4266
  %7254 = vmatpush.bf16.msra.mxu0 %v4258
  %7255 = vmatpush.bf16.msra.mxu0 %v4250
  %7256 = vmatpush.bf16.msra.mxu0 %v4242
  %7257 = vmatpush.bf16.msra.mxu0 %v4234
  %7258 = vmatmul.bf16.gmra.mxu0 %v7142
  %v7259 = vpop.f32.mrf.mxu0
  %v7260 = vadd.f32 0.0, %v7259
  %v7261 = vpop.f32.mrf.mxu0
  %7262 = vdwg.mxu0
  %7263 = vmatpush.bf16.msra.mxu0 %v4354
  %7264 = vmatpush.bf16.msra.mxu0 %v4346
  %7265 = vmatpush.bf16.msra.mxu0 %v4338
  %7266 = vmatpush.bf16.msra.mxu0 %v4330
  %7267 = vmatpush.bf16.msra.mxu0 %v4322
  %7268 = vmatpush.bf16.msra.mxu0 %v4314
  %7269 = vmatpush.bf16.msra.mxu0 %v4306
  %7270 = vmatpush.bf16.msra.mxu0 %v4298
  %7271 = vmatmul.bf16.gmra.mxu0 %v7143
  %v7272 = vpop.f32.mrf.mxu0
  %v7273 = vadd.f32 %v7260, %v7272
  %v7274 = vpop.f32.mrf.mxu0
  %7275 = vdwg.mxu0
  %7276 = vmatpush.bf16.msra.mxu0 %v4291
  %7277 = vmatpush.bf16.msra.mxu0 %v4283
  %7278 = vmatpush.bf16.msra.mxu0 %v4275
  %7279 = vmatpush.bf16.msra.mxu0 %v4267
  %7280 = vmatpush.bf16.msra.mxu0 %v4259
  %7281 = vmatpush.bf16.msra.mxu0 %v4251
  %7282 = vmatpush.bf16.msra.mxu0 %v4243
  %7283 = vmatpush.bf16.msra.mxu0 %v4235
  %7284 = vmatmul.bf16.gmra.mxu0 %v7142
  %v7285 = vpop.f32.mrf.mxu0
  %v7286 = vadd.f32 0.0, %v7285
  %v7287 = vpop.f32.mrf.mxu0
  %7288 = vdwg.mxu0
  %7289 = vmatpush.bf16.msra.mxu0 %v4355
  %7290 = vmatpush.bf16.msra.mxu0 %v4347
  %7291 = vmatpush.bf16.msra.mxu0 %v4339
  %7292 = vmatpush.bf16.msra.mxu0 %v4331
  %7293 = vmatpush.bf16.msra.mxu0 %v4323
  %7294 = vmatpush.bf16.msra.mxu0 %v4315
  %7295 = vmatpush.bf16.msra.mxu0 %v4307
  %7296 = vmatpush.bf16.msra.mxu0 %v4299
  %7297 = vmatmul.bf16.gmra.mxu0 %v7143
  %v7298 = vpop.f32.mrf.mxu0
  %v7299 = vadd.f32 %v7286, %v7298
  %v7300 = vpop.f32.mrf.mxu0
  %7301 = vdwg.mxu0
  %7302 = vmatpush.bf16.msra.mxu0 %v4292
  %7303 = vmatpush.bf16.msra.mxu0 %v4284
  %7304 = vmatpush.bf16.msra.mxu0 %v4276
  %7305 = vmatpush.bf16.msra.mxu0 %v4268
  %7306 = vmatpush.bf16.msra.mxu0 %v4260
  %7307 = vmatpush.bf16.msra.mxu0 %v4252
  %7308 = vmatpush.bf16.msra.mxu0 %v4244
  %7309 = vmatpush.bf16.msra.mxu0 %v4236
  %7310 = vmatmul.bf16.gmra.mxu0 %v7142
  %v7311 = vpop.f32.mrf.mxu0
  %v7312 = vadd.f32 0.0, %v7311
  %v7313 = vpop.f32.mrf.mxu0
  %7314 = vdwg.mxu0
  %7315 = vmatpush.bf16.msra.mxu0 %v4356
  %7316 = vmatpush.bf16.msra.mxu0 %v4348
  %7317 = vmatpush.bf16.msra.mxu0 %v4340
  %7318 = vmatpush.bf16.msra.mxu0 %v4332
  %7319 = vmatpush.bf16.msra.mxu0 %v4324
  %7320 = vmatpush.bf16.msra.mxu0 %v4316
  %7321 = vmatpush.bf16.msra.mxu0 %v4308
  %7322 = vmatpush.bf16.msra.mxu0 %v4300
  %7323 = vmatmul.bf16.gmra.mxu0 %v7143
  %v7324 = vpop.f32.mrf.mxu0
  %v7325 = vadd.f32 %v7312, %v7324
  %v7326 = vpop.f32.mrf.mxu0
  %7327 = vdwg.mxu0
  %7328 = vmatpush.bf16.msra.mxu0 %v4293
  %7329 = vmatpush.bf16.msra.mxu0 %v4285
  %7330 = vmatpush.bf16.msra.mxu0 %v4277
  %7331 = vmatpush.bf16.msra.mxu0 %v4269
  %7332 = vmatpush.bf16.msra.mxu0 %v4261
  %7333 = vmatpush.bf16.msra.mxu0 %v4253
  %7334 = vmatpush.bf16.msra.mxu0 %v4245
  %7335 = vmatpush.bf16.msra.mxu0 %v4237
  %7336 = vmatmul.bf16.gmra.mxu0 %v7142
  %v7337 = vpop.f32.mrf.mxu0
  %v7338 = vadd.f32 0.0, %v7337
  %v7339 = vpop.f32.mrf.mxu0
  %7340 = vdwg.mxu0
  %7341 = vmatpush.bf16.msra.mxu0 %v4357
  %7342 = vmatpush.bf16.msra.mxu0 %v4349
  %7343 = vmatpush.bf16.msra.mxu0 %v4341
  %7344 = vmatpush.bf16.msra.mxu0 %v4333
  %7345 = vmatpush.bf16.msra.mxu0 %v4325
  %7346 = vmatpush.bf16.msra.mxu0 %v4317
  %7347 = vmatpush.bf16.msra.mxu0 %v4309
  %7348 = vmatpush.bf16.msra.mxu0 %v4301
  %7349 = vmatmul.bf16.gmra.mxu0 %v7143
  %v7350 = vpop.f32.mrf.mxu0
  %v7351 = vadd.f32 %v7338, %v7350
  %v7352 = vpop.f32.mrf.mxu0
  %7353 = vdwg.mxu0
  %v7354 = vadd.f32 %v7132, %v7169
  %v7355 = vadd.f32 %v7133, %v7195
  %v7356 = vadd.f32 %v7134, %v7221
  %v7357 = vadd.f32 %v7135, %v7247
  %v7358 = vadd.f32 %v7136, %v7273
  %v7359 = vadd.f32 %v7137, %v7299
  %v7360 = vadd.f32 %v7138, %v7325
  %v7361 = vadd.f32 %v7139, %v7351
  %v7362 = vtanh.pop %v7354
  %v7363 = vtanh.pop %v7355
  %v7364 = vtanh.pop %v7356
  %v7365 = vtanh.pop %v7357
  %v7366 = vtanh.pop %v7358
  %v7367 = vtanh.pop %v7359
  %v7368 = vtanh.pop %v7360
  %v7369 = vtanh.pop %v7361
  %v7370 = vmul.f32 %v7362, 0.5
  %v7371 = vmul.f32 %v7363, 0.5
  %v7372 = vmul.f32 %v7364, 0.5
  %v7373 = vmul.f32 %v7365, 0.5
  %v7374 = vmul.f32 %v7366, 0.5
  %v7375 = vmul.f32 %v7367, 0.5
  %v7376 = vadd.f32 %v7370, 0.5
  %v7377 = vadd.f32 %v7371, 0.5
  %v7378 = vadd.f32 %v7372, 0.5
  %v7379 = vadd.f32 %v7373, 0.5
  %v7380 = vadd.f32 %v7374, 0.5
  %v7381 = vadd.f32 %v7375, 0.5
  %v7382 = vmul.f32 %v7378, %v7120
  %v7383 = vmul.f32 %v7379, %v7121
  %v7384 = vmul.f32 %v7376, %v7368
  %v7385 = vmul.f32 %v7377, %v7369
  %v7386 = vadd.f32 %v7382, %v7384
  %v7387 = vadd.f32 %v7383, %v7385
  %v7388 = vtanh.pop %v7386
  %v7389 = vtanh.pop %v7387
  %v7390 = vmul.f32 %v7380, %v7388
  %v7391 = vmul.f32 %v7381, %v7389
  %v7392 = vpack.c.bf16 %v7391, %v7390
  %7393 = vst [vmem:[#allocation9 + $0x58] sm:$0xf] %v7392
  %v7395 = vrot.slane %v7392, 4
  %7397 = vst [vmem:[#allocation9 + $0x24] sm:$0xf] %v7395
  %v7398 = vld [vmem:[#allocation8 + $0x300] sm:$0xff]
  %v7399 = vld [vmem:[#allocation8 + $0x308] sm:$0xff]
  %v7400 = vld [vmem:[#allocation8 + $0x310] sm:$0xff]
  %v7401 = vld [vmem:[#allocation8 + $0x318] sm:$0xff]
  %v7402 = vld [vmem:[#allocation8 + $0x320] sm:$0xff]
  %v7403 = vld [vmem:[#allocation8 + $0x328] sm:$0xff]
  %v7404 = vld [vmem:[#allocation8 + $0x330] sm:$0xff]
  %v7405 = vld [vmem:[#allocation8 + $0x338] sm:$0xff]
  %v7406 = vunpack.c.l.b16 %v7392
  %v7407 = vunpack.c.h.b16 %v7392
  %v7408 = vpack.c.b16 %v7406, %v7406
  %v7409 = vpack.c.b16 %v7407, %v7407
  %7412 = vmatpush.bf16.msra.mxu0 %v4286
  %7413 = vmatpush.bf16.msra.mxu0 %v4278
  %7414 = vmatpush.bf16.msra.mxu0 %v4270
  %7415 = vmatpush.bf16.msra.mxu0 %v4262
  %7416 = vmatpush.bf16.msra.mxu0 %v4254
  %7417 = vmatpush.bf16.msra.mxu0 %v4246
  %7418 = vmatpush.bf16.msra.mxu0 %v4238
  %7419 = vmatpush.bf16.msra.mxu0 %v4230
  %7420 = vmatmul.bf16.gmra.mxu0 %v7408
  %v7421 = vpop.f32.mrf.mxu0
  %v7422 = vadd.f32 0.0, %v7421
  %v7423 = vpop.f32.mrf.mxu0
  %7424 = vdwg.mxu0
  %7425 = vmatpush.bf16.msra.mxu0 %v4350
  %7426 = vmatpush.bf16.msra.mxu0 %v4342
  %7427 = vmatpush.bf16.msra.mxu0 %v4334
  %7428 = vmatpush.bf16.msra.mxu0 %v4326
  %7429 = vmatpush.bf16.msra.mxu0 %v4318
  %7430 = vmatpush.bf16.msra.mxu0 %v4310
  %7431 = vmatpush.bf16.msra.mxu0 %v4302
  %7432 = vmatpush.bf16.msra.mxu0 %v4294
  %7433 = vmatmul.bf16.gmra.mxu0 %v7409
  %v7434 = vpop.f32.mrf.mxu0
  %v7435 = vadd.f32 %v7422, %v7434
  %v7436 = vpop.f32.mrf.mxu0
  %7437 = vdwg.mxu0
  %7438 = vmatpush.bf16.msra.mxu0 %v4287
  %7439 = vmatpush.bf16.msra.mxu0 %v4279
  %7440 = vmatpush.bf16.msra.mxu0 %v4271
  %7441 = vmatpush.bf16.msra.mxu0 %v4263
  %7442 = vmatpush.bf16.msra.mxu0 %v4255
  %7443 = vmatpush.bf16.msra.mxu0 %v4247
  %7444 = vmatpush.bf16.msra.mxu0 %v4239
  %7445 = vmatpush.bf16.msra.mxu0 %v4231
  %7446 = vmatmul.bf16.gmra.mxu0 %v7408
  %v7447 = vpop.f32.mrf.mxu0
  %v7448 = vadd.f32 0.0, %v7447
  %v7449 = vpop.f32.mrf.mxu0
  %7450 = vdwg.mxu0
  %7451 = vmatpush.bf16.msra.mxu0 %v4351
  %7452 = vmatpush.bf16.msra.mxu0 %v4343
  %7453 = vmatpush.bf16.msra.mxu0 %v4335
  %7454 = vmatpush.bf16.msra.mxu0 %v4327
  %7455 = vmatpush.bf16.msra.mxu0 %v4319
  %7456 = vmatpush.bf16.msra.mxu0 %v4311
  %7457 = vmatpush.bf16.msra.mxu0 %v4303
  %7458 = vmatpush.bf16.msra.mxu0 %v4295
  %7459 = vmatmul.bf16.gmra.mxu0 %v7409
  %v7460 = vpop.f32.mrf.mxu0
  %v7461 = vadd.f32 %v7448, %v7460
  %v7462 = vpop.f32.mrf.mxu0
  %7463 = vdwg.mxu0
  %7464 = vmatpush.bf16.msra.mxu0 %v4288
  %7465 = vmatpush.bf16.msra.mxu0 %v4280
  %7466 = vmatpush.bf16.msra.mxu0 %v4272
  %7467 = vmatpush.bf16.msra.mxu0 %v4264
  %7468 = vmatpush.bf16.msra.mxu0 %v4256
  %7469 = vmatpush.bf16.msra.mxu0 %v4248
  %7470 = vmatpush.bf16.msra.mxu0 %v4240
  %7471 = vmatpush.bf16.msra.mxu0 %v4232
  %7472 = vmatmul.bf16.gmra.mxu0 %v7408
  %v7473 = vpop.f32.mrf.mxu0
  %v7474 = vadd.f32 0.0, %v7473
  %v7475 = vpop.f32.mrf.mxu0
  %7476 = vdwg.mxu0
  %7477 = vmatpush.bf16.msra.mxu0 %v4352
  %7478 = vmatpush.bf16.msra.mxu0 %v4344
  %7479 = vmatpush.bf16.msra.mxu0 %v4336
  %7480 = vmatpush.bf16.msra.mxu0 %v4328
  %7481 = vmatpush.bf16.msra.mxu0 %v4320
  %7482 = vmatpush.bf16.msra.mxu0 %v4312
  %7483 = vmatpush.bf16.msra.mxu0 %v4304
  %7484 = vmatpush.bf16.msra.mxu0 %v4296
  %7485 = vmatmul.bf16.gmra.mxu0 %v7409
  %v7486 = vpop.f32.mrf.mxu0
  %v7487 = vadd.f32 %v7474, %v7486
  %v7488 = vpop.f32.mrf.mxu0
  %7489 = vdwg.mxu0
  %7490 = vmatpush.bf16.msra.mxu0 %v4289
  %7491 = vmatpush.bf16.msra.mxu0 %v4281
  %7492 = vmatpush.bf16.msra.mxu0 %v4273
  %7493 = vmatpush.bf16.msra.mxu0 %v4265
  %7494 = vmatpush.bf16.msra.mxu0 %v4257
  %7495 = vmatpush.bf16.msra.mxu0 %v4249
  %7496 = vmatpush.bf16.msra.mxu0 %v4241
  %7497 = vmatpush.bf16.msra.mxu0 %v4233
  %7498 = vmatmul.bf16.gmra.mxu0 %v7408
  %v7499 = vpop.f32.mrf.mxu0
  %v7500 = vadd.f32 0.0, %v7499
  %v7501 = vpop.f32.mrf.mxu0
  %7502 = vdwg.mxu0
  %7503 = vmatpush.bf16.msra.mxu0 %v4353
  %7504 = vmatpush.bf16.msra.mxu0 %v4345
  %7505 = vmatpush.bf16.msra.mxu0 %v4337
  %7506 = vmatpush.bf16.msra.mxu0 %v4329
  %7507 = vmatpush.bf16.msra.mxu0 %v4321
  %7508 = vmatpush.bf16.msra.mxu0 %v4313
  %7509 = vmatpush.bf16.msra.mxu0 %v4305
  %7510 = vmatpush.bf16.msra.mxu0 %v4297
  %7511 = vmatmul.bf16.gmra.mxu0 %v7409
  %v7512 = vpop.f32.mrf.mxu0
  %v7513 = vadd.f32 %v7500, %v7512
  %v7514 = vpop.f32.mrf.mxu0
  %7515 = vdwg.mxu0
  %7516 = vmatpush.bf16.msra.mxu0 %v4290
  %7517 = vmatpush.bf16.msra.mxu0 %v4282
  %7518 = vmatpush.bf16.msra.mxu0 %v4274
  %7519 = vmatpush.bf16.msra.mxu0 %v4266
  %7520 = vmatpush.bf16.msra.mxu0 %v4258
  %7521 = vmatpush.bf16.msra.mxu0 %v4250
  %7522 = vmatpush.bf16.msra.mxu0 %v4242
  %7523 = vmatpush.bf16.msra.mxu0 %v4234
  %7524 = vmatmul.bf16.gmra.mxu0 %v7408
  %v7525 = vpop.f32.mrf.mxu0
  %v7526 = vadd.f32 0.0, %v7525
  %v7527 = vpop.f32.mrf.mxu0
  %7528 = vdwg.mxu0
  %7529 = vmatpush.bf16.msra.mxu0 %v4354
  %7530 = vmatpush.bf16.msra.mxu0 %v4346
  %7531 = vmatpush.bf16.msra.mxu0 %v4338
  %7532 = vmatpush.bf16.msra.mxu0 %v4330
  %7533 = vmatpush.bf16.msra.mxu0 %v4322
  %7534 = vmatpush.bf16.msra.mxu0 %v4314
  %7535 = vmatpush.bf16.msra.mxu0 %v4306
  %7536 = vmatpush.bf16.msra.mxu0 %v4298
  %7537 = vmatmul.bf16.gmra.mxu0 %v7409
  %v7538 = vpop.f32.mrf.mxu0
  %v7539 = vadd.f32 %v7526, %v7538
  %v7540 = vpop.f32.mrf.mxu0
  %7541 = vdwg.mxu0
  %7542 = vmatpush.bf16.msra.mxu0 %v4291
  %7543 = vmatpush.bf16.msra.mxu0 %v4283
  %7544 = vmatpush.bf16.msra.mxu0 %v4275
  %7545 = vmatpush.bf16.msra.mxu0 %v4267
  %7546 = vmatpush.bf16.msra.mxu0 %v4259
  %7547 = vmatpush.bf16.msra.mxu0 %v4251
  %7548 = vmatpush.bf16.msra.mxu0 %v4243
  %7549 = vmatpush.bf16.msra.mxu0 %v4235
  %7550 = vmatmul.bf16.gmra.mxu0 %v7408
  %v7551 = vpop.f32.mrf.mxu0
  %v7552 = vadd.f32 0.0, %v7551
  %v7553 = vpop.f32.mrf.mxu0
  %7554 = vdwg.mxu0
  %7555 = vmatpush.bf16.msra.mxu0 %v4355
  %7556 = vmatpush.bf16.msra.mxu0 %v4347
  %7557 = vmatpush.bf16.msra.mxu0 %v4339
  %7558 = vmatpush.bf16.msra.mxu0 %v4331
  %7559 = vmatpush.bf16.msra.mxu0 %v4323
  %7560 = vmatpush.bf16.msra.mxu0 %v4315
  %7561 = vmatpush.bf16.msra.mxu0 %v4307
  %7562 = vmatpush.bf16.msra.mxu0 %v4299
  %7563 = vmatmul.bf16.gmra.mxu0 %v7409
  %v7564 = vpop.f32.mrf.mxu0
  %v7565 = vadd.f32 %v7552, %v7564
  %v7566 = vpop.f32.mrf.mxu0
  %7567 = vdwg.mxu0
  %7568 = vmatpush.bf16.msra.mxu0 %v4292
  %7569 = vmatpush.bf16.msra.mxu0 %v4284
  %7570 = vmatpush.bf16.msra.mxu0 %v4276
  %7571 = vmatpush.bf16.msra.mxu0 %v4268
  %7572 = vmatpush.bf16.msra.mxu0 %v4260
  %7573 = vmatpush.bf16.msra.mxu0 %v4252
  %7574 = vmatpush.bf16.msra.mxu0 %v4244
  %7575 = vmatpush.bf16.msra.mxu0 %v4236
  %7576 = vmatmul.bf16.gmra.mxu0 %v7408
  %v7577 = vpop.f32.mrf.mxu0
  %v7578 = vadd.f32 0.0, %v7577
  %v7579 = vpop.f32.mrf.mxu0
  %7580 = vdwg.mxu0
  %7581 = vmatpush.bf16.msra.mxu0 %v4356
  %7582 = vmatpush.bf16.msra.mxu0 %v4348
  %7583 = vmatpush.bf16.msra.mxu0 %v4340
  %7584 = vmatpush.bf16.msra.mxu0 %v4332
  %7585 = vmatpush.bf16.msra.mxu0 %v4324
  %7586 = vmatpush.bf16.msra.mxu0 %v4316
  %7587 = vmatpush.bf16.msra.mxu0 %v4308
  %7588 = vmatpush.bf16.msra.mxu0 %v4300
  %7589 = vmatmul.bf16.gmra.mxu0 %v7409
  %v7590 = vpop.f32.mrf.mxu0
  %v7591 = vadd.f32 %v7578, %v7590
  %v7592 = vpop.f32.mrf.mxu0
  %7593 = vdwg.mxu0
  %7594 = vmatpush.bf16.msra.mxu0 %v4293
  %7595 = vmatpush.bf16.msra.mxu0 %v4285
  %7596 = vmatpush.bf16.msra.mxu0 %v4277
  %7597 = vmatpush.bf16.msra.mxu0 %v4269
  %7598 = vmatpush.bf16.msra.mxu0 %v4261
  %7599 = vmatpush.bf16.msra.mxu0 %v4253
  %7600 = vmatpush.bf16.msra.mxu0 %v4245
  %7601 = vmatpush.bf16.msra.mxu0 %v4237
  %7602 = vmatmul.bf16.gmra.mxu0 %v7408
  %v7603 = vpop.f32.mrf.mxu0
  %v7604 = vadd.f32 0.0, %v7603
  %v7605 = vpop.f32.mrf.mxu0
  %7606 = vdwg.mxu0
  %7607 = vmatpush.bf16.msra.mxu0 %v4357
  %7608 = vmatpush.bf16.msra.mxu0 %v4349
  %7609 = vmatpush.bf16.msra.mxu0 %v4341
  %7610 = vmatpush.bf16.msra.mxu0 %v4333
  %7611 = vmatpush.bf16.msra.mxu0 %v4325
  %7612 = vmatpush.bf16.msra.mxu0 %v4317
  %7613 = vmatpush.bf16.msra.mxu0 %v4309
  %7614 = vmatpush.bf16.msra.mxu0 %v4301
  %7615 = vmatmul.bf16.gmra.mxu0 %v7409
  %v7616 = vpop.f32.mrf.mxu0
  %v7617 = vadd.f32 %v7604, %v7616
  %v7618 = vpop.f32.mrf.mxu0
  %7619 = vdwg.mxu0
  %v7620 = vadd.f32 %v7398, %v7435
  %v7621 = vadd.f32 %v7399, %v7461
  %v7622 = vadd.f32 %v7400, %v7487
  %v7623 = vadd.f32 %v7401, %v7513
  %v7624 = vadd.f32 %v7402, %v7539
  %v7625 = vadd.f32 %v7403, %v7565
  %v7626 = vadd.f32 %v7404, %v7591
  %v7627 = vadd.f32 %v7405, %v7617
  %v7628 = vtanh.pop %v7620
  %v7629 = vtanh.pop %v7621
  %v7630 = vtanh.pop %v7622
  %v7631 = vtanh.pop %v7623
  %v7632 = vtanh.pop %v7624
  %v7633 = vtanh.pop %v7625
  %v7634 = vtanh.pop %v7626
  %v7635 = vtanh.pop %v7627
  %v7636 = vmul.f32 %v7628, 0.5
  %v7637 = vmul.f32 %v7629, 0.5
  %v7638 = vmul.f32 %v7630, 0.5
  %v7639 = vmul.f32 %v7631, 0.5
  %v7640 = vmul.f32 %v7632, 0.5
  %v7641 = vmul.f32 %v7633, 0.5
  %v7642 = vadd.f32 %v7636, 0.5
  %v7643 = vadd.f32 %v7637, 0.5
  %v7644 = vadd.f32 %v7638, 0.5
  %v7645 = vadd.f32 %v7639, 0.5
  %v7646 = vadd.f32 %v7640, 0.5
  %v7647 = vadd.f32 %v7641, 0.5
  %v7648 = vmul.f32 %v7644, %v7386
  %v7649 = vmul.f32 %v7645, %v7387
  %v7650 = vmul.f32 %v7642, %v7634
  %v7651 = vmul.f32 %v7643, %v7635
  %v7652 = vadd.f32 %v7648, %v7650
  %v7653 = vadd.f32 %v7649, %v7651
  %v7654 = vtanh.pop %v7652
  %v7655 = vtanh.pop %v7653
  %v7656 = vmul.f32 %v7646, %v7654
  %v7657 = vmul.f32 %v7647, %v7655
  %v7658 = vpack.c.bf16 %v7657, %v7656
  %7659 = vst [vmem:[#allocation9 + $0x60] sm:$0xf] %v7658
  %v7661 = vrot.slane %v7658, 4
  %7663 = vst [vmem:[#allocation9 + $0x1c] sm:$0xf] %v7661
  %v7664 = vld [vmem:[#allocation8 + $0x340] sm:$0xff]
  %v7665 = vld [vmem:[#allocation8 + $0x348] sm:$0xff]
  %v7666 = vld [vmem:[#allocation8 + $0x350] sm:$0xff]
  %v7667 = vld [vmem:[#allocation8 + $0x358] sm:$0xff]
  %v7668 = vld [vmem:[#allocation8 + $0x360] sm:$0xff]
  %v7669 = vld [vmem:[#allocation8 + $0x368] sm:$0xff]
  %v7670 = vld [vmem:[#allocation8 + $0x370] sm:$0xff]
  %v7671 = vld [vmem:[#allocation8 + $0x378] sm:$0xff]
  %v7672 = vunpack.c.l.b16 %v7658
  %v7673 = vunpack.c.h.b16 %v7658
  %v7674 = vpack.c.b16 %v7672, %v7672
  %v7675 = vpack.c.b16 %v7673, %v7673
  %7678 = vmatpush.bf16.msra.mxu0 %v4286
  %7679 = vmatpush.bf16.msra.mxu0 %v4278
  %7680 = vmatpush.bf16.msra.mxu0 %v4270
  %7681 = vmatpush.bf16.msra.mxu0 %v4262
  %7682 = vmatpush.bf16.msra.mxu0 %v4254
  %7683 = vmatpush.bf16.msra.mxu0 %v4246
  %7684 = vmatpush.bf16.msra.mxu0 %v4238
  %7685 = vmatpush.bf16.msra.mxu0 %v4230
  %7686 = vmatmul.bf16.gmra.mxu0 %v7674
  %v7687 = vpop.f32.mrf.mxu0
  %v7688 = vadd.f32 0.0, %v7687
  %v7689 = vpop.f32.mrf.mxu0
  %7690 = vdwg.mxu0
  %7691 = vmatpush.bf16.msra.mxu0 %v4350
  %7692 = vmatpush.bf16.msra.mxu0 %v4342
  %7693 = vmatpush.bf16.msra.mxu0 %v4334
  %7694 = vmatpush.bf16.msra.mxu0 %v4326
  %7695 = vmatpush.bf16.msra.mxu0 %v4318
  %7696 = vmatpush.bf16.msra.mxu0 %v4310
  %7697 = vmatpush.bf16.msra.mxu0 %v4302
  %7698 = vmatpush.bf16.msra.mxu0 %v4294
  %7699 = vmatmul.bf16.gmra.mxu0 %v7675
  %v7700 = vpop.f32.mrf.mxu0
  %v7701 = vadd.f32 %v7688, %v7700
  %v7702 = vpop.f32.mrf.mxu0
  %7703 = vdwg.mxu0
  %7704 = vmatpush.bf16.msra.mxu0 %v4287
  %7705 = vmatpush.bf16.msra.mxu0 %v4279
  %7706 = vmatpush.bf16.msra.mxu0 %v4271
  %7707 = vmatpush.bf16.msra.mxu0 %v4263
  %7708 = vmatpush.bf16.msra.mxu0 %v4255
  %7709 = vmatpush.bf16.msra.mxu0 %v4247
  %7710 = vmatpush.bf16.msra.mxu0 %v4239
  %7711 = vmatpush.bf16.msra.mxu0 %v4231
  %7712 = vmatmul.bf16.gmra.mxu0 %v7674
  %v7713 = vpop.f32.mrf.mxu0
  %v7714 = vadd.f32 0.0, %v7713
  %v7715 = vpop.f32.mrf.mxu0
  %7716 = vdwg.mxu0
  %7717 = vmatpush.bf16.msra.mxu0 %v4351
  %7718 = vmatpush.bf16.msra.mxu0 %v4343
  %7719 = vmatpush.bf16.msra.mxu0 %v4335
  %7720 = vmatpush.bf16.msra.mxu0 %v4327
  %7721 = vmatpush.bf16.msra.mxu0 %v4319
  %7722 = vmatpush.bf16.msra.mxu0 %v4311
  %7723 = vmatpush.bf16.msra.mxu0 %v4303
  %7724 = vmatpush.bf16.msra.mxu0 %v4295
  %7725 = vmatmul.bf16.gmra.mxu0 %v7675
  %v7726 = vpop.f32.mrf.mxu0
  %v7727 = vadd.f32 %v7714, %v7726
  %v7728 = vpop.f32.mrf.mxu0
  %7729 = vdwg.mxu0
  %7730 = vmatpush.bf16.msra.mxu0 %v4288
  %7731 = vmatpush.bf16.msra.mxu0 %v4280
  %7732 = vmatpush.bf16.msra.mxu0 %v4272
  %7733 = vmatpush.bf16.msra.mxu0 %v4264
  %7734 = vmatpush.bf16.msra.mxu0 %v4256
  %7735 = vmatpush.bf16.msra.mxu0 %v4248
  %7736 = vmatpush.bf16.msra.mxu0 %v4240
  %7737 = vmatpush.bf16.msra.mxu0 %v4232
  %7738 = vmatmul.bf16.gmra.mxu0 %v7674
  %v7739 = vpop.f32.mrf.mxu0
  %v7740 = vadd.f32 0.0, %v7739
  %v7741 = vpop.f32.mrf.mxu0
  %7742 = vdwg.mxu0
  %7743 = vmatpush.bf16.msra.mxu0 %v4352
  %7744 = vmatpush.bf16.msra.mxu0 %v4344
  %7745 = vmatpush.bf16.msra.mxu0 %v4336
  %7746 = vmatpush.bf16.msra.mxu0 %v4328
  %7747 = vmatpush.bf16.msra.mxu0 %v4320
  %7748 = vmatpush.bf16.msra.mxu0 %v4312
  %7749 = vmatpush.bf16.msra.mxu0 %v4304
  %7750 = vmatpush.bf16.msra.mxu0 %v4296
  %7751 = vmatmul.bf16.gmra.mxu0 %v7675
  %v7752 = vpop.f32.mrf.mxu0
  %v7753 = vadd.f32 %v7740, %v7752
  %v7754 = vpop.f32.mrf.mxu0
  %7755 = vdwg.mxu0
  %7756 = vmatpush.bf16.msra.mxu0 %v4289
  %7757 = vmatpush.bf16.msra.mxu0 %v4281
  %7758 = vmatpush.bf16.msra.mxu0 %v4273
  %7759 = vmatpush.bf16.msra.mxu0 %v4265
  %7760 = vmatpush.bf16.msra.mxu0 %v4257
  %7761 = vmatpush.bf16.msra.mxu0 %v4249
  %7762 = vmatpush.bf16.msra.mxu0 %v4241
  %7763 = vmatpush.bf16.msra.mxu0 %v4233
  %7764 = vmatmul.bf16.gmra.mxu0 %v7674
  %v7765 = vpop.f32.mrf.mxu0
  %v7766 = vadd.f32 0.0, %v7765
  %v7767 = vpop.f32.mrf.mxu0
  %7768 = vdwg.mxu0
  %7769 = vmatpush.bf16.msra.mxu0 %v4353
  %7770 = vmatpush.bf16.msra.mxu0 %v4345
  %7771 = vmatpush.bf16.msra.mxu0 %v4337
  %7772 = vmatpush.bf16.msra.mxu0 %v4329
  %7773 = vmatpush.bf16.msra.mxu0 %v4321
  %7774 = vmatpush.bf16.msra.mxu0 %v4313
  %7775 = vmatpush.bf16.msra.mxu0 %v4305
  %7776 = vmatpush.bf16.msra.mxu0 %v4297
  %7777 = vmatmul.bf16.gmra.mxu0 %v7675
  %v7778 = vpop.f32.mrf.mxu0
  %v7779 = vadd.f32 %v7766, %v7778
  %v7780 = vpop.f32.mrf.mxu0
  %7781 = vdwg.mxu0
  %7782 = vmatpush.bf16.msra.mxu0 %v4290
  %7783 = vmatpush.bf16.msra.mxu0 %v4282
  %7784 = vmatpush.bf16.msra.mxu0 %v4274
  %7785 = vmatpush.bf16.msra.mxu0 %v4266
  %7786 = vmatpush.bf16.msra.mxu0 %v4258
  %7787 = vmatpush.bf16.msra.mxu0 %v4250
  %7788 = vmatpush.bf16.msra.mxu0 %v4242
  %7789 = vmatpush.bf16.msra.mxu0 %v4234
  %7790 = vmatmul.bf16.gmra.mxu0 %v7674
  %v7791 = vpop.f32.mrf.mxu0
  %v7792 = vadd.f32 0.0, %v7791
  %v7793 = vpop.f32.mrf.mxu0
  %7794 = vdwg.mxu0
  %7795 = vmatpush.bf16.msra.mxu0 %v4354
  %7796 = vmatpush.bf16.msra.mxu0 %v4346
  %7797 = vmatpush.bf16.msra.mxu0 %v4338
  %7798 = vmatpush.bf16.msra.mxu0 %v4330
  %7799 = vmatpush.bf16.msra.mxu0 %v4322
  %7800 = vmatpush.bf16.msra.mxu0 %v4314
  %7801 = vmatpush.bf16.msra.mxu0 %v4306
  %7802 = vmatpush.bf16.msra.mxu0 %v4298
  %7803 = vmatmul.bf16.gmra.mxu0 %v7675
  %v7804 = vpop.f32.mrf.mxu0
  %v7805 = vadd.f32 %v7792, %v7804
  %v7806 = vpop.f32.mrf.mxu0
  %7807 = vdwg.mxu0
  %7808 = vmatpush.bf16.msra.mxu0 %v4291
  %7809 = vmatpush.bf16.msra.mxu0 %v4283
  %7810 = vmatpush.bf16.msra.mxu0 %v4275
  %7811 = vmatpush.bf16.msra.mxu0 %v4267
  %7812 = vmatpush.bf16.msra.mxu0 %v4259
  %7813 = vmatpush.bf16.msra.mxu0 %v4251
  %7814 = vmatpush.bf16.msra.mxu0 %v4243
  %7815 = vmatpush.bf16.msra.mxu0 %v4235
  %7816 = vmatmul.bf16.gmra.mxu0 %v7674
  %v7817 = vpop.f32.mrf.mxu0
  %v7818 = vadd.f32 0.0, %v7817
  %v7819 = vpop.f32.mrf.mxu0
  %7820 = vdwg.mxu0
  %7821 = vmatpush.bf16.msra.mxu0 %v4355
  %7822 = vmatpush.bf16.msra.mxu0 %v4347
  %7823 = vmatpush.bf16.msra.mxu0 %v4339
  %7824 = vmatpush.bf16.msra.mxu0 %v4331
  %7825 = vmatpush.bf16.msra.mxu0 %v4323
  %7826 = vmatpush.bf16.msra.mxu0 %v4315
  %7827 = vmatpush.bf16.msra.mxu0 %v4307
  %7828 = vmatpush.bf16.msra.mxu0 %v4299
  %7829 = vmatmul.bf16.gmra.mxu0 %v7675
  %v7830 = vpop.f32.mrf.mxu0
  %v7831 = vadd.f32 %v7818, %v7830
  %v7832 = vpop.f32.mrf.mxu0
  %7833 = vdwg.mxu0
  %7834 = vmatpush.bf16.msra.mxu0 %v4292
  %7835 = vmatpush.bf16.msra.mxu0 %v4284
  %7836 = vmatpush.bf16.msra.mxu0 %v4276
  %7837 = vmatpush.bf16.msra.mxu0 %v4268
  %7838 = vmatpush.bf16.msra.mxu0 %v4260
  %7839 = vmatpush.bf16.msra.mxu0 %v4252
  %7840 = vmatpush.bf16.msra.mxu0 %v4244
  %7841 = vmatpush.bf16.msra.mxu0 %v4236
  %7842 = vmatmul.bf16.gmra.mxu0 %v7674
  %v7843 = vpop.f32.mrf.mxu0
  %v7844 = vadd.f32 0.0, %v7843
  %v7845 = vpop.f32.mrf.mxu0
  %7846 = vdwg.mxu0
  %7847 = vmatpush.bf16.msra.mxu0 %v4356
  %7848 = vmatpush.bf16.msra.mxu0 %v4348
  %7849 = vmatpush.bf16.msra.mxu0 %v4340
  %7850 = vmatpush.bf16.msra.mxu0 %v4332
  %7851 = vmatpush.bf16.msra.mxu0 %v4324
  %7852 = vmatpush.bf16.msra.mxu0 %v4316
  %7853 = vmatpush.bf16.msra.mxu0 %v4308
  %7854 = vmatpush.bf16.msra.mxu0 %v4300
  %7855 = vmatmul.bf16.gmra.mxu0 %v7675
  %v7856 = vpop.f32.mrf.mxu0
  %v7857 = vadd.f32 %v7844, %v7856
  %v7858 = vpop.f32.mrf.mxu0
  %7859 = vdwg.mxu0
  %7860 = vmatpush.bf16.msra.mxu0 %v4293
  %7861 = vmatpush.bf16.msra.mxu0 %v4285
  %7862 = vmatpush.bf16.msra.mxu0 %v4277
  %7863 = vmatpush.bf16.msra.mxu0 %v4269
  %7864 = vmatpush.bf16.msra.mxu0 %v4261
  %7865 = vmatpush.bf16.msra.mxu0 %v4253
  %7866 = vmatpush.bf16.msra.mxu0 %v4245
  %7867 = vmatpush.bf16.msra.mxu0 %v4237
  %7868 = vmatmul.bf16.gmra.mxu0 %v7674
  %v7869 = vpop.f32.mrf.mxu0
  %v7870 = vadd.f32 0.0, %v7869
  %v7871 = vpop.f32.mrf.mxu0
  %7872 = vdwg.mxu0
  %7873 = vmatpush.bf16.msra.mxu0 %v4357
  %7874 = vmatpush.bf16.msra.mxu0 %v4349
  %7875 = vmatpush.bf16.msra.mxu0 %v4341
  %7876 = vmatpush.bf16.msra.mxu0 %v4333
  %7877 = vmatpush.bf16.msra.mxu0 %v4325
  %7878 = vmatpush.bf16.msra.mxu0 %v4317
  %7879 = vmatpush.bf16.msra.mxu0 %v4309
  %7880 = vmatpush.bf16.msra.mxu0 %v4301
  %7881 = vmatmul.bf16.gmra.mxu0 %v7675
  %v7882 = vpop.f32.mrf.mxu0
  %v7883 = vadd.f32 %v7870, %v7882
  %v7884 = vpop.f32.mrf.mxu0
  %7885 = vdwg.mxu0
  %v7886 = vadd.f32 %v7664, %v7701
  %v7887 = vadd.f32 %v7665, %v7727
  %v7888 = vadd.f32 %v7666, %v7753
  %v7889 = vadd.f32 %v7667, %v7779
  %v7890 = vadd.f32 %v7668, %v7805
  %v7891 = vadd.f32 %v7669, %v7831
  %v7892 = vadd.f32 %v7670, %v7857
  %v7893 = vadd.f32 %v7671, %v7883
  %v7894 = vtanh.pop %v7886
  %v7895 = vtanh.pop %v7887
  %v7896 = vtanh.pop %v7888
  %v7897 = vtanh.pop %v7889
  %v7898 = vtanh.pop %v7890
  %v7899 = vtanh.pop %v7891
  %v7900 = vtanh.pop %v7892
  %v7901 = vtanh.pop %v7893
  %v7902 = vmul.f32 %v7894, 0.5
  %v7903 = vmul.f32 %v7895, 0.5
  %v7904 = vmul.f32 %v7896, 0.5
  %v7905 = vmul.f32 %v7897, 0.5
  %v7906 = vmul.f32 %v7898, 0.5
  %v7907 = vmul.f32 %v7899, 0.5
  %v7908 = vadd.f32 %v7902, 0.5
  %v7909 = vadd.f32 %v7903, 0.5
  %v7910 = vadd.f32 %v7904, 0.5
  %v7911 = vadd.f32 %v7905, 0.5
  %v7912 = vadd.f32 %v7906, 0.5
  %v7913 = vadd.f32 %v7907, 0.5
  %v7914 = vmul.f32 %v7910, %v7652
  %v7915 = vmul.f32 %v7911, %v7653
  %v7916 = vmul.f32 %v7908, %v7900
  %v7917 = vmul.f32 %v7909, %v7901
  %v7918 = vadd.f32 %v7914, %v7916
  %v7919 = vadd.f32 %v7915, %v7917
  %v7920 = vtanh.pop %v7918
  %v7921 = vtanh.pop %v7919
  %v7922 = vmul.f32 %v7912, %v7920
  %v7923 = vmul.f32 %v7913, %v7921
  %v7924 = vpack.c.bf16 %v7923, %v7922
  %7925 = vst [vmem:[#allocation9 + $0x68] sm:$0xf] %v7924
  %v7927 = vrot.slane %v7924, 4
  %7929 = vst [vmem:[#allocation9 + $0x14] sm:$0xf] %v7927
  %v7930 = vld [vmem:[#allocation8 + $0x380] sm:$0xff]
  %v7931 = vld [vmem:[#allocation8 + $0x388] sm:$0xff]
  %v7932 = vld [vmem:[#allocation8 + $0x390] sm:$0xff]
  %v7933 = vld [vmem:[#allocation8 + $0x398] sm:$0xff]
  %v7934 = vld [vmem:[#allocation8 + $0x3a0] sm:$0xff]
  %v7935 = vld [vmem:[#allocation8 + $0x3a8] sm:$0xff]
  %v7936 = vld [vmem:[#allocation8 + $0x3b0] sm:$0xff]
  %v7937 = vld [vmem:[#allocation8 + $0x3b8] sm:$0xff]
  %v7938 = vunpack.c.l.b16 %v7924
  %v7939 = vunpack.c.h.b16 %v7924
  %v7940 = vpack.c.b16 %v7938, %v7938
  %v7941 = vpack.c.b16 %v7939, %v7939
  %7944 = vmatpush.bf16.msra.mxu0 %v4286
  %7945 = vmatpush.bf16.msra.mxu0 %v4278
  %7946 = vmatpush.bf16.msra.mxu0 %v4270
  %7947 = vmatpush.bf16.msra.mxu0 %v4262
  %7948 = vmatpush.bf16.msra.mxu0 %v4254
  %7949 = vmatpush.bf16.msra.mxu0 %v4246
  %7950 = vmatpush.bf16.msra.mxu0 %v4238
  %7951 = vmatpush.bf16.msra.mxu0 %v4230
  %7952 = vmatmul.bf16.gmra.mxu0 %v7940
  %v7953 = vpop.f32.mrf.mxu0
  %v7954 = vadd.f32 0.0, %v7953
  %v7955 = vpop.f32.mrf.mxu0
  %7956 = vdwg.mxu0
  %7957 = vmatpush.bf16.msra.mxu0 %v4350
  %7958 = vmatpush.bf16.msra.mxu0 %v4342
  %7959 = vmatpush.bf16.msra.mxu0 %v4334
  %7960 = vmatpush.bf16.msra.mxu0 %v4326
  %7961 = vmatpush.bf16.msra.mxu0 %v4318
  %7962 = vmatpush.bf16.msra.mxu0 %v4310
  %7963 = vmatpush.bf16.msra.mxu0 %v4302
  %7964 = vmatpush.bf16.msra.mxu0 %v4294
  %7965 = vmatmul.bf16.gmra.mxu0 %v7941
  %v7966 = vpop.f32.mrf.mxu0
  %v7967 = vadd.f32 %v7954, %v7966
  %v7968 = vpop.f32.mrf.mxu0
  %7969 = vdwg.mxu0
  %7970 = vmatpush.bf16.msra.mxu0 %v4287
  %7971 = vmatpush.bf16.msra.mxu0 %v4279
  %7972 = vmatpush.bf16.msra.mxu0 %v4271
  %7973 = vmatpush.bf16.msra.mxu0 %v4263
  %7974 = vmatpush.bf16.msra.mxu0 %v4255
  %7975 = vmatpush.bf16.msra.mxu0 %v4247
  %7976 = vmatpush.bf16.msra.mxu0 %v4239
  %7977 = vmatpush.bf16.msra.mxu0 %v4231
  %7978 = vmatmul.bf16.gmra.mxu0 %v7940
  %v7979 = vpop.f32.mrf.mxu0
  %v7980 = vadd.f32 0.0, %v7979
  %v7981 = vpop.f32.mrf.mxu0
  %7982 = vdwg.mxu0
  %7983 = vmatpush.bf16.msra.mxu0 %v4351
  %7984 = vmatpush.bf16.msra.mxu0 %v4343
  %7985 = vmatpush.bf16.msra.mxu0 %v4335
  %7986 = vmatpush.bf16.msra.mxu0 %v4327
  %7987 = vmatpush.bf16.msra.mxu0 %v4319
  %7988 = vmatpush.bf16.msra.mxu0 %v4311
  %7989 = vmatpush.bf16.msra.mxu0 %v4303
  %7990 = vmatpush.bf16.msra.mxu0 %v4295
  %7991 = vmatmul.bf16.gmra.mxu0 %v7941
  %v7992 = vpop.f32.mrf.mxu0
  %v7993 = vadd.f32 %v7980, %v7992
  %v7994 = vpop.f32.mrf.mxu0
  %7995 = vdwg.mxu0
  %7996 = vmatpush.bf16.msra.mxu0 %v4288
  %7997 = vmatpush.bf16.msra.mxu0 %v4280
  %7998 = vmatpush.bf16.msra.mxu0 %v4272
  %7999 = vmatpush.bf16.msra.mxu0 %v4264
  %8000 = vmatpush.bf16.msra.mxu0 %v4256
  %8001 = vmatpush.bf16.msra.mxu0 %v4248
  %8002 = vmatpush.bf16.msra.mxu0 %v4240
  %8003 = vmatpush.bf16.msra.mxu0 %v4232
  %8004 = vmatmul.bf16.gmra.mxu0 %v7940
  %v8005 = vpop.f32.mrf.mxu0
  %v8006 = vadd.f32 0.0, %v8005
  %v8007 = vpop.f32.mrf.mxu0
  %8008 = vdwg.mxu0
  %8009 = vmatpush.bf16.msra.mxu0 %v4352
  %8010 = vmatpush.bf16.msra.mxu0 %v4344
  %8011 = vmatpush.bf16.msra.mxu0 %v4336
  %8012 = vmatpush.bf16.msra.mxu0 %v4328
  %8013 = vmatpush.bf16.msra.mxu0 %v4320
  %8014 = vmatpush.bf16.msra.mxu0 %v4312
  %8015 = vmatpush.bf16.msra.mxu0 %v4304
  %8016 = vmatpush.bf16.msra.mxu0 %v4296
  %8017 = vmatmul.bf16.gmra.mxu0 %v7941
  %v8018 = vpop.f32.mrf.mxu0
  %v8019 = vadd.f32 %v8006, %v8018
  %v8020 = vpop.f32.mrf.mxu0
  %8021 = vdwg.mxu0
  %8022 = vmatpush.bf16.msra.mxu0 %v4289
  %8023 = vmatpush.bf16.msra.mxu0 %v4281
  %8024 = vmatpush.bf16.msra.mxu0 %v4273
  %8025 = vmatpush.bf16.msra.mxu0 %v4265
  %8026 = vmatpush.bf16.msra.mxu0 %v4257
  %8027 = vmatpush.bf16.msra.mxu0 %v4249
  %8028 = vmatpush.bf16.msra.mxu0 %v4241
  %8029 = vmatpush.bf16.msra.mxu0 %v4233
  %8030 = vmatmul.bf16.gmra.mxu0 %v7940
  %v8031 = vpop.f32.mrf.mxu0
  %v8032 = vadd.f32 0.0, %v8031
  %v8033 = vpop.f32.mrf.mxu0
  %8034 = vdwg.mxu0
  %8035 = vmatpush.bf16.msra.mxu0 %v4353
  %8036 = vmatpush.bf16.msra.mxu0 %v4345
  %8037 = vmatpush.bf16.msra.mxu0 %v4337
  %8038 = vmatpush.bf16.msra.mxu0 %v4329
  %8039 = vmatpush.bf16.msra.mxu0 %v4321
  %8040 = vmatpush.bf16.msra.mxu0 %v4313
  %8041 = vmatpush.bf16.msra.mxu0 %v4305
  %8042 = vmatpush.bf16.msra.mxu0 %v4297
  %8043 = vmatmul.bf16.gmra.mxu0 %v7941
  %v8044 = vpop.f32.mrf.mxu0
  %v8045 = vadd.f32 %v8032, %v8044
  %v8046 = vpop.f32.mrf.mxu0
  %8047 = vdwg.mxu0
  %8048 = vmatpush.bf16.msra.mxu0 %v4290
  %8049 = vmatpush.bf16.msra.mxu0 %v4282
  %8050 = vmatpush.bf16.msra.mxu0 %v4274
  %8051 = vmatpush.bf16.msra.mxu0 %v4266
  %8052 = vmatpush.bf16.msra.mxu0 %v4258
  %8053 = vmatpush.bf16.msra.mxu0 %v4250
  %8054 = vmatpush.bf16.msra.mxu0 %v4242
  %8055 = vmatpush.bf16.msra.mxu0 %v4234
  %8056 = vmatmul.bf16.gmra.mxu0 %v7940
  %v8057 = vpop.f32.mrf.mxu0
  %v8058 = vadd.f32 0.0, %v8057
  %v8059 = vpop.f32.mrf.mxu0
  %8060 = vdwg.mxu0
  %8061 = vmatpush.bf16.msra.mxu0 %v4354
  %8062 = vmatpush.bf16.msra.mxu0 %v4346
  %8063 = vmatpush.bf16.msra.mxu0 %v4338
  %8064 = vmatpush.bf16.msra.mxu0 %v4330
  %8065 = vmatpush.bf16.msra.mxu0 %v4322
  %8066 = vmatpush.bf16.msra.mxu0 %v4314
  %8067 = vmatpush.bf16.msra.mxu0 %v4306
  %8068 = vmatpush.bf16.msra.mxu0 %v4298
  %8069 = vmatmul.bf16.gmra.mxu0 %v7941
  %v8070 = vpop.f32.mrf.mxu0
  %v8071 = vadd.f32 %v8058, %v8070
  %v8072 = vpop.f32.mrf.mxu0
  %8073 = vdwg.mxu0
  %8074 = vmatpush.bf16.msra.mxu0 %v4291
  %8075 = vmatpush.bf16.msra.mxu0 %v4283
  %8076 = vmatpush.bf16.msra.mxu0 %v4275
  %8077 = vmatpush.bf16.msra.mxu0 %v4267
  %8078 = vmatpush.bf16.msra.mxu0 %v4259
  %8079 = vmatpush.bf16.msra.mxu0 %v4251
  %8080 = vmatpush.bf16.msra.mxu0 %v4243
  %8081 = vmatpush.bf16.msra.mxu0 %v4235
  %8082 = vmatmul.bf16.gmra.mxu0 %v7940
  %v8083 = vpop.f32.mrf.mxu0
  %v8084 = vadd.f32 0.0, %v8083
  %v8085 = vpop.f32.mrf.mxu0
  %8086 = vdwg.mxu0
  %8087 = vmatpush.bf16.msra.mxu0 %v4355
  %8088 = vmatpush.bf16.msra.mxu0 %v4347
  %8089 = vmatpush.bf16.msra.mxu0 %v4339
  %8090 = vmatpush.bf16.msra.mxu0 %v4331
  %8091 = vmatpush.bf16.msra.mxu0 %v4323
  %8092 = vmatpush.bf16.msra.mxu0 %v4315
  %8093 = vmatpush.bf16.msra.mxu0 %v4307
  %8094 = vmatpush.bf16.msra.mxu0 %v4299
  %8095 = vmatmul.bf16.gmra.mxu0 %v7941
  %v8096 = vpop.f32.mrf.mxu0
  %v8097 = vadd.f32 %v8084, %v8096
  %v8098 = vpop.f32.mrf.mxu0
  %8099 = vdwg.mxu0
  %8100 = vmatpush.bf16.msra.mxu0 %v4292
  %8101 = vmatpush.bf16.msra.mxu0 %v4284
  %8102 = vmatpush.bf16.msra.mxu0 %v4276
  %8103 = vmatpush.bf16.msra.mxu0 %v4268
  %8104 = vmatpush.bf16.msra.mxu0 %v4260
  %8105 = vmatpush.bf16.msra.mxu0 %v4252
  %8106 = vmatpush.bf16.msra.mxu0 %v4244
  %8107 = vmatpush.bf16.msra.mxu0 %v4236
  %8108 = vmatmul.bf16.gmra.mxu0 %v7940
  %v8109 = vpop.f32.mrf.mxu0
  %v8110 = vadd.f32 0.0, %v8109
  %v8111 = vpop.f32.mrf.mxu0
  %8112 = vdwg.mxu0
  %8113 = vmatpush.bf16.msra.mxu0 %v4356
  %8114 = vmatpush.bf16.msra.mxu0 %v4348
  %8115 = vmatpush.bf16.msra.mxu0 %v4340
  %8116 = vmatpush.bf16.msra.mxu0 %v4332
  %8117 = vmatpush.bf16.msra.mxu0 %v4324
  %8118 = vmatpush.bf16.msra.mxu0 %v4316
  %8119 = vmatpush.bf16.msra.mxu0 %v4308
  %8120 = vmatpush.bf16.msra.mxu0 %v4300
  %8121 = vmatmul.bf16.gmra.mxu0 %v7941
  %v8122 = vpop.f32.mrf.mxu0
  %v8123 = vadd.f32 %v8110, %v8122
  %v8124 = vpop.f32.mrf.mxu0
  %8125 = vdwg.mxu0
  %8126 = vmatpush.bf16.msra.mxu0 %v4293
  %8127 = vmatpush.bf16.msra.mxu0 %v4285
  %8128 = vmatpush.bf16.msra.mxu0 %v4277
  %8129 = vmatpush.bf16.msra.mxu0 %v4269
  %8130 = vmatpush.bf16.msra.mxu0 %v4261
  %8131 = vmatpush.bf16.msra.mxu0 %v4253
  %8132 = vmatpush.bf16.msra.mxu0 %v4245
  %8133 = vmatpush.bf16.msra.mxu0 %v4237
  %8134 = vmatmul.bf16.gmra.mxu0 %v7940
  %v8135 = vpop.f32.mrf.mxu0
  %v8136 = vadd.f32 0.0, %v8135
  %v8137 = vpop.f32.mrf.mxu0
  %8138 = vdwg.mxu0
  %8139 = vmatpush.bf16.msra.mxu0 %v4357
  %8140 = vmatpush.bf16.msra.mxu0 %v4349
  %8141 = vmatpush.bf16.msra.mxu0 %v4341
  %8142 = vmatpush.bf16.msra.mxu0 %v4333
  %8143 = vmatpush.bf16.msra.mxu0 %v4325
  %8144 = vmatpush.bf16.msra.mxu0 %v4317
  %8145 = vmatpush.bf16.msra.mxu0 %v4309
  %8146 = vmatpush.bf16.msra.mxu0 %v4301
  %8147 = vmatmul.bf16.gmra.mxu0 %v7941
  %v8148 = vpop.f32.mrf.mxu0
  %v8149 = vadd.f32 %v8136, %v8148
  %v8150 = vpop.f32.mrf.mxu0
  %8151 = vdwg.mxu0
  %v8152 = vadd.f32 %v7930, %v7967
  %v8153 = vadd.f32 %v7931, %v7993
  %v8154 = vadd.f32 %v7932, %v8019
  %v8155 = vadd.f32 %v7933, %v8045
  %v8156 = vadd.f32 %v7934, %v8071
  %v8157 = vadd.f32 %v7935, %v8097
  %v8158 = vadd.f32 %v7936, %v8123
  %v8159 = vadd.f32 %v7937, %v8149
  %v8160 = vtanh.pop %v8152
  %v8161 = vtanh.pop %v8153
  %v8162 = vtanh.pop %v8154
  %v8163 = vtanh.pop %v8155
  %v8164 = vtanh.pop %v8156
  %v8165 = vtanh.pop %v8157
  %v8166 = vtanh.pop %v8158
  %v8167 = vtanh.pop %v8159
  %v8168 = vmul.f32 %v8160, 0.5
  %v8169 = vmul.f32 %v8161, 0.5
  %v8170 = vmul.f32 %v8162, 0.5
  %v8171 = vmul.f32 %v8163, 0.5
  %v8172 = vmul.f32 %v8164, 0.5
  %v8173 = vmul.f32 %v8165, 0.5
  %v8174 = vadd.f32 %v8168, 0.5
  %v8175 = vadd.f32 %v8169, 0.5
  %v8176 = vadd.f32 %v8170, 0.5
  %v8177 = vadd.f32 %v8171, 0.5
  %v8178 = vadd.f32 %v8172, 0.5
  %v8179 = vadd.f32 %v8173, 0.5
  %v8180 = vmul.f32 %v8176, %v7918
  %v8181 = vmul.f32 %v8177, %v7919
  %v8182 = vmul.f32 %v8174, %v8166
  %v8183 = vmul.f32 %v8175, %v8167
  %v8184 = vadd.f32 %v8180, %v8182
  %v8185 = vadd.f32 %v8181, %v8183
  %v8186 = vtanh.pop %v8184
  %v8187 = vtanh.pop %v8185
  %v8188 = vmul.f32 %v8178, %v8186
  %v8189 = vmul.f32 %v8179, %v8187
  %v8190 = vpack.c.bf16 %v8189, %v8188
  %8191 = vst [vmem:[#allocation9 + $0x70] sm:$0xf] %v8190
  %v8193 = vrot.slane %v8190, 4
  %8195 = vst [vmem:[#allocation9 + $0xc] sm:$0xf] %v8193
  %v8196 = vld [vmem:[#allocation8 + $0x3c0] sm:$0xff]
  %v8197 = vld [vmem:[#allocation8 + $0x3c8] sm:$0xff]
  %v8198 = vld [vmem:[#allocation8 + $0x3d0] sm:$0xff]
  %v8199 = vld [vmem:[#allocation8 + $0x3d8] sm:$0xff]
  %v8200 = vld [vmem:[#allocation8 + $0x3e0] sm:$0xff]
  %v8201 = vld [vmem:[#allocation8 + $0x3e8] sm:$0xff]
  %v8202 = vld [vmem:[#allocation8 + $0x3f0] sm:$0xff]
  %v8203 = vld [vmem:[#allocation8 + $0x3f8] sm:$0xff]
  %v8204 = vunpack.c.l.b16 %v8190
  %v8205 = vunpack.c.h.b16 %v8190
  %v8206 = vpack.c.b16 %v8204, %v8204
  %v8207 = vpack.c.b16 %v8205, %v8205
  %8210 = vmatpush.bf16.msra.mxu0 %v4286
  %8211 = vmatpush.bf16.msra.mxu0 %v4278
  %8212 = vmatpush.bf16.msra.mxu0 %v4270
  %8213 = vmatpush.bf16.msra.mxu0 %v4262
  %8214 = vmatpush.bf16.msra.mxu0 %v4254
  %8215 = vmatpush.bf16.msra.mxu0 %v4246
  %8216 = vmatpush.bf16.msra.mxu0 %v4238
  %8217 = vmatpush.bf16.msra.mxu0 %v4230
  %8218 = vmatmul.bf16.gmra.mxu0 %v8206
  %v8219 = vpop.f32.mrf.mxu0
  %v8220 = vadd.f32 0.0, %v8219
  %v8221 = vpop.f32.mrf.mxu0
  %8222 = vdwg.mxu0
  %8223 = vmatpush.bf16.msra.mxu0 %v4350
  %8224 = vmatpush.bf16.msra.mxu0 %v4342
  %8225 = vmatpush.bf16.msra.mxu0 %v4334
  %8226 = vmatpush.bf16.msra.mxu0 %v4326
  %8227 = vmatpush.bf16.msra.mxu0 %v4318
  %8228 = vmatpush.bf16.msra.mxu0 %v4310
  %8229 = vmatpush.bf16.msra.mxu0 %v4302
  %8230 = vmatpush.bf16.msra.mxu0 %v4294
  %8231 = vmatmul.bf16.gmra.mxu0 %v8207
  %v8232 = vpop.f32.mrf.mxu0
  %v8233 = vadd.f32 %v8220, %v8232
  %v8234 = vpop.f32.mrf.mxu0
  %8235 = vdwg.mxu0
  %8236 = vmatpush.bf16.msra.mxu0 %v4287
  %8237 = vmatpush.bf16.msra.mxu0 %v4279
  %8238 = vmatpush.bf16.msra.mxu0 %v4271
  %8239 = vmatpush.bf16.msra.mxu0 %v4263
  %8240 = vmatpush.bf16.msra.mxu0 %v4255
  %8241 = vmatpush.bf16.msra.mxu0 %v4247
  %8242 = vmatpush.bf16.msra.mxu0 %v4239
  %8243 = vmatpush.bf16.msra.mxu0 %v4231
  %8244 = vmatmul.bf16.gmra.mxu0 %v8206
  %v8245 = vpop.f32.mrf.mxu0
  %v8246 = vadd.f32 0.0, %v8245
  %v8247 = vpop.f32.mrf.mxu0
  %8248 = vdwg.mxu0
  %8249 = vmatpush.bf16.msra.mxu0 %v4351
  %8250 = vmatpush.bf16.msra.mxu0 %v4343
  %8251 = vmatpush.bf16.msra.mxu0 %v4335
  %8252 = vmatpush.bf16.msra.mxu0 %v4327
  %8253 = vmatpush.bf16.msra.mxu0 %v4319
  %8254 = vmatpush.bf16.msra.mxu0 %v4311
  %8255 = vmatpush.bf16.msra.mxu0 %v4303
  %8256 = vmatpush.bf16.msra.mxu0 %v4295
  %8257 = vmatmul.bf16.gmra.mxu0 %v8207
  %v8258 = vpop.f32.mrf.mxu0
  %v8259 = vadd.f32 %v8246, %v8258
  %v8260 = vpop.f32.mrf.mxu0
  %8261 = vdwg.mxu0
  %8262 = vmatpush.bf16.msra.mxu0 %v4288
  %8263 = vmatpush.bf16.msra.mxu0 %v4280
  %8264 = vmatpush.bf16.msra.mxu0 %v4272
  %8265 = vmatpush.bf16.msra.mxu0 %v4264
  %8266 = vmatpush.bf16.msra.mxu0 %v4256
  %8267 = vmatpush.bf16.msra.mxu0 %v4248
  %8268 = vmatpush.bf16.msra.mxu0 %v4240
  %8269 = vmatpush.bf16.msra.mxu0 %v4232
  %8270 = vmatmul.bf16.gmra.mxu0 %v8206
  %v8271 = vpop.f32.mrf.mxu0
  %v8272 = vadd.f32 0.0, %v8271
  %v8273 = vpop.f32.mrf.mxu0
  %8274 = vdwg.mxu0
  %8275 = vmatpush.bf16.msra.mxu0 %v4352
  %8276 = vmatpush.bf16.msra.mxu0 %v4344
  %8277 = vmatpush.bf16.msra.mxu0 %v4336
  %8278 = vmatpush.bf16.msra.mxu0 %v4328
  %8279 = vmatpush.bf16.msra.mxu0 %v4320
  %8280 = vmatpush.bf16.msra.mxu0 %v4312
  %8281 = vmatpush.bf16.msra.mxu0 %v4304
  %8282 = vmatpush.bf16.msra.mxu0 %v4296
  %8283 = vmatmul.bf16.gmra.mxu0 %v8207
  %v8284 = vpop.f32.mrf.mxu0
  %v8285 = vadd.f32 %v8272, %v8284
  %v8286 = vpop.f32.mrf.mxu0
  %8287 = vdwg.mxu0
  %8288 = vmatpush.bf16.msra.mxu0 %v4289
  %8289 = vmatpush.bf16.msra.mxu0 %v4281
  %8290 = vmatpush.bf16.msra.mxu0 %v4273
  %8291 = vmatpush.bf16.msra.mxu0 %v4265
  %8292 = vmatpush.bf16.msra.mxu0 %v4257
  %8293 = vmatpush.bf16.msra.mxu0 %v4249
  %8294 = vmatpush.bf16.msra.mxu0 %v4241
  %8295 = vmatpush.bf16.msra.mxu0 %v4233
  %8296 = vmatmul.bf16.gmra.mxu0 %v8206
  %v8297 = vpop.f32.mrf.mxu0
  %v8298 = vadd.f32 0.0, %v8297
  %v8299 = vpop.f32.mrf.mxu0
  %8300 = vdwg.mxu0
  %8301 = vmatpush.bf16.msra.mxu0 %v4353
  %8302 = vmatpush.bf16.msra.mxu0 %v4345
  %8303 = vmatpush.bf16.msra.mxu0 %v4337
  %8304 = vmatpush.bf16.msra.mxu0 %v4329
  %8305 = vmatpush.bf16.msra.mxu0 %v4321
  %8306 = vmatpush.bf16.msra.mxu0 %v4313
  %8307 = vmatpush.bf16.msra.mxu0 %v4305
  %8308 = vmatpush.bf16.msra.mxu0 %v4297
  %8309 = vmatmul.bf16.gmra.mxu0 %v8207
  %v8310 = vpop.f32.mrf.mxu0
  %v8311 = vadd.f32 %v8298, %v8310
  %v8312 = vpop.f32.mrf.mxu0
  %8313 = vdwg.mxu0
  %8314 = vmatpush.bf16.msra.mxu0 %v4290
  %8315 = vmatpush.bf16.msra.mxu0 %v4282
  %8316 = vmatpush.bf16.msra.mxu0 %v4274
  %8317 = vmatpush.bf16.msra.mxu0 %v4266
  %8318 = vmatpush.bf16.msra.mxu0 %v4258
  %8319 = vmatpush.bf16.msra.mxu0 %v4250
  %8320 = vmatpush.bf16.msra.mxu0 %v4242
  %8321 = vmatpush.bf16.msra.mxu0 %v4234
  %8322 = vmatmul.bf16.gmra.mxu0 %v8206
  %v8323 = vpop.f32.mrf.mxu0
  %v8324 = vadd.f32 0.0, %v8323
  %v8325 = vpop.f32.mrf.mxu0
  %8326 = vdwg.mxu0
  %8327 = vmatpush.bf16.msra.mxu0 %v4354
  %8328 = vmatpush.bf16.msra.mxu0 %v4346
  %8329 = vmatpush.bf16.msra.mxu0 %v4338
  %8330 = vmatpush.bf16.msra.mxu0 %v4330
  %8331 = vmatpush.bf16.msra.mxu0 %v4322
  %8332 = vmatpush.bf16.msra.mxu0 %v4314
  %8333 = vmatpush.bf16.msra.mxu0 %v4306
  %8334 = vmatpush.bf16.msra.mxu0 %v4298
  %8335 = vmatmul.bf16.gmra.mxu0 %v8207
  %v8336 = vpop.f32.mrf.mxu0
  %v8337 = vadd.f32 %v8324, %v8336
  %v8338 = vpop.f32.mrf.mxu0
  %8339 = vdwg.mxu0
  %8340 = vmatpush.bf16.msra.mxu0 %v4291
  %8341 = vmatpush.bf16.msra.mxu0 %v4283
  %8342 = vmatpush.bf16.msra.mxu0 %v4275
  %8343 = vmatpush.bf16.msra.mxu0 %v4267
  %8344 = vmatpush.bf16.msra.mxu0 %v4259
  %8345 = vmatpush.bf16.msra.mxu0 %v4251
  %8346 = vmatpush.bf16.msra.mxu0 %v4243
  %8347 = vmatpush.bf16.msra.mxu0 %v4235
  %8348 = vmatmul.bf16.gmra.mxu0 %v8206
  %v8349 = vpop.f32.mrf.mxu0
  %v8350 = vadd.f32 0.0, %v8349
  %v8351 = vpop.f32.mrf.mxu0
  %8352 = vdwg.mxu0
  %8353 = vmatpush.bf16.msra.mxu0 %v4355
  %8354 = vmatpush.bf16.msra.mxu0 %v4347
  %8355 = vmatpush.bf16.msra.mxu0 %v4339
  %8356 = vmatpush.bf16.msra.mxu0 %v4331
  %8357 = vmatpush.bf16.msra.mxu0 %v4323
  %8358 = vmatpush.bf16.msra.mxu0 %v4315
  %8359 = vmatpush.bf16.msra.mxu0 %v4307
  %8360 = vmatpush.bf16.msra.mxu0 %v4299
  %8361 = vmatmul.bf16.gmra.mxu0 %v8207
  %v8362 = vpop.f32.mrf.mxu0
  %v8363 = vadd.f32 %v8350, %v8362
  %v8364 = vpop.f32.mrf.mxu0
  %8365 = vdwg.mxu0
  %8366 = vmatpush.bf16.msra.mxu0 %v4292
  %8367 = vmatpush.bf16.msra.mxu0 %v4284
  %8368 = vmatpush.bf16.msra.mxu0 %v4276
  %8369 = vmatpush.bf16.msra.mxu0 %v4268
  %8370 = vmatpush.bf16.msra.mxu0 %v4260
  %8371 = vmatpush.bf16.msra.mxu0 %v4252
  %8372 = vmatpush.bf16.msra.mxu0 %v4244
  %8373 = vmatpush.bf16.msra.mxu0 %v4236
  %8374 = vmatmul.bf16.gmra.mxu0 %v8206
  %v8375 = vpop.f32.mrf.mxu0
  %v8376 = vadd.f32 0.0, %v8375
  %v8377 = vpop.f32.mrf.mxu0
  %8378 = vdwg.mxu0
  %8379 = vmatpush.bf16.msra.mxu0 %v4356
  %8380 = vmatpush.bf16.msra.mxu0 %v4348
  %8381 = vmatpush.bf16.msra.mxu0 %v4340
  %8382 = vmatpush.bf16.msra.mxu0 %v4332
  %8383 = vmatpush.bf16.msra.mxu0 %v4324
  %8384 = vmatpush.bf16.msra.mxu0 %v4316
  %8385 = vmatpush.bf16.msra.mxu0 %v4308
  %8386 = vmatpush.bf16.msra.mxu0 %v4300
  %8387 = vmatmul.bf16.gmra.mxu0 %v8207
  %v8388 = vpop.f32.mrf.mxu0
  %v8389 = vadd.f32 %v8376, %v8388
  %v8390 = vpop.f32.mrf.mxu0
  %8391 = vdwg.mxu0
  %8392 = vmatpush.bf16.msra.mxu0 %v4293
  %8393 = vmatpush.bf16.msra.mxu0 %v4285
  %8394 = vmatpush.bf16.msra.mxu0 %v4277
  %8395 = vmatpush.bf16.msra.mxu0 %v4269
  %8396 = vmatpush.bf16.msra.mxu0 %v4261
  %8397 = vmatpush.bf16.msra.mxu0 %v4253
  %8398 = vmatpush.bf16.msra.mxu0 %v4245
  %8399 = vmatpush.bf16.msra.mxu0 %v4237
  %8400 = vmatmul.bf16.gmra.mxu0 %v8206
  %v8401 = vpop.f32.mrf.mxu0
  %v8402 = vadd.f32 0.0, %v8401
  %v8403 = vpop.f32.mrf.mxu0
  %8404 = vdwg.mxu0
  %8405 = vmatpush.bf16.msra.mxu0 %v4357
  %8406 = vmatpush.bf16.msra.mxu0 %v4349
  %8407 = vmatpush.bf16.msra.mxu0 %v4341
  %8408 = vmatpush.bf16.msra.mxu0 %v4333
  %8409 = vmatpush.bf16.msra.mxu0 %v4325
  %8410 = vmatpush.bf16.msra.mxu0 %v4317
  %8411 = vmatpush.bf16.msra.mxu0 %v4309
  %8412 = vmatpush.bf16.msra.mxu0 %v4301
  %8413 = vmatmul.bf16.gmra.mxu0 %v8207
  %v8414 = vpop.f32.mrf.mxu0
  %v8415 = vadd.f32 %v8402, %v8414
  %v8416 = vpop.f32.mrf.mxu0
  %8417 = vdwg.mxu0
  %v8418 = vadd.f32 %v8196, %v8233
  %v8419 = vadd.f32 %v8197, %v8259
  %v8420 = vadd.f32 %v8198, %v8285
  %v8421 = vadd.f32 %v8199, %v8311
  %v8422 = vadd.f32 %v8200, %v8337
  %v8423 = vadd.f32 %v8201, %v8363
  %v8424 = vadd.f32 %v8202, %v8389
  %v8425 = vadd.f32 %v8203, %v8415
  %v8426 = vtanh.pop %v8418
  %v8427 = vtanh.pop %v8419
  %v8428 = vtanh.pop %v8420
  %v8429 = vtanh.pop %v8421
  %v8430 = vtanh.pop %v8422
  %v8431 = vtanh.pop %v8423
  %v8432 = vtanh.pop %v8424
  %v8433 = vtanh.pop %v8425
  %v8434 = vmul.f32 %v8426, 0.5
  %v8435 = vmul.f32 %v8427, 0.5
  %v8436 = vmul.f32 %v8428, 0.5
  %v8437 = vmul.f32 %v8429, 0.5
  %v8438 = vmul.f32 %v8430, 0.5
  %v8439 = vmul.f32 %v8431, 0.5
  %v8440 = vadd.f32 %v8434, 0.5
  %v8441 = vadd.f32 %v8435, 0.5
  %v8442 = vadd.f32 %v8436, 0.5
  %v8443 = vadd.f32 %v8437, 0.5
  %v8444 = vadd.f32 %v8438, 0.5
  %v8445 = vadd.f32 %v8439, 0.5
  %v8446 = vmul.f32 %v8442, %v8184
  %v8447 = vmul.f32 %v8443, %v8185
  %v8448 = vmul.f32 %v8440, %v8432
  %v8449 = vmul.f32 %v8441, %v8433
  %v8450 = vadd.f32 %v8446, %v8448
  %v8451 = vadd.f32 %v8447, %v8449
  %v8452 = vtanh.pop %v8450
  %v8453 = vtanh.pop %v8451
  %v8454 = vmul.f32 %v8444, %v8452
  %v8455 = vmul.f32 %v8445, %v8453
  %v8456 = vpack.c.bf16 %v8455, %v8454
  %8457 = vst [vmem:[#allocation9 + $0x78] sm:$0xf] %v8456
  %v8459 = vrot.slane %v8456, 4
  %8461 = vst [vmem:[#allocation9 + $0x4] sm:$0xf] %v8459
  %s8462 = smul.u32 4, 512
  %s8463 = smul.u32 %s8462, 1
  %s8464 = sshll.u32 %s8463, 4
  %8465 = dma.done %s59, %s8464
  %v8466 = vld [vmem:[#allocation9] sm:$0xff]
  %v8467 = vld [vmem:[#allocation9 + $0x8] sm:$0xff]
  %v8468 = vld [vmem:[#allocation9 + $0x10] sm:$0xff]
  %v8469 = vld [vmem:[#allocation9 + $0x18] sm:$0xff]
  %v8470 = vld [vmem:[#allocation9 + $0x20] sm:$0xff]
  %v8471 = vld [vmem:[#allocation9 + $0x28] sm:$0xff]
  %v8472 = vld [vmem:[#allocation9 + $0x30] sm:$0xff]
  %v8473 = vld [vmem:[#allocation9 + $0x38] sm:$0xff]
  %v8474 = vld [vmem:[#allocation9 + $0x40] sm:$0xff]
  %v8475 = vld [vmem:[#allocation9 + $0x48] sm:$0xff]
  %v8476 = vld [vmem:[#allocation9 + $0x50] sm:$0xff]
  %v8477 = vld [vmem:[#allocation9 + $0x58] sm:$0xff]
  %v8478 = vld [vmem:[#allocation9 + $0x60] sm:$0xff]
  %v8479 = vld [vmem:[#allocation9 + $0x68] sm:$0xff]
  %v8480 = vld [vmem:[#allocation9 + $0x70] sm:$0xff]
  %v8481 = vld [vmem:[#allocation9 + $0x78] sm:$0xff]
  %v8482 = vld [vmem:[#allocation4] sm:$0xf]
  %v8483 = vld [vmem:[#allocation4 + $0x4] sm:$0xf]
  %v8484 = vld [vmem:[#allocation4 + $0x8] sm:$0xf]
  %v8485 = vld [vmem:[#allocation4 + $0xc] sm:$0xf]
  %v8486 = vld [vmem:[#allocation4 + $0x10] sm:$0xf]
  %v8487 = vld [vmem:[#allocation4 + $0x14] sm:$0xf]
  %v8488 = vld [vmem:[#allocation4 + $0x18] sm:$0xf]
  %v8489 = vld [vmem:[#allocation4 + $0x1c] sm:$0xf]
  %v8490 = vld [vmem:[#allocation4 + $0x20] sm:$0xf]
  %v8491 = vld [vmem:[#allocation4 + $0x24] sm:$0xf]
  %v8492 = vld [vmem:[#allocation4 + $0x28] sm:$0xf]
  %v8493 = vld [vmem:[#allocation4 + $0x2c] sm:$0xf]
  %v8494 = vld [vmem:[#allocation4 + $0x30] sm:$0xf]
  %v8495 = vld [vmem:[#allocation4 + $0x34] sm:$0xf]
  %v8496 = vld [vmem:[#allocation4 + $0x38] sm:$0xf]
  %v8497 = vld [vmem:[#allocation4 + $0x3c] sm:$0xf]
  %v8498 = vld [vmem:[#allocation4 + $0x40] sm:$0xf]
  %v8499 = vld [vmem:[#allocation4 + $0x44] sm:$0xf]
  %v8500 = vld [vmem:[#allocation4 + $0x48] sm:$0xf]
  %v8501 = vld [vmem:[#allocation4 + $0x4c] sm:$0xf]
  %v8502 = vld [vmem:[#allocation4 + $0x50] sm:$0xf]
  %v8503 = vld [vmem:[#allocation4 + $0x54] sm:$0xf]
  %v8504 = vld [vmem:[#allocation4 + $0x58] sm:$0xf]
  %v8505 = vld [vmem:[#allocation4 + $0x5c] sm:$0xf]
  %v8506 = vld [vmem:[#allocation4 + $0x60] sm:$0xf]
  %v8507 = vld [vmem:[#allocation4 + $0x64] sm:$0xf]
  %v8508 = vld [vmem:[#allocation4 + $0x68] sm:$0xf]
  %v8509 = vld [vmem:[#allocation4 + $0x6c] sm:$0xf]
  %v8510 = vld [vmem:[#allocation4 + $0x70] sm:$0xf]
  %v8511 = vld [vmem:[#allocation4 + $0x74] sm:$0xf]
  %v8512 = vld [vmem:[#allocation4 + $0x78] sm:$0xf]
  %v8513 = vld [vmem:[#allocation4 + $0x7c] sm:$0xf]
  %v8514 = vld [vmem:[#allocation4 + $0x80] sm:$0xf]
  %v8515 = vld [vmem:[#allocation4 + $0x84] sm:$0xf]
  %v8516 = vld [vmem:[#allocation4 + $0x88] sm:$0xf]
  %v8517 = vld [vmem:[#allocation4 + $0x8c] sm:$0xf]
  %v8518 = vld [vmem:[#allocation4 + $0x90] sm:$0xf]
  %v8519 = vld [vmem:[#allocation4 + $0x94] sm:$0xf]
  %v8520 = vld [vmem:[#allocation4 + $0x98] sm:$0xf]
  %v8521 = vld [vmem:[#allocation4 + $0x9c] sm:$0xf]
  %v8522 = vld [vmem:[#allocation4 + $0xa0] sm:$0xf]
  %v8523 = vld [vmem:[#allocation4 + $0xa4] sm:$0xf]
  %v8524 = vld [vmem:[#allocation4 + $0xa8] sm:$0xf]
  %v8525 = vld [vmem:[#allocation4 + $0xac] sm:$0xf]
  %v8526 = vld [vmem:[#allocation4 + $0xb0] sm:$0xf]
  %v8527 = vld [vmem:[#allocation4 + $0xb4] sm:$0xf]
  %v8528 = vld [vmem:[#allocation4 + $0xb8] sm:$0xf]
  %v8529 = vld [vmem:[#allocation4 + $0xbc] sm:$0xf]
  %v8530 = vld [vmem:[#allocation4 + $0xc0] sm:$0xf]
  %v8531 = vld [vmem:[#allocation4 + $0xc4] sm:$0xf]
  %v8532 = vld [vmem:[#allocation4 + $0xc8] sm:$0xf]
  %v8533 = vld [vmem:[#allocation4 + $0xcc] sm:$0xf]
  %v8534 = vld [vmem:[#allocation4 + $0xd0] sm:$0xf]
  %v8535 = vld [vmem:[#allocation4 + $0xd4] sm:$0xf]
  %v8536 = vld [vmem:[#allocation4 + $0xd8] sm:$0xf]
  %v8537 = vld [vmem:[#allocation4 + $0xdc] sm:$0xf]
  %v8538 = vld [vmem:[#allocation4 + $0xe0] sm:$0xf]
  %v8539 = vld [vmem:[#allocation4 + $0xe4] sm:$0xf]
  %v8540 = vld [vmem:[#allocation4 + $0xe8] sm:$0xf]
  %v8541 = vld [vmem:[#allocation4 + $0xec] sm:$0xf]
  %v8542 = vld [vmem:[#allocation4 + $0xf0] sm:$0xf]
  %v8543 = vld [vmem:[#allocation4 + $0xf4] sm:$0xf]
  %v8544 = vld [vmem:[#allocation4 + $0xf8] sm:$0xf]
  %v8545 = vld [vmem:[#allocation4 + $0xfc] sm:$0xf]
  %v8546 = vld [vmem:[#allocation4 + $0x100] sm:$0xf]
  %v8547 = vld [vmem:[#allocation4 + $0x104] sm:$0xf]
  %v8548 = vld [vmem:[#allocation4 + $0x108] sm:$0xf]
  %v8549 = vld [vmem:[#allocation4 + $0x10c] sm:$0xf]
  %v8550 = vld [vmem:[#allocation4 + $0x110] sm:$0xf]
  %v8551 = vld [vmem:[#allocation4 + $0x114] sm:$0xf]
  %v8552 = vld [vmem:[#allocation4 + $0x118] sm:$0xf]
  %v8553 = vld [vmem:[#allocation4 + $0x11c] sm:$0xf]
  %v8554 = vld [vmem:[#allocation4 + $0x120] sm:$0xf]
  %v8555 = vld [vmem:[#allocation4 + $0x124] sm:$0xf]
  %v8556 = vld [vmem:[#allocation4 + $0x128] sm:$0xf]
  %v8557 = vld [vmem:[#allocation4 + $0x12c] sm:$0xf]
  %v8558 = vld [vmem:[#allocation4 + $0x130] sm:$0xf]
  %v8559 = vld [vmem:[#allocation4 + $0x134] sm:$0xf]
  %v8560 = vld [vmem:[#allocation4 + $0x138] sm:$0xf]
  %v8561 = vld [vmem:[#allocation4 + $0x13c] sm:$0xf]
  %v8562 = vld [vmem:[#allocation4 + $0x140] sm:$0xf]
  %v8563 = vld [vmem:[#allocation4 + $0x144] sm:$0xf]
  %v8564 = vld [vmem:[#allocation4 + $0x148] sm:$0xf]
  %v8565 = vld [vmem:[#allocation4 + $0x14c] sm:$0xf]
  %v8566 = vld [vmem:[#allocation4 + $0x150] sm:$0xf]
  %v8567 = vld [vmem:[#allocation4 + $0x154] sm:$0xf]
  %v8568 = vld [vmem:[#allocation4 + $0x158] sm:$0xf]
  %v8569 = vld [vmem:[#allocation4 + $0x15c] sm:$0xf]
  %v8570 = vld [vmem:[#allocation4 + $0x160] sm:$0xf]
  %v8571 = vld [vmem:[#allocation4 + $0x164] sm:$0xf]
  %v8572 = vld [vmem:[#allocation4 + $0x168] sm:$0xf]
  %v8573 = vld [vmem:[#allocation4 + $0x16c] sm:$0xf]
  %v8574 = vld [vmem:[#allocation4 + $0x170] sm:$0xf]
  %v8575 = vld [vmem:[#allocation4 + $0x174] sm:$0xf]
  %v8576 = vld [vmem:[#allocation4 + $0x178] sm:$0xf]
  %v8577 = vld [vmem:[#allocation4 + $0x17c] sm:$0xf]
  %v8578 = vld [vmem:[#allocation4 + $0x180] sm:$0xf]
  %v8579 = vld [vmem:[#allocation4 + $0x184] sm:$0xf]
  %v8580 = vld [vmem:[#allocation4 + $0x188] sm:$0xf]
  %v8581 = vld [vmem:[#allocation4 + $0x18c] sm:$0xf]
  %v8582 = vld [vmem:[#allocation4 + $0x190] sm:$0xf]
  %v8583 = vld [vmem:[#allocation4 + $0x194] sm:$0xf]
  %v8584 = vld [vmem:[#allocation4 + $0x198] sm:$0xf]
  %v8585 = vld [vmem:[#allocation4 + $0x19c] sm:$0xf]
  %v8586 = vld [vmem:[#allocation4 + $0x1a0] sm:$0xf]
  %v8587 = vld [vmem:[#allocation4 + $0x1a4] sm:$0xf]
  %v8588 = vld [vmem:[#allocation4 + $0x1a8] sm:$0xf]
  %v8589 = vld [vmem:[#allocation4 + $0x1ac] sm:$0xf]
  %v8590 = vld [vmem:[#allocation4 + $0x1b0] sm:$0xf]
  %v8591 = vld [vmem:[#allocation4 + $0x1b4] sm:$0xf]
  %v8592 = vld [vmem:[#allocation4 + $0x1b8] sm:$0xf]
  %v8593 = vld [vmem:[#allocation4 + $0x1bc] sm:$0xf]
  %v8594 = vld [vmem:[#allocation4 + $0x1c0] sm:$0xf]
  %v8595 = vld [vmem:[#allocation4 + $0x1c4] sm:$0xf]
  %v8596 = vld [vmem:[#allocation4 + $0x1c8] sm:$0xf]
  %v8597 = vld [vmem:[#allocation4 + $0x1cc] sm:$0xf]
  %v8598 = vld [vmem:[#allocation4 + $0x1d0] sm:$0xf]
  %v8599 = vld [vmem:[#allocation4 + $0x1d4] sm:$0xf]
  %v8600 = vld [vmem:[#allocation4 + $0x1d8] sm:$0xf]
  %v8601 = vld [vmem:[#allocation4 + $0x1dc] sm:$0xf]
  %v8602 = vld [vmem:[#allocation4 + $0x1e0] sm:$0xf]
  %v8603 = vld [vmem:[#allocation4 + $0x1e4] sm:$0xf]
  %v8604 = vld [vmem:[#allocation4 + $0x1e8] sm:$0xf]
  %v8605 = vld [vmem:[#allocation4 + $0x1ec] sm:$0xf]
  %v8606 = vld [vmem:[#allocation4 + $0x1f0] sm:$0xf]
  %v8607 = vld [vmem:[#allocation4 + $0x1f4] sm:$0xf]
  %v8608 = vld [vmem:[#allocation4 + $0x1f8] sm:$0xf]
  %v8609 = vld [vmem:[#allocation4 + $0x1fc] sm:$0xf]
  %v8610 = vld [vmem:[#allocation4 + $0x200] sm:$0xf]
  %v8611 = vld [vmem:[#allocation4 + $0x204] sm:$0xf]
  %v8612 = vld [vmem:[#allocation4 + $0x208] sm:$0xf]
  %v8613 = vld [vmem:[#allocation4 + $0x20c] sm:$0xf]
  %v8614 = vld [vmem:[#allocation4 + $0x210] sm:$0xf]
  %v8615 = vld [vmem:[#allocation4 + $0x214] sm:$0xf]
  %v8616 = vld [vmem:[#allocation4 + $0x218] sm:$0xf]
  %v8617 = vld [vmem:[#allocation4 + $0x21c] sm:$0xf]
  %v8618 = vld [vmem:[#allocation4 + $0x220] sm:$0xf]
  %v8619 = vld [vmem:[#allocation4 + $0x224] sm:$0xf]
  %v8620 = vld [vmem:[#allocation4 + $0x228] sm:$0xf]
  %v8621 = vld [vmem:[#allocation4 + $0x22c] sm:$0xf]
  %v8622 = vld [vmem:[#allocation4 + $0x230] sm:$0xf]
  %v8623 = vld [vmem:[#allocation4 + $0x234] sm:$0xf]
  %v8624 = vld [vmem:[#allocation4 + $0x238] sm:$0xf]
  %v8625 = vld [vmem:[#allocation4 + $0x23c] sm:$0xf]
  %v8626 = vld [vmem:[#allocation4 + $0x240] sm:$0xf]
  %v8627 = vld [vmem:[#allocation4 + $0x244] sm:$0xf]
  %v8628 = vld [vmem:[#allocation4 + $0x248] sm:$0xf]
  %v8629 = vld [vmem:[#allocation4 + $0x24c] sm:$0xf]
  %v8630 = vld [vmem:[#allocation4 + $0x250] sm:$0xf]
  %v8631 = vld [vmem:[#allocation4 + $0x254] sm:$0xf]
  %v8632 = vld [vmem:[#allocation4 + $0x258] sm:$0xf]
  %v8633 = vld [vmem:[#allocation4 + $0x25c] sm:$0xf]
  %v8634 = vld [vmem:[#allocation4 + $0x260] sm:$0xf]
  %v8635 = vld [vmem:[#allocation4 + $0x264] sm:$0xf]
  %v8636 = vld [vmem:[#allocation4 + $0x268] sm:$0xf]
  %v8637 = vld [vmem:[#allocation4 + $0x26c] sm:$0xf]
  %v8638 = vld [vmem:[#allocation4 + $0x270] sm:$0xf]
  %v8639 = vld [vmem:[#allocation4 + $0x274] sm:$0xf]
  %v8640 = vld [vmem:[#allocation4 + $0x278] sm:$0xf]
  %v8641 = vld [vmem:[#allocation4 + $0x27c] sm:$0xf]
  %v8642 = vld [vmem:[#allocation4 + $0x280] sm:$0xf]
  %v8643 = vld [vmem:[#allocation4 + $0x284] sm:$0xf]
  %v8644 = vld [vmem:[#allocation4 + $0x288] sm:$0xf]
  %v8645 = vld [vmem:[#allocation4 + $0x28c] sm:$0xf]
  %v8646 = vld [vmem:[#allocation4 + $0x290] sm:$0xf]
  %v8647 = vld [vmem:[#allocation4 + $0x294] sm:$0xf]
  %v8648 = vld [vmem:[#allocation4 + $0x298] sm:$0xf]
  %v8649 = vld [vmem:[#allocation4 + $0x29c] sm:$0xf]
  %v8650 = vld [vmem:[#allocation4 + $0x2a0] sm:$0xf]
  %v8651 = vld [vmem:[#allocation4 + $0x2a4] sm:$0xf]
  %v8652 = vld [vmem:[#allocation4 + $0x2a8] sm:$0xf]
  %v8653 = vld [vmem:[#allocation4 + $0x2ac] sm:$0xf]
  %v8654 = vld [vmem:[#allocation4 + $0x2b0] sm:$0xf]
  %v8655 = vld [vmem:[#allocation4 + $0x2b4] sm:$0xf]
  %v8656 = vld [vmem:[#allocation4 + $0x2b8] sm:$0xf]
  %v8657 = vld [vmem:[#allocation4 + $0x2bc] sm:$0xf]
  %v8658 = vld [vmem:[#allocation4 + $0x2c0] sm:$0xf]
  %v8659 = vld [vmem:[#allocation4 + $0x2c4] sm:$0xf]
  %v8660 = vld [vmem:[#allocation4 + $0x2c8] sm:$0xf]
  %v8661 = vld [vmem:[#allocation4 + $0x2cc] sm:$0xf]
  %v8662 = vld [vmem:[#allocation4 + $0x2d0] sm:$0xf]
  %v8663 = vld [vmem:[#allocation4 + $0x2d4] sm:$0xf]
  %v8664 = vld [vmem:[#allocation4 + $0x2d8] sm:$0xf]
  %v8665 = vld [vmem:[#allocation4 + $0x2dc] sm:$0xf]
  %v8666 = vld [vmem:[#allocation4 + $0x2e0] sm:$0xf]
  %v8667 = vld [vmem:[#allocation4 + $0x2e4] sm:$0xf]
  %v8668 = vld [vmem:[#allocation4 + $0x2e8] sm:$0xf]
  %v8669 = vld [vmem:[#allocation4 + $0x2ec] sm:$0xf]
  %v8670 = vld [vmem:[#allocation4 + $0x2f0] sm:$0xf]
  %v8671 = vld [vmem:[#allocation4 + $0x2f4] sm:$0xf]
  %v8672 = vld [vmem:[#allocation4 + $0x2f8] sm:$0xf]
  %v8673 = vld [vmem:[#allocation4 + $0x2fc] sm:$0xf]
  %v8674 = vld [vmem:[#allocation4 + $0x300] sm:$0xf]
  %v8675 = vld [vmem:[#allocation4 + $0x304] sm:$0xf]
  %v8676 = vld [vmem:[#allocation4 + $0x308] sm:$0xf]
  %v8677 = vld [vmem:[#allocation4 + $0x30c] sm:$0xf]
  %v8678 = vld [vmem:[#allocation4 + $0x310] sm:$0xf]
  %v8679 = vld [vmem:[#allocation4 + $0x314] sm:$0xf]
  %v8680 = vld [vmem:[#allocation4 + $0x318] sm:$0xf]
  %v8681 = vld [vmem:[#allocation4 + $0x31c] sm:$0xf]
  %v8682 = vld [vmem:[#allocation4 + $0x320] sm:$0xf]
  %v8683 = vld [vmem:[#allocation4 + $0x324] sm:$0xf]
  %v8684 = vld [vmem:[#allocation4 + $0x328] sm:$0xf]
  %v8685 = vld [vmem:[#allocation4 + $0x32c] sm:$0xf]
  %v8686 = vld [vmem:[#allocation4 + $0x330] sm:$0xf]
  %v8687 = vld [vmem:[#allocation4 + $0x334] sm:$0xf]
  %v8688 = vld [vmem:[#allocation4 + $0x338] sm:$0xf]
  %v8689 = vld [vmem:[#allocation4 + $0x33c] sm:$0xf]
  %v8690 = vld [vmem:[#allocation4 + $0x340] sm:$0xf]
  %v8691 = vld [vmem:[#allocation4 + $0x344] sm:$0xf]
  %v8692 = vld [vmem:[#allocation4 + $0x348] sm:$0xf]
  %v8693 = vld [vmem:[#allocation4 + $0x34c] sm:$0xf]
  %v8694 = vld [vmem:[#allocation4 + $0x350] sm:$0xf]
  %v8695 = vld [vmem:[#allocation4 + $0x354] sm:$0xf]
  %v8696 = vld [vmem:[#allocation4 + $0x358] sm:$0xf]
  %v8697 = vld [vmem:[#allocation4 + $0x35c] sm:$0xf]
  %v8698 = vld [vmem:[#allocation4 + $0x360] sm:$0xf]
  %v8699 = vld [vmem:[#allocation4 + $0x364] sm:$0xf]
  %v8700 = vld [vmem:[#allocation4 + $0x368] sm:$0xf]
  %v8701 = vld [vmem:[#allocation4 + $0x36c] sm:$0xf]
  %v8702 = vld [vmem:[#allocation4 + $0x370] sm:$0xf]
  %v8703 = vld [vmem:[#allocation4 + $0x374] sm:$0xf]
  %v8704 = vld [vmem:[#allocation4 + $0x378] sm:$0xf]
  %v8705 = vld [vmem:[#allocation4 + $0x37c] sm:$0xf]
  %v8706 = vld [vmem:[#allocation4 + $0x380] sm:$0xf]
  %v8707 = vld [vmem:[#allocation4 + $0x384] sm:$0xf]
  %v8708 = vld [vmem:[#allocation4 + $0x388] sm:$0xf]
  %v8709 = vld [vmem:[#allocation4 + $0x38c] sm:$0xf]
  %v8710 = vld [vmem:[#allocation4 + $0x390] sm:$0xf]
  %v8711 = vld [vmem:[#allocation4 + $0x394] sm:$0xf]
  %v8712 = vld [vmem:[#allocation4 + $0x398] sm:$0xf]
  %v8713 = vld [vmem:[#allocation4 + $0x39c] sm:$0xf]
  %v8714 = vld [vmem:[#allocation4 + $0x3a0] sm:$0xf]
  %v8715 = vld [vmem:[#allocation4 + $0x3a4] sm:$0xf]
  %v8716 = vld [vmem:[#allocation4 + $0x3a8] sm:$0xf]
  %v8717 = vld [vmem:[#allocation4 + $0x3ac] sm:$0xf]
  %v8718 = vld [vmem:[#allocation4 + $0x3b0] sm:$0xf]
  %v8719 = vld [vmem:[#allocation4 + $0x3b4] sm:$0xf]
  %v8720 = vld [vmem:[#allocation4 + $0x3b8] sm:$0xf]
  %v8721 = vld [vmem:[#allocation4 + $0x3bc] sm:$0xf]
  %v8722 = vld [vmem:[#allocation4 + $0x3c0] sm:$0xf]
  %v8723 = vld [vmem:[#allocation4 + $0x3c4] sm:$0xf]
  %v8724 = vld [vmem:[#allocation4 + $0x3c8] sm:$0xf]
  %v8725 = vld [vmem:[#allocation4 + $0x3cc] sm:$0xf]
  %v8726 = vld [vmem:[#allocation4 + $0x3d0] sm:$0xf]
  %v8727 = vld [vmem:[#allocation4 + $0x3d4] sm:$0xf]
  %v8728 = vld [vmem:[#allocation4 + $0x3d8] sm:$0xf]
  %v8729 = vld [vmem:[#allocation4 + $0x3dc] sm:$0xf]
  %v8730 = vld [vmem:[#allocation4 + $0x3e0] sm:$0xf]
  %v8731 = vld [vmem:[#allocation4 + $0x3e4] sm:$0xf]
  %v8732 = vld [vmem:[#allocation4 + $0x3e8] sm:$0xf]
  %v8733 = vld [vmem:[#allocation4 + $0x3ec] sm:$0xf]
  %v8734 = vld [vmem:[#allocation4 + $0x3f0] sm:$0xf]
  %v8735 = vld [vmem:[#allocation4 + $0x3f4] sm:$0xf]
  %v8736 = vld [vmem:[#allocation4 + $0x3f8] sm:$0xf]
  %v8737 = vld [vmem:[#allocation4 + $0x3fc] sm:$0xf]
  %v8738 = vld [vmem:[#allocation4 + $0x400] sm:$0xf]
  %v8739 = vld [vmem:[#allocation4 + $0x404] sm:$0xf]
  %v8740 = vld [vmem:[#allocation4 + $0x408] sm:$0xf]
  %v8741 = vld [vmem:[#allocation4 + $0x40c] sm:$0xf]
  %v8742 = vld [vmem:[#allocation4 + $0x410] sm:$0xf]
  %v8743 = vld [vmem:[#allocation4 + $0x414] sm:$0xf]
  %v8744 = vld [vmem:[#allocation4 + $0x418] sm:$0xf]
  %v8745 = vld [vmem:[#allocation4 + $0x41c] sm:$0xf]
  %v8746 = vld [vmem:[#allocation4 + $0x420] sm:$0xf]
  %v8747 = vld [vmem:[#allocation4 + $0x424] sm:$0xf]
  %v8748 = vld [vmem:[#allocation4 + $0x428] sm:$0xf]
  %v8749 = vld [vmem:[#allocation4 + $0x42c] sm:$0xf]
  %v8750 = vld [vmem:[#allocation4 + $0x430] sm:$0xf]
  %v8751 = vld [vmem:[#allocation4 + $0x434] sm:$0xf]
  %v8752 = vld [vmem:[#allocation4 + $0x438] sm:$0xf]
  %v8753 = vld [vmem:[#allocation4 + $0x43c] sm:$0xf]
  %v8754 = vld [vmem:[#allocation4 + $0x440] sm:$0xf]
  %v8755 = vld [vmem:[#allocation4 + $0x444] sm:$0xf]
  %v8756 = vld [vmem:[#allocation4 + $0x448] sm:$0xf]
  %v8757 = vld [vmem:[#allocation4 + $0x44c] sm:$0xf]
  %v8758 = vld [vmem:[#allocation4 + $0x450] sm:$0xf]
  %v8759 = vld [vmem:[#allocation4 + $0x454] sm:$0xf]
  %v8760 = vld [vmem:[#allocation4 + $0x458] sm:$0xf]
  %v8761 = vld [vmem:[#allocation4 + $0x45c] sm:$0xf]
  %v8762 = vld [vmem:[#allocation4 + $0x460] sm:$0xf]
  %v8763 = vld [vmem:[#allocation4 + $0x464] sm:$0xf]
  %v8764 = vld [vmem:[#allocation4 + $0x468] sm:$0xf]
  %v8765 = vld [vmem:[#allocation4 + $0x46c] sm:$0xf]
  %v8766 = vld [vmem:[#allocation4 + $0x470] sm:$0xf]
  %v8767 = vld [vmem:[#allocation4 + $0x474] sm:$0xf]
  %v8768 = vld [vmem:[#allocation4 + $0x478] sm:$0xf]
  %v8769 = vld [vmem:[#allocation4 + $0x47c] sm:$0xf]
  %v8770 = vld [vmem:[#allocation4 + $0x480] sm:$0xf]
  %v8771 = vld [vmem:[#allocation4 + $0x484] sm:$0xf]
  %v8772 = vld [vmem:[#allocation4 + $0x488] sm:$0xf]
  %v8773 = vld [vmem:[#allocation4 + $0x48c] sm:$0xf]
  %v8774 = vld [vmem:[#allocation4 + $0x490] sm:$0xf]
  %v8775 = vld [vmem:[#allocation4 + $0x494] sm:$0xf]
  %v8776 = vld [vmem:[#allocation4 + $0x498] sm:$0xf]
  %v8777 = vld [vmem:[#allocation4 + $0x49c] sm:$0xf]
  %v8778 = vld [vmem:[#allocation4 + $0x4a0] sm:$0xf]
  %v8779 = vld [vmem:[#allocation4 + $0x4a4] sm:$0xf]
  %v8780 = vld [vmem:[#allocation4 + $0x4a8] sm:$0xf]
  %v8781 = vld [vmem:[#allocation4 + $0x4ac] sm:$0xf]
  %v8782 = vld [vmem:[#allocation4 + $0x4b0] sm:$0xf]
  %v8783 = vld [vmem:[#allocation4 + $0x4b4] sm:$0xf]
  %v8784 = vld [vmem:[#allocation4 + $0x4b8] sm:$0xf]
  %v8785 = vld [vmem:[#allocation4 + $0x4bc] sm:$0xf]
  %v8786 = vld [vmem:[#allocation4 + $0x4c0] sm:$0xf]
  %v8787 = vld [vmem:[#allocation4 + $0x4c4] sm:$0xf]
  %v8788 = vld [vmem:[#allocation4 + $0x4c8] sm:$0xf]
  %v8789 = vld [vmem:[#allocation4 + $0x4cc] sm:$0xf]
  %v8790 = vld [vmem:[#allocation4 + $0x4d0] sm:$0xf]
  %v8791 = vld [vmem:[#allocation4 + $0x4d4] sm:$0xf]
  %v8792 = vld [vmem:[#allocation4 + $0x4d8] sm:$0xf]
  %v8793 = vld [vmem:[#allocation4 + $0x4dc] sm:$0xf]
  %v8794 = vld [vmem:[#allocation4 + $0x4e0] sm:$0xf]
  %v8795 = vld [vmem:[#allocation4 + $0x4e4] sm:$0xf]
  %v8796 = vld [vmem:[#allocation4 + $0x4e8] sm:$0xf]
  %v8797 = vld [vmem:[#allocation4 + $0x4ec] sm:$0xf]
  %v8798 = vld [vmem:[#allocation4 + $0x4f0] sm:$0xf]
  %v8799 = vld [vmem:[#allocation4 + $0x4f4] sm:$0xf]
  %v8800 = vld [vmem:[#allocation4 + $0x4f8] sm:$0xf]
  %v8801 = vld [vmem:[#allocation4 + $0x4fc] sm:$0xf]
  %v8802 = vld [vmem:[#allocation4 + $0x500] sm:$0xf]
  %v8803 = vld [vmem:[#allocation4 + $0x504] sm:$0xf]
  %v8804 = vld [vmem:[#allocation4 + $0x508] sm:$0xf]
  %v8805 = vld [vmem:[#allocation4 + $0x50c] sm:$0xf]
  %v8806 = vld [vmem:[#allocation4 + $0x510] sm:$0xf]
  %v8807 = vld [vmem:[#allocation4 + $0x514] sm:$0xf]
  %v8808 = vld [vmem:[#allocation4 + $0x518] sm:$0xf]
  %v8809 = vld [vmem:[#allocation4 + $0x51c] sm:$0xf]
  %v8810 = vld [vmem:[#allocation4 + $0x520] sm:$0xf]
  %v8811 = vld [vmem:[#allocation4 + $0x524] sm:$0xf]
  %v8812 = vld [vmem:[#allocation4 + $0x528] sm:$0xf]
  %v8813 = vld [vmem:[#allocation4 + $0x52c] sm:$0xf]
  %v8814 = vld [vmem:[#allocation4 + $0x530] sm:$0xf]
  %v8815 = vld [vmem:[#allocation4 + $0x534] sm:$0xf]
  %v8816 = vld [vmem:[#allocation4 + $0x538] sm:$0xf]
  %v8817 = vld [vmem:[#allocation4 + $0x53c] sm:$0xf]
  %v8818 = vld [vmem:[#allocation4 + $0x540] sm:$0xf]
  %v8819 = vld [vmem:[#allocation4 + $0x544] sm:$0xf]
  %v8820 = vld [vmem:[#allocation4 + $0x548] sm:$0xf]
  %v8821 = vld [vmem:[#allocation4 + $0x54c] sm:$0xf]
  %v8822 = vld [vmem:[#allocation4 + $0x550] sm:$0xf]
  %v8823 = vld [vmem:[#allocation4 + $0x554] sm:$0xf]
  %v8824 = vld [vmem:[#allocation4 + $0x558] sm:$0xf]
  %v8825 = vld [vmem:[#allocation4 + $0x55c] sm:$0xf]
  %v8826 = vld [vmem:[#allocation4 + $0x560] sm:$0xf]
  %v8827 = vld [vmem:[#allocation4 + $0x564] sm:$0xf]
  %v8828 = vld [vmem:[#allocation4 + $0x568] sm:$0xf]
  %v8829 = vld [vmem:[#allocation4 + $0x56c] sm:$0xf]
  %v8830 = vld [vmem:[#allocation4 + $0x570] sm:$0xf]
  %v8831 = vld [vmem:[#allocation4 + $0x574] sm:$0xf]
  %v8832 = vld [vmem:[#allocation4 + $0x578] sm:$0xf]
  %v8833 = vld [vmem:[#allocation4 + $0x57c] sm:$0xf]
  %v8834 = vld [vmem:[#allocation4 + $0x580] sm:$0xf]
  %v8835 = vld [vmem:[#allocation4 + $0x584] sm:$0xf]
  %v8836 = vld [vmem:[#allocation4 + $0x588] sm:$0xf]
  %v8837 = vld [vmem:[#allocation4 + $0x58c] sm:$0xf]
  %v8838 = vld [vmem:[#allocation4 + $0x590] sm:$0xf]
  %v8839 = vld [vmem:[#allocation4 + $0x594] sm:$0xf]
  %v8840 = vld [vmem:[#allocation4 + $0x598] sm:$0xf]
  %v8841 = vld [vmem:[#allocation4 + $0x59c] sm:$0xf]
  %v8842 = vld [vmem:[#allocation4 + $0x5a0] sm:$0xf]
  %v8843 = vld [vmem:[#allocation4 + $0x5a4] sm:$0xf]
  %v8844 = vld [vmem:[#allocation4 + $0x5a8] sm:$0xf]
  %v8845 = vld [vmem:[#allocation4 + $0x5ac] sm:$0xf]
  %v8846 = vld [vmem:[#allocation4 + $0x5b0] sm:$0xf]
  %v8847 = vld [vmem:[#allocation4 + $0x5b4] sm:$0xf]
  %v8848 = vld [vmem:[#allocation4 + $0x5b8] sm:$0xf]
  %v8849 = vld [vmem:[#allocation4 + $0x5bc] sm:$0xf]
  %v8850 = vld [vmem:[#allocation4 + $0x5c0] sm:$0xf]
  %v8851 = vld [vmem:[#allocation4 + $0x5c4] sm:$0xf]
  %v8852 = vld [vmem:[#allocation4 + $0x5c8] sm:$0xf]
  %v8853 = vld [vmem:[#allocation4 + $0x5cc] sm:$0xf]
  %v8854 = vld [vmem:[#allocation4 + $0x5d0] sm:$0xf]
  %v8855 = vld [vmem:[#allocation4 + $0x5d4] sm:$0xf]
  %v8856 = vld [vmem:[#allocation4 + $0x5d8] sm:$0xf]
  %v8857 = vld [vmem:[#allocation4 + $0x5dc] sm:$0xf]
  %v8858 = vld [vmem:[#allocation4 + $0x5e0] sm:$0xf]
  %v8859 = vld [vmem:[#allocation4 + $0x5e4] sm:$0xf]
  %v8860 = vld [vmem:[#allocation4 + $0x5e8] sm:$0xf]
  %v8861 = vld [vmem:[#allocation4 + $0x5ec] sm:$0xf]
  %v8862 = vld [vmem:[#allocation4 + $0x5f0] sm:$0xf]
  %v8863 = vld [vmem:[#allocation4 + $0x5f4] sm:$0xf]
  %v8864 = vld [vmem:[#allocation4 + $0x5f8] sm:$0xf]
  %v8865 = vld [vmem:[#allocation4 + $0x5fc] sm:$0xf]
  %v8866 = vld [vmem:[#allocation4 + $0x600] sm:$0xf]
  %v8867 = vld [vmem:[#allocation4 + $0x604] sm:$0xf]
  %v8868 = vld [vmem:[#allocation4 + $0x608] sm:$0xf]
  %v8869 = vld [vmem:[#allocation4 + $0x60c] sm:$0xf]
  %v8870 = vld [vmem:[#allocation4 + $0x610] sm:$0xf]
  %v8871 = vld [vmem:[#allocation4 + $0x614] sm:$0xf]
  %v8872 = vld [vmem:[#allocation4 + $0x618] sm:$0xf]
  %v8873 = vld [vmem:[#allocation4 + $0x61c] sm:$0xf]
  %v8874 = vld [vmem:[#allocation4 + $0x620] sm:$0xf]
  %v8875 = vld [vmem:[#allocation4 + $0x624] sm:$0xf]
  %v8876 = vld [vmem:[#allocation4 + $0x628] sm:$0xf]
  %v8877 = vld [vmem:[#allocation4 + $0x62c] sm:$0xf]
  %v8878 = vld [vmem:[#allocation4 + $0x630] sm:$0xf]
  %v8879 = vld [vmem:[#allocation4 + $0x634] sm:$0xf]
  %v8880 = vld [vmem:[#allocation4 + $0x638] sm:$0xf]
  %v8881 = vld [vmem:[#allocation4 + $0x63c] sm:$0xf]
  %v8882 = vld [vmem:[#allocation4 + $0x640] sm:$0xf]
  %v8883 = vld [vmem:[#allocation4 + $0x644] sm:$0xf]
  %v8884 = vld [vmem:[#allocation4 + $0x648] sm:$0xf]
  %v8885 = vld [vmem:[#allocation4 + $0x64c] sm:$0xf]
  %v8886 = vld [vmem:[#allocation4 + $0x650] sm:$0xf]
  %v8887 = vld [vmem:[#allocation4 + $0x654] sm:$0xf]
  %v8888 = vld [vmem:[#allocation4 + $0x658] sm:$0xf]
  %v8889 = vld [vmem:[#allocation4 + $0x65c] sm:$0xf]
  %v8890 = vld [vmem:[#allocation4 + $0x660] sm:$0xf]
  %v8891 = vld [vmem:[#allocation4 + $0x664] sm:$0xf]
  %v8892 = vld [vmem:[#allocation4 + $0x668] sm:$0xf]
  %v8893 = vld [vmem:[#allocation4 + $0x66c] sm:$0xf]
  %v8894 = vld [vmem:[#allocation4 + $0x670] sm:$0xf]
  %v8895 = vld [vmem:[#allocation4 + $0x674] sm:$0xf]
  %v8896 = vld [vmem:[#allocation4 + $0x678] sm:$0xf]
  %v8897 = vld [vmem:[#allocation4 + $0x67c] sm:$0xf]
  %v8898 = vld [vmem:[#allocation4 + $0x680] sm:$0xf]
  %v8899 = vld [vmem:[#allocation4 + $0x684] sm:$0xf]
  %v8900 = vld [vmem:[#allocation4 + $0x688] sm:$0xf]
  %v8901 = vld [vmem:[#allocation4 + $0x68c] sm:$0xf]
  %v8902 = vld [vmem:[#allocation4 + $0x690] sm:$0xf]
  %v8903 = vld [vmem:[#allocation4 + $0x694] sm:$0xf]
  %v8904 = vld [vmem:[#allocation4 + $0x698] sm:$0xf]
  %v8905 = vld [vmem:[#allocation4 + $0x69c] sm:$0xf]
  %v8906 = vld [vmem:[#allocation4 + $0x6a0] sm:$0xf]
  %v8907 = vld [vmem:[#allocation4 + $0x6a4] sm:$0xf]
  %v8908 = vld [vmem:[#allocation4 + $0x6a8] sm:$0xf]
  %v8909 = vld [vmem:[#allocation4 + $0x6ac] sm:$0xf]
  %v8910 = vld [vmem:[#allocation4 + $0x6b0] sm:$0xf]
  %v8911 = vld [vmem:[#allocation4 + $0x6b4] sm:$0xf]
  %v8912 = vld [vmem:[#allocation4 + $0x6b8] sm:$0xf]
  %v8913 = vld [vmem:[#allocation4 + $0x6bc] sm:$0xf]
  %v8914 = vld [vmem:[#allocation4 + $0x6c0] sm:$0xf]
  %v8915 = vld [vmem:[#allocation4 + $0x6c4] sm:$0xf]
  %v8916 = vld [vmem:[#allocation4 + $0x6c8] sm:$0xf]
  %v8917 = vld [vmem:[#allocation4 + $0x6cc] sm:$0xf]
  %v8918 = vld [vmem:[#allocation4 + $0x6d0] sm:$0xf]
  %v8919 = vld [vmem:[#allocation4 + $0x6d4] sm:$0xf]
  %v8920 = vld [vmem:[#allocation4 + $0x6d8] sm:$0xf]
  %v8921 = vld [vmem:[#allocation4 + $0x6dc] sm:$0xf]
  %v8922 = vld [vmem:[#allocation4 + $0x6e0] sm:$0xf]
  %v8923 = vld [vmem:[#allocation4 + $0x6e4] sm:$0xf]
  %v8924 = vld [vmem:[#allocation4 + $0x6e8] sm:$0xf]
  %v8925 = vld [vmem:[#allocation4 + $0x6ec] sm:$0xf]
  %v8926 = vld [vmem:[#allocation4 + $0x6f0] sm:$0xf]
  %v8927 = vld [vmem:[#allocation4 + $0x6f4] sm:$0xf]
  %v8928 = vld [vmem:[#allocation4 + $0x6f8] sm:$0xf]
  %v8929 = vld [vmem:[#allocation4 + $0x6fc] sm:$0xf]
  %v8930 = vld [vmem:[#allocation4 + $0x700] sm:$0xf]
  %v8931 = vld [vmem:[#allocation4 + $0x704] sm:$0xf]
  %v8932 = vld [vmem:[#allocation4 + $0x708] sm:$0xf]
  %v8933 = vld [vmem:[#allocation4 + $0x70c] sm:$0xf]
  %v8934 = vld [vmem:[#allocation4 + $0x710] sm:$0xf]
  %v8935 = vld [vmem:[#allocation4 + $0x714] sm:$0xf]
  %v8936 = vld [vmem:[#allocation4 + $0x718] sm:$0xf]
  %v8937 = vld [vmem:[#allocation4 + $0x71c] sm:$0xf]
  %v8938 = vld [vmem:[#allocation4 + $0x720] sm:$0xf]
  %v8939 = vld [vmem:[#allocation4 + $0x724] sm:$0xf]
  %v8940 = vld [vmem:[#allocation4 + $0x728] sm:$0xf]
  %v8941 = vld [vmem:[#allocation4 + $0x72c] sm:$0xf]
  %v8942 = vld [vmem:[#allocation4 + $0x730] sm:$0xf]
  %v8943 = vld [vmem:[#allocation4 + $0x734] sm:$0xf]
  %v8944 = vld [vmem:[#allocation4 + $0x738] sm:$0xf]
  %v8945 = vld [vmem:[#allocation4 + $0x73c] sm:$0xf]
  %v8946 = vld [vmem:[#allocation4 + $0x740] sm:$0xf]
  %v8947 = vld [vmem:[#allocation4 + $0x744] sm:$0xf]
  %v8948 = vld [vmem:[#allocation4 + $0x748] sm:$0xf]
  %v8949 = vld [vmem:[#allocation4 + $0x74c] sm:$0xf]
  %v8950 = vld [vmem:[#allocation4 + $0x750] sm:$0xf]
  %v8951 = vld [vmem:[#allocation4 + $0x754] sm:$0xf]
  %v8952 = vld [vmem:[#allocation4 + $0x758] sm:$0xf]
  %v8953 = vld [vmem:[#allocation4 + $0x75c] sm:$0xf]
  %v8954 = vld [vmem:[#allocation4 + $0x760] sm:$0xf]
  %v8955 = vld [vmem:[#allocation4 + $0x764] sm:$0xf]
  %v8956 = vld [vmem:[#allocation4 + $0x768] sm:$0xf]
  %v8957 = vld [vmem:[#allocation4 + $0x76c] sm:$0xf]
  %v8958 = vld [vmem:[#allocation4 + $0x770] sm:$0xf]
  %v8959 = vld [vmem:[#allocation4 + $0x774] sm:$0xf]
  %v8960 = vld [vmem:[#allocation4 + $0x778] sm:$0xf]
  %v8961 = vld [vmem:[#allocation4 + $0x77c] sm:$0xf]
  %v8962 = vld [vmem:[#allocation4 + $0x780] sm:$0xf]
  %v8963 = vld [vmem:[#allocation4 + $0x784] sm:$0xf]
  %v8964 = vld [vmem:[#allocation4 + $0x788] sm:$0xf]
  %v8965 = vld [vmem:[#allocation4 + $0x78c] sm:$0xf]
  %v8966 = vld [vmem:[#allocation4 + $0x790] sm:$0xf]
  %v8967 = vld [vmem:[#allocation4 + $0x794] sm:$0xf]
  %v8968 = vld [vmem:[#allocation4 + $0x798] sm:$0xf]
  %v8969 = vld [vmem:[#allocation4 + $0x79c] sm:$0xf]
  %v8970 = vld [vmem:[#allocation4 + $0x7a0] sm:$0xf]
  %v8971 = vld [vmem:[#allocation4 + $0x7a4] sm:$0xf]
  %v8972 = vld [vmem:[#allocation4 + $0x7a8] sm:$0xf]
  %v8973 = vld [vmem:[#allocation4 + $0x7ac] sm:$0xf]
  %v8974 = vld [vmem:[#allocation4 + $0x7b0] sm:$0xf]
  %v8975 = vld [vmem:[#allocation4 + $0x7b4] sm:$0xf]
  %v8976 = vld [vmem:[#allocation4 + $0x7b8] sm:$0xf]
  %v8977 = vld [vmem:[#allocation4 + $0x7bc] sm:$0xf]
  %v8978 = vld [vmem:[#allocation4 + $0x7c0] sm:$0xf]
  %v8979 = vld [vmem:[#allocation4 + $0x7c4] sm:$0xf]
  %v8980 = vld [vmem:[#allocation4 + $0x7c8] sm:$0xf]
  %v8981 = vld [vmem:[#allocation4 + $0x7cc] sm:$0xf]
  %v8982 = vld [vmem:[#allocation4 + $0x7d0] sm:$0xf]
  %v8983 = vld [vmem:[#allocation4 + $0x7d4] sm:$0xf]
  %v8984 = vld [vmem:[#allocation4 + $0x7d8] sm:$0xf]
  %v8985 = vld [vmem:[#allocation4 + $0x7dc] sm:$0xf]
  %v8986 = vld [vmem:[#allocation4 + $0x7e0] sm:$0xf]
  %v8987 = vld [vmem:[#allocation4 + $0x7e4] sm:$0xf]
  %v8988 = vld [vmem:[#allocation4 + $0x7e8] sm:$0xf]
  %v8989 = vld [vmem:[#allocation4 + $0x7ec] sm:$0xf]
  %v8990 = vld [vmem:[#allocation4 + $0x7f0] sm:$0xf]
  %v8991 = vld [vmem:[#allocation4 + $0x7f4] sm:$0xf]
  %v8992 = vld [vmem:[#allocation4 + $0x7f8] sm:$0xf]
  %v8993 = vld [vmem:[#allocation4 + $0x7fc] sm:$0xf]
  %v8994 = vld [vmem:[%s8] sm:$0x1]
  %v8996 = vperm.slane %v8994, 0
  %v9014 = vunpack.c.l.b16 %v8466
  %v9015 = vunpack.c.h.b16 %v8466
  %v9016 = vunpack.c.l.b16 %v8467
  %v9017 = vunpack.c.h.b16 %v8467
  %v9018 = vunpack.c.l.b16 %v8468
  %v9019 = vunpack.c.h.b16 %v8468
  %v9020 = vunpack.c.l.b16 %v8469
  %v9021 = vunpack.c.h.b16 %v8469
  %v9022 = vunpack.c.l.b16 %v8470
  %v9023 = vunpack.c.h.b16 %v8470
  %v9024 = vunpack.c.l.b16 %v8471
  %v9025 = vunpack.c.h.b16 %v8471
  %v9026 = vunpack.c.l.b16 %v8472
  %v9027 = vunpack.c.h.b16 %v8472
  %v9028 = vunpack.c.l.b16 %v8473
  %v9029 = vunpack.c.h.b16 %v8473
  %v9030 = vunpack.c.l.b16 %v8474
  %v9031 = vunpack.c.h.b16 %v8474
  %v9032 = vunpack.c.l.b16 %v8475
  %v9033 = vunpack.c.h.b16 %v8475
  %v9034 = vunpack.c.l.b16 %v8476
  %v9035 = vunpack.c.h.b16 %v8476
  %v9036 = vunpack.c.l.b16 %v8477
  %v9037 = vunpack.c.h.b16 %v8477
  %v9038 = vunpack.c.l.b16 %v8478
  %v9039 = vunpack.c.h.b16 %v8478
  %v9040 = vunpack.c.l.b16 %v8479
  %v9041 = vunpack.c.h.b16 %v8479
  %v9042 = vunpack.c.l.b16 %v8480
  %v9043 = vunpack.c.h.b16 %v8480
  %v9044 = vunpack.c.l.b16 %v8481
  %v9045 = vunpack.c.h.b16 %v8481
  %v9046 = vpack.c.b16 %v9014, %v9014
  %v9047 = vpack.c.b16 %v9015, %v9015
  %v9048 = vpack.c.b16 %v9016, %v9016
  %v9049 = vpack.c.b16 %v9017, %v9017
  %v9050 = vpack.c.b16 %v9018, %v9018
  %v9051 = vpack.c.b16 %v9019, %v9019
  %v9052 = vpack.c.b16 %v9020, %v9020
  %v9053 = vpack.c.b16 %v9021, %v9021
  %v9054 = vpack.c.b16 %v9022, %v9022
  %v9055 = vpack.c.b16 %v9023, %v9023
  %v9056 = vpack.c.b16 %v9024, %v9024
  %v9057 = vpack.c.b16 %v9025, %v9025
  %v9058 = vpack.c.b16 %v9026, %v9026
  %v9059 = vpack.c.b16 %v9027, %v9027
  %v9060 = vpack.c.b16 %v9028, %v9028
  %v9061 = vpack.c.b16 %v9029, %v9029
  %v9062 = vpack.c.b16 %v9030, %v9030
  %v9063 = vpack.c.b16 %v9031, %v9031
  %v9064 = vpack.c.b16 %v9032, %v9032
  %v9065 = vpack.c.b16 %v9033, %v9033
  %v9066 = vpack.c.b16 %v9034, %v9034
  %v9067 = vpack.c.b16 %v9035, %v9035
  %v9068 = vpack.c.b16 %v9036, %v9036
  %v9069 = vpack.c.b16 %v9037, %v9037
  %v9070 = vpack.c.b16 %v9038, %v9038
  %v9071 = vpack.c.b16 %v9039, %v9039
  %v9072 = vpack.c.b16 %v9040, %v9040
  %v9073 = vpack.c.b16 %v9041, %v9041
  %v9074 = vpack.c.b16 %v9042, %v9042
  %v9075 = vpack.c.b16 %v9043, %v9043
  %v9076 = vpack.c.b16 %v9044, %v9044
  %v9077 = vpack.c.b16 %v9045, %v9045
  %v9622 = vunpack.c.l.b16 %v8482
  %v9623 = vunpack.c.l.b16 %v8483
  %v9624 = vunpack.c.l.b16 %v8484
  %v9625 = vunpack.c.l.b16 %v8485
  %v9626 = vunpack.c.l.b16 %v8486
  %v9627 = vunpack.c.l.b16 %v8487
  %v9628 = vunpack.c.l.b16 %v8488
  %v9629 = vunpack.c.l.b16 %v8489
  %v9630 = vunpack.c.l.b16 %v8490
  %v9631 = vunpack.c.l.b16 %v8491
  %v9632 = vunpack.c.l.b16 %v8492
  %v9633 = vunpack.c.l.b16 %v8493
  %v9634 = vunpack.c.l.b16 %v8494
  %v9635 = vunpack.c.l.b16 %v8495
  %v9636 = vunpack.c.l.b16 %v8496
  %v9637 = vunpack.c.l.b16 %v8497
  %v9638 = vunpack.c.l.b16 %v8498
  %v9639 = vunpack.c.l.b16 %v8499
  %v9640 = vunpack.c.l.b16 %v8500
  %v9641 = vunpack.c.l.b16 %v8501
  %v9642 = vunpack.c.l.b16 %v8502
  %v9643 = vunpack.c.l.b16 %v8503
  %v9644 = vunpack.c.l.b16 %v8504
  %v9645 = vunpack.c.l.b16 %v8505
  %v9646 = vunpack.c.l.b16 %v8506
  %v9647 = vunpack.c.l.b16 %v8507
  %v9648 = vunpack.c.l.b16 %v8508
  %v9649 = vunpack.c.l.b16 %v8509
  %v9650 = vunpack.c.l.b16 %v8510
  %v9651 = vunpack.c.l.b16 %v8511
  %v9652 = vunpack.c.l.b16 %v8512
  %v9653 = vunpack.c.l.b16 %v8513
  %v9654 = vunpack.c.l.b16 %v8514
  %v9655 = vunpack.c.l.b16 %v8515
  %v9656 = vunpack.c.l.b16 %v8516
  %v9657 = vunpack.c.l.b16 %v8517
  %v9658 = vunpack.c.l.b16 %v8518
  %v9659 = vunpack.c.l.b16 %v8519
  %v9660 = vunpack.c.l.b16 %v8520
  %v9661 = vunpack.c.l.b16 %v8521
  %v9662 = vunpack.c.l.b16 %v8522
  %v9663 = vunpack.c.l.b16 %v8523
  %v9664 = vunpack.c.l.b16 %v8524
  %v9665 = vunpack.c.l.b16 %v8525
  %v9666 = vunpack.c.l.b16 %v8526
  %v9667 = vunpack.c.l.b16 %v8527
  %v9668 = vunpack.c.l.b16 %v8528
  %v9669 = vunpack.c.l.b16 %v8529
  %v9670 = vunpack.c.l.b16 %v8530
  %v9671 = vunpack.c.l.b16 %v8531
  %v9672 = vunpack.c.l.b16 %v8532
  %v9673 = vunpack.c.l.b16 %v8533
  %v9674 = vunpack.c.l.b16 %v8534
  %v9675 = vunpack.c.l.b16 %v8535
  %v9676 = vunpack.c.l.b16 %v8536
  %v9677 = vunpack.c.l.b16 %v8537
  %v9678 = vunpack.c.l.b16 %v8538
  %v9679 = vunpack.c.l.b16 %v8539
  %v9680 = vunpack.c.l.b16 %v8540
  %v9681 = vunpack.c.l.b16 %v8541
  %v9682 = vunpack.c.l.b16 %v8542
  %v9683 = vunpack.c.l.b16 %v8543
  %v9684 = vunpack.c.l.b16 %v8544
  %v9685 = vunpack.c.l.b16 %v8545
  %v9686 = vunpack.c.l.b16 %v8546
  %v9687 = vunpack.c.l.b16 %v8547
  %v9688 = vunpack.c.l.b16 %v8548
  %v9689 = vunpack.c.l.b16 %v8549
  %v9690 = vunpack.c.l.b16 %v8550
  %v9691 = vunpack.c.l.b16 %v8551
  %v9692 = vunpack.c.l.b16 %v8552
  %v9693 = vunpack.c.l.b16 %v8553
  %v9694 = vunpack.c.l.b16 %v8554
  %v9695 = vunpack.c.l.b16 %v8555
  %v9696 = vunpack.c.l.b16 %v8556
  %v9697 = vunpack.c.l.b16 %v8557
  %v9698 = vunpack.c.l.b16 %v8558
  %v9699 = vunpack.c.l.b16 %v8559
  %v9700 = vunpack.c.l.b16 %v8560
  %v9701 = vunpack.c.l.b16 %v8561
  %v9702 = vunpack.c.l.b16 %v8562
  %v9703 = vunpack.c.l.b16 %v8563
  %v9704 = vunpack.c.l.b16 %v8564
  %v9705 = vunpack.c.l.b16 %v8565
  %v9706 = vunpack.c.l.b16 %v8566
  %v9707 = vunpack.c.l.b16 %v8567
  %v9708 = vunpack.c.l.b16 %v8568
  %v9709 = vunpack.c.l.b16 %v8569
  %v9710 = vunpack.c.l.b16 %v8570
  %v9711 = vunpack.c.l.b16 %v8571
  %v9712 = vunpack.c.l.b16 %v8572
  %v9713 = vunpack.c.l.b16 %v8573
  %v9714 = vunpack.c.l.b16 %v8574
  %v9715 = vunpack.c.l.b16 %v8575
  %v9716 = vunpack.c.l.b16 %v8576
  %v9717 = vunpack.c.l.b16 %v8577
  %v9718 = vunpack.c.l.b16 %v8578
  %v9719 = vunpack.c.l.b16 %v8579
  %v9720 = vunpack.c.l.b16 %v8580
  %v9721 = vunpack.c.l.b16 %v8581
  %v9722 = vunpack.c.l.b16 %v8582
  %v9723 = vunpack.c.l.b16 %v8583
  %v9724 = vunpack.c.l.b16 %v8584
  %v9725 = vunpack.c.l.b16 %v8585
  %v9726 = vunpack.c.l.b16 %v8586
  %v9727 = vunpack.c.l.b16 %v8587
  %v9728 = vunpack.c.l.b16 %v8588
  %v9729 = vunpack.c.l.b16 %v8589
  %v9730 = vunpack.c.l.b16 %v8590
  %v9731 = vunpack.c.l.b16 %v8591
  %v9732 = vunpack.c.l.b16 %v8592
  %v9733 = vunpack.c.l.b16 %v8593
  %v9734 = vunpack.c.l.b16 %v8594
  %v9735 = vunpack.c.l.b16 %v8595
  %v9736 = vunpack.c.l.b16 %v8596
  %v9737 = vunpack.c.l.b16 %v8597
  %v9738 = vunpack.c.l.b16 %v8598
  %v9739 = vunpack.c.l.b16 %v8599
  %v9740 = vunpack.c.l.b16 %v8600
  %v9741 = vunpack.c.l.b16 %v8601
  %v9742 = vunpack.c.l.b16 %v8602
  %v9743 = vunpack.c.l.b16 %v8603
  %v9744 = vunpack.c.l.b16 %v8604
  %v9745 = vunpack.c.l.b16 %v8605
  %v9746 = vunpack.c.l.b16 %v8606
  %v9747 = vunpack.c.l.b16 %v8607
  %v9748 = vunpack.c.l.b16 %v8608
  %v9749 = vunpack.c.l.b16 %v8609
  %v9750 = vunpack.c.l.b16 %v8610
  %v9751 = vunpack.c.l.b16 %v8611
  %v9752 = vunpack.c.l.b16 %v8612
  %v9753 = vunpack.c.l.b16 %v8613
  %v9754 = vunpack.c.l.b16 %v8614
  %v9755 = vunpack.c.l.b16 %v8615
  %v9756 = vunpack.c.l.b16 %v8616
  %v9757 = vunpack.c.l.b16 %v8617
  %v9758 = vunpack.c.l.b16 %v8618
  %v9759 = vunpack.c.l.b16 %v8619
  %v9760 = vunpack.c.l.b16 %v8620
  %v9761 = vunpack.c.l.b16 %v8621
  %v9762 = vunpack.c.l.b16 %v8622
  %v9763 = vunpack.c.l.b16 %v8623
  %v9764 = vunpack.c.l.b16 %v8624
  %v9765 = vunpack.c.l.b16 %v8625
  %v9766 = vunpack.c.l.b16 %v8626
  %v9767 = vunpack.c.l.b16 %v8627
  %v9768 = vunpack.c.l.b16 %v8628
  %v9769 = vunpack.c.l.b16 %v8629
  %v9770 = vunpack.c.l.b16 %v8630
  %v9771 = vunpack.c.l.b16 %v8631
  %v9772 = vunpack.c.l.b16 %v8632
  %v9773 = vunpack.c.l.b16 %v8633
  %v9774 = vunpack.c.l.b16 %v8634
  %v9775 = vunpack.c.l.b16 %v8635
  %v9776 = vunpack.c.l.b16 %v8636
  %v9777 = vunpack.c.l.b16 %v8637
  %v9778 = vunpack.c.l.b16 %v8638
  %v9779 = vunpack.c.l.b16 %v8639
  %v9780 = vunpack.c.l.b16 %v8640
  %v9781 = vunpack.c.l.b16 %v8641
  %v9782 = vunpack.c.l.b16 %v8642
  %v9783 = vunpack.c.l.b16 %v8643
  %v9784 = vunpack.c.l.b16 %v8644
  %v9785 = vunpack.c.l.b16 %v8645
  %v9786 = vunpack.c.l.b16 %v8646
  %v9787 = vunpack.c.l.b16 %v8647
  %v9788 = vunpack.c.l.b16 %v8648
  %v9789 = vunpack.c.l.b16 %v8649
  %v9790 = vunpack.c.l.b16 %v8650
  %v9791 = vunpack.c.l.b16 %v8651
  %v9792 = vunpack.c.l.b16 %v8652
  %v9793 = vunpack.c.l.b16 %v8653
  %v9794 = vunpack.c.l.b16 %v8654
  %v9795 = vunpack.c.l.b16 %v8655
  %v9796 = vunpack.c.l.b16 %v8656
  %v9797 = vunpack.c.l.b16 %v8657
  %v9798 = vunpack.c.l.b16 %v8658
  %v9799 = vunpack.c.l.b16 %v8659
  %v9800 = vunpack.c.l.b16 %v8660
  %v9801 = vunpack.c.l.b16 %v8661
  %v9802 = vunpack.c.l.b16 %v8662
  %v9803 = vunpack.c.l.b16 %v8663
  %v9804 = vunpack.c.l.b16 %v8664
  %v9805 = vunpack.c.l.b16 %v8665
  %v9806 = vunpack.c.l.b16 %v8666
  %v9807 = vunpack.c.l.b16 %v8667
  %v9808 = vunpack.c.l.b16 %v8668
  %v9809 = vunpack.c.l.b16 %v8669
  %v9810 = vunpack.c.l.b16 %v8670
  %v9811 = vunpack.c.l.b16 %v8671
  %v9812 = vunpack.c.l.b16 %v8672
  %v9813 = vunpack.c.l.b16 %v8673
  %v9814 = vunpack.c.l.b16 %v8674
  %v9815 = vunpack.c.l.b16 %v8675
  %v9816 = vunpack.c.l.b16 %v8676
  %v9817 = vunpack.c.l.b16 %v8677
  %v9818 = vunpack.c.l.b16 %v8678
  %v9819 = vunpack.c.l.b16 %v8679
  %v9820 = vunpack.c.l.b16 %v8680
  %v9821 = vunpack.c.l.b16 %v8681
  %v9822 = vunpack.c.l.b16 %v8682
  %v9823 = vunpack.c.l.b16 %v8683
  %v9824 = vunpack.c.l.b16 %v8684
  %v9825 = vunpack.c.l.b16 %v8685
  %v9826 = vunpack.c.l.b16 %v8686
  %v9827 = vunpack.c.l.b16 %v8687
  %v9828 = vunpack.c.l.b16 %v8688
  %v9829 = vunpack.c.l.b16 %v8689
  %v9830 = vunpack.c.l.b16 %v8690
  %v9831 = vunpack.c.l.b16 %v8691
  %v9832 = vunpack.c.l.b16 %v8692
  %v9833 = vunpack.c.l.b16 %v8693
  %v9834 = vunpack.c.l.b16 %v8694
  %v9835 = vunpack.c.l.b16 %v8695
  %v9836 = vunpack.c.l.b16 %v8696
  %v9837 = vunpack.c.l.b16 %v8697
  %v9838 = vunpack.c.l.b16 %v8698
  %v9839 = vunpack.c.l.b16 %v8699
  %v9840 = vunpack.c.l.b16 %v8700
  %v9841 = vunpack.c.l.b16 %v8701
  %v9842 = vunpack.c.l.b16 %v8702
  %v9843 = vunpack.c.l.b16 %v8703
  %v9844 = vunpack.c.l.b16 %v8704
  %v9845 = vunpack.c.l.b16 %v8705
  %v9846 = vunpack.c.l.b16 %v8706
  %v9847 = vunpack.c.l.b16 %v8707
  %v9848 = vunpack.c.l.b16 %v8708
  %v9849 = vunpack.c.l.b16 %v8709
  %v9850 = vunpack.c.l.b16 %v8710
  %v9851 = vunpack.c.l.b16 %v8711
  %v9852 = vunpack.c.l.b16 %v8712
  %v9853 = vunpack.c.l.b16 %v8713
  %v9854 = vunpack.c.l.b16 %v8714
  %v9855 = vunpack.c.l.b16 %v8715
  %v9856 = vunpack.c.l.b16 %v8716
  %v9857 = vunpack.c.l.b16 %v8717
  %v9858 = vunpack.c.l.b16 %v8718
  %v9859 = vunpack.c.l.b16 %v8719
  %v9860 = vunpack.c.l.b16 %v8720
  %v9861 = vunpack.c.l.b16 %v8721
  %v9862 = vunpack.c.l.b16 %v8722
  %v9863 = vunpack.c.l.b16 %v8723
  %v9864 = vunpack.c.l.b16 %v8724
  %v9865 = vunpack.c.l.b16 %v8725
  %v9866 = vunpack.c.l.b16 %v8726
  %v9867 = vunpack.c.l.b16 %v8727
  %v9868 = vunpack.c.l.b16 %v8728
  %v9869 = vunpack.c.l.b16 %v8729
  %v9870 = vunpack.c.l.b16 %v8730
  %v9871 = vunpack.c.l.b16 %v8731
  %v9872 = vunpack.c.l.b16 %v8732
  %v9873 = vunpack.c.l.b16 %v8733
  %v9874 = vunpack.c.l.b16 %v8734
  %v9875 = vunpack.c.l.b16 %v8735
  %v9876 = vunpack.c.l.b16 %v8736
  %v9877 = vunpack.c.l.b16 %v8737
  %v9878 = vunpack.c.l.b16 %v8738
  %v9879 = vunpack.c.l.b16 %v8739
  %v9880 = vunpack.c.l.b16 %v8740
  %v9881 = vunpack.c.l.b16 %v8741
  %v9882 = vunpack.c.l.b16 %v8742
  %v9883 = vunpack.c.l.b16 %v8743
  %v9884 = vunpack.c.l.b16 %v8744
  %v9885 = vunpack.c.l.b16 %v8745
  %v9886 = vunpack.c.l.b16 %v8746
  %v9887 = vunpack.c.l.b16 %v8747
  %v9888 = vunpack.c.l.b16 %v8748
  %v9889 = vunpack.c.l.b16 %v8749
  %v9890 = vunpack.c.l.b16 %v8750
  %v9891 = vunpack.c.l.b16 %v8751
  %v9892 = vunpack.c.l.b16 %v8752
  %v9893 = vunpack.c.l.b16 %v8753
  %v9894 = vunpack.c.l.b16 %v8754
  %v9895 = vunpack.c.l.b16 %v8755
  %v9896 = vunpack.c.l.b16 %v8756
  %v9897 = vunpack.c.l.b16 %v8757
  %v9898 = vunpack.c.l.b16 %v8758
  %v9899 = vunpack.c.l.b16 %v8759
  %v9900 = vunpack.c.l.b16 %v8760
  %v9901 = vunpack.c.l.b16 %v8761
  %v9902 = vunpack.c.l.b16 %v8762
  %v9903 = vunpack.c.l.b16 %v8763
  %v9904 = vunpack.c.l.b16 %v8764
  %v9905 = vunpack.c.l.b16 %v8765
  %v9906 = vunpack.c.l.b16 %v8766
  %v9907 = vunpack.c.l.b16 %v8767
  %v9908 = vunpack.c.l.b16 %v8768
  %v9909 = vunpack.c.l.b16 %v8769
  %v9910 = vunpack.c.l.b16 %v8770
  %v9911 = vunpack.c.l.b16 %v8771
  %v9912 = vunpack.c.l.b16 %v8772
  %v9913 = vunpack.c.l.b16 %v8773
  %v9914 = vunpack.c.l.b16 %v8774
  %v9915 = vunpack.c.l.b16 %v8775
  %v9916 = vunpack.c.l.b16 %v8776
  %v9917 = vunpack.c.l.b16 %v8777
  %v9918 = vunpack.c.l.b16 %v8778
  %v9919 = vunpack.c.l.b16 %v8779
  %v9920 = vunpack.c.l.b16 %v8780
  %v9921 = vunpack.c.l.b16 %v8781
  %v9922 = vunpack.c.l.b16 %v8782
  %v9923 = vunpack.c.l.b16 %v8783
  %v9924 = vunpack.c.l.b16 %v8784
  %v9925 = vunpack.c.l.b16 %v8785
  %v9926 = vunpack.c.l.b16 %v8786
  %v9927 = vunpack.c.l.b16 %v8787
  %v9928 = vunpack.c.l.b16 %v8788
  %v9929 = vunpack.c.l.b16 %v8789
  %v9930 = vunpack.c.l.b16 %v8790
  %v9931 = vunpack.c.l.b16 %v8791
  %v9932 = vunpack.c.l.b16 %v8792
  %v9933 = vunpack.c.l.b16 %v8793
  %v9934 = vunpack.c.l.b16 %v8794
  %v9935 = vunpack.c.l.b16 %v8795
  %v9936 = vunpack.c.l.b16 %v8796
  %v9937 = vunpack.c.l.b16 %v8797
  %v9938 = vunpack.c.l.b16 %v8798
  %v9939 = vunpack.c.l.b16 %v8799
  %v9940 = vunpack.c.l.b16 %v8800
  %v9941 = vunpack.c.l.b16 %v8801
  %v9942 = vunpack.c.l.b16 %v8802
  %v9943 = vunpack.c.l.b16 %v8803
  %v9944 = vunpack.c.l.b16 %v8804
  %v9945 = vunpack.c.l.b16 %v8805
  %v9946 = vunpack.c.l.b16 %v8806
  %v9947 = vunpack.c.l.b16 %v8807
  %v9948 = vunpack.c.l.b16 %v8808
  %v9949 = vunpack.c.l.b16 %v8809
  %v9950 = vunpack.c.l.b16 %v8810
  %v9951 = vunpack.c.l.b16 %v8811
  %v9952 = vunpack.c.l.b16 %v8812
  %v9953 = vunpack.c.l.b16 %v8813
  %v9954 = vunpack.c.l.b16 %v8814
  %v9955 = vunpack.c.l.b16 %v8815
  %v9956 = vunpack.c.l.b16 %v8816
  %v9957 = vunpack.c.l.b16 %v8817
  %v9958 = vunpack.c.l.b16 %v8818
  %v9959 = vunpack.c.l.b16 %v8819
  %v9960 = vunpack.c.l.b16 %v8820
  %v9961 = vunpack.c.l.b16 %v8821
  %v9962 = vunpack.c.l.b16 %v8822
  %v9963 = vunpack.c.l.b16 %v8823
  %v9964 = vunpack.c.l.b16 %v8824
  %v9965 = vunpack.c.l.b16 %v8825
  %v9966 = vunpack.c.l.b16 %v8826
  %v9967 = vunpack.c.l.b16 %v8827
  %v9968 = vunpack.c.l.b16 %v8828
  %v9969 = vunpack.c.l.b16 %v8829
  %v9970 = vunpack.c.l.b16 %v8830
  %v9971 = vunpack.c.l.b16 %v8831
  %v9972 = vunpack.c.l.b16 %v8832
  %v9973 = vunpack.c.l.b16 %v8833
  %v9974 = vunpack.c.l.b16 %v8834
  %v9975 = vunpack.c.l.b16 %v8835
  %v9976 = vunpack.c.l.b16 %v8836
  %v9977 = vunpack.c.l.b16 %v8837
  %v9978 = vunpack.c.l.b16 %v8838
  %v9979 = vunpack.c.l.b16 %v8839
  %v9980 = vunpack.c.l.b16 %v8840
  %v9981 = vunpack.c.l.b16 %v8841
  %v9982 = vunpack.c.l.b16 %v8842
  %v9983 = vunpack.c.l.b16 %v8843
  %v9984 = vunpack.c.l.b16 %v8844
  %v9985 = vunpack.c.l.b16 %v8845
  %v9986 = vunpack.c.l.b16 %v8846
  %v9987 = vunpack.c.l.b16 %v8847
  %v9988 = vunpack.c.l.b16 %v8848
  %v9989 = vunpack.c.l.b16 %v8849
  %v9990 = vunpack.c.l.b16 %v8850
  %v9991 = vunpack.c.l.b16 %v8851
  %v9992 = vunpack.c.l.b16 %v8852
  %v9993 = vunpack.c.l.b16 %v8853
  %v9994 = vunpack.c.l.b16 %v8854
  %v9995 = vunpack.c.l.b16 %v8855
  %v9996 = vunpack.c.l.b16 %v8856
  %v9997 = vunpack.c.l.b16 %v8857
  %v9998 = vunpack.c.l.b16 %v8858
  %v9999 = vunpack.c.l.b16 %v8859
  %v10000 = vunpack.c.l.b16 %v8860
  %v10001 = vunpack.c.l.b16 %v8861
  %v10002 = vunpack.c.l.b16 %v8862
  %v10003 = vunpack.c.l.b16 %v8863
  %v10004 = vunpack.c.l.b16 %v8864
  %v10005 = vunpack.c.l.b16 %v8865
  %v10006 = vunpack.c.l.b16 %v8866
  %v10007 = vunpack.c.l.b16 %v8867
  %v10008 = vunpack.c.l.b16 %v8868
  %v10009 = vunpack.c.l.b16 %v8869
  %v10010 = vunpack.c.l.b16 %v8870
  %v10011 = vunpack.c.l.b16 %v8871
  %v10012 = vunpack.c.l.b16 %v8872
  %v10013 = vunpack.c.l.b16 %v8873
  %v10014 = vunpack.c.l.b16 %v8874
  %v10015 = vunpack.c.l.b16 %v8875
  %v10016 = vunpack.c.l.b16 %v8876
  %v10017 = vunpack.c.l.b16 %v8877
  %v10018 = vunpack.c.l.b16 %v8878
  %v10019 = vunpack.c.l.b16 %v8879
  %v10020 = vunpack.c.l.b16 %v8880
  %v10021 = vunpack.c.l.b16 %v8881
  %v10022 = vunpack.c.l.b16 %v8882
  %v10023 = vunpack.c.l.b16 %v8883
  %v10024 = vunpack.c.l.b16 %v8884
  %v10025 = vunpack.c.l.b16 %v8885
  %v10026 = vunpack.c.l.b16 %v8886
  %v10027 = vunpack.c.l.b16 %v8887
  %v10028 = vunpack.c.l.b16 %v8888
  %v10029 = vunpack.c.l.b16 %v8889
  %v10030 = vunpack.c.l.b16 %v8890
  %v10031 = vunpack.c.l.b16 %v8891
  %v10032 = vunpack.c.l.b16 %v8892
  %v10033 = vunpack.c.l.b16 %v8893
  %v10034 = vunpack.c.l.b16 %v8894
  %v10035 = vunpack.c.l.b16 %v8895
  %v10036 = vunpack.c.l.b16 %v8896
  %v10037 = vunpack.c.l.b16 %v8897
  %v10038 = vunpack.c.l.b16 %v8898
  %v10039 = vunpack.c.l.b16 %v8899
  %v10040 = vunpack.c.l.b16 %v8900
  %v10041 = vunpack.c.l.b16 %v8901
  %v10042 = vunpack.c.l.b16 %v8902
  %v10043 = vunpack.c.l.b16 %v8903
  %v10044 = vunpack.c.l.b16 %v8904
  %v10045 = vunpack.c.l.b16 %v8905
  %v10046 = vunpack.c.l.b16 %v8906
  %v10047 = vunpack.c.l.b16 %v8907
  %v10048 = vunpack.c.l.b16 %v8908
  %v10049 = vunpack.c.l.b16 %v8909
  %v10050 = vunpack.c.l.b16 %v8910
  %v10051 = vunpack.c.l.b16 %v8911
  %v10052 = vunpack.c.l.b16 %v8912
  %v10053 = vunpack.c.l.b16 %v8913
  %v10054 = vunpack.c.l.b16 %v8914
  %v10055 = vunpack.c.l.b16 %v8915
  %v10056 = vunpack.c.l.b16 %v8916
  %v10057 = vunpack.c.l.b16 %v8917
  %v10058 = vunpack.c.l.b16 %v8918
  %v10059 = vunpack.c.l.b16 %v8919
  %v10060 = vunpack.c.l.b16 %v8920
  %v10061 = vunpack.c.l.b16 %v8921
  %v10062 = vunpack.c.l.b16 %v8922
  %v10063 = vunpack.c.l.b16 %v8923
  %v10064 = vunpack.c.l.b16 %v8924
  %v10065 = vunpack.c.l.b16 %v8925
  %v10066 = vunpack.c.l.b16 %v8926
  %v10067 = vunpack.c.l.b16 %v8927
  %v10068 = vunpack.c.l.b16 %v8928
  %v10069 = vunpack.c.l.b16 %v8929
  %v10070 = vunpack.c.l.b16 %v8930
  %v10071 = vunpack.c.l.b16 %v8931
  %v10072 = vunpack.c.l.b16 %v8932
  %v10073 = vunpack.c.l.b16 %v8933
  %v10074 = vunpack.c.l.b16 %v8934
  %v10075 = vunpack.c.l.b16 %v8935
  %v10076 = vunpack.c.l.b16 %v8936
  %v10077 = vunpack.c.l.b16 %v8937
  %v10078 = vunpack.c.l.b16 %v8938
  %v10079 = vunpack.c.l.b16 %v8939
  %v10080 = vunpack.c.l.b16 %v8940
  %v10081 = vunpack.c.l.b16 %v8941
  %v10082 = vunpack.c.l.b16 %v8942
  %v10083 = vunpack.c.l.b16 %v8943
  %v10084 = vunpack.c.l.b16 %v8944
  %v10085 = vunpack.c.l.b16 %v8945
  %v10086 = vunpack.c.l.b16 %v8946
  %v10087 = vunpack.c.l.b16 %v8947
  %v10088 = vunpack.c.l.b16 %v8948
  %v10089 = vunpack.c.l.b16 %v8949
  %v10090 = vunpack.c.l.b16 %v8950
  %v10091 = vunpack.c.l.b16 %v8951
  %v10092 = vunpack.c.l.b16 %v8952
  %v10093 = vunpack.c.l.b16 %v8953
  %v10094 = vunpack.c.l.b16 %v8954
  %v10095 = vunpack.c.l.b16 %v8955
  %v10096 = vunpack.c.l.b16 %v8956
  %v10097 = vunpack.c.l.b16 %v8957
  %v10098 = vunpack.c.l.b16 %v8958
  %v10099 = vunpack.c.l.b16 %v8959
  %v10100 = vunpack.c.l.b16 %v8960
  %v10101 = vunpack.c.l.b16 %v8961
  %v10102 = vunpack.c.l.b16 %v8962
  %v10103 = vunpack.c.l.b16 %v8963
  %v10104 = vunpack.c.l.b16 %v8964
  %v10105 = vunpack.c.l.b16 %v8965
  %v10106 = vunpack.c.l.b16 %v8966
  %v10107 = vunpack.c.l.b16 %v8967
  %v10108 = vunpack.c.l.b16 %v8968
  %v10109 = vunpack.c.l.b16 %v8969
  %v10110 = vunpack.c.l.b16 %v8970
  %v10111 = vunpack.c.l.b16 %v8971
  %v10112 = vunpack.c.l.b16 %v8972
  %v10113 = vunpack.c.l.b16 %v8973
  %v10114 = vunpack.c.l.b16 %v8974
  %v10115 = vunpack.c.l.b16 %v8975
  %v10116 = vunpack.c.l.b16 %v8976
  %v10117 = vunpack.c.l.b16 %v8977
  %v10118 = vunpack.c.l.b16 %v8978
  %v10119 = vunpack.c.l.b16 %v8979
  %v10120 = vunpack.c.l.b16 %v8980
  %v10121 = vunpack.c.l.b16 %v8981
  %v10122 = vunpack.c.l.b16 %v8982
  %v10123 = vunpack.c.l.b16 %v8983
  %v10124 = vunpack.c.l.b16 %v8984
  %v10125 = vunpack.c.l.b16 %v8985
  %v10126 = vunpack.c.l.b16 %v8986
  %v10127 = vunpack.c.l.b16 %v8987
  %v10128 = vunpack.c.l.b16 %v8988
  %v10129 = vunpack.c.l.b16 %v8989
  %v10130 = vunpack.c.l.b16 %v8990
  %v10131 = vunpack.c.l.b16 %v8991
  %v10132 = vunpack.c.l.b16 %v8992
  %v10133 = vunpack.c.l.b16 %v8993
  %v10134 = vpack.c.b16 %v9623, %v9622
  %v10135 = vpack.c.b16 %v9625, %v9624
  %v10136 = vpack.c.b16 %v9627, %v9626
  %v10137 = vpack.c.b16 %v9629, %v9628
  %v10138 = vpack.c.b16 %v9631, %v9630
  %v10139 = vpack.c.b16 %v9633, %v9632
  %v10140 = vpack.c.b16 %v9635, %v9634
  %v10141 = vpack.c.b16 %v9637, %v9636
  %v10142 = vpack.c.b16 %v9639, %v9638
  %v10143 = vpack.c.b16 %v9641, %v9640
  %v10144 = vpack.c.b16 %v9643, %v9642
  %v10145 = vpack.c.b16 %v9645, %v9644
  %v10146 = vpack.c.b16 %v9647, %v9646
  %v10147 = vpack.c.b16 %v9649, %v9648
  %v10148 = vpack.c.b16 %v9651, %v9650
  %v10149 = vpack.c.b16 %v9653, %v9652
  %v10150 = vpack.c.b16 %v9655, %v9654
  %v10151 = vpack.c.b16 %v9657, %v9656
  %v10152 = vpack.c.b16 %v9659, %v9658
  %v10153 = vpack.c.b16 %v9661, %v9660
  %v10154 = vpack.c.b16 %v9663, %v9662
  %v10155 = vpack.c.b16 %v9665, %v9664
  %v10156 = vpack.c.b16 %v9667, %v9666
  %v10157 = vpack.c.b16 %v9669, %v9668
  %v10158 = vpack.c.b16 %v9671, %v9670
  %v10159 = vpack.c.b16 %v9673, %v9672
  %v10160 = vpack.c.b16 %v9675, %v9674
  %v10161 = vpack.c.b16 %v9677, %v9676
  %v10162 = vpack.c.b16 %v9679, %v9678
  %v10163 = vpack.c.b16 %v9681, %v9680
  %v10164 = vpack.c.b16 %v9683, %v9682
  %v10165 = vpack.c.b16 %v9685, %v9684
  %v10166 = vpack.c.b16 %v9687, %v9686
  %v10167 = vpack.c.b16 %v9689, %v9688
  %v10168 = vpack.c.b16 %v9691, %v9690
  %v10169 = vpack.c.b16 %v9693, %v9692
  %v10170 = vpack.c.b16 %v9695, %v9694
  %v10171 = vpack.c.b16 %v9697, %v9696
  %v10172 = vpack.c.b16 %v9699, %v9698
  %v10173 = vpack.c.b16 %v9701, %v9700
  %v10174 = vpack.c.b16 %v9703, %v9702
  %v10175 = vpack.c.b16 %v9705, %v9704
  %v10176 = vpack.c.b16 %v9707, %v9706
  %v10177 = vpack.c.b16 %v9709, %v9708
  %v10178 = vpack.c.b16 %v9711, %v9710
  %v10179 = vpack.c.b16 %v9713, %v9712
  %v10180 = vpack.c.b16 %v9715, %v9714
  %v10181 = vpack.c.b16 %v9717, %v9716
  %v10182 = vpack.c.b16 %v9719, %v9718
  %v10183 = vpack.c.b16 %v9721, %v9720
  %v10184 = vpack.c.b16 %v9723, %v9722
  %v10185 = vpack.c.b16 %v9725, %v9724
  %v10186 = vpack.c.b16 %v9727, %v9726
  %v10187 = vpack.c.b16 %v9729, %v9728
  %v10188 = vpack.c.b16 %v9731, %v9730
  %v10189 = vpack.c.b16 %v9733, %v9732
  %v10190 = vpack.c.b16 %v9735, %v9734
  %v10191 = vpack.c.b16 %v9737, %v9736
  %v10192 = vpack.c.b16 %v9739, %v9738
  %v10193 = vpack.c.b16 %v9741, %v9740
  %v10194 = vpack.c.b16 %v9743, %v9742
  %v10195 = vpack.c.b16 %v9745, %v9744
  %v10196 = vpack.c.b16 %v9747, %v9746
  %v10197 = vpack.c.b16 %v9749, %v9748
  %v10198 = vpack.c.b16 %v9751, %v9750
  %v10199 = vpack.c.b16 %v9753, %v9752
  %v10200 = vpack.c.b16 %v9755, %v9754
  %v10201 = vpack.c.b16 %v9757, %v9756
  %v10202 = vpack.c.b16 %v9759, %v9758
  %v10203 = vpack.c.b16 %v9761, %v9760
  %v10204 = vpack.c.b16 %v9763, %v9762
  %v10205 = vpack.c.b16 %v9765, %v9764
  %v10206 = vpack.c.b16 %v9767, %v9766
  %v10207 = vpack.c.b16 %v9769, %v9768
  %v10208 = vpack.c.b16 %v9771, %v9770
  %v10209 = vpack.c.b16 %v9773, %v9772
  %v10210 = vpack.c.b16 %v9775, %v9774
  %v10211 = vpack.c.b16 %v9777, %v9776
  %v10212 = vpack.c.b16 %v9779, %v9778
  %v10213 = vpack.c.b16 %v9781, %v9780
  %v10214 = vpack.c.b16 %v9783, %v9782
  %v10215 = vpack.c.b16 %v9785, %v9784
  %v10216 = vpack.c.b16 %v9787, %v9786
  %v10217 = vpack.c.b16 %v9789, %v9788
  %v10218 = vpack.c.b16 %v9791, %v9790
  %v10219 = vpack.c.b16 %v9793, %v9792
  %v10220 = vpack.c.b16 %v9795, %v9794
  %v10221 = vpack.c.b16 %v9797, %v9796
  %v10222 = vpack.c.b16 %v9799, %v9798
  %v10223 = vpack.c.b16 %v9801, %v9800
  %v10224 = vpack.c.b16 %v9803, %v9802
  %v10225 = vpack.c.b16 %v9805, %v9804
  %v10226 = vpack.c.b16 %v9807, %v9806
  %v10227 = vpack.c.b16 %v9809, %v9808
  %v10228 = vpack.c.b16 %v9811, %v9810
  %v10229 = vpack.c.b16 %v9813, %v9812
  %v10230 = vpack.c.b16 %v9815, %v9814
  %v10231 = vpack.c.b16 %v9817, %v9816
  %v10232 = vpack.c.b16 %v9819, %v9818
  %v10233 = vpack.c.b16 %v9821, %v9820
  %v10234 = vpack.c.b16 %v9823, %v9822
  %v10235 = vpack.c.b16 %v9825, %v9824
  %v10236 = vpack.c.b16 %v9827, %v9826
  %v10237 = vpack.c.b16 %v9829, %v9828
  %v10238 = vpack.c.b16 %v9831, %v9830
  %v10239 = vpack.c.b16 %v9833, %v9832
  %v10240 = vpack.c.b16 %v9835, %v9834
  %v10241 = vpack.c.b16 %v9837, %v9836
  %v10242 = vpack.c.b16 %v9839, %v9838
  %v10243 = vpack.c.b16 %v9841, %v9840
  %v10244 = vpack.c.b16 %v9843, %v9842
  %v10245 = vpack.c.b16 %v9845, %v9844
  %v10246 = vpack.c.b16 %v9847, %v9846
  %v10247 = vpack.c.b16 %v9849, %v9848
  %v10248 = vpack.c.b16 %v9851, %v9850
  %v10249 = vpack.c.b16 %v9853, %v9852
  %v10250 = vpack.c.b16 %v9855, %v9854
  %v10251 = vpack.c.b16 %v9857, %v9856
  %v10252 = vpack.c.b16 %v9859, %v9858
  %v10253 = vpack.c.b16 %v9861, %v9860
  %v10254 = vpack.c.b16 %v9863, %v9862
  %v10255 = vpack.c.b16 %v9865, %v9864
  %v10256 = vpack.c.b16 %v9867, %v9866
  %v10257 = vpack.c.b16 %v9869, %v9868
  %v10258 = vpack.c.b16 %v9871, %v9870
  %v10259 = vpack.c.b16 %v9873, %v9872
  %v10260 = vpack.c.b16 %v9875, %v9874
  %v10261 = vpack.c.b16 %v9877, %v9876
  %v10262 = vpack.c.b16 %v9879, %v9878
  %v10263 = vpack.c.b16 %v9881, %v9880
  %v10264 = vpack.c.b16 %v9883, %v9882
  %v10265 = vpack.c.b16 %v9885, %v9884
  %v10266 = vpack.c.b16 %v9887, %v9886
  %v10267 = vpack.c.b16 %v9889, %v9888
  %v10268 = vpack.c.b16 %v9891, %v9890
  %v10269 = vpack.c.b16 %v9893, %v9892
  %v10270 = vpack.c.b16 %v9895, %v9894
  %v10271 = vpack.c.b16 %v9897, %v9896
  %v10272 = vpack.c.b16 %v9899, %v9898
  %v10273 = vpack.c.b16 %v9901, %v9900
  %v10274 = vpack.c.b16 %v9903, %v9902
  %v10275 = vpack.c.b16 %v9905, %v9904
  %v10276 = vpack.c.b16 %v9907, %v9906
  %v10277 = vpack.c.b16 %v9909, %v9908
  %v10278 = vpack.c.b16 %v9911, %v9910
  %v10279 = vpack.c.b16 %v9913, %v9912
  %v10280 = vpack.c.b16 %v9915, %v9914
  %v10281 = vpack.c.b16 %v9917, %v9916
  %v10282 = vpack.c.b16 %v9919, %v9918
  %v10283 = vpack.c.b16 %v9921, %v9920
  %v10284 = vpack.c.b16 %v9923, %v9922
  %v10285 = vpack.c.b16 %v9925, %v9924
  %v10286 = vpack.c.b16 %v9927, %v9926
  %v10287 = vpack.c.b16 %v9929, %v9928
  %v10288 = vpack.c.b16 %v9931, %v9930
  %v10289 = vpack.c.b16 %v9933, %v9932
  %v10290 = vpack.c.b16 %v9935, %v9934
  %v10291 = vpack.c.b16 %v9937, %v9936
  %v10292 = vpack.c.b16 %v9939, %v9938
  %v10293 = vpack.c.b16 %v9941, %v9940
  %v10294 = vpack.c.b16 %v9943, %v9942
  %v10295 = vpack.c.b16 %v9945, %v9944
  %v10296 = vpack.c.b16 %v9947, %v9946
  %v10297 = vpack.c.b16 %v9949, %v9948
  %v10298 = vpack.c.b16 %v9951, %v9950
  %v10299 = vpack.c.b16 %v9953, %v9952
  %v10300 = vpack.c.b16 %v9955, %v9954
  %v10301 = vpack.c.b16 %v9957, %v9956
  %v10302 = vpack.c.b16 %v9959, %v9958
  %v10303 = vpack.c.b16 %v9961, %v9960
  %v10304 = vpack.c.b16 %v9963, %v9962
  %v10305 = vpack.c.b16 %v9965, %v9964
  %v10306 = vpack.c.b16 %v9967, %v9966
  %v10307 = vpack.c.b16 %v9969, %v9968
  %v10308 = vpack.c.b16 %v9971, %v9970
  %v10309 = vpack.c.b16 %v9973, %v9972
  %v10310 = vpack.c.b16 %v9975, %v9974
  %v10311 = vpack.c.b16 %v9977, %v9976
  %v10312 = vpack.c.b16 %v9979, %v9978
  %v10313 = vpack.c.b16 %v9981, %v9980
  %v10314 = vpack.c.b16 %v9983, %v9982
  %v10315 = vpack.c.b16 %v9985, %v9984
  %v10316 = vpack.c.b16 %v9987, %v9986
  %v10317 = vpack.c.b16 %v9989, %v9988
  %v10318 = vpack.c.b16 %v9991, %v9990
  %v10319 = vpack.c.b16 %v9993, %v9992
  %v10320 = vpack.c.b16 %v9995, %v9994
  %v10321 = vpack.c.b16 %v9997, %v9996
  %v10322 = vpack.c.b16 %v9999, %v9998
  %v10323 = vpack.c.b16 %v10001, %v10000
  %v10324 = vpack.c.b16 %v10003, %v10002
  %v10325 = vpack.c.b16 %v10005, %v10004
  %v10326 = vpack.c.b16 %v10007, %v10006
  %v10327 = vpack.c.b16 %v10009, %v10008
  %v10328 = vpack.c.b16 %v10011, %v10010
  %v10329 = vpack.c.b16 %v10013, %v10012
  %v10330 = vpack.c.b16 %v10015, %v10014
  %v10331 = vpack.c.b16 %v10017, %v10016
  %v10332 = vpack.c.b16 %v10019, %v10018
  %v10333 = vpack.c.b16 %v10021, %v10020
  %v10334 = vpack.c.b16 %v10023, %v10022
  %v10335 = vpack.c.b16 %v10025, %v10024
  %v10336 = vpack.c.b16 %v10027, %v10026
  %v10337 = vpack.c.b16 %v10029, %v10028
  %v10338 = vpack.c.b16 %v10031, %v10030
  %v10339 = vpack.c.b16 %v10033, %v10032
  %v10340 = vpack.c.b16 %v10035, %v10034
  %v10341 = vpack.c.b16 %v10037, %v10036
  %v10342 = vpack.c.b16 %v10039, %v10038
  %v10343 = vpack.c.b16 %v10041, %v10040
  %v10344 = vpack.c.b16 %v10043, %v10042
  %v10345 = vpack.c.b16 %v10045, %v10044
  %v10346 = vpack.c.b16 %v10047, %v10046
  %v10347 = vpack.c.b16 %v10049, %v10048
  %v10348 = vpack.c.b16 %v10051, %v10050
  %v10349 = vpack.c.b16 %v10053, %v10052
  %v10350 = vpack.c.b16 %v10055, %v10054
  %v10351 = vpack.c.b16 %v10057, %v10056
  %v10352 = vpack.c.b16 %v10059, %v10058
  %v10353 = vpack.c.b16 %v10061, %v10060
  %v10354 = vpack.c.b16 %v10063, %v10062
  %v10355 = vpack.c.b16 %v10065, %v10064
  %v10356 = vpack.c.b16 %v10067, %v10066
  %v10357 = vpack.c.b16 %v10069, %v10068
  %v10358 = vpack.c.b16 %v10071, %v10070
  %v10359 = vpack.c.b16 %v10073, %v10072
  %v10360 = vpack.c.b16 %v10075, %v10074
  %v10361 = vpack.c.b16 %v10077, %v10076
  %v10362 = vpack.c.b16 %v10079, %v10078
  %v10363 = vpack.c.b16 %v10081, %v10080
  %v10364 = vpack.c.b16 %v10083, %v10082
  %v10365 = vpack.c.b16 %v10085, %v10084
  %v10366 = vpack.c.b16 %v10087, %v10086
  %v10367 = vpack.c.b16 %v10089, %v10088
  %v10368 = vpack.c.b16 %v10091, %v10090
  %v10369 = vpack.c.b16 %v10093, %v10092
  %v10370 = vpack.c.b16 %v10095, %v10094
  %v10371 = vpack.c.b16 %v10097, %v10096
  %v10372 = vpack.c.b16 %v10099, %v10098
  %v10373 = vpack.c.b16 %v10101, %v10100
  %v10374 = vpack.c.b16 %v10103, %v10102
  %v10375 = vpack.c.b16 %v10105, %v10104
  %v10376 = vpack.c.b16 %v10107, %v10106
  %v10377 = vpack.c.b16 %v10109, %v10108
  %v10378 = vpack.c.b16 %v10111, %v10110
  %v10379 = vpack.c.b16 %v10113, %v10112
  %v10380 = vpack.c.b16 %v10115, %v10114
  %v10381 = vpack.c.b16 %v10117, %v10116
  %v10382 = vpack.c.b16 %v10119, %v10118
  %v10383 = vpack.c.b16 %v10121, %v10120
  %v10384 = vpack.c.b16 %v10123, %v10122
  %v10385 = vpack.c.b16 %v10125, %v10124
  %v10386 = vpack.c.b16 %v10127, %v10126
  %v10387 = vpack.c.b16 %v10129, %v10128
  %v10388 = vpack.c.b16 %v10131, %v10130
  %v10389 = vpack.c.b16 %v10133, %v10132
  %10646 = vmatpush.bf16.msra.mxu0 %v10141
  %10647 = vmatpush.bf16.msra.mxu0 %v10140
  %10648 = vmatpush.bf16.msra.mxu0 %v10139
  %10649 = vmatpush.bf16.msra.mxu0 %v10138
  %10650 = vmatpush.bf16.msra.mxu0 %v10137
  %10651 = vmatpush.bf16.msra.mxu0 %v10136
  %10652 = vmatpush.bf16.msra.mxu0 %v10135
  %10653 = vmatpush.bf16.msra.mxu0 %v10134
  %10654 = vmatmul.bf16.gmra.mxu0 %v9046
  %v10655 = vpop.f32.mrf.mxu0
  %v10656 = vadd.f32 %v8996, %v10655
  %v10657 = vpop.f32.mrf.mxu0
  %10658 = vdwg.mxu0
  %10659 = vmatpush.bf16.msra.mxu0 %v10149
  %10660 = vmatpush.bf16.msra.mxu0 %v10148
  %10661 = vmatpush.bf16.msra.mxu0 %v10147
  %10662 = vmatpush.bf16.msra.mxu0 %v10146
  %10663 = vmatpush.bf16.msra.mxu0 %v10145
  %10664 = vmatpush.bf16.msra.mxu0 %v10144
  %10665 = vmatpush.bf16.msra.mxu0 %v10143
  %10666 = vmatpush.bf16.msra.mxu0 %v10142
  %10667 = vmatmul.bf16.gmra.mxu0 %v9047
  %v10668 = vpop.f32.mrf.mxu0
  %v10669 = vadd.f32 %v10656, %v10668
  %v10670 = vpop.f32.mrf.mxu0
  %10671 = vdwg.mxu0
  %10672 = vmatpush.bf16.msra.mxu0 %v10157
  %10673 = vmatpush.bf16.msra.mxu0 %v10156
  %10674 = vmatpush.bf16.msra.mxu0 %v10155
  %10675 = vmatpush.bf16.msra.mxu0 %v10154
  %10676 = vmatpush.bf16.msra.mxu0 %v10153
  %10677 = vmatpush.bf16.msra.mxu0 %v10152
  %10678 = vmatpush.bf16.msra.mxu0 %v10151
  %10679 = vmatpush.bf16.msra.mxu0 %v10150
  %10680 = vmatmul.bf16.gmra.mxu0 %v9048
  %v10681 = vpop.f32.mrf.mxu0
  %v10682 = vadd.f32 %v10669, %v10681
  %v10683 = vpop.f32.mrf.mxu0
  %10684 = vdwg.mxu0
  %10685 = vmatpush.bf16.msra.mxu0 %v10165
  %10686 = vmatpush.bf16.msra.mxu0 %v10164
  %10687 = vmatpush.bf16.msra.mxu0 %v10163
  %10688 = vmatpush.bf16.msra.mxu0 %v10162
  %10689 = vmatpush.bf16.msra.mxu0 %v10161
  %10690 = vmatpush.bf16.msra.mxu0 %v10160
  %10691 = vmatpush.bf16.msra.mxu0 %v10159
  %10692 = vmatpush.bf16.msra.mxu0 %v10158
  %10693 = vmatmul.bf16.gmra.mxu0 %v9049
  %v10694 = vpop.f32.mrf.mxu0
  %v10695 = vadd.f32 %v10682, %v10694
  %v10696 = vpop.f32.mrf.mxu0
  %10697 = vdwg.mxu0
  %10698 = vmatpush.bf16.msra.mxu0 %v10173
  %10699 = vmatpush.bf16.msra.mxu0 %v10172
  %10700 = vmatpush.bf16.msra.mxu0 %v10171
  %10701 = vmatpush.bf16.msra.mxu0 %v10170
  %10702 = vmatpush.bf16.msra.mxu0 %v10169
  %10703 = vmatpush.bf16.msra.mxu0 %v10168
  %10704 = vmatpush.bf16.msra.mxu0 %v10167
  %10705 = vmatpush.bf16.msra.mxu0 %v10166
  %10706 = vmatmul.bf16.gmra.mxu0 %v9050
  %v10707 = vpop.f32.mrf.mxu0
  %v10708 = vadd.f32 %v10695, %v10707
  %v10709 = vpop.f32.mrf.mxu0
  %10710 = vdwg.mxu0
  %10711 = vmatpush.bf16.msra.mxu0 %v10181
  %10712 = vmatpush.bf16.msra.mxu0 %v10180
  %10713 = vmatpush.bf16.msra.mxu0 %v10179
  %10714 = vmatpush.bf16.msra.mxu0 %v10178
  %10715 = vmatpush.bf16.msra.mxu0 %v10177
  %10716 = vmatpush.bf16.msra.mxu0 %v10176
  %10717 = vmatpush.bf16.msra.mxu0 %v10175
  %10718 = vmatpush.bf16.msra.mxu0 %v10174
  %10719 = vmatmul.bf16.gmra.mxu0 %v9051
  %v10720 = vpop.f32.mrf.mxu0
  %v10721 = vadd.f32 %v10708, %v10720
  %v10722 = vpop.f32.mrf.mxu0
  %10723 = vdwg.mxu0
  %10724 = vmatpush.bf16.msra.mxu0 %v10189
  %10725 = vmatpush.bf16.msra.mxu0 %v10188
  %10726 = vmatpush.bf16.msra.mxu0 %v10187
  %10727 = vmatpush.bf16.msra.mxu0 %v10186
  %10728 = vmatpush.bf16.msra.mxu0 %v10185
  %10729 = vmatpush.bf16.msra.mxu0 %v10184
  %10730 = vmatpush.bf16.msra.mxu0 %v10183
  %10731 = vmatpush.bf16.msra.mxu0 %v10182
  %10732 = vmatmul.bf16.gmra.mxu0 %v9052
  %v10733 = vpop.f32.mrf.mxu0
  %v10734 = vadd.f32 %v10721, %v10733
  %v10735 = vpop.f32.mrf.mxu0
  %10736 = vdwg.mxu0
  %10737 = vmatpush.bf16.msra.mxu0 %v10197
  %10738 = vmatpush.bf16.msra.mxu0 %v10196
  %10739 = vmatpush.bf16.msra.mxu0 %v10195
  %10740 = vmatpush.bf16.msra.mxu0 %v10194
  %10741 = vmatpush.bf16.msra.mxu0 %v10193
  %10742 = vmatpush.bf16.msra.mxu0 %v10192
  %10743 = vmatpush.bf16.msra.mxu0 %v10191
  %10744 = vmatpush.bf16.msra.mxu0 %v10190
  %10745 = vmatmul.bf16.gmra.mxu0 %v9053
  %v10746 = vpop.f32.mrf.mxu0
  %v10747 = vadd.f32 %v10734, %v10746
  %v10748 = vpop.f32.mrf.mxu0
  %10749 = vdwg.mxu0
  %10750 = vmatpush.bf16.msra.mxu0 %v10205
  %10751 = vmatpush.bf16.msra.mxu0 %v10204
  %10752 = vmatpush.bf16.msra.mxu0 %v10203
  %10753 = vmatpush.bf16.msra.mxu0 %v10202
  %10754 = vmatpush.bf16.msra.mxu0 %v10201
  %10755 = vmatpush.bf16.msra.mxu0 %v10200
  %10756 = vmatpush.bf16.msra.mxu0 %v10199
  %10757 = vmatpush.bf16.msra.mxu0 %v10198
  %10758 = vmatmul.bf16.gmra.mxu0 %v9054
  %v10759 = vpop.f32.mrf.mxu0
  %v10760 = vadd.f32 %v10747, %v10759
  %v10761 = vpop.f32.mrf.mxu0
  %10762 = vdwg.mxu0
  %10763 = vmatpush.bf16.msra.mxu0 %v10213
  %10764 = vmatpush.bf16.msra.mxu0 %v10212
  %10765 = vmatpush.bf16.msra.mxu0 %v10211
  %10766 = vmatpush.bf16.msra.mxu0 %v10210
  %10767 = vmatpush.bf16.msra.mxu0 %v10209
  %10768 = vmatpush.bf16.msra.mxu0 %v10208
  %10769 = vmatpush.bf16.msra.mxu0 %v10207
  %10770 = vmatpush.bf16.msra.mxu0 %v10206
  %10771 = vmatmul.bf16.gmra.mxu0 %v9055
  %v10772 = vpop.f32.mrf.mxu0
  %v10773 = vadd.f32 %v10760, %v10772
  %v10774 = vpop.f32.mrf.mxu0
  %10775 = vdwg.mxu0
  %10776 = vmatpush.bf16.msra.mxu0 %v10221
  %10777 = vmatpush.bf16.msra.mxu0 %v10220
  %10778 = vmatpush.bf16.msra.mxu0 %v10219
  %10779 = vmatpush.bf16.msra.mxu0 %v10218
  %10780 = vmatpush.bf16.msra.mxu0 %v10217
  %10781 = vmatpush.bf16.msra.mxu0 %v10216
  %10782 = vmatpush.bf16.msra.mxu0 %v10215
  %10783 = vmatpush.bf16.msra.mxu0 %v10214
  %10784 = vmatmul.bf16.gmra.mxu0 %v9056
  %v10785 = vpop.f32.mrf.mxu0
  %v10786 = vadd.f32 %v10773, %v10785
  %v10787 = vpop.f32.mrf.mxu0
  %10788 = vdwg.mxu0
  %10789 = vmatpush.bf16.msra.mxu0 %v10229
  %10790 = vmatpush.bf16.msra.mxu0 %v10228
  %10791 = vmatpush.bf16.msra.mxu0 %v10227
  %10792 = vmatpush.bf16.msra.mxu0 %v10226
  %10793 = vmatpush.bf16.msra.mxu0 %v10225
  %10794 = vmatpush.bf16.msra.mxu0 %v10224
  %10795 = vmatpush.bf16.msra.mxu0 %v10223
  %10796 = vmatpush.bf16.msra.mxu0 %v10222
  %10797 = vmatmul.bf16.gmra.mxu0 %v9057
  %v10798 = vpop.f32.mrf.mxu0
  %v10799 = vadd.f32 %v10786, %v10798
  %v10800 = vpop.f32.mrf.mxu0
  %10801 = vdwg.mxu0
  %10802 = vmatpush.bf16.msra.mxu0 %v10237
  %10803 = vmatpush.bf16.msra.mxu0 %v10236
  %10804 = vmatpush.bf16.msra.mxu0 %v10235
  %10805 = vmatpush.bf16.msra.mxu0 %v10234
  %10806 = vmatpush.bf16.msra.mxu0 %v10233
  %10807 = vmatpush.bf16.msra.mxu0 %v10232
  %10808 = vmatpush.bf16.msra.mxu0 %v10231
  %10809 = vmatpush.bf16.msra.mxu0 %v10230
  %10810 = vmatmul.bf16.gmra.mxu0 %v9058
  %v10811 = vpop.f32.mrf.mxu0
  %v10812 = vadd.f32 %v10799, %v10811
  %v10813 = vpop.f32.mrf.mxu0
  %10814 = vdwg.mxu0
  %10815 = vmatpush.bf16.msra.mxu0 %v10245
  %10816 = vmatpush.bf16.msra.mxu0 %v10244
  %10817 = vmatpush.bf16.msra.mxu0 %v10243
  %10818 = vmatpush.bf16.msra.mxu0 %v10242
  %10819 = vmatpush.bf16.msra.mxu0 %v10241
  %10820 = vmatpush.bf16.msra.mxu0 %v10240
  %10821 = vmatpush.bf16.msra.mxu0 %v10239
  %10822 = vmatpush.bf16.msra.mxu0 %v10238
  %10823 = vmatmul.bf16.gmra.mxu0 %v9059
  %v10824 = vpop.f32.mrf.mxu0
  %v10825 = vadd.f32 %v10812, %v10824
  %v10826 = vpop.f32.mrf.mxu0
  %10827 = vdwg.mxu0
  %10828 = vmatpush.bf16.msra.mxu0 %v10253
  %10829 = vmatpush.bf16.msra.mxu0 %v10252
  %10830 = vmatpush.bf16.msra.mxu0 %v10251
  %10831 = vmatpush.bf16.msra.mxu0 %v10250
  %10832 = vmatpush.bf16.msra.mxu0 %v10249
  %10833 = vmatpush.bf16.msra.mxu0 %v10248
  %10834 = vmatpush.bf16.msra.mxu0 %v10247
  %10835 = vmatpush.bf16.msra.mxu0 %v10246
  %10836 = vmatmul.bf16.gmra.mxu0 %v9060
  %v10837 = vpop.f32.mrf.mxu0
  %v10838 = vadd.f32 %v10825, %v10837
  %v10839 = vpop.f32.mrf.mxu0
  %10840 = vdwg.mxu0
  %10841 = vmatpush.bf16.msra.mxu0 %v10261
  %10842 = vmatpush.bf16.msra.mxu0 %v10260
  %10843 = vmatpush.bf16.msra.mxu0 %v10259
  %10844 = vmatpush.bf16.msra.mxu0 %v10258
  %10845 = vmatpush.bf16.msra.mxu0 %v10257
  %10846 = vmatpush.bf16.msra.mxu0 %v10256
  %10847 = vmatpush.bf16.msra.mxu0 %v10255
  %10848 = vmatpush.bf16.msra.mxu0 %v10254
  %10849 = vmatmul.bf16.gmra.mxu0 %v9061
  %v10850 = vpop.f32.mrf.mxu0
  %v10851 = vadd.f32 %v10838, %v10850
  %v10852 = vpop.f32.mrf.mxu0
  %10853 = vdwg.mxu0
  %10854 = vmatpush.bf16.msra.mxu0 %v10269
  %10855 = vmatpush.bf16.msra.mxu0 %v10268
  %10856 = vmatpush.bf16.msra.mxu0 %v10267
  %10857 = vmatpush.bf16.msra.mxu0 %v10266
  %10858 = vmatpush.bf16.msra.mxu0 %v10265
  %10859 = vmatpush.bf16.msra.mxu0 %v10264
  %10860 = vmatpush.bf16.msra.mxu0 %v10263
  %10861 = vmatpush.bf16.msra.mxu0 %v10262
  %10862 = vmatmul.bf16.gmra.mxu0 %v9062
  %v10863 = vpop.f32.mrf.mxu0
  %v10864 = vadd.f32 %v10851, %v10863
  %v10865 = vpop.f32.mrf.mxu0
  %10866 = vdwg.mxu0
  %10867 = vmatpush.bf16.msra.mxu0 %v10277
  %10868 = vmatpush.bf16.msra.mxu0 %v10276
  %10869 = vmatpush.bf16.msra.mxu0 %v10275
  %10870 = vmatpush.bf16.msra.mxu0 %v10274
  %10871 = vmatpush.bf16.msra.mxu0 %v10273
  %10872 = vmatpush.bf16.msra.mxu0 %v10272
  %10873 = vmatpush.bf16.msra.mxu0 %v10271
  %10874 = vmatpush.bf16.msra.mxu0 %v10270
  %10875 = vmatmul.bf16.gmra.mxu0 %v9063
  %v10876 = vpop.f32.mrf.mxu0
  %v10877 = vadd.f32 %v10864, %v10876
  %v10878 = vpop.f32.mrf.mxu0
  %10879 = vdwg.mxu0
  %10880 = vmatpush.bf16.msra.mxu0 %v10285
  %10881 = vmatpush.bf16.msra.mxu0 %v10284
  %10882 = vmatpush.bf16.msra.mxu0 %v10283
  %10883 = vmatpush.bf16.msra.mxu0 %v10282
  %10884 = vmatpush.bf16.msra.mxu0 %v10281
  %10885 = vmatpush.bf16.msra.mxu0 %v10280
  %10886 = vmatpush.bf16.msra.mxu0 %v10279
  %10887 = vmatpush.bf16.msra.mxu0 %v10278
  %10888 = vmatmul.bf16.gmra.mxu0 %v9064
  %v10889 = vpop.f32.mrf.mxu0
  %v10890 = vadd.f32 %v10877, %v10889
  %v10891 = vpop.f32.mrf.mxu0
  %10892 = vdwg.mxu0
  %10893 = vmatpush.bf16.msra.mxu0 %v10293
  %10894 = vmatpush.bf16.msra.mxu0 %v10292
  %10895 = vmatpush.bf16.msra.mxu0 %v10291
  %10896 = vmatpush.bf16.msra.mxu0 %v10290
  %10897 = vmatpush.bf16.msra.mxu0 %v10289
  %10898 = vmatpush.bf16.msra.mxu0 %v10288
  %10899 = vmatpush.bf16.msra.mxu0 %v10287
  %10900 = vmatpush.bf16.msra.mxu0 %v10286
  %10901 = vmatmul.bf16.gmra.mxu0 %v9065
  %v10902 = vpop.f32.mrf.mxu0
  %v10903 = vadd.f32 %v10890, %v10902
  %v10904 = vpop.f32.mrf.mxu0
  %10905 = vdwg.mxu0
  %10906 = vmatpush.bf16.msra.mxu0 %v10301
  %10907 = vmatpush.bf16.msra.mxu0 %v10300
  %10908 = vmatpush.bf16.msra.mxu0 %v10299
  %10909 = vmatpush.bf16.msra.mxu0 %v10298
  %10910 = vmatpush.bf16.msra.mxu0 %v10297
  %10911 = vmatpush.bf16.msra.mxu0 %v10296
  %10912 = vmatpush.bf16.msra.mxu0 %v10295
  %10913 = vmatpush.bf16.msra.mxu0 %v10294
  %10914 = vmatmul.bf16.gmra.mxu0 %v9066
  %v10915 = vpop.f32.mrf.mxu0
  %v10916 = vadd.f32 %v10903, %v10915
  %v10917 = vpop.f32.mrf.mxu0
  %10918 = vdwg.mxu0
  %10919 = vmatpush.bf16.msra.mxu0 %v10309
  %10920 = vmatpush.bf16.msra.mxu0 %v10308
  %10921 = vmatpush.bf16.msra.mxu0 %v10307
  %10922 = vmatpush.bf16.msra.mxu0 %v10306
  %10923 = vmatpush.bf16.msra.mxu0 %v10305
  %10924 = vmatpush.bf16.msra.mxu0 %v10304
  %10925 = vmatpush.bf16.msra.mxu0 %v10303
  %10926 = vmatpush.bf16.msra.mxu0 %v10302
  %10927 = vmatmul.bf16.gmra.mxu0 %v9067
  %v10928 = vpop.f32.mrf.mxu0
  %v10929 = vadd.f32 %v10916, %v10928
  %v10930 = vpop.f32.mrf.mxu0
  %10931 = vdwg.mxu0
  %10932 = vmatpush.bf16.msra.mxu0 %v10317
  %10933 = vmatpush.bf16.msra.mxu0 %v10316
  %10934 = vmatpush.bf16.msra.mxu0 %v10315
  %10935 = vmatpush.bf16.msra.mxu0 %v10314
  %10936 = vmatpush.bf16.msra.mxu0 %v10313
  %10937 = vmatpush.bf16.msra.mxu0 %v10312
  %10938 = vmatpush.bf16.msra.mxu0 %v10311
  %10939 = vmatpush.bf16.msra.mxu0 %v10310
  %10940 = vmatmul.bf16.gmra.mxu0 %v9068
  %v10941 = vpop.f32.mrf.mxu0
  %v10942 = vadd.f32 %v10929, %v10941
  %v10943 = vpop.f32.mrf.mxu0
  %10944 = vdwg.mxu0
  %10945 = vmatpush.bf16.msra.mxu0 %v10325
  %10946 = vmatpush.bf16.msra.mxu0 %v10324
  %10947 = vmatpush.bf16.msra.mxu0 %v10323
  %10948 = vmatpush.bf16.msra.mxu0 %v10322
  %10949 = vmatpush.bf16.msra.mxu0 %v10321
  %10950 = vmatpush.bf16.msra.mxu0 %v10320
  %10951 = vmatpush.bf16.msra.mxu0 %v10319
  %10952 = vmatpush.bf16.msra.mxu0 %v10318
  %10953 = vmatmul.bf16.gmra.mxu0 %v9069
  %v10954 = vpop.f32.mrf.mxu0
  %v10955 = vadd.f32 %v10942, %v10954
  %v10956 = vpop.f32.mrf.mxu0
  %10957 = vdwg.mxu0
  %10958 = vmatpush.bf16.msra.mxu0 %v10333
  %10959 = vmatpush.bf16.msra.mxu0 %v10332
  %10960 = vmatpush.bf16.msra.mxu0 %v10331
  %10961 = vmatpush.bf16.msra.mxu0 %v10330
  %10962 = vmatpush.bf16.msra.mxu0 %v10329
  %10963 = vmatpush.bf16.msra.mxu0 %v10328
  %10964 = vmatpush.bf16.msra.mxu0 %v10327
  %10965 = vmatpush.bf16.msra.mxu0 %v10326
  %10966 = vmatmul.bf16.gmra.mxu0 %v9070
  %v10967 = vpop.f32.mrf.mxu0
  %v10968 = vadd.f32 %v10955, %v10967
  %v10969 = vpop.f32.mrf.mxu0
  %10970 = vdwg.mxu0
  %10971 = vmatpush.bf16.msra.mxu0 %v10341
  %10972 = vmatpush.bf16.msra.mxu0 %v10340
  %10973 = vmatpush.bf16.msra.mxu0 %v10339
  %10974 = vmatpush.bf16.msra.mxu0 %v10338
  %10975 = vmatpush.bf16.msra.mxu0 %v10337
  %10976 = vmatpush.bf16.msra.mxu0 %v10336
  %10977 = vmatpush.bf16.msra.mxu0 %v10335
  %10978 = vmatpush.bf16.msra.mxu0 %v10334
  %10979 = vmatmul.bf16.gmra.mxu0 %v9071
  %v10980 = vpop.f32.mrf.mxu0
  %v10981 = vadd.f32 %v10968, %v10980
  %v10982 = vpop.f32.mrf.mxu0
  %10983 = vdwg.mxu0
  %10984 = vmatpush.bf16.msra.mxu0 %v10349
  %10985 = vmatpush.bf16.msra.mxu0 %v10348
  %10986 = vmatpush.bf16.msra.mxu0 %v10347
  %10987 = vmatpush.bf16.msra.mxu0 %v10346
  %10988 = vmatpush.bf16.msra.mxu0 %v10345
  %10989 = vmatpush.bf16.msra.mxu0 %v10344
  %10990 = vmatpush.bf16.msra.mxu0 %v10343
  %10991 = vmatpush.bf16.msra.mxu0 %v10342
  %10992 = vmatmul.bf16.gmra.mxu0 %v9072
  %v10993 = vpop.f32.mrf.mxu0
  %v10994 = vadd.f32 %v10981, %v10993
  %v10995 = vpop.f32.mrf.mxu0
  %10996 = vdwg.mxu0
  %10997 = vmatpush.bf16.msra.mxu0 %v10357
  %10998 = vmatpush.bf16.msra.mxu0 %v10356
  %10999 = vmatpush.bf16.msra.mxu0 %v10355
  %11000 = vmatpush.bf16.msra.mxu0 %v10354
  %11001 = vmatpush.bf16.msra.mxu0 %v10353
  %11002 = vmatpush.bf16.msra.mxu0 %v10352
  %11003 = vmatpush.bf16.msra.mxu0 %v10351
  %11004 = vmatpush.bf16.msra.mxu0 %v10350
  %11005 = vmatmul.bf16.gmra.mxu0 %v9073
  %v11006 = vpop.f32.mrf.mxu0
  %v11007 = vadd.f32 %v10994, %v11006
  %v11008 = vpop.f32.mrf.mxu0
  %11009 = vdwg.mxu0
  %11010 = vmatpush.bf16.msra.mxu0 %v10365
  %11011 = vmatpush.bf16.msra.mxu0 %v10364
  %11012 = vmatpush.bf16.msra.mxu0 %v10363
  %11013 = vmatpush.bf16.msra.mxu0 %v10362
  %11014 = vmatpush.bf16.msra.mxu0 %v10361
  %11015 = vmatpush.bf16.msra.mxu0 %v10360
  %11016 = vmatpush.bf16.msra.mxu0 %v10359
  %11017 = vmatpush.bf16.msra.mxu0 %v10358
  %11018 = vmatmul.bf16.gmra.mxu0 %v9074
  %v11019 = vpop.f32.mrf.mxu0
  %v11020 = vadd.f32 %v11007, %v11019
  %v11021 = vpop.f32.mrf.mxu0
  %11022 = vdwg.mxu0
  %11023 = vmatpush.bf16.msra.mxu0 %v10373
  %11024 = vmatpush.bf16.msra.mxu0 %v10372
  %11025 = vmatpush.bf16.msra.mxu0 %v10371
  %11026 = vmatpush.bf16.msra.mxu0 %v10370
  %11027 = vmatpush.bf16.msra.mxu0 %v10369
  %11028 = vmatpush.bf16.msra.mxu0 %v10368
  %11029 = vmatpush.bf16.msra.mxu0 %v10367
  %11030 = vmatpush.bf16.msra.mxu0 %v10366
  %11031 = vmatmul.bf16.gmra.mxu0 %v9075
  %v11032 = vpop.f32.mrf.mxu0
  %v11033 = vadd.f32 %v11020, %v11032
  %v11034 = vpop.f32.mrf.mxu0
  %11035 = vdwg.mxu0
  %11036 = vmatpush.bf16.msra.mxu0 %v10381
  %11037 = vmatpush.bf16.msra.mxu0 %v10380
  %11038 = vmatpush.bf16.msra.mxu0 %v10379
  %11039 = vmatpush.bf16.msra.mxu0 %v10378
  %11040 = vmatpush.bf16.msra.mxu0 %v10377
  %11041 = vmatpush.bf16.msra.mxu0 %v10376
  %11042 = vmatpush.bf16.msra.mxu0 %v10375
  %11043 = vmatpush.bf16.msra.mxu0 %v10374
  %11044 = vmatmul.bf16.gmra.mxu0 %v9076
  %v11045 = vpop.f32.mrf.mxu0
  %v11046 = vadd.f32 %v11033, %v11045
  %v11047 = vpop.f32.mrf.mxu0
  %11048 = vdwg.mxu0
  %11049 = vmatpush.bf16.msra.mxu0 %v10389
  %11050 = vmatpush.bf16.msra.mxu0 %v10388
  %11051 = vmatpush.bf16.msra.mxu0 %v10387
  %11052 = vmatpush.bf16.msra.mxu0 %v10386
  %11053 = vmatpush.bf16.msra.mxu0 %v10385
  %11054 = vmatpush.bf16.msra.mxu0 %v10384
  %11055 = vmatpush.bf16.msra.mxu0 %v10383
  %11056 = vmatpush.bf16.msra.mxu0 %v10382
  %11057 = vmatmul.bf16.gmra.mxu0 %v9077
  %v11058 = vpop.f32.mrf.mxu0
  %v11059 = vadd.f32 %v11046, %v11058
  %v11060 = vpop.f32.mrf.mxu0
  %11061 = vdwg.mxu0
  %v11062 = vtanh.pop %v11059
  %v11063 = vpack.c.bf16 %v11062, %v11062
  %v11064 = vld [vmem:[%s9] sm:$0xf]
  %v11065 = vld [vmem:[%s9 + $0x4] sm:$0xf]
  %v11066 = vld [vmem:[%s9 + $0x8] sm:$0xf]
  %v11067 = vld [vmem:[%s9 + $0xc] sm:$0xf]
  %v11068 = vld [vmem:[%s9 + $0x10] sm:$0xf]
  %v11069 = vld [vmem:[%s9 + $0x14] sm:$0xf]
  %v11070 = vld [vmem:[%s9 + $0x18] sm:$0xf]
  %v11071 = vld [vmem:[%s9 + $0x1c] sm:$0xf]
  %v11072 = vld [vmem:[%s9 + $0x20] sm:$0xf]
  %v11073 = vld [vmem:[%s9 + $0x24] sm:$0xf]
  %v11074 = vld [vmem:[%s9 + $0x28] sm:$0xf]
  %v11075 = vld [vmem:[%s9 + $0x2c] sm:$0xf]
  %v11076 = vld [vmem:[%s9 + $0x30] sm:$0xf]
  %v11077 = vld [vmem:[%s9 + $0x34] sm:$0xf]
  %v11078 = vld [vmem:[%s9 + $0x38] sm:$0xf]
  %v11079 = vld [vmem:[%s9 + $0x3c] sm:$0xf]
  %v11080 = vld [vmem:[%s10] sm:$0x1]
  %v11082 = vperm.slane %v11080, 0
  %v11100 = vunpack.c.l.b16 %v11064
  %v11101 = vunpack.c.l.b16 %v11065
  %v11102 = vunpack.c.l.b16 %v11066
  %v11103 = vunpack.c.l.b16 %v11067
  %v11104 = vunpack.c.l.b16 %v11068
  %v11105 = vunpack.c.l.b16 %v11069
  %v11106 = vunpack.c.l.b16 %v11070
  %v11107 = vunpack.c.l.b16 %v11071
  %v11108 = vunpack.c.l.b16 %v11072
  %v11109 = vunpack.c.l.b16 %v11073
  %v11110 = vunpack.c.l.b16 %v11074
  %v11111 = vunpack.c.l.b16 %v11075
  %v11112 = vunpack.c.l.b16 %v11076
  %v11113 = vunpack.c.l.b16 %v11077
  %v11114 = vunpack.c.l.b16 %v11078
  %v11115 = vunpack.c.l.b16 %v11079
  %v11116 = vpack.c.b16 %v11101, %v11100
  %v11117 = vpack.c.b16 %v11103, %v11102
  %v11118 = vpack.c.b16 %v11105, %v11104
  %v11119 = vpack.c.b16 %v11107, %v11106
  %v11120 = vpack.c.b16 %v11109, %v11108
  %v11121 = vpack.c.b16 %v11111, %v11110
  %v11122 = vpack.c.b16 %v11113, %v11112
  %v11123 = vpack.c.b16 %v11115, %v11114
  %11132 = vmatpush.bf16.msra.mxu0 %v11123
  %11133 = vmatpush.bf16.msra.mxu0 %v11122
  %11134 = vmatpush.bf16.msra.mxu0 %v11121
  %11135 = vmatpush.bf16.msra.mxu0 %v11120
  %11136 = vmatpush.bf16.msra.mxu0 %v11119
  %11137 = vmatpush.bf16.msra.mxu0 %v11118
  %11138 = vmatpush.bf16.msra.mxu0 %v11117
  %11139 = vmatpush.bf16.msra.mxu0 %v11116
  %11140 = vmatmul.bf16.gmra.mxu0 %v11063
  %v11141 = vpop.f32.mrf.mxu0
  %v11142 = vadd.f32 %v11082, %v11141
  %v11143 = vpop.f32.mrf.mxu0
  %11144 = vdwg.mxu0
  %11145 = vst [vmem:[%s11] sm:$0xff] %v11142
  // Predicated region
  $region46: #{bilstm_nilm_forward.1} parent=0 // pred_check
    _
  $region47: #{bilstm_nilm_forward.1} parent=0 // pred_check_branch
    %11147 = sbr.rel (0) target = $region49
  $region48: #{bilstm_nilm_forward.1} parent=0 // pred_region
    _
  $region49: #{bilstm_nilm_forward.1} parent=0 // pred_fallthru
    _
  // Predicated region
  $region50: #{bilstm_nilm_forward.1} parent=0 // pred_check
    _
  $region51: #{bilstm_nilm_forward.1} parent=0 // pred_check_branch
    %11149 = sbr.rel (0) target = $region53
  $region52: #{bilstm_nilm_forward.1} parent=0 // pred_region
    _
  $region53: #{bilstm_nilm_forward.1} parent=0 // pred_fallthru
    _
  %11150 = vsyncmov [#allocation5]
  %s11151 = vpop.sfrf %11150
  %p11152 = scmp.eq.s32.totalorder %s11151, 0
  %p11153 = pneg %p11152
  %11155 = shalt.err (%p11153)
  %s11156 = scalar_lea.sflag [#allocation5], 1
  %11157 = vsyncmov %s11156
  %s11158 = vpop.sfrf %11157
  %p11159 = scmp.eq.s32.totalorder %s11158, 0
  %p11160 = pneg %p11159
  %11162 = shalt.err (%p11160)
  %s11163 = scalar_lea.sflag [#allocation5], 2
  %11164 = vsyncmov %s11163
  %s11165 = vpop.sfrf %11164
  %p11166 = scmp.eq.s32.totalorder %s11165, 0
  %p11167 = pneg %p11166
  %11169 = shalt.err (%p11167)

</llo_original>
